<compile_context>
chip_gen: v6e
topology: v6e:2x2x1
jax: 0.10.0
libtpu: 0.0.40
codegen_flags: <defaults>
</compile_context>

<pallas_src>
import jax
import jax.numpy as jnp
from jax.experimental import pallas as pl
from jax.experimental.pallas import tpu as pltpu


def _round_up(n: int, m: int) -> int:
    return ((n + m - 1) // m) * m


def _sublane_multiple(dtype) -> int:
    # Packed-tile sublane requirement: (8,128) f32, (16,128) bf16, (32,128) int8/fp8.
    return max(8, 32 // jnp.dtype(dtype).itemsize)


def highway_kernel(x_ref, w_ref, b_ref, o_ref):
    """x_ref: (tm, D) row tile. w_ref: (D, 2D) fused [Wt | Wh]. b_ref: (1, 2D)."""
    D = x_ref.shape[1]
    x = x_ref[...]                                   # native dtype straight into the MXU

    # Single fused projection: [T_lin | H_lin] = x @ [Wt | Wh] + [bt | bh]
    th = jnp.dot(x, w_ref[...], preferred_element_type=jnp.float32)
    th = th + b_ref[...].astype(jnp.float32)         # (1, 2D) broadcasts over rows

    t = jax.nn.sigmoid(th[:, :D])                    # f32 epilogue (EUP)
    h = jnp.maximum(th[:, D:], 0.0)                  # relu

    x_f32 = x.astype(jnp.float32)
    # t*h + (1-t)*x == t*(h - x) + x  -> one fewer VALU op per element.
    o_ref[...] = (t * (h - x_f32) + x_f32).astype(o_ref.dtype)


def fuse_highway_params(wt, bt, wh, bh):
    """Fuse the two projections ONCE, outside the per-forward hot path.

    wt/wh: (D, D) in (in, out) layout (transposed nn.Linear.weight); bt/bh: (D,).
    Returns w_fused (D, 2D) and b_fused (1, 2D).
    """
    w = jnp.concatenate([wt, wh], axis=1)
    b = jnp.concatenate([bt, bh], axis=0).reshape(1, -1)
    return w, b


def _vmem_bytes_estimate(tm, D, x_itemsize, w_itemsize, weight_bufs):
    x_tile = 2 * tm * D * x_itemsize                 # double-buffered input rows
    o_tile = 2 * tm * D * x_itemsize                 # double-buffered output rows
    w_blk = weight_bufs * (D * 2 * D + 2 * D) * w_itemsize
    temps = tm * 2 * D * 4 + 3 * tm * D * 4          # th + (t, h, x_f32) f32 temporaries
    return x_tile + o_tile + w_blk + temps


def highway_unit(x, w_fused, b_fused, *, tm_max=256):
    """Apply the highway block row-wise. x: [..., D]; w_fused: (D, 2D); b_fused: (1, 2D)."""
    orig_shape = x.shape
    D = orig_shape[-1]
    assert w_fused.shape == (D, 2 * D) and b_fused.shape == (1, 2 * D)
    x2d = x.reshape(-1, D)
    N = x2d.shape[0]

    # Balanced row tiles: same tile count as tm_max would give, but
    #  (a) no jnp.pad / out[:N] copies -- the cdiv grid lets Pallas mask the tail block
    #  (b) near-equal tiles so v7x's 2 TCs split the "parallel" axis evenly
    #      (N=300 -> 2 tiles of 152 rows, only 4 masked rows).
    sub = _sublane_multiple(x.dtype)
    tm_max = max(sub, _round_up(min(tm_max, _round_up(N, sub)), sub))
    num_tiles = pl.cdiv(N, tm_max)
    tm = _round_up(pl.cdiv(N, num_tiles), sub)
    grid_m = pl.cdiv(N, tm)

    cp_kwargs = dict(dimension_semantics=("parallel",))
    est = _vmem_bytes_estimate(tm, D, jnp.dtype(x.dtype).itemsize,
                               jnp.dtype(w_fused.dtype).itemsize, weight_bufs=1)
    if est > 12 * 1024 * 1024:                       # v5e default scoped VMEM is ~16 MiB
        try:
            cap = pltpu.get_tpu_info().vmem_capacity_bytes
        except Exception:
            cap = 64 * 1024 * 1024                   # conservative: v7x physical VMEM
        cp_kwargs["vmem_limit_bytes"] = int(min(est + (8 << 20), cap - (4 << 20)))
    # TODO(synk): for D beyond ~1.4K (f32) / ~2K (bf16), tile the K and 2D dims
    # with an f32 accumulator instead of keeping the fused (D, 2D) weight
    # resident (v7x-only 64 MiB VMEM trap); unnecessary at the Model's D=512.
    # TODO(synk): on v6e/v7x, pre-cast x / w_fused to bf16 (keep f32 accumulation)
    # for ~2x MXU rate and half the HBM traffic, if the 1e-3 tolerance still holds.

    def build_and_call(weight_pipeline_mode):
        wkw = {} if weight_pipeline_mode is None else dict(pipeline_mode=weight_pipeline_mode)
        return pl.pallas_call(
            highway_kernel,
            out_shape=jax.ShapeDtypeStruct((N, D), x.dtype),
            grid_spec=pltpu.PrefetchScalarGridSpec(
                num_scalar_prefetch=0,
                grid=(grid_m,),
                in_specs=[
                    pl.BlockSpec((tm, D), lambda i: (i, 0)),             # x rows (tiled)
                    pl.BlockSpec((D, 2 * D), lambda i: (0, 0), **wkw),   # fused [Wt | Wh]
                    pl.BlockSpec((1, 2 * D), lambda i: (0, 0), **wkw),   # fused [bt | bh]
                ],
                out_specs=pl.BlockSpec((tm, D), lambda i: (i, 0)),
            ),
            compiler_params=pltpu.CompilerParams(**cp_kwargs),
        )(x2d, w_fused, b_fused)

    try:
        # Grid-invariant weight/bias: a single VMEM buffer suffices (halves the
        # resident fused-weight footprint vs. the default double buffer).
        out = build_and_call(pl.Buffered(1))
    except Exception:
        # Fallback for Pallas versions that reject Buffered(1) on a top-level
        # pallas_call BlockSpec: default buffering is still correct, and the
        # grid-invariant index_map avoids re-DMAing the weight each step anyway.
        out = build_and_call(None)

    return out.reshape(orig_shape)


def _ref(x, wt, bt, wh, bh):
    t = jax.nn.sigmoid(x @ wt + bt)
    h = jnp.maximum(x @ wh + bh, 0.0)
    return t * h + (1.0 - t) * x


if __name__ == "__main__":
    key = jax.random.PRNGKey(0)
    # The Model's highway operates on [batch, 512]; 512 is lane-dense (4x128).
    # batch=300 exercises the balanced-tile path (2 tiles of 152 rows, 4 masked).
    batch, hidden = 300, 512

    k_x, k_wt, k_bt, k_wh, k_bh = jax.random.split(key, 5)
    bound = 1.0 / (hidden ** 0.5)                    # PyTorch nn.Linear default init range

    x = jax.random.normal(k_x, (batch, hidden), dtype=jnp.float32)
    # Stored as (in, out) so the kernel computes x @ W (== x @ W_pt^T).
    wt = jax.random.uniform(k_wt, (hidden, hidden), jnp.float32, -bound, bound)
    bt = jax.random.uniform(k_bt, (hidden,), jnp.float32, -bound, bound)
    wh = jax.random.uniform(k_wh, (hidden, hidden), jnp.float32, -bound, bound)
    bh = jax.random.uniform(k_bh, (hidden,), jnp.float32, -bound, bound)

    # Parameter fusion happens once, outside the per-forward hot path.
    w_fused, b_fused = fuse_highway_params(wt, bt, wh, bh)
    w_fused, b_fused = jax.block_until_ready((w_fused, b_fused))

    out = highway_unit(x, w_fused, b_fused, tm_max=256)
    jax.block_until_ready(out)

    ref = _ref(x, wt, bt, wh, bh)
    assert out.shape == ref.shape
    assert jnp.allclose(out, ref, atol=1e-3, rtol=1e-3), "mismatch vs JAX reference"

    print("KERNEL_OK")
</pallas_src>

<mosaic_0001>
module attributes {stable_mosaic.version = 11 : i64} {
  func.func @highway_kernel(%arg0: i32, %arg1: memref<152x512xf32, #tpu.memory_space<vmem>>, %arg2: memref<512x1024xf32, #tpu.memory_space<vmem>>, %arg3: memref<1x1024xf32, #tpu.memory_space<vmem>>, %arg4: memref<152x512xf32, #tpu.memory_space<vmem>>) attributes {dimension_semantics = [#tpu.dimension_semantics<parallel>], iteration_bounds = array<i64: 2>, scalar_prefetch = 0 : i64, scratch_operands = 0 : i64, tpu.core_type = #tpu.core_type<tc>, window_params = [{transform_indices = @transform_0, window_bounds = array<i64: 152, 512>}, {pipeline_mode = #tpu.pipeline_mode<synchronous>, transform_indices = @transform_1, window_bounds = array<i64: 512, 1024>}, {pipeline_mode = #tpu.pipeline_mode<synchronous>, transform_indices = @transform_2, window_bounds = array<i64: 1, 1024>}, {transform_indices = @transform_3, window_bounds = array<i64: 152, 512>}]} {
    %c0 = arith.constant 0 : index
    %c0_0 = arith.constant 0 : index
    %0 = vector.load %arg1[%c0, %c0_0] : memref<152x512xf32, #tpu.memory_space<vmem>>, vector<152x512xf32>
    %c0_1 = arith.constant 0 : index
    %c0_2 = arith.constant 0 : index
    %1 = vector.load %arg2[%c0_1, %c0_2] : memref<512x1024xf32, #tpu.memory_space<vmem>>, vector<512x1024xf32>
    %cst = arith.constant dense<0.000000e+00> : vector<152x1024xf32>
    %2 = tpu.matmul %0, %1, %cst {dimension_numbers = #tpu.dot_dimension_numbers<[1], [0], [0], [1], [0, 0, 1, 1], [], []>} : vector<152x512xf32>, vector<512x1024xf32>, vector<152x1024xf32> -> vector<152x1024xf32>
    %c0_3 = arith.constant 0 : index
    %c0_4 = arith.constant 0 : index
    %3 = vector.load %arg3[%c0_3, %c0_4] : memref<1x1024xf32, #tpu.memory_space<vmem>>, vector<1x1024xf32>
    %4 = vector.broadcast %3 : vector<1x1024xf32> to vector<152x1024xf32>
    %5 = arith.addf %2, %4 : vector<152x1024xf32>
    %6 = vector.extract_strided_slice %5 {offsets = [0, 0], sizes = [152, 512], strides = [1, 1]} : vector<152x1024xf32> to vector<152x512xf32>
    %7 = arith.negf %6 : vector<152x512xf32>
    %8 = math.exp %7 : vector<152x512xf32>
    %cst_5 = arith.constant 1.000000e+00 : f32
    %9 = vector.broadcast %cst_5 : f32 to vector<152x512xf32>
    %10 = arith.addf %9, %8 : vector<152x512xf32>
    %11 = arith.divf %9, %10 : vector<152x512xf32>
    %12 = vector.extract_strided_slice %5 {offsets = [0, 512], sizes = [152, 512], strides = [1, 1]} : vector<152x1024xf32> to vector<152x512xf32>
    %cst_6 = arith.constant 0.000000e+00 : f32
    %13 = vector.broadcast %cst_6 : f32 to vector<152x512xf32>
    %14 = arith.maximumf %12, %13 : vector<152x512xf32>
    %15 = arith.subf %14, %0 : vector<152x512xf32>
    %16 = arith.mulf %11, %15 : vector<152x512xf32>
    %17 = arith.addf %16, %0 : vector<152x512xf32>
    %c0_7 = arith.constant 0 : index
    %c0_8 = arith.constant 0 : index
    %18 = vector.load %arg4[%c0_7, %c0_8] : memref<152x512xf32, #tpu.memory_space<vmem>>, vector<152x512xf32>
    tpu.vector_store %arg4[%c0_7, %c0_8], %17 {strides = array<i32>} : memref<152x512xf32, #tpu.memory_space<vmem>>, vector<152x512xf32>,
    return
  }
  func.func @transform_0(%arg0: i32) -> (i32, i32) {
    %c0_i32 = arith.constant 0 : i32
    %c0_i32_0 = arith.constant 0 : i32
    return %arg0, %c0_i32 : i32, i32
  }
  func.func @transform_1(%arg0: i32) -> (i32, i32) {
    %c0_i32 = arith.constant 0 : i32
    %c0_i32_0 = arith.constant 0 : i32
    %c0_i32_1 = arith.constant 0 : i32
    return %c0_i32, %c0_i32_0 : i32, i32
  }
  func.func @transform_2(%arg0: i32) -> (i32, i32) {
    %c0_i32 = arith.constant 0 : i32
    %c0_i32_0 = arith.constant 0 : i32
    %c0_i32_1 = arith.constant 0 : i32
    return %c0_i32, %c0_i32_0 : i32, i32
  }
  func.func @transform_3(%arg0: i32) -> (i32, i32) {
    %c0_i32 = arith.constant 0 : i32
    %c0_i32_0 = arith.constant 0 : i32
    return %arg0, %c0_i32 : i32, i32
  }
}

module attributes {stable_mosaic.version = 11 : i64} {
  func.func @highway_kernel(%arg0: i32, %arg1: memref<152x512xf32, #tpu.memory_space<vmem>>, %arg2: memref<512x1024xf32, #tpu.memory_space<vmem>>, %arg3: memref<1x1024xf32, #tpu.memory_space<vmem>>, %arg4: memref<152x512xf32, #tpu.memory_space<vmem>>) attributes {dimension_semantics = [#tpu.dimension_semantics<parallel>], iteration_bounds = array<i64: 2>, scalar_prefetch = 0 : i64, scratch_operands = 0 : i64, tpu.core_type = #tpu.core_type<tc>, window_params = [{transform_indices = @transform_0, window_bounds = array<i64: 152, 512>}, {pipeline_mode = #tpu.pipeline_mode<synchronous>, transform_indices = @transform_1, window_bounds = array<i64: 512, 1024>}, {pipeline_mode = #tpu.pipeline_mode<synchronous>, transform_indices = @transform_2, window_bounds = array<i64: 1, 1024>}, {transform_indices = @transform_3, window_bounds = array<i64: 152, 512>}]} {
    %c0 = arith.constant 0 : index
    %c0_0 = arith.constant 0 : index
    %0 = vector.load %arg1[%c0, %c0_0] : memref<152x512xf32, #tpu.memory_space<vmem>>, vector<152x512xf32>
    %c0_1 = arith.constant 0 : index
    %c0_2 = arith.constant 0 : index
    %1 = vector.load %arg2[%c0_1, %c0_2] : memref<512x1024xf32, #tpu.memory_space<vmem>>, vector<512x1024xf32>
    %cst = arith.constant dense<0.000000e+00> : vector<152x1024xf32>
    %2 = tpu.matmul %0, %1, %cst {dimension_numbers = #tpu.dot_dimension_numbers<[1], [0], [0], [1], [0, 0, 1, 1], [], []>} : vector<152x512xf32>, vector<512x1024xf32>, vector<152x1024xf32> -> vector<152x1024xf32>
    %c0_3 = arith.constant 0 : index
    %c0_4 = arith.constant 0 : index
    %3 = vector.load %arg3[%c0_3, %c0_4] : memref<1x1024xf32, #tpu.memory_space<vmem>>, vector<1x1024xf32>
    %4 = vector.broadcast %3 : vector<1x1024xf32> to vector<152x1024xf32>
    %5 = arith.addf %2, %4 : vector<152x1024xf32>
    %6 = vector.extract_strided_slice %5 {offsets = [0, 0], sizes = [152, 512], strides = [1, 1]} : vector<152x1024xf32> to vector<152x512xf32>
    %7 = arith.negf %6 : vector<152x512xf32>
    %8 = math.exp %7 : vector<152x512xf32>
    %cst_5 = arith.constant 1.000000e+00 : f32
    %9 = vector.broadcast %cst_5 : f32 to vector<152x512xf32>
    %10 = arith.addf %9, %8 : vector<152x512xf32>
    %11 = arith.divf %9, %10 : vector<152x512xf32>
    %12 = vector.extract_strided_slice %5 {offsets = [0, 512], sizes = [152, 512], strides = [1, 1]} : vector<152x1024xf32> to vector<152x512xf32>
    %cst_6 = arith.constant 0.000000e+00 : f32
    %13 = vector.broadcast %cst_6 : f32 to vector<152x512xf32>
    %14 = arith.maximumf %12, %13 : vector<152x512xf32>
    %15 = arith.subf %14, %0 : vector<152x512xf32>
    %16 = arith.mulf %11, %15 : vector<152x512xf32>
    %17 = arith.addf %16, %0 : vector<152x512xf32>
    %c0_7 = arith.constant 0 : index
    %c0_8 = arith.constant 0 : index
    %18 = vector.load %arg4[%c0_7, %c0_8] : memref<152x512xf32, #tpu.memory_space<vmem>>, vector<152x512xf32>
    tpu.vector_store %arg4[%c0_7, %c0_8], %17 {strides = array<i32>} : memref<152x512xf32, #tpu.memory_space<vmem>>, vector<152x512xf32>,
    return
  }
  func.func @transform_0(%arg0: i32) -> (i32, i32) {
    %c0_i32 = arith.constant 0 : i32
    %c0_i32_0 = arith.constant 0 : i32
    return %arg0, %c0_i32 : i32, i32
  }
  func.func @transform_1(%arg0: i32) -> (i32, i32) {
    %c0_i32 = arith.constant 0 : i32
    %c0_i32_0 = arith.constant 0 : i32
    %c0_i32_1 = arith.constant 0 : i32
    return %c0_i32, %c0_i32_0 : i32, i32
  }
  func.func @transform_2(%arg0: i32) -> (i32, i32) {
    %c0_i32 = arith.constant 0 : i32
    %c0_i32_0 = arith.constant 0 : i32
    %c0_i32_1 = arith.constant 0 : i32
    return %c0_i32, %c0_i32_0 : i32, i32
  }
  func.func @transform_3(%arg0: i32) -> (i32, i32) {
    %c0_i32 = arith.constant 0 : i32
    %c0_i32_0 = arith.constant 0 : i32
    return %arg0, %c0_i32 : i32, i32
  }
}

</mosaic_0001>

<llo_original>
// kernel: tpu_custom_call.1
$region0: #{tpu_custom_call.1}
  #allocation0 [shape = 'u32[]', space=smem, size = 0x4, offset = 0x4, fixed_abs, tag = 'smem constant byte address 0x4 - core index']
  #allocation1 [shape = 'u32[144,128]{1,0:T(1,128)}', space=vmem, size = 0x12000, scoped, tag = 'internal scratch']
  %s0 = inlined_call_operand.hbm [shape: f32[300,512], index: 0, kind: input, shape index: {}]
  %s1 = inlined_call_operand.hbm [shape: f32[512,1024], index: 1, kind: input, shape index: {}]
  %s2 = inlined_call_operand.hbm [shape: f32[1,1024], index: 2, kind: input, shape index: {}]
  %s3 = inlined_call_operand.hbm [shape: f32[300,512], index: 3, kind: output, shape index: {}]
  %s4 = sld [smem:[#allocation0]]
  $region57: #{tpu_custom_call.1} parent=0
    _
  %s6 = ssub.s32 1, %s4
  %s7 = scalar_select 0, %s6, %s4
  $region1: #{tpu_custom_call.1} parent=0
    #allocation2 [shape = 'u8[622592]{0}', space=vmem, size = 0x98000, scoped, tag = 'input window, operand 0']
    #allocation3 [shape = 's32[2]{0}', space=sflag, size = 0x8, scoped, tag = 'scoped memory for tpu_custom_call.1']
    #allocation4 [shape = 's32[2]{0}', space=sflag, size = 0x8, scoped, tag = 'scoped memory for tpu_custom_call.1']
    #allocation5 [shape = 'u8[2097152]{0}', space=vmem, size = 0x200000, scoped, tag = 'input window, operand 1, single buffered']
    #allocation6 [shape = 's32[1]{0}', space=sflag, size = 0x4, scoped, tag = 'scoped memory for tpu_custom_call.1']
    #allocation7 [shape = 'u8[4096]{0}', space=vmem, size = 0x1000, scoped, tag = 'input window, operand 2, single buffered']
    #allocation8 [shape = 'u8[622592]{0}', space=vmem, size = 0x98000, scoped, tag = 'output window, operand 0']
    %8 = vsyncpa [#allocation3], 0
    %s9 = scalar_lea.sflag [#allocation3], 1
    %10 = vsyncpa %s9, 0
    %11 = vsyncpa [#allocation6], 0
    %12 = vsyncpa [#allocation4], 0
    %s13 = scalar_lea.sflag [#allocation4], 1
    %14 = vsyncpa %s13, 0
    loop: start=0, step=1, limit=4
    $region2: #{tpu_custom_call.1} parent=1 // loop_pre_header
      _
    $region3: #{tpu_custom_call.1} parent=1 // loop_header
      %s16 = sphi 0, %s20
      %p17 = scmp.ge.s32.totalorder %s16, 4
      %s26 = sphi 0, %s28
      %s29 = sphi 0, %s26
      %s30 = sphi 0, %s29
      %s46 = sphi 0, %s30
      %s50 = sphi 0, %s50
      %s52 = sphi 0, %s50
      %s53 = sphi 0, %s52
      %s67 = sphi 0, %s53
      %s71 = sphi 0, %s71
      %s73 = sphi 0, %s71
      %s74 = sphi 0, %s73
      %s88 = sphi 0, %s74
      %s94 = sphi 0, %s96
      %s97 = sphi 0, %s94
      %s98 = sphi 0, %s97
      %s114 = sphi 0, %s98
    $region4: #{tpu_custom_call.1} parent=1 // loop_header_branch
      %19 = sbr.rel (%p17) target = $region8
    $region5: #{tpu_custom_call.1} parent=1 // loop_body
      %s21 = ssub.s32 %s16, 1
      %s22 = ssub.s32 %s16, 2
      %s23 = sadd.s32 %s16, 1
      %s24 = ssub.s32 %s16, %s23
      %p25 = scmp.eq.s32.totalorder %s24, 0
      %s27 = sadd.s32 %s26, 1
      %s28 = scalar_select %p25, %s26, %s27
      %p31 = pneg %p25
      %p32 = scmp.eq.s32.totalorder %s16, 1
      %p33 = por %p31, %p32
      %p34 = scmp.ne.s32.totalorder %s26, %s29
      %p35 = scmp.eq.s32.totalorder %s16, 0
      %p36 = por %p34, %p35
      %p37 = scmp.ne.s32.totalorder %s26, %s29
      %p38 = scmp.eq.s32.totalorder %s21, 1
      %p39 = por %p37, %p38
      %p40 = scmp.ne.s32.totalorder %s29, %s30
      %p41 = scmp.eq.s32.totalorder %s21, 0
      %p42 = por %p40, %p41
      %p43 = scmp.ne.s32.totalorder %s29, %s30
      %p44 = scmp.eq.s32.totalorder %s22, 1
      %p45 = por %p43, %p44
      %p47 = scmp.ne.s32.totalorder %s30, %s46
      %p48 = scmp.eq.s32.totalorder %s22, 0
      %p49 = por %p47, %p48
      %s51 = sadd.s32 %s50, 1
      %p54 = scmp.eq.s32.totalorder %s16, 1
      %p55 = scmp.ne.s32.totalorder %s50, %s52
      %p56 = scmp.eq.s32.totalorder %s16, 0
      %p57 = por %p55, %p56
      %p58 = scmp.ne.s32.totalorder %s50, %s52
      %p59 = scmp.eq.s32.totalorder %s21, 1
      %p60 = por %p58, %p59
      %p61 = scmp.ne.s32.totalorder %s52, %s53
      %p62 = scmp.eq.s32.totalorder %s21, 0
      %p63 = por %p61, %p62
      %p64 = scmp.ne.s32.totalorder %s52, %s53
      %p65 = scmp.eq.s32.totalorder %s22, 1
      %p66 = por %p64, %p65
      %p68 = scmp.ne.s32.totalorder %s53, %s67
      %p69 = scmp.eq.s32.totalorder %s22, 0
      %p70 = por %p68, %p69
      %s72 = sadd.s32 %s71, 1
      %p75 = scmp.eq.s32.totalorder %s16, 1
      %p76 = scmp.ne.s32.totalorder %s71, %s73
      %p77 = scmp.eq.s32.totalorder %s16, 0
      %p78 = por %p76, %p77
      %p79 = scmp.ne.s32.totalorder %s71, %s73
      %p80 = scmp.eq.s32.totalorder %s21, 1
      %p81 = por %p79, %p80
      %p82 = scmp.ne.s32.totalorder %s73, %s74
      %p83 = scmp.eq.s32.totalorder %s21, 0
      %p84 = por %p82, %p83
      %p85 = scmp.ne.s32.totalorder %s73, %s74
      %p86 = scmp.eq.s32.totalorder %s22, 1
      %p87 = por %p85, %p86
      %p89 = scmp.ne.s32.totalorder %s74, %s88
      %p90 = scmp.eq.s32.totalorder %s22, 0
      %p91 = por %p89, %p90
      %s92 = ssub.s32 %s16, %s23
      %p93 = scmp.eq.s32.totalorder %s92, 0
      %s95 = sadd.s32 %s94, 1
      %s96 = scalar_select %p93, %s94, %s95
      %p99 = pneg %p93
      %p100 = scmp.eq.s32.totalorder %s16, 1
      %p101 = por %p99, %p100
      %p102 = scmp.ne.s32.totalorder %s94, %s97
      %p103 = scmp.eq.s32.totalorder %s16, 0
      %p104 = por %p102, %p103
      %p105 = scmp.ne.s32.totalorder %s94, %s97
      %p106 = scmp.eq.s32.totalorder %s21, 1
      %p107 = por %p105, %p106
      %p108 = scmp.ne.s32.totalorder %s97, %s98
      %p109 = scmp.eq.s32.totalorder %s21, 0
      %p110 = por %p108, %p109
      %p111 = scmp.ne.s32.totalorder %s97, %s98
      %p112 = scmp.eq.s32.totalorder %s22, 1
      %p113 = por %p111, %p112
      %p115 = scmp.ne.s32.totalorder %s98, %s114
      %p116 = scmp.eq.s32.totalorder %s22, 0
      %p117 = por %p115, %p116
      %p118 = scmp.le.s32.totalorder 1, %s16
      %p119 = scmp.lt.s32.totalorder %s16, 3
      %p120 = pnand %p118, %p119
      %p121 = pneg %p120
      // Predicated region
      $region9: #{tpu_custom_call.1} parent=5 // pred_check
        _
      $region10: #{tpu_custom_call.1} parent=5 // pred_check_branch
        %123 = sbr.rel (%p120) target = $region12
      $region11: #{tpu_custom_call.1} parent=5 // pred_region
        %s124 = ssub.s32 %s16, 1
        // Predicated region
        $region13: #{tpu_custom_call.1} parent=11 // pred_check
          %p125 = pneg %p63
        $region14: #{tpu_custom_call.1} parent=11 // pred_check_branch
          %127 = sbr.rel (%p125) target = $region16
        $region15: #{tpu_custom_call.1} parent=11 // pred_region
          %s129 = ssub.s32 65536, 65536
          %130 = vsyncadd [#allocation6], %s129
          %s131 = sshll.u32 [#allocation5], 4
          %s132 = int_to_ptr.vmem [resolvable:$true] %s131
          %137 = dma.hbm_to_vmem [thread:$0]  %s1, 65536, %s132, [#allocation6], 1024, 1024, 64
        $region16: #{tpu_custom_call.1} parent=11 // pred_fallthru
          _
        // Predicated region
        $region17: #{tpu_custom_call.1} parent=11 // pred_check
          %p138 = pneg %p84
        $region18: #{tpu_custom_call.1} parent=11 // pred_check_branch
          %140 = sbr.rel (%p138) target = $region20
        $region19: #{tpu_custom_call.1} parent=11 // pred_region
          %s142 = ssub.s32 128, 128
          %143 = vsyncadd [#allocation6], %s142
          %s145 = sshll.u32 [#allocation7], 4
          %s146 = int_to_ptr.vmem [resolvable:$true] %s145
          %148 = dma.hbm_to_vmem [thread:$0]  %s2, 128, %s146, [#allocation6]
        $region20: #{tpu_custom_call.1} parent=11 // pred_fallthru
          _
      $region12: #{tpu_custom_call.1} parent=5 // pred_fallthru
        _
      %p149 = scmp.lt.s32.totalorder %s16, 2
      // Predicated region
      $region21: #{tpu_custom_call.1} parent=5 // pred_check
        %p150 = pneg %p149
      $region22: #{tpu_custom_call.1} parent=5 // pred_check_branch
        %152 = sbr.rel (%p150) target = $region24
      $region23: #{tpu_custom_call.1} parent=5 // pred_region
        // Predicated region
        $region25: #{tpu_custom_call.1} parent=23 // pred_check
          %p153 = pneg %p36
        $region26: #{tpu_custom_call.1} parent=23 // pred_check_branch
          %155 = sbr.rel (%p153) target = $region28
        $region27: #{tpu_custom_call.1} parent=23 // pred_region
          %s156 = sand.u32 %s26, 1
          %s157 = scalar_lea.sflag [#allocation3], %s156
          %s158 = sand.u32 %s26, 1
          %s159 = smul.addr %s158, 608
          %s160 = scalar_lea.vmem [#allocation2], %s159
          %s161 = smul.u32 19, %s16
          %s163 = ssub.s32 9728, 9728
          %164 = vsyncadd %s157, %s163
          %s165 = smul.addr %s161, 4
          %s166 = smul.addr %s165, 128
          %s167 = scalar_lea.hbm %s0, %s166
          %s168 = sshll.u32 %s160, 4
          %s169 = int_to_ptr.vmem [resolvable:$true] %s168
          %174 = dma.hbm_to_vmem [thread:$0]  %s167, 9728, %s169, %s157, 512, 512, 32
        $region28: #{tpu_custom_call.1} parent=23 // pred_fallthru
          _
      $region24: #{tpu_custom_call.1} parent=5 // pred_fallthru
        _
      %p175 = scmp.le.s32.totalorder 1, %s16
      %p176 = scmp.lt.s32.totalorder %s16, 3
      %p177 = pnand %p175, %p176
      %p178 = pneg %p177
      // Predicated region
      $region29: #{tpu_custom_call.1} parent=5 // pred_check
        _
      $region30: #{tpu_custom_call.1} parent=5 // pred_check_branch
        %180 = sbr.rel (%p177) target = $region32
      $region31: #{tpu_custom_call.1} parent=5 // pred_region
        %s181 = ssub.s32 %s16, 1
        %s182 = sand.u32 %s29, 1
        %s183 = scalar_lea.sflag [#allocation3], %s182
        %s184 = sand.u32 %s29, 1
        %s185 = smul.addr %s184, 608
        %s186 = scalar_lea.vmem [#allocation2], %s185
        // Predicated region
        $region33: #{tpu_custom_call.1} parent=31 // pred_check
          %p187 = pneg %p42
        $region34: #{tpu_custom_call.1} parent=31 // pred_check_branch
          %189 = sbr.rel (%p187) target = $region36
        $region35: #{tpu_custom_call.1} parent=31 // pred_region
          %190 = dma.done %s183, 9728
        $region36: #{tpu_custom_call.1} parent=31 // pred_fallthru
          _
        // Predicated region
        $region37: #{tpu_custom_call.1} parent=31 // pred_check
          %p191 = pneg %p63
        $region38: #{tpu_custom_call.1} parent=31 // pred_check_branch
          %193 = sbr.rel (%p191) target = $region40
        $region39: #{tpu_custom_call.1} parent=31 // pred_region
          %194 = dma.done [#allocation6], 65536
        $region40: #{tpu_custom_call.1} parent=31 // pred_fallthru
          _
        // Predicated region
        $region41: #{tpu_custom_call.1} parent=31 // pred_check
          %p195 = pneg %p84
        $region42: #{tpu_custom_call.1} parent=31 // pred_check_branch
          %197 = sbr.rel (%p195) target = $region44
        $region43: #{tpu_custom_call.1} parent=31 // pred_region
          %198 = dma.done [#allocation6], 128
        $region44: #{tpu_custom_call.1} parent=31 // pred_fallthru
          _
        %s199 = sand.u32 %s29, 1
        %s200 = scalar_lea.sflag [#allocation3], %s199
        %s201 = sand.u32 %s29, 1
        %s202 = smul.addr %s201, 608
        %s203 = scalar_lea.vmem [#allocation2], %s202
        %p204 = pneg %p42
        %p205 = pneg %p39
        %p206 = pneg %p63
        %p207 = pneg %p60
        %p208 = pneg %p84
        %p209 = pneg %p81
        %p210 = pneg %p110
        %p211 = pneg %p107
        %s212 = sand.u32 %s97, 1
        %s213 = scalar_lea.sflag [#allocation4], %s212
        %s214 = sand.u32 %s97, 1
        %s215 = smul.addr %s214, 608
        %s216 = scalar_lea.vmem [#allocation8], %s215
        %s217 = smul.u32 19, %s21
        %s218 = smul.u32 19, %s21
        %v219 = vld [vmem:[%s186] sm:$0xff]
        %v220 = vld [vmem:[%s186 + $0x8] sm:$0xff]
        %v221 = vld [vmem:[%s186 + $0x10] sm:$0xff]
        %v222 = vld [vmem:[%s186 + $0x18] sm:$0xff]
        %v223 = vld [vmem:[%s186 + $0x20] sm:$0xff]
        %v224 = vld [vmem:[%s186 + $0x28] sm:$0xff]
        %v225 = vld [vmem:[%s186 + $0x30] sm:$0xff]
        %v226 = vld [vmem:[%s186 + $0x38] sm:$0xff]
        %v227 = vld [vmem:[%s186 + $0x40] sm:$0xff]
        %v228 = vld [vmem:[%s186 + $0x48] sm:$0xff]
        %v229 = vld [vmem:[%s186 + $0x50] sm:$0xff]
        %v230 = vld [vmem:[%s186 + $0x58] sm:$0xff]
        %v231 = vld [vmem:[%s186 + $0x60] sm:$0xff]
        %v232 = vld [vmem:[%s186 + $0x68] sm:$0xff]
        %v233 = vld [vmem:[%s186 + $0x70] sm:$0xff]
        %v234 = vld [vmem:[%s186 + $0x78] sm:$0xff]
        %v235 = vld [vmem:[%s186 + $0x80] sm:$0xff]
        %v236 = vld [vmem:[%s186 + $0x88] sm:$0xff]
        %v237 = vld [vmem:[%s186 + $0x90] sm:$0xff]
        %v238 = vld [vmem:[%s186 + $0x98] sm:$0xff]
        %v239 = vld [vmem:[%s186 + $0xa0] sm:$0xff]
        %v240 = vld [vmem:[%s186 + $0xa8] sm:$0xff]
        %v241 = vld [vmem:[%s186 + $0xb0] sm:$0xff]
        %v242 = vld [vmem:[%s186 + $0xb8] sm:$0xff]
        %v243 = vld [vmem:[%s186 + $0xc0] sm:$0xff]
        %v244 = vld [vmem:[%s186 + $0xc8] sm:$0xff]
        %v245 = vld [vmem:[%s186 + $0xd0] sm:$0xff]
        %v246 = vld [vmem:[%s186 + $0xd8] sm:$0xff]
        %v247 = vld [vmem:[%s186 + $0xe0] sm:$0xff]
        %v248 = vld [vmem:[%s186 + $0xe8] sm:$0xff]
        %v249 = vld [vmem:[%s186 + $0xf0] sm:$0xff]
        %v250 = vld [vmem:[%s186 + $0xf8] sm:$0xff]
        %v251 = vld [vmem:[%s186 + $0x100] sm:$0xff]
        %v252 = vld [vmem:[%s186 + $0x108] sm:$0xff]
        %v253 = vld [vmem:[%s186 + $0x110] sm:$0xff]
        %v254 = vld [vmem:[%s186 + $0x118] sm:$0xff]
        %v255 = vld [vmem:[%s186 + $0x120] sm:$0xff]
        %v256 = vld [vmem:[%s186 + $0x128] sm:$0xff]
        %v257 = vld [vmem:[%s186 + $0x130] sm:$0xff]
        %v258 = vld [vmem:[%s186 + $0x138] sm:$0xff]
        %v259 = vld [vmem:[%s186 + $0x140] sm:$0xff]
        %v260 = vld [vmem:[%s186 + $0x148] sm:$0xff]
        %v261 = vld [vmem:[%s186 + $0x150] sm:$0xff]
        %v262 = vld [vmem:[%s186 + $0x158] sm:$0xff]
        %v263 = vld [vmem:[%s186 + $0x160] sm:$0xff]
        %v264 = vld [vmem:[%s186 + $0x168] sm:$0xff]
        %v265 = vld [vmem:[%s186 + $0x170] sm:$0xff]
        %v266 = vld [vmem:[%s186 + $0x178] sm:$0xff]
        %v267 = vld [vmem:[%s186 + $0x180] sm:$0xff]
        %v268 = vld [vmem:[%s186 + $0x188] sm:$0xff]
        %v269 = vld [vmem:[%s186 + $0x190] sm:$0xff]
        %v270 = vld [vmem:[%s186 + $0x198] sm:$0xff]
        %v271 = vld [vmem:[%s186 + $0x1a0] sm:$0xff]
        %v272 = vld [vmem:[%s186 + $0x1a8] sm:$0xff]
        %v273 = vld [vmem:[%s186 + $0x1b0] sm:$0xff]
        %v274 = vld [vmem:[%s186 + $0x1b8] sm:$0xff]
        %v275 = vld [vmem:[%s186 + $0x1c0] sm:$0xff]
        %v276 = vld [vmem:[%s186 + $0x1c8] sm:$0xff]
        %v277 = vld [vmem:[%s186 + $0x1d0] sm:$0xff]
        %v278 = vld [vmem:[%s186 + $0x1d8] sm:$0xff]
        %v279 = vld [vmem:[%s186 + $0x1e0] sm:$0xff]
        %v280 = vld [vmem:[%s186 + $0x1e8] sm:$0xff]
        %v281 = vld [vmem:[%s186 + $0x1f0] sm:$0xff]
        %v282 = vld [vmem:[%s186 + $0x1f8] sm:$0xff]
        %v283 = vld [vmem:[%s186 + $0x200] sm:$0xff]
        %v284 = vld [vmem:[%s186 + $0x208] sm:$0xff]
        %v285 = vld [vmem:[%s186 + $0x210] sm:$0xff]
        %v286 = vld [vmem:[%s186 + $0x218] sm:$0xff]
        %v287 = vld [vmem:[%s186 + $0x220] sm:$0xff]
        %v288 = vld [vmem:[%s186 + $0x228] sm:$0xff]
        %v289 = vld [vmem:[%s186 + $0x230] sm:$0xff]
        %v290 = vld [vmem:[%s186 + $0x238] sm:$0xff]
        %v291 = vld [vmem:[%s186 + $0x240] sm:$0xff]
        %v292 = vld [vmem:[%s186 + $0x248] sm:$0xff]
        %v293 = vld [vmem:[%s186 + $0x250] sm:$0xff]
        %v294 = vld [vmem:[%s186 + $0x258] sm:$0xff]
        %v295 = vld [vmem:[#allocation5] sm:$0xff]
        %v296 = vld [vmem:[#allocation5 + $0x8] sm:$0xff]
        %v297 = vld [vmem:[#allocation5 + $0x10] sm:$0xff]
        %v298 = vld [vmem:[#allocation5 + $0x18] sm:$0xff]
        %v299 = vld [vmem:[#allocation5 + $0x20] sm:$0xff]
        %v300 = vld [vmem:[#allocation5 + $0x28] sm:$0xff]
        %v301 = vld [vmem:[#allocation5 + $0x30] sm:$0xff]
        %v302 = vld [vmem:[#allocation5 + $0x38] sm:$0xff]
        %v303 = vld [vmem:[#allocation5 + $0x40] sm:$0xff]
        %v304 = vld [vmem:[#allocation5 + $0x48] sm:$0xff]
        %v305 = vld [vmem:[#allocation5 + $0x50] sm:$0xff]
        %v306 = vld [vmem:[#allocation5 + $0x58] sm:$0xff]
        %v307 = vld [vmem:[#allocation5 + $0x60] sm:$0xff]
        %v308 = vld [vmem:[#allocation5 + $0x68] sm:$0xff]
        %v309 = vld [vmem:[#allocation5 + $0x70] sm:$0xff]
        %v310 = vld [vmem:[#allocation5 + $0x78] sm:$0xff]
        %v311 = vld [vmem:[#allocation5 + $0x80] sm:$0xff]
        %v312 = vld [vmem:[#allocation5 + $0x88] sm:$0xff]
        %v313 = vld [vmem:[#allocation5 + $0x90] sm:$0xff]
        %v314 = vld [vmem:[#allocation5 + $0x98] sm:$0xff]
        %v315 = vld [vmem:[#allocation5 + $0xa0] sm:$0xff]
        %v316 = vld [vmem:[#allocation5 + $0xa8] sm:$0xff]
        %v317 = vld [vmem:[#allocation5 + $0xb0] sm:$0xff]
        %v318 = vld [vmem:[#allocation5 + $0xb8] sm:$0xff]
        %v319 = vld [vmem:[#allocation5 + $0xc0] sm:$0xff]
        %v320 = vld [vmem:[#allocation5 + $0xc8] sm:$0xff]
        %v321 = vld [vmem:[#allocation5 + $0xd0] sm:$0xff]
        %v322 = vld [vmem:[#allocation5 + $0xd8] sm:$0xff]
        %v323 = vld [vmem:[#allocation5 + $0xe0] sm:$0xff]
        %v324 = vld [vmem:[#allocation5 + $0xe8] sm:$0xff]
        %v325 = vld [vmem:[#allocation5 + $0xf0] sm:$0xff]
        %v326 = vld [vmem:[#allocation5 + $0xf8] sm:$0xff]
        %v327 = vld [vmem:[#allocation5 + $0x100] sm:$0xff]
        %v328 = vld [vmem:[#allocation5 + $0x108] sm:$0xff]
        %v329 = vld [vmem:[#allocation5 + $0x110] sm:$0xff]
        %v330 = vld [vmem:[#allocation5 + $0x118] sm:$0xff]
        %v331 = vld [vmem:[#allocation5 + $0x120] sm:$0xff]
        %v332 = vld [vmem:[#allocation5 + $0x128] sm:$0xff]
        %v333 = vld [vmem:[#allocation5 + $0x130] sm:$0xff]
        %v334 = vld [vmem:[#allocation5 + $0x138] sm:$0xff]
        %v335 = vld [vmem:[#allocation5 + $0x140] sm:$0xff]
        %v336 = vld [vmem:[#allocation5 + $0x148] sm:$0xff]
        %v337 = vld [vmem:[#allocation5 + $0x150] sm:$0xff]
        %v338 = vld [vmem:[#allocation5 + $0x158] sm:$0xff]
        %v339 = vld [vmem:[#allocation5 + $0x160] sm:$0xff]
        %v340 = vld [vmem:[#allocation5 + $0x168] sm:$0xff]
        %v341 = vld [vmem:[#allocation5 + $0x170] sm:$0xff]
        %v342 = vld [vmem:[#allocation5 + $0x178] sm:$0xff]
        %v343 = vld [vmem:[#allocation5 + $0x180] sm:$0xff]
        %v344 = vld [vmem:[#allocation5 + $0x188] sm:$0xff]
        %v345 = vld [vmem:[#allocation5 + $0x190] sm:$0xff]
        %v346 = vld [vmem:[#allocation5 + $0x198] sm:$0xff]
        %v347 = vld [vmem:[#allocation5 + $0x1a0] sm:$0xff]
        %v348 = vld [vmem:[#allocation5 + $0x1a8] sm:$0xff]
        %v349 = vld [vmem:[#allocation5 + $0x1b0] sm:$0xff]
        %v350 = vld [vmem:[#allocation5 + $0x1b8] sm:$0xff]
        %v351 = vld [vmem:[#allocation5 + $0x1c0] sm:$0xff]
        %v352 = vld [vmem:[#allocation5 + $0x1c8] sm:$0xff]
        %v353 = vld [vmem:[#allocation5 + $0x1d0] sm:$0xff]
        %v354 = vld [vmem:[#allocation5 + $0x1d8] sm:$0xff]
        %v355 = vld [vmem:[#allocation5 + $0x1e0] sm:$0xff]
        %v356 = vld [vmem:[#allocation5 + $0x1e8] sm:$0xff]
        %v357 = vld [vmem:[#allocation5 + $0x1f0] sm:$0xff]
        %v358 = vld [vmem:[#allocation5 + $0x1f8] sm:$0xff]
        %v359 = vld [vmem:[#allocation5 + $0x200] sm:$0xff]
        %v360 = vld [vmem:[#allocation5 + $0x208] sm:$0xff]
        %v361 = vld [vmem:[#allocation5 + $0x210] sm:$0xff]
        %v362 = vld [vmem:[#allocation5 + $0x218] sm:$0xff]
        %v363 = vld [vmem:[#allocation5 + $0x220] sm:$0xff]
        %v364 = vld [vmem:[#allocation5 + $0x228] sm:$0xff]
        %v365 = vld [vmem:[#allocation5 + $0x230] sm:$0xff]
        %v366 = vld [vmem:[#allocation5 + $0x238] sm:$0xff]
        %v367 = vld [vmem:[#allocation5 + $0x240] sm:$0xff]
        %v368 = vld [vmem:[#allocation5 + $0x248] sm:$0xff]
        %v369 = vld [vmem:[#allocation5 + $0x250] sm:$0xff]
        %v370 = vld [vmem:[#allocation5 + $0x258] sm:$0xff]
        %v371 = vld [vmem:[#allocation5 + $0x260] sm:$0xff]
        %v372 = vld [vmem:[#allocation5 + $0x268] sm:$0xff]
        %v373 = vld [vmem:[#allocation5 + $0x270] sm:$0xff]
        %v374 = vld [vmem:[#allocation5 + $0x278] sm:$0xff]
        %v375 = vld [vmem:[#allocation5 + $0x280] sm:$0xff]
        %v376 = vld [vmem:[#allocation5 + $0x288] sm:$0xff]
        %v377 = vld [vmem:[#allocation5 + $0x290] sm:$0xff]
        %v378 = vld [vmem:[#allocation5 + $0x298] sm:$0xff]
        %v379 = vld [vmem:[#allocation5 + $0x2a0] sm:$0xff]
        %v380 = vld [vmem:[#allocation5 + $0x2a8] sm:$0xff]
        %v381 = vld [vmem:[#allocation5 + $0x2b0] sm:$0xff]
        %v382 = vld [vmem:[#allocation5 + $0x2b8] sm:$0xff]
        %v383 = vld [vmem:[#allocation5 + $0x2c0] sm:$0xff]
        %v384 = vld [vmem:[#allocation5 + $0x2c8] sm:$0xff]
        %v385 = vld [vmem:[#allocation5 + $0x2d0] sm:$0xff]
        %v386 = vld [vmem:[#allocation5 + $0x2d8] sm:$0xff]
        %v387 = vld [vmem:[#allocation5 + $0x2e0] sm:$0xff]
        %v388 = vld [vmem:[#allocation5 + $0x2e8] sm:$0xff]
        %v389 = vld [vmem:[#allocation5 + $0x2f0] sm:$0xff]
        %v390 = vld [vmem:[#allocation5 + $0x2f8] sm:$0xff]
        %v391 = vld [vmem:[#allocation5 + $0x300] sm:$0xff]
        %v392 = vld [vmem:[#allocation5 + $0x308] sm:$0xff]
        %v393 = vld [vmem:[#allocation5 + $0x310] sm:$0xff]
        %v394 = vld [vmem:[#allocation5 + $0x318] sm:$0xff]
        %v395 = vld [vmem:[#allocation5 + $0x320] sm:$0xff]
        %v396 = vld [vmem:[#allocation5 + $0x328] sm:$0xff]
        %v397 = vld [vmem:[#allocation5 + $0x330] sm:$0xff]
        %v398 = vld [vmem:[#allocation5 + $0x338] sm:$0xff]
        %v399 = vld [vmem:[#allocation5 + $0x340] sm:$0xff]
        %v400 = vld [vmem:[#allocation5 + $0x348] sm:$0xff]
        %v401 = vld [vmem:[#allocation5 + $0x350] sm:$0xff]
        %v402 = vld [vmem:[#allocation5 + $0x358] sm:$0xff]
        %v403 = vld [vmem:[#allocation5 + $0x360] sm:$0xff]
        %v404 = vld [vmem:[#allocation5 + $0x368] sm:$0xff]
        %v405 = vld [vmem:[#allocation5 + $0x370] sm:$0xff]
        %v406 = vld [vmem:[#allocation5 + $0x378] sm:$0xff]
        %v407 = vld [vmem:[#allocation5 + $0x380] sm:$0xff]
        %v408 = vld [vmem:[#allocation5 + $0x388] sm:$0xff]
        %v409 = vld [vmem:[#allocation5 + $0x390] sm:$0xff]
        %v410 = vld [vmem:[#allocation5 + $0x398] sm:$0xff]
        %v411 = vld [vmem:[#allocation5 + $0x3a0] sm:$0xff]
        %v412 = vld [vmem:[#allocation5 + $0x3a8] sm:$0xff]
        %v413 = vld [vmem:[#allocation5 + $0x3b0] sm:$0xff]
        %v414 = vld [vmem:[#allocation5 + $0x3b8] sm:$0xff]
        %v415 = vld [vmem:[#allocation5 + $0x3c0] sm:$0xff]
        %v416 = vld [vmem:[#allocation5 + $0x3c8] sm:$0xff]
        %v417 = vld [vmem:[#allocation5 + $0x3d0] sm:$0xff]
        %v418 = vld [vmem:[#allocation5 + $0x3d8] sm:$0xff]
        %v419 = vld [vmem:[#allocation5 + $0x3e0] sm:$0xff]
        %v420 = vld [vmem:[#allocation5 + $0x3e8] sm:$0xff]
        %v421 = vld [vmem:[#allocation5 + $0x3f0] sm:$0xff]
        %v422 = vld [vmem:[#allocation5 + $0x3f8] sm:$0xff]
        %v423 = vld [vmem:[#allocation5 + $0x400] sm:$0xff]
        %v424 = vld [vmem:[#allocation5 + $0x408] sm:$0xff]
        %v425 = vld [vmem:[#allocation5 + $0x410] sm:$0xff]
        %v426 = vld [vmem:[#allocation5 + $0x418] sm:$0xff]
        %v427 = vld [vmem:[#allocation5 + $0x420] sm:$0xff]
        %v428 = vld [vmem:[#allocation5 + $0x428] sm:$0xff]
        %v429 = vld [vmem:[#allocation5 + $0x430] sm:$0xff]
        %v430 = vld [vmem:[#allocation5 + $0x438] sm:$0xff]
        %v431 = vld [vmem:[#allocation5 + $0x440] sm:$0xff]
        %v432 = vld [vmem:[#allocation5 + $0x448] sm:$0xff]
        %v433 = vld [vmem:[#allocation5 + $0x450] sm:$0xff]
        %v434 = vld [vmem:[#allocation5 + $0x458] sm:$0xff]
        %v435 = vld [vmem:[#allocation5 + $0x460] sm:$0xff]
        %v436 = vld [vmem:[#allocation5 + $0x468] sm:$0xff]
        %v437 = vld [vmem:[#allocation5 + $0x470] sm:$0xff]
        %v438 = vld [vmem:[#allocation5 + $0x478] sm:$0xff]
        %v439 = vld [vmem:[#allocation5 + $0x480] sm:$0xff]
        %v440 = vld [vmem:[#allocation5 + $0x488] sm:$0xff]
        %v441 = vld [vmem:[#allocation5 + $0x490] sm:$0xff]
        %v442 = vld [vmem:[#allocation5 + $0x498] sm:$0xff]
        %v443 = vld [vmem:[#allocation5 + $0x4a0] sm:$0xff]
        %v444 = vld [vmem:[#allocation5 + $0x4a8] sm:$0xff]
        %v445 = vld [vmem:[#allocation5 + $0x4b0] sm:$0xff]
        %v446 = vld [vmem:[#allocation5 + $0x4b8] sm:$0xff]
        %v447 = vld [vmem:[#allocation5 + $0x4c0] sm:$0xff]
        %v448 = vld [vmem:[#allocation5 + $0x4c8] sm:$0xff]
        %v449 = vld [vmem:[#allocation5 + $0x4d0] sm:$0xff]
        %v450 = vld [vmem:[#allocation5 + $0x4d8] sm:$0xff]
        %v451 = vld [vmem:[#allocation5 + $0x4e0] sm:$0xff]
        %v452 = vld [vmem:[#allocation5 + $0x4e8] sm:$0xff]
        %v453 = vld [vmem:[#allocation5 + $0x4f0] sm:$0xff]
        %v454 = vld [vmem:[#allocation5 + $0x4f8] sm:$0xff]
        %v455 = vld [vmem:[#allocation5 + $0x500] sm:$0xff]
        %v456 = vld [vmem:[#allocation5 + $0x508] sm:$0xff]
        %v457 = vld [vmem:[#allocation5 + $0x510] sm:$0xff]
        %v458 = vld [vmem:[#allocation5 + $0x518] sm:$0xff]
        %v459 = vld [vmem:[#allocation5 + $0x520] sm:$0xff]
        %v460 = vld [vmem:[#allocation5 + $0x528] sm:$0xff]
        %v461 = vld [vmem:[#allocation5 + $0x530] sm:$0xff]
        %v462 = vld [vmem:[#allocation5 + $0x538] sm:$0xff]
        %v463 = vld [vmem:[#allocation5 + $0x540] sm:$0xff]
        %v464 = vld [vmem:[#allocation5 + $0x548] sm:$0xff]
        %v465 = vld [vmem:[#allocation5 + $0x550] sm:$0xff]
        %v466 = vld [vmem:[#allocation5 + $0x558] sm:$0xff]
        %v467 = vld [vmem:[#allocation5 + $0x560] sm:$0xff]
        %v468 = vld [vmem:[#allocation5 + $0x568] sm:$0xff]
        %v469 = vld [vmem:[#allocation5 + $0x570] sm:$0xff]
        %v470 = vld [vmem:[#allocation5 + $0x578] sm:$0xff]
        %v471 = vld [vmem:[#allocation5 + $0x580] sm:$0xff]
        %v472 = vld [vmem:[#allocation5 + $0x588] sm:$0xff]
        %v473 = vld [vmem:[#allocation5 + $0x590] sm:$0xff]
        %v474 = vld [vmem:[#allocation5 + $0x598] sm:$0xff]
        %v475 = vld [vmem:[#allocation5 + $0x5a0] sm:$0xff]
        %v476 = vld [vmem:[#allocation5 + $0x5a8] sm:$0xff]
        %v477 = vld [vmem:[#allocation5 + $0x5b0] sm:$0xff]
        %v478 = vld [vmem:[#allocation5 + $0x5b8] sm:$0xff]
        %v479 = vld [vmem:[#allocation5 + $0x5c0] sm:$0xff]
        %v480 = vld [vmem:[#allocation5 + $0x5c8] sm:$0xff]
        %v481 = vld [vmem:[#allocation5 + $0x5d0] sm:$0xff]
        %v482 = vld [vmem:[#allocation5 + $0x5d8] sm:$0xff]
        %v483 = vld [vmem:[#allocation5 + $0x5e0] sm:$0xff]
        %v484 = vld [vmem:[#allocation5 + $0x5e8] sm:$0xff]
        %v485 = vld [vmem:[#allocation5 + $0x5f0] sm:$0xff]
        %v486 = vld [vmem:[#allocation5 + $0x5f8] sm:$0xff]
        %v487 = vld [vmem:[#allocation5 + $0x600] sm:$0xff]
        %v488 = vld [vmem:[#allocation5 + $0x608] sm:$0xff]
        %v489 = vld [vmem:[#allocation5 + $0x610] sm:$0xff]
        %v490 = vld [vmem:[#allocation5 + $0x618] sm:$0xff]
        %v491 = vld [vmem:[#allocation5 + $0x620] sm:$0xff]
        %v492 = vld [vmem:[#allocation5 + $0x628] sm:$0xff]
        %v493 = vld [vmem:[#allocation5 + $0x630] sm:$0xff]
        %v494 = vld [vmem:[#allocation5 + $0x638] sm:$0xff]
        %v495 = vld [vmem:[#allocation5 + $0x640] sm:$0xff]
        %v496 = vld [vmem:[#allocation5 + $0x648] sm:$0xff]
        %v497 = vld [vmem:[#allocation5 + $0x650] sm:$0xff]
        %v498 = vld [vmem:[#allocation5 + $0x658] sm:$0xff]
        %v499 = vld [vmem:[#allocation5 + $0x660] sm:$0xff]
        %v500 = vld [vmem:[#allocation5 + $0x668] sm:$0xff]
        %v501 = vld [vmem:[#allocation5 + $0x670] sm:$0xff]
        %v502 = vld [vmem:[#allocation5 + $0x678] sm:$0xff]
        %v503 = vld [vmem:[#allocation5 + $0x680] sm:$0xff]
        %v504 = vld [vmem:[#allocation5 + $0x688] sm:$0xff]
        %v505 = vld [vmem:[#allocation5 + $0x690] sm:$0xff]
        %v506 = vld [vmem:[#allocation5 + $0x698] sm:$0xff]
        %v507 = vld [vmem:[#allocation5 + $0x6a0] sm:$0xff]
        %v508 = vld [vmem:[#allocation5 + $0x6a8] sm:$0xff]
        %v509 = vld [vmem:[#allocation5 + $0x6b0] sm:$0xff]
        %v510 = vld [vmem:[#allocation5 + $0x6b8] sm:$0xff]
        %v511 = vld [vmem:[#allocation5 + $0x6c0] sm:$0xff]
        %v512 = vld [vmem:[#allocation5 + $0x6c8] sm:$0xff]
        %v513 = vld [vmem:[#allocation5 + $0x6d0] sm:$0xff]
        %v514 = vld [vmem:[#allocation5 + $0x6d8] sm:$0xff]
        %v515 = vld [vmem:[#allocation5 + $0x6e0] sm:$0xff]
        %v516 = vld [vmem:[#allocation5 + $0x6e8] sm:$0xff]
        %v517 = vld [vmem:[#allocation5 + $0x6f0] sm:$0xff]
        %v518 = vld [vmem:[#allocation5 + $0x6f8] sm:$0xff]
        %v519 = vld [vmem:[#allocation5 + $0x700] sm:$0xff]
        %v520 = vld [vmem:[#allocation5 + $0x708] sm:$0xff]
        %v521 = vld [vmem:[#allocation5 + $0x710] sm:$0xff]
        %v522 = vld [vmem:[#allocation5 + $0x718] sm:$0xff]
        %v523 = vld [vmem:[#allocation5 + $0x720] sm:$0xff]
        %v524 = vld [vmem:[#allocation5 + $0x728] sm:$0xff]
        %v525 = vld [vmem:[#allocation5 + $0x730] sm:$0xff]
        %v526 = vld [vmem:[#allocation5 + $0x738] sm:$0xff]
        %v527 = vld [vmem:[#allocation5 + $0x740] sm:$0xff]
        %v528 = vld [vmem:[#allocation5 + $0x748] sm:$0xff]
        %v529 = vld [vmem:[#allocation5 + $0x750] sm:$0xff]
        %v530 = vld [vmem:[#allocation5 + $0x758] sm:$0xff]
        %v531 = vld [vmem:[#allocation5 + $0x760] sm:$0xff]
        %v532 = vld [vmem:[#allocation5 + $0x768] sm:$0xff]
        %v533 = vld [vmem:[#allocation5 + $0x770] sm:$0xff]
        %v534 = vld [vmem:[#allocation5 + $0x778] sm:$0xff]
        %v535 = vld [vmem:[#allocation5 + $0x780] sm:$0xff]
        %v536 = vld [vmem:[#allocation5 + $0x788] sm:$0xff]
        %v537 = vld [vmem:[#allocation5 + $0x790] sm:$0xff]
        %v538 = vld [vmem:[#allocation5 + $0x798] sm:$0xff]
        %v539 = vld [vmem:[#allocation5 + $0x7a0] sm:$0xff]
        %v540 = vld [vmem:[#allocation5 + $0x7a8] sm:$0xff]
        %v541 = vld [vmem:[#allocation5 + $0x7b0] sm:$0xff]
        %v542 = vld [vmem:[#allocation5 + $0x7b8] sm:$0xff]
        %v543 = vld [vmem:[#allocation5 + $0x7c0] sm:$0xff]
        %v544 = vld [vmem:[#allocation5 + $0x7c8] sm:$0xff]
        %v545 = vld [vmem:[#allocation5 + $0x7d0] sm:$0xff]
        %v546 = vld [vmem:[#allocation5 + $0x7d8] sm:$0xff]
        %v547 = vld [vmem:[#allocation5 + $0x7e0] sm:$0xff]
        %v548 = vld [vmem:[#allocation5 + $0x7e8] sm:$0xff]
        %v549 = vld [vmem:[#allocation5 + $0x7f0] sm:$0xff]
        %v550 = vld [vmem:[#allocation5 + $0x7f8] sm:$0xff]
        %v551 = vld [vmem:[#allocation5 + $0x800] sm:$0xff]
        %v552 = vld [vmem:[#allocation5 + $0x808] sm:$0xff]
        %v553 = vld [vmem:[#allocation5 + $0x810] sm:$0xff]
        %v554 = vld [vmem:[#allocation5 + $0x818] sm:$0xff]
        %v555 = vld [vmem:[#allocation5 + $0x820] sm:$0xff]
        %v556 = vld [vmem:[#allocation5 + $0x828] sm:$0xff]
        %v557 = vld [vmem:[#allocation5 + $0x830] sm:$0xff]
        %v558 = vld [vmem:[#allocation5 + $0x838] sm:$0xff]
        %v559 = vld [vmem:[#allocation5 + $0x840] sm:$0xff]
        %v560 = vld [vmem:[#allocation5 + $0x848] sm:$0xff]
        %v561 = vld [vmem:[#allocation5 + $0x850] sm:$0xff]
        %v562 = vld [vmem:[#allocation5 + $0x858] sm:$0xff]
        %v563 = vld [vmem:[#allocation5 + $0x860] sm:$0xff]
        %v564 = vld [vmem:[#allocation5 + $0x868] sm:$0xff]
        %v565 = vld [vmem:[#allocation5 + $0x870] sm:$0xff]
        %v566 = vld [vmem:[#allocation5 + $0x878] sm:$0xff]
        %v567 = vld [vmem:[#allocation5 + $0x880] sm:$0xff]
        %v568 = vld [vmem:[#allocation5 + $0x888] sm:$0xff]
        %v569 = vld [vmem:[#allocation5 + $0x890] sm:$0xff]
        %v570 = vld [vmem:[#allocation5 + $0x898] sm:$0xff]
        %v571 = vld [vmem:[#allocation5 + $0x8a0] sm:$0xff]
        %v572 = vld [vmem:[#allocation5 + $0x8a8] sm:$0xff]
        %v573 = vld [vmem:[#allocation5 + $0x8b0] sm:$0xff]
        %v574 = vld [vmem:[#allocation5 + $0x8b8] sm:$0xff]
        %v575 = vld [vmem:[#allocation5 + $0x8c0] sm:$0xff]
        %v576 = vld [vmem:[#allocation5 + $0x8c8] sm:$0xff]
        %v577 = vld [vmem:[#allocation5 + $0x8d0] sm:$0xff]
        %v578 = vld [vmem:[#allocation5 + $0x8d8] sm:$0xff]
        %v579 = vld [vmem:[#allocation5 + $0x8e0] sm:$0xff]
        %v580 = vld [vmem:[#allocation5 + $0x8e8] sm:$0xff]
        %v581 = vld [vmem:[#allocation5 + $0x8f0] sm:$0xff]
        %v582 = vld [vmem:[#allocation5 + $0x8f8] sm:$0xff]
        %v583 = vld [vmem:[#allocation5 + $0x900] sm:$0xff]
        %v584 = vld [vmem:[#allocation5 + $0x908] sm:$0xff]
        %v585 = vld [vmem:[#allocation5 + $0x910] sm:$0xff]
        %v586 = vld [vmem:[#allocation5 + $0x918] sm:$0xff]
        %v587 = vld [vmem:[#allocation5 + $0x920] sm:$0xff]
        %v588 = vld [vmem:[#allocation5 + $0x928] sm:$0xff]
        %v589 = vld [vmem:[#allocation5 + $0x930] sm:$0xff]
        %v590 = vld [vmem:[#allocation5 + $0x938] sm:$0xff]
        %v591 = vld [vmem:[#allocation5 + $0x940] sm:$0xff]
        %v592 = vld [vmem:[#allocation5 + $0x948] sm:$0xff]
        %v593 = vld [vmem:[#allocation5 + $0x950] sm:$0xff]
        %v594 = vld [vmem:[#allocation5 + $0x958] sm:$0xff]
        %v595 = vld [vmem:[#allocation5 + $0x960] sm:$0xff]
        %v596 = vld [vmem:[#allocation5 + $0x968] sm:$0xff]
        %v597 = vld [vmem:[#allocation5 + $0x970] sm:$0xff]
        %v598 = vld [vmem:[#allocation5 + $0x978] sm:$0xff]
        %v599 = vld [vmem:[#allocation5 + $0x980] sm:$0xff]
        %v600 = vld [vmem:[#allocation5 + $0x988] sm:$0xff]
        %v601 = vld [vmem:[#allocation5 + $0x990] sm:$0xff]
        %v602 = vld [vmem:[#allocation5 + $0x998] sm:$0xff]
        %v603 = vld [vmem:[#allocation5 + $0x9a0] sm:$0xff]
        %v604 = vld [vmem:[#allocation5 + $0x9a8] sm:$0xff]
        %v605 = vld [vmem:[#allocation5 + $0x9b0] sm:$0xff]
        %v606 = vld [vmem:[#allocation5 + $0x9b8] sm:$0xff]
        %v607 = vld [vmem:[#allocation5 + $0x9c0] sm:$0xff]
        %v608 = vld [vmem:[#allocation5 + $0x9c8] sm:$0xff]
        %v609 = vld [vmem:[#allocation5 + $0x9d0] sm:$0xff]
        %v610 = vld [vmem:[#allocation5 + $0x9d8] sm:$0xff]
        %v611 = vld [vmem:[#allocation5 + $0x9e0] sm:$0xff]
        %v612 = vld [vmem:[#allocation5 + $0x9e8] sm:$0xff]
        %v613 = vld [vmem:[#allocation5 + $0x9f0] sm:$0xff]
        %v614 = vld [vmem:[#allocation5 + $0x9f8] sm:$0xff]
        %v615 = vld [vmem:[#allocation5 + $0xa00] sm:$0xff]
        %v616 = vld [vmem:[#allocation5 + $0xa08] sm:$0xff]
        %v617 = vld [vmem:[#allocation5 + $0xa10] sm:$0xff]
        %v618 = vld [vmem:[#allocation5 + $0xa18] sm:$0xff]
        %v619 = vld [vmem:[#allocation5 + $0xa20] sm:$0xff]
        %v620 = vld [vmem:[#allocation5 + $0xa28] sm:$0xff]
        %v621 = vld [vmem:[#allocation5 + $0xa30] sm:$0xff]
        %v622 = vld [vmem:[#allocation5 + $0xa38] sm:$0xff]
        %v623 = vld [vmem:[#allocation5 + $0xa40] sm:$0xff]
        %v624 = vld [vmem:[#allocation5 + $0xa48] sm:$0xff]
        %v625 = vld [vmem:[#allocation5 + $0xa50] sm:$0xff]
        %v626 = vld [vmem:[#allocation5 + $0xa58] sm:$0xff]
        %v627 = vld [vmem:[#allocation5 + $0xa60] sm:$0xff]
        %v628 = vld [vmem:[#allocation5 + $0xa68] sm:$0xff]
        %v629 = vld [vmem:[#allocation5 + $0xa70] sm:$0xff]
        %v630 = vld [vmem:[#allocation5 + $0xa78] sm:$0xff]
        %v631 = vld [vmem:[#allocation5 + $0xa80] sm:$0xff]
        %v632 = vld [vmem:[#allocation5 + $0xa88] sm:$0xff]
        %v633 = vld [vmem:[#allocation5 + $0xa90] sm:$0xff]
        %v634 = vld [vmem:[#allocation5 + $0xa98] sm:$0xff]
        %v635 = vld [vmem:[#allocation5 + $0xaa0] sm:$0xff]
        %v636 = vld [vmem:[#allocation5 + $0xaa8] sm:$0xff]
        %v637 = vld [vmem:[#allocation5 + $0xab0] sm:$0xff]
        %v638 = vld [vmem:[#allocation5 + $0xab8] sm:$0xff]
        %v639 = vld [vmem:[#allocation5 + $0xac0] sm:$0xff]
        %v640 = vld [vmem:[#allocation5 + $0xac8] sm:$0xff]
        %v641 = vld [vmem:[#allocation5 + $0xad0] sm:$0xff]
        %v642 = vld [vmem:[#allocation5 + $0xad8] sm:$0xff]
        %v643 = vld [vmem:[#allocation5 + $0xae0] sm:$0xff]
        %v644 = vld [vmem:[#allocation5 + $0xae8] sm:$0xff]
        %v645 = vld [vmem:[#allocation5 + $0xaf0] sm:$0xff]
        %v646 = vld [vmem:[#allocation5 + $0xaf8] sm:$0xff]
        %v647 = vld [vmem:[#allocation5 + $0xb00] sm:$0xff]
        %v648 = vld [vmem:[#allocation5 + $0xb08] sm:$0xff]
        %v649 = vld [vmem:[#allocation5 + $0xb10] sm:$0xff]
        %v650 = vld [vmem:[#allocation5 + $0xb18] sm:$0xff]
        %v651 = vld [vmem:[#allocation5 + $0xb20] sm:$0xff]
        %v652 = vld [vmem:[#allocation5 + $0xb28] sm:$0xff]
        %v653 = vld [vmem:[#allocation5 + $0xb30] sm:$0xff]
        %v654 = vld [vmem:[#allocation5 + $0xb38] sm:$0xff]
        %v655 = vld [vmem:[#allocation5 + $0xb40] sm:$0xff]
        %v656 = vld [vmem:[#allocation5 + $0xb48] sm:$0xff]
        %v657 = vld [vmem:[#allocation5 + $0xb50] sm:$0xff]
        %v658 = vld [vmem:[#allocation5 + $0xb58] sm:$0xff]
        %v659 = vld [vmem:[#allocation5 + $0xb60] sm:$0xff]
        %v660 = vld [vmem:[#allocation5 + $0xb68] sm:$0xff]
        %v661 = vld [vmem:[#allocation5 + $0xb70] sm:$0xff]
        %v662 = vld [vmem:[#allocation5 + $0xb78] sm:$0xff]
        %v663 = vld [vmem:[#allocation5 + $0xb80] sm:$0xff]
        %v664 = vld [vmem:[#allocation5 + $0xb88] sm:$0xff]
        %v665 = vld [vmem:[#allocation5 + $0xb90] sm:$0xff]
        %v666 = vld [vmem:[#allocation5 + $0xb98] sm:$0xff]
        %v667 = vld [vmem:[#allocation5 + $0xba0] sm:$0xff]
        %v668 = vld [vmem:[#allocation5 + $0xba8] sm:$0xff]
        %v669 = vld [vmem:[#allocation5 + $0xbb0] sm:$0xff]
        %v670 = vld [vmem:[#allocation5 + $0xbb8] sm:$0xff]
        %v671 = vld [vmem:[#allocation5 + $0xbc0] sm:$0xff]
        %v672 = vld [vmem:[#allocation5 + $0xbc8] sm:$0xff]
        %v673 = vld [vmem:[#allocation5 + $0xbd0] sm:$0xff]
        %v674 = vld [vmem:[#allocation5 + $0xbd8] sm:$0xff]
        %v675 = vld [vmem:[#allocation5 + $0xbe0] sm:$0xff]
        %v676 = vld [vmem:[#allocation5 + $0xbe8] sm:$0xff]
        %v677 = vld [vmem:[#allocation5 + $0xbf0] sm:$0xff]
        %v678 = vld [vmem:[#allocation5 + $0xbf8] sm:$0xff]
        %v679 = vld [vmem:[#allocation5 + $0xc00] sm:$0xff]
        %v680 = vld [vmem:[#allocation5 + $0xc08] sm:$0xff]
        %v681 = vld [vmem:[#allocation5 + $0xc10] sm:$0xff]
        %v682 = vld [vmem:[#allocation5 + $0xc18] sm:$0xff]
        %v683 = vld [vmem:[#allocation5 + $0xc20] sm:$0xff]
        %v684 = vld [vmem:[#allocation5 + $0xc28] sm:$0xff]
        %v685 = vld [vmem:[#allocation5 + $0xc30] sm:$0xff]
        %v686 = vld [vmem:[#allocation5 + $0xc38] sm:$0xff]
        %v687 = vld [vmem:[#allocation5 + $0xc40] sm:$0xff]
        %v688 = vld [vmem:[#allocation5 + $0xc48] sm:$0xff]
        %v689 = vld [vmem:[#allocation5 + $0xc50] sm:$0xff]
        %v690 = vld [vmem:[#allocation5 + $0xc58] sm:$0xff]
        %v691 = vld [vmem:[#allocation5 + $0xc60] sm:$0xff]
        %v692 = vld [vmem:[#allocation5 + $0xc68] sm:$0xff]
        %v693 = vld [vmem:[#allocation5 + $0xc70] sm:$0xff]
        %v694 = vld [vmem:[#allocation5 + $0xc78] sm:$0xff]
        %v695 = vld [vmem:[#allocation5 + $0xc80] sm:$0xff]
        %v696 = vld [vmem:[#allocation5 + $0xc88] sm:$0xff]
        %v697 = vld [vmem:[#allocation5 + $0xc90] sm:$0xff]
        %v698 = vld [vmem:[#allocation5 + $0xc98] sm:$0xff]
        %v699 = vld [vmem:[#allocation5 + $0xca0] sm:$0xff]
        %v700 = vld [vmem:[#allocation5 + $0xca8] sm:$0xff]
        %v701 = vld [vmem:[#allocation5 + $0xcb0] sm:$0xff]
        %v702 = vld [vmem:[#allocation5 + $0xcb8] sm:$0xff]
        %v703 = vld [vmem:[#allocation5 + $0xcc0] sm:$0xff]
        %v704 = vld [vmem:[#allocation5 + $0xcc8] sm:$0xff]
        %v705 = vld [vmem:[#allocation5 + $0xcd0] sm:$0xff]
        %v706 = vld [vmem:[#allocation5 + $0xcd8] sm:$0xff]
        %v707 = vld [vmem:[#allocation5 + $0xce0] sm:$0xff]
        %v708 = vld [vmem:[#allocation5 + $0xce8] sm:$0xff]
        %v709 = vld [vmem:[#allocation5 + $0xcf0] sm:$0xff]
        %v710 = vld [vmem:[#allocation5 + $0xcf8] sm:$0xff]
        %v711 = vld [vmem:[#allocation5 + $0xd00] sm:$0xff]
        %v712 = vld [vmem:[#allocation5 + $0xd08] sm:$0xff]
        %v713 = vld [vmem:[#allocation5 + $0xd10] sm:$0xff]
        %v714 = vld [vmem:[#allocation5 + $0xd18] sm:$0xff]
        %v715 = vld [vmem:[#allocation5 + $0xd20] sm:$0xff]
        %v716 = vld [vmem:[#allocation5 + $0xd28] sm:$0xff]
        %v717 = vld [vmem:[#allocation5 + $0xd30] sm:$0xff]
        %v718 = vld [vmem:[#allocation5 + $0xd38] sm:$0xff]
        %v719 = vld [vmem:[#allocation5 + $0xd40] sm:$0xff]
        %v720 = vld [vmem:[#allocation5 + $0xd48] sm:$0xff]
        %v721 = vld [vmem:[#allocation5 + $0xd50] sm:$0xff]
        %v722 = vld [vmem:[#allocation5 + $0xd58] sm:$0xff]
        %v723 = vld [vmem:[#allocation5 + $0xd60] sm:$0xff]
        %v724 = vld [vmem:[#allocation5 + $0xd68] sm:$0xff]
        %v725 = vld [vmem:[#allocation5 + $0xd70] sm:$0xff]
        %v726 = vld [vmem:[#allocation5 + $0xd78] sm:$0xff]
        %v727 = vld [vmem:[#allocation5 + $0xd80] sm:$0xff]
        %v728 = vld [vmem:[#allocation5 + $0xd88] sm:$0xff]
        %v729 = vld [vmem:[#allocation5 + $0xd90] sm:$0xff]
        %v730 = vld [vmem:[#allocation5 + $0xd98] sm:$0xff]
        %v731 = vld [vmem:[#allocation5 + $0xda0] sm:$0xff]
        %v732 = vld [vmem:[#allocation5 + $0xda8] sm:$0xff]
        %v733 = vld [vmem:[#allocation5 + $0xdb0] sm:$0xff]
        %v734 = vld [vmem:[#allocation5 + $0xdb8] sm:$0xff]
        %v735 = vld [vmem:[#allocation5 + $0xdc0] sm:$0xff]
        %v736 = vld [vmem:[#allocation5 + $0xdc8] sm:$0xff]
        %v737 = vld [vmem:[#allocation5 + $0xdd0] sm:$0xff]
        %v738 = vld [vmem:[#allocation5 + $0xdd8] sm:$0xff]
        %v739 = vld [vmem:[#allocation5 + $0xde0] sm:$0xff]
        %v740 = vld [vmem:[#allocation5 + $0xde8] sm:$0xff]
        %v741 = vld [vmem:[#allocation5 + $0xdf0] sm:$0xff]
        %v742 = vld [vmem:[#allocation5 + $0xdf8] sm:$0xff]
        %v743 = vld [vmem:[#allocation5 + $0xe00] sm:$0xff]
        %v744 = vld [vmem:[#allocation5 + $0xe08] sm:$0xff]
        %v745 = vld [vmem:[#allocation5 + $0xe10] sm:$0xff]
        %v746 = vld [vmem:[#allocation5 + $0xe18] sm:$0xff]
        %v747 = vld [vmem:[#allocation5 + $0xe20] sm:$0xff]
        %v748 = vld [vmem:[#allocation5 + $0xe28] sm:$0xff]
        %v749 = vld [vmem:[#allocation5 + $0xe30] sm:$0xff]
        %v750 = vld [vmem:[#allocation5 + $0xe38] sm:$0xff]
        %v751 = vld [vmem:[#allocation5 + $0xe40] sm:$0xff]
        %v752 = vld [vmem:[#allocation5 + $0xe48] sm:$0xff]
        %v753 = vld [vmem:[#allocation5 + $0xe50] sm:$0xff]
        %v754 = vld [vmem:[#allocation5 + $0xe58] sm:$0xff]
        %v755 = vld [vmem:[#allocation5 + $0xe60] sm:$0xff]
        %v756 = vld [vmem:[#allocation5 + $0xe68] sm:$0xff]
        %v757 = vld [vmem:[#allocation5 + $0xe70] sm:$0xff]
        %v758 = vld [vmem:[#allocation5 + $0xe78] sm:$0xff]
        %v759 = vld [vmem:[#allocation5 + $0xe80] sm:$0xff]
        %v760 = vld [vmem:[#allocation5 + $0xe88] sm:$0xff]
        %v761 = vld [vmem:[#allocation5 + $0xe90] sm:$0xff]
        %v762 = vld [vmem:[#allocation5 + $0xe98] sm:$0xff]
        %v763 = vld [vmem:[#allocation5 + $0xea0] sm:$0xff]
        %v764 = vld [vmem:[#allocation5 + $0xea8] sm:$0xff]
        %v765 = vld [vmem:[#allocation5 + $0xeb0] sm:$0xff]
        %v766 = vld [vmem:[#allocation5 + $0xeb8] sm:$0xff]
        %v767 = vld [vmem:[#allocation5 + $0xec0] sm:$0xff]
        %v768 = vld [vmem:[#allocation5 + $0xec8] sm:$0xff]
        %v769 = vld [vmem:[#allocation5 + $0xed0] sm:$0xff]
        %v770 = vld [vmem:[#allocation5 + $0xed8] sm:$0xff]
        %v771 = vld [vmem:[#allocation5 + $0xee0] sm:$0xff]
        %v772 = vld [vmem:[#allocation5 + $0xee8] sm:$0xff]
        %v773 = vld [vmem:[#allocation5 + $0xef0] sm:$0xff]
        %v774 = vld [vmem:[#allocation5 + $0xef8] sm:$0xff]
        %v775 = vld [vmem:[#allocation5 + $0xf00] sm:$0xff]
        %v776 = vld [vmem:[#allocation5 + $0xf08] sm:$0xff]
        %v777 = vld [vmem:[#allocation5 + $0xf10] sm:$0xff]
        %v778 = vld [vmem:[#allocation5 + $0xf18] sm:$0xff]
        %v779 = vld [vmem:[#allocation5 + $0xf20] sm:$0xff]
        %v780 = vld [vmem:[#allocation5 + $0xf28] sm:$0xff]
        %v781 = vld [vmem:[#allocation5 + $0xf30] sm:$0xff]
        %v782 = vld [vmem:[#allocation5 + $0xf38] sm:$0xff]
        %v783 = vld [vmem:[#allocation5 + $0xf40] sm:$0xff]
        %v784 = vld [vmem:[#allocation5 + $0xf48] sm:$0xff]
        %v785 = vld [vmem:[#allocation5 + $0xf50] sm:$0xff]
        %v786 = vld [vmem:[#allocation5 + $0xf58] sm:$0xff]
        %v787 = vld [vmem:[#allocation5 + $0xf60] sm:$0xff]
        %v788 = vld [vmem:[#allocation5 + $0xf68] sm:$0xff]
        %v789 = vld [vmem:[#allocation5 + $0xf70] sm:$0xff]
        %v790 = vld [vmem:[#allocation5 + $0xf78] sm:$0xff]
        %v791 = vld [vmem:[#allocation5 + $0xf80] sm:$0xff]
        %v792 = vld [vmem:[#allocation5 + $0xf88] sm:$0xff]
        %v793 = vld [vmem:[#allocation5 + $0xf90] sm:$0xff]
        %v794 = vld [vmem:[#allocation5 + $0xf98] sm:$0xff]
        %v795 = vld [vmem:[#allocation5 + $0xfa0] sm:$0xff]
        %v796 = vld [vmem:[#allocation5 + $0xfa8] sm:$0xff]
        %v797 = vld [vmem:[#allocation5 + $0xfb0] sm:$0xff]
        %v798 = vld [vmem:[#allocation5 + $0xfb8] sm:$0xff]
        %v799 = vld [vmem:[#allocation5 + $0xfc0] sm:$0xff]
        %v800 = vld [vmem:[#allocation5 + $0xfc8] sm:$0xff]
        %v801 = vld [vmem:[#allocation5 + $0xfd0] sm:$0xff]
        %v802 = vld [vmem:[#allocation5 + $0xfd8] sm:$0xff]
        %v803 = vld [vmem:[#allocation5 + $0xfe0] sm:$0xff]
        %v804 = vld [vmem:[#allocation5 + $0xfe8] sm:$0xff]
        %v805 = vld [vmem:[#allocation5 + $0xff0] sm:$0xff]
        %v806 = vld [vmem:[#allocation5 + $0xff8] sm:$0xff]
        %v807 = vld [vmem:[#allocation7] sm:$0xff]
        %v809 = vlaneseq
        %v810 = vshrl.u32 %v809, 7
        %v811 = vsub.s32 0, %v810
        %v812 = vrot.slane %v807, %v811
        %v813 = vlaneseq
        %v814 = vshrl.u32 %v813, 7
        %v815 = vsub.s32 1, %v814
        %v816 = vrot.slane %v807, %v815
        %v817 = vlaneseq
        %v818 = vshrl.u32 %v817, 7
        %v819 = vsub.s32 2, %v818
        %v820 = vrot.slane %v807, %v819
        %v821 = vlaneseq
        %v822 = vshrl.u32 %v821, 7
        %v823 = vsub.s32 3, %v822
        %v824 = vrot.slane %v807, %v823
        %v825 = vlaneseq
        %v826 = vshrl.u32 %v825, 7
        %v827 = vsub.s32 4, %v826
        %v828 = vrot.slane %v807, %v827
        %v829 = vlaneseq
        %v830 = vshrl.u32 %v829, 7
        %v831 = vsub.s32 5, %v830
        %v832 = vrot.slane %v807, %v831
        %v833 = vlaneseq
        %v834 = vshrl.u32 %v833, 7
        %v835 = vsub.s32 6, %v834
        %v836 = vrot.slane %v807, %v835
        %v837 = vlaneseq
        %v838 = vshrl.u32 %v837, 7
        %v839 = vsub.s32 7, %v838
        %v840 = vrot.slane %v807, %v839
        %849 = vmatprep.subr.mxu0 %v416
        %850 = vmatpush1.msra.mxu0 %v415
        %851 = vmatprep.subr.mxu0 %v408
        %852 = vmatpush1.msra.mxu0 %v407
        %853 = vmatprep.subr.mxu0 %v400
        %854 = vmatpush1.msra.mxu0 %v399
        %855 = vmatprep.subr.mxu0 %v392
        %856 = vmatpush1.msra.mxu0 %v391
        %857 = vmatprep.subr.mxu0 %v384
        %858 = vmatpush1.msra.mxu0 %v383
        %859 = vmatprep.subr.mxu0 %v376
        %860 = vmatpush1.msra.mxu0 %v375
        %861 = vmatprep.subr.mxu0 %v368
        %862 = vmatpush1.msra.mxu0 %v367
        %863 = vmatprep.subr.mxu0 %v360
        %864 = vmatpush1.msra.mxu0 %v359
        %865 = vmatprep.subr.mxu0 %v352
        %866 = vmatpush1.msra.mxu0 %v351
        %867 = vmatprep.subr.mxu0 %v344
        %868 = vmatpush1.msra.mxu0 %v343
        %869 = vmatprep.subr.mxu0 %v336
        %870 = vmatpush1.msra.mxu0 %v335
        %871 = vmatprep.subr.mxu0 %v328
        %872 = vmatpush1.msra.mxu0 %v327
        %873 = vmatprep.subr.mxu0 %v320
        %874 = vmatpush1.msra.mxu0 %v319
        %875 = vmatprep.subr.mxu0 %v312
        %876 = vmatpush1.msra.mxu0 %v311
        %877 = vmatprep.subr.mxu0 %v304
        %878 = vmatpush1.msra.mxu0 %v303
        %879 = vmatprep.subr.mxu0 %v296
        %880 = vmatpush1.msra.mxu0 %v295
        %881 = vmatprep.subr.mxu0 %v544
        %882 = vmatpush2.msra.mxu0 %v543
        %883 = vmatprep.subr.mxu0 %v536
        %884 = vmatpush2.msra.mxu0 %v535
        %885 = vmatprep.subr.mxu0 %v528
        %886 = vmatpush2.msra.mxu0 %v527
        %887 = vmatprep.subr.mxu0 %v520
        %888 = vmatpush2.msra.mxu0 %v519
        %889 = vmatprep.subr.mxu0 %v512
        %890 = vmatpush2.msra.mxu0 %v511
        %891 = vmatprep.subr.mxu0 %v504
        %892 = vmatpush2.msra.mxu0 %v503
        %893 = vmatprep.subr.mxu0 %v496
        %894 = vmatpush2.msra.mxu0 %v495
        %895 = vmatprep.subr.mxu0 %v488
        %896 = vmatpush2.msra.mxu0 %v487
        %897 = vmatprep.subr.mxu0 %v480
        %898 = vmatpush2.msra.mxu0 %v479
        %899 = vmatprep.subr.mxu0 %v472
        %900 = vmatpush2.msra.mxu0 %v471
        %901 = vmatprep.subr.mxu0 %v464
        %902 = vmatpush2.msra.mxu0 %v463
        %903 = vmatprep.subr.mxu0 %v456
        %904 = vmatpush2.msra.mxu0 %v455
        %905 = vmatprep.subr.mxu0 %v448
        %906 = vmatpush2.msra.mxu0 %v447
        %907 = vmatprep.subr.mxu0 %v440
        %908 = vmatpush2.msra.mxu0 %v439
        %909 = vmatprep.subr.mxu0 %v432
        %910 = vmatpush2.msra.mxu0 %v431
        %911 = vmatprep.subr.mxu0 %v424
        %912 = vmatpush2.msra.mxu0 %v423
        %913 = vmatprep.mubr.f32.mxu0 %v220
        %914 = vmatmul.mubr.f32.gmra.mxu0 %v219
        %v915 = vpop.f32.mrf.mxu0
        %v916 = vadd.f32 %v812, %v915
        %v917 = vpop.f32.mrf.mxu0
        %v918 = vadd.f32 %v816, %v917
        %919 = vmatprep.mubr.f32.mxu0 %v224
        %920 = vmatmul.mubr.f32.gmra.mxu0 %v223
        %v921 = vpop.f32.mrf.mxu0
        %v922 = vadd.f32 %v812, %v921
        %v923 = vpop.f32.mrf.mxu0
        %v924 = vadd.f32 %v816, %v923
        %925 = vmatprep.mubr.f32.mxu0 %v228
        %926 = vmatmul.mubr.f32.gmra.mxu0 %v227
        %v927 = vpop.f32.mrf.mxu0
        %v928 = vadd.f32 %v812, %v927
        %v929 = vpop.f32.mrf.mxu0
        %v930 = vadd.f32 %v816, %v929
        %931 = vmatprep.mubr.f32.mxu0 %v232
        %932 = vmatmul.mubr.f32.gmra.mxu0 %v231
        %v933 = vpop.f32.mrf.mxu0
        %v934 = vadd.f32 %v812, %v933
        %v935 = vpop.f32.mrf.mxu0
        %v936 = vadd.f32 %v816, %v935
        %937 = vmatprep.mubr.f32.mxu0 %v236
        %938 = vmatmul.mubr.f32.gmra.mxu0 %v235
        %v939 = vpop.f32.mrf.mxu0
        %v940 = vadd.f32 %v812, %v939
        %v941 = vpop.f32.mrf.mxu0
        %v942 = vadd.f32 %v816, %v941
        %943 = vmatprep.mubr.f32.mxu0 %v240
        %944 = vmatmul.mubr.f32.gmra.mxu0 %v239
        %v945 = vpop.f32.mrf.mxu0
        %v946 = vadd.f32 %v812, %v945
        %v947 = vpop.f32.mrf.mxu0
        %v948 = vadd.f32 %v816, %v947
        %949 = vmatprep.mubr.f32.mxu0 %v244
        %950 = vmatmul.mubr.f32.gmra.mxu0 %v243
        %v951 = vpop.f32.mrf.mxu0
        %v952 = vadd.f32 %v812, %v951
        %v953 = vpop.f32.mrf.mxu0
        %v954 = vadd.f32 %v816, %v953
        %955 = vmatprep.mubr.f32.mxu0 %v248
        %956 = vmatmul.mubr.f32.gmra.mxu0 %v247
        %v957 = vpop.f32.mrf.mxu0
        %v958 = vadd.f32 %v812, %v957
        %v959 = vpop.f32.mrf.mxu0
        %v960 = vadd.f32 %v816, %v959
        %961 = vmatprep.mubr.f32.mxu0 %v252
        %962 = vmatmul.mubr.f32.gmra.mxu0 %v251
        %v963 = vpop.f32.mrf.mxu0
        %v964 = vadd.f32 %v812, %v963
        %v965 = vpop.f32.mrf.mxu0
        %v966 = vadd.f32 %v816, %v965
        %967 = vmatprep.mubr.f32.mxu0 %v256
        %968 = vmatmul.mubr.f32.gmra.mxu0 %v255
        %v969 = vpop.f32.mrf.mxu0
        %v970 = vadd.f32 %v812, %v969
        %v971 = vpop.f32.mrf.mxu0
        %v972 = vadd.f32 %v816, %v971
        %973 = vmatprep.mubr.f32.mxu0 %v260
        %974 = vmatmul.mubr.f32.gmra.mxu0 %v259
        %v975 = vpop.f32.mrf.mxu0
        %v976 = vadd.f32 %v812, %v975
        %v977 = vpop.f32.mrf.mxu0
        %v978 = vadd.f32 %v816, %v977
        %979 = vmatprep.mubr.f32.mxu0 %v264
        %980 = vmatmul.mubr.f32.gmra.mxu0 %v263
        %v981 = vpop.f32.mrf.mxu0
        %v982 = vadd.f32 %v812, %v981
        %v983 = vpop.f32.mrf.mxu0
        %v984 = vadd.f32 %v816, %v983
        %985 = vmatprep.mubr.f32.mxu0 %v268
        %986 = vmatmul.mubr.f32.gmra.mxu0 %v267
        %v987 = vpop.f32.mrf.mxu0
        %v988 = vadd.f32 %v812, %v987
        %v989 = vpop.f32.mrf.mxu0
        %v990 = vadd.f32 %v816, %v989
        %991 = vmatprep.mubr.f32.mxu0 %v272
        %992 = vmatmul.mubr.f32.gmra.mxu0 %v271
        %v993 = vpop.f32.mrf.mxu0
        %v994 = vadd.f32 %v812, %v993
        %v995 = vpop.f32.mrf.mxu0
        %v996 = vadd.f32 %v816, %v995
        %997 = vmatprep.mubr.f32.mxu0 %v276
        %998 = vmatmul.mubr.f32.gmra.mxu0 %v275
        %v999 = vpop.f32.mrf.mxu0
        %v1000 = vadd.f32 %v812, %v999
        %v1001 = vpop.f32.mrf.mxu0
        %v1002 = vadd.f32 %v816, %v1001
        %1003 = vmatprep.mubr.f32.mxu0 %v280
        %1004 = vmatmul.mubr.f32.gmra.mxu0 %v279
        %v1005 = vpop.f32.mrf.mxu0
        %v1006 = vadd.f32 %v812, %v1005
        %v1007 = vpop.f32.mrf.mxu0
        %v1008 = vadd.f32 %v816, %v1007
        %1009 = vmatprep.mubr.f32.mxu0 %v284
        %1010 = vmatmul.mubr.f32.gmra.mxu0 %v283
        %v1011 = vpop.f32.mrf.mxu0
        %v1012 = vadd.f32 %v812, %v1011
        %v1013 = vpop.f32.mrf.mxu0
        %v1014 = vadd.f32 %v816, %v1013
        %1015 = vmatprep.mubr.f32.mxu0 %v288
        %1016 = vmatmul.mubr.f32.gmra.mxu0 %v287
        %v1017 = vpop.f32.mrf.mxu0
        %v1018 = vadd.f32 %v812, %v1017
        %v1019 = vpop.f32.mrf.mxu0
        %v1020 = vadd.f32 %v816, %v1019
        %1021 = vmatprep.mubr.f32.mxu0 %v292
        %1022 = vmatmul.mubr.f32.gmra.mxu0 %v291
        %v1023 = vpop.f32.mrf.mxu0
        %v1024 = vadd.f32 %v812, %v1023
        %v1025 = vpop.f32.mrf.mxu0
        %v1026 = vadd.f32 %v816, %v1025
        %1027 = vdwg.mxu0
        %1028 = vmatprep.subr.mxu0 %v672
        %1029 = vmatpush1.msra.mxu0 %v671
        %1030 = vmatprep.subr.mxu0 %v664
        %1031 = vmatpush1.msra.mxu0 %v663
        %1032 = vmatprep.subr.mxu0 %v656
        %1033 = vmatpush1.msra.mxu0 %v655
        %1034 = vmatprep.subr.mxu0 %v648
        %1035 = vmatpush1.msra.mxu0 %v647
        %1036 = vmatprep.subr.mxu0 %v640
        %1037 = vmatpush1.msra.mxu0 %v639
        %1038 = vmatprep.subr.mxu0 %v632
        %1039 = vmatpush1.msra.mxu0 %v631
        %1040 = vmatprep.subr.mxu0 %v624
        %1041 = vmatpush1.msra.mxu0 %v623
        %1042 = vmatprep.subr.mxu0 %v616
        %1043 = vmatpush1.msra.mxu0 %v615
        %1044 = vmatprep.subr.mxu0 %v608
        %1045 = vmatpush1.msra.mxu0 %v607
        %1046 = vmatprep.subr.mxu0 %v600
        %1047 = vmatpush1.msra.mxu0 %v599
        %1048 = vmatprep.subr.mxu0 %v592
        %1049 = vmatpush1.msra.mxu0 %v591
        %1050 = vmatprep.subr.mxu0 %v584
        %1051 = vmatpush1.msra.mxu0 %v583
        %1052 = vmatprep.subr.mxu0 %v576
        %1053 = vmatpush1.msra.mxu0 %v575
        %1054 = vmatprep.subr.mxu0 %v568
        %1055 = vmatpush1.msra.mxu0 %v567
        %1056 = vmatprep.subr.mxu0 %v560
        %1057 = vmatpush1.msra.mxu0 %v559
        %1058 = vmatprep.subr.mxu0 %v552
        %1059 = vmatpush1.msra.mxu0 %v551
        %1060 = vmatprep.subr.mxu0 %v800
        %1061 = vmatpush2.msra.mxu0 %v799
        %1062 = vmatprep.subr.mxu0 %v792
        %1063 = vmatpush2.msra.mxu0 %v791
        %1064 = vmatprep.subr.mxu0 %v784
        %1065 = vmatpush2.msra.mxu0 %v783
        %1066 = vmatprep.subr.mxu0 %v776
        %1067 = vmatpush2.msra.mxu0 %v775
        %1068 = vmatprep.subr.mxu0 %v768
        %1069 = vmatpush2.msra.mxu0 %v767
        %1070 = vmatprep.subr.mxu0 %v760
        %1071 = vmatpush2.msra.mxu0 %v759
        %1072 = vmatprep.subr.mxu0 %v752
        %1073 = vmatpush2.msra.mxu0 %v751
        %1074 = vmatprep.subr.mxu0 %v744
        %1075 = vmatpush2.msra.mxu0 %v743
        %1076 = vmatprep.subr.mxu0 %v736
        %1077 = vmatpush2.msra.mxu0 %v735
        %1078 = vmatprep.subr.mxu0 %v728
        %1079 = vmatpush2.msra.mxu0 %v727
        %1080 = vmatprep.subr.mxu0 %v720
        %1081 = vmatpush2.msra.mxu0 %v719
        %1082 = vmatprep.subr.mxu0 %v712
        %1083 = vmatpush2.msra.mxu0 %v711
        %1084 = vmatprep.subr.mxu0 %v704
        %1085 = vmatpush2.msra.mxu0 %v703
        %1086 = vmatprep.subr.mxu0 %v696
        %1087 = vmatpush2.msra.mxu0 %v695
        %1088 = vmatprep.subr.mxu0 %v688
        %1089 = vmatpush2.msra.mxu0 %v687
        %1090 = vmatprep.subr.mxu0 %v680
        %1091 = vmatpush2.msra.mxu0 %v679
        %1092 = vmatprep.mubr.f32.mxu0 %v222
        %1093 = vmatmul.mubr.f32.gmra.mxu0 %v221
        %v1094 = vpop.f32.mrf.mxu0
        %v1095 = vadd.f32 %v916, %v1094
        %v1096 = vpop.f32.mrf.mxu0
        %v1097 = vadd.f32 %v918, %v1096
        %1098 = vmatprep.mubr.f32.mxu0 %v226
        %1099 = vmatmul.mubr.f32.gmra.mxu0 %v225
        %v1100 = vpop.f32.mrf.mxu0
        %v1101 = vadd.f32 %v922, %v1100
        %v1102 = vpop.f32.mrf.mxu0
        %v1103 = vadd.f32 %v924, %v1102
        %1104 = vmatprep.mubr.f32.mxu0 %v230
        %1105 = vmatmul.mubr.f32.gmra.mxu0 %v229
        %v1106 = vpop.f32.mrf.mxu0
        %v1107 = vadd.f32 %v928, %v1106
        %v1108 = vpop.f32.mrf.mxu0
        %v1109 = vadd.f32 %v930, %v1108
        %1110 = vmatprep.mubr.f32.mxu0 %v234
        %1111 = vmatmul.mubr.f32.gmra.mxu0 %v233
        %v1112 = vpop.f32.mrf.mxu0
        %v1113 = vadd.f32 %v934, %v1112
        %v1114 = vpop.f32.mrf.mxu0
        %v1115 = vadd.f32 %v936, %v1114
        %1116 = vmatprep.mubr.f32.mxu0 %v238
        %1117 = vmatmul.mubr.f32.gmra.mxu0 %v237
        %v1118 = vpop.f32.mrf.mxu0
        %v1119 = vadd.f32 %v940, %v1118
        %v1120 = vpop.f32.mrf.mxu0
        %v1121 = vadd.f32 %v942, %v1120
        %1122 = vmatprep.mubr.f32.mxu0 %v242
        %1123 = vmatmul.mubr.f32.gmra.mxu0 %v241
        %v1124 = vpop.f32.mrf.mxu0
        %v1125 = vadd.f32 %v946, %v1124
        %v1126 = vpop.f32.mrf.mxu0
        %v1127 = vadd.f32 %v948, %v1126
        %1128 = vmatprep.mubr.f32.mxu0 %v246
        %1129 = vmatmul.mubr.f32.gmra.mxu0 %v245
        %v1130 = vpop.f32.mrf.mxu0
        %v1131 = vadd.f32 %v952, %v1130
        %v1132 = vpop.f32.mrf.mxu0
        %v1133 = vadd.f32 %v954, %v1132
        %1134 = vmatprep.mubr.f32.mxu0 %v250
        %1135 = vmatmul.mubr.f32.gmra.mxu0 %v249
        %v1136 = vpop.f32.mrf.mxu0
        %v1137 = vadd.f32 %v958, %v1136
        %v1138 = vpop.f32.mrf.mxu0
        %v1139 = vadd.f32 %v960, %v1138
        %1140 = vmatprep.mubr.f32.mxu0 %v254
        %1141 = vmatmul.mubr.f32.gmra.mxu0 %v253
        %v1142 = vpop.f32.mrf.mxu0
        %v1143 = vadd.f32 %v964, %v1142
        %v1144 = vpop.f32.mrf.mxu0
        %v1145 = vadd.f32 %v966, %v1144
        %1146 = vmatprep.mubr.f32.mxu0 %v258
        %1147 = vmatmul.mubr.f32.gmra.mxu0 %v257
        %v1148 = vpop.f32.mrf.mxu0
        %v1149 = vadd.f32 %v970, %v1148
        %v1150 = vpop.f32.mrf.mxu0
        %v1151 = vadd.f32 %v972, %v1150
        %1152 = vmatprep.mubr.f32.mxu0 %v262
        %1153 = vmatmul.mubr.f32.gmra.mxu0 %v261
        %v1154 = vpop.f32.mrf.mxu0
        %v1155 = vadd.f32 %v976, %v1154
        %v1156 = vpop.f32.mrf.mxu0
        %v1157 = vadd.f32 %v978, %v1156
        %1158 = vmatprep.mubr.f32.mxu0 %v266
        %1159 = vmatmul.mubr.f32.gmra.mxu0 %v265
        %v1160 = vpop.f32.mrf.mxu0
        %v1161 = vadd.f32 %v982, %v1160
        %v1162 = vpop.f32.mrf.mxu0
        %v1163 = vadd.f32 %v984, %v1162
        %1164 = vmatprep.mubr.f32.mxu0 %v270
        %1165 = vmatmul.mubr.f32.gmra.mxu0 %v269
        %v1166 = vpop.f32.mrf.mxu0
        %v1167 = vadd.f32 %v988, %v1166
        %v1168 = vpop.f32.mrf.mxu0
        %v1169 = vadd.f32 %v990, %v1168
        %1170 = vmatprep.mubr.f32.mxu0 %v274
        %1171 = vmatmul.mubr.f32.gmra.mxu0 %v273
        %v1172 = vpop.f32.mrf.mxu0
        %v1173 = vadd.f32 %v994, %v1172
        %v1174 = vpop.f32.mrf.mxu0
        %v1175 = vadd.f32 %v996, %v1174
        %1176 = vmatprep.mubr.f32.mxu0 %v278
        %1177 = vmatmul.mubr.f32.gmra.mxu0 %v277
        %v1178 = vpop.f32.mrf.mxu0
        %v1179 = vadd.f32 %v1000, %v1178
        %v1180 = vpop.f32.mrf.mxu0
        %v1181 = vadd.f32 %v1002, %v1180
        %1182 = vmatprep.mubr.f32.mxu0 %v282
        %1183 = vmatmul.mubr.f32.gmra.mxu0 %v281
        %v1184 = vpop.f32.mrf.mxu0
        %v1185 = vadd.f32 %v1006, %v1184
        %v1186 = vpop.f32.mrf.mxu0
        %v1187 = vadd.f32 %v1008, %v1186
        %1188 = vmatprep.mubr.f32.mxu0 %v286
        %1189 = vmatmul.mubr.f32.gmra.mxu0 %v285
        %v1190 = vpop.f32.mrf.mxu0
        %v1191 = vadd.f32 %v1012, %v1190
        %v1192 = vpop.f32.mrf.mxu0
        %v1193 = vadd.f32 %v1014, %v1192
        %1194 = vmatprep.mubr.f32.mxu0 %v290
        %1195 = vmatmul.mubr.f32.gmra.mxu0 %v289
        %v1196 = vpop.f32.mrf.mxu0
        %v1197 = vadd.f32 %v1018, %v1196
        %v1198 = vpop.f32.mrf.mxu0
        %v1199 = vadd.f32 %v1020, %v1198
        %1200 = vmatprep.mubr.f32.mxu0 %v294
        %1201 = vmatmul.mubr.f32.gmra.mxu0 %v293
        %v1202 = vpop.f32.mrf.mxu0
        %v1203 = vadd.f32 %v1024, %v1202
        %v1204 = vpop.f32.mrf.mxu0
        %v1205 = vadd.f32 %v1026, %v1204
        %1206 = vdwg.mxu0
        %1207 = vmatprep.subr.mxu0 %v418
        %1208 = vmatpush1.msra.mxu0 %v417
        %1209 = vmatprep.subr.mxu0 %v410
        %1210 = vmatpush1.msra.mxu0 %v409
        %1211 = vmatprep.subr.mxu0 %v402
        %1212 = vmatpush1.msra.mxu0 %v401
        %1213 = vmatprep.subr.mxu0 %v394
        %1214 = vmatpush1.msra.mxu0 %v393
        %1215 = vmatprep.subr.mxu0 %v386
        %1216 = vmatpush1.msra.mxu0 %v385
        %1217 = vmatprep.subr.mxu0 %v378
        %1218 = vmatpush1.msra.mxu0 %v377
        %1219 = vmatprep.subr.mxu0 %v370
        %1220 = vmatpush1.msra.mxu0 %v369
        %1221 = vmatprep.subr.mxu0 %v362
        %1222 = vmatpush1.msra.mxu0 %v361
        %1223 = vmatprep.subr.mxu0 %v354
        %1224 = vmatpush1.msra.mxu0 %v353
        %1225 = vmatprep.subr.mxu0 %v346
        %1226 = vmatpush1.msra.mxu0 %v345
        %1227 = vmatprep.subr.mxu0 %v338
        %1228 = vmatpush1.msra.mxu0 %v337
        %1229 = vmatprep.subr.mxu0 %v330
        %1230 = vmatpush1.msra.mxu0 %v329
        %1231 = vmatprep.subr.mxu0 %v322
        %1232 = vmatpush1.msra.mxu0 %v321
        %1233 = vmatprep.subr.mxu0 %v314
        %1234 = vmatpush1.msra.mxu0 %v313
        %1235 = vmatprep.subr.mxu0 %v306
        %1236 = vmatpush1.msra.mxu0 %v305
        %1237 = vmatprep.subr.mxu0 %v298
        %1238 = vmatpush1.msra.mxu0 %v297
        %1239 = vmatprep.subr.mxu0 %v546
        %1240 = vmatpush2.msra.mxu0 %v545
        %1241 = vmatprep.subr.mxu0 %v538
        %1242 = vmatpush2.msra.mxu0 %v537
        %1243 = vmatprep.subr.mxu0 %v530
        %1244 = vmatpush2.msra.mxu0 %v529
        %1245 = vmatprep.subr.mxu0 %v522
        %1246 = vmatpush2.msra.mxu0 %v521
        %1247 = vmatprep.subr.mxu0 %v514
        %1248 = vmatpush2.msra.mxu0 %v513
        %1249 = vmatprep.subr.mxu0 %v506
        %1250 = vmatpush2.msra.mxu0 %v505
        %1251 = vmatprep.subr.mxu0 %v498
        %1252 = vmatpush2.msra.mxu0 %v497
        %1253 = vmatprep.subr.mxu0 %v490
        %1254 = vmatpush2.msra.mxu0 %v489
        %1255 = vmatprep.subr.mxu0 %v482
        %1256 = vmatpush2.msra.mxu0 %v481
        %1257 = vmatprep.subr.mxu0 %v474
        %1258 = vmatpush2.msra.mxu0 %v473
        %1259 = vmatprep.subr.mxu0 %v466
        %1260 = vmatpush2.msra.mxu0 %v465
        %1261 = vmatprep.subr.mxu0 %v458
        %1262 = vmatpush2.msra.mxu0 %v457
        %1263 = vmatprep.subr.mxu0 %v450
        %1264 = vmatpush2.msra.mxu0 %v449
        %1265 = vmatprep.subr.mxu0 %v442
        %1266 = vmatpush2.msra.mxu0 %v441
        %1267 = vmatprep.subr.mxu0 %v434
        %1268 = vmatpush2.msra.mxu0 %v433
        %1269 = vmatprep.subr.mxu0 %v426
        %1270 = vmatpush2.msra.mxu0 %v425
        %1271 = vmatprep.mubr.f32.mxu0 %v220
        %1272 = vmatmul.mubr.f32.gmra.mxu0 %v219
        %v1273 = vpop.f32.mrf.mxu0
        %v1274 = vadd.f32 %v820, %v1273
        %v1275 = vpop.f32.mrf.mxu0
        %v1276 = vadd.f32 %v824, %v1275
        %1277 = vmatprep.mubr.f32.mxu0 %v224
        %1278 = vmatmul.mubr.f32.gmra.mxu0 %v223
        %v1279 = vpop.f32.mrf.mxu0
        %v1280 = vadd.f32 %v820, %v1279
        %v1281 = vpop.f32.mrf.mxu0
        %v1282 = vadd.f32 %v824, %v1281
        %1283 = vmatprep.mubr.f32.mxu0 %v228
        %1284 = vmatmul.mubr.f32.gmra.mxu0 %v227
        %v1285 = vpop.f32.mrf.mxu0
        %v1286 = vadd.f32 %v820, %v1285
        %v1287 = vpop.f32.mrf.mxu0
        %v1288 = vadd.f32 %v824, %v1287
        %1289 = vmatprep.mubr.f32.mxu0 %v232
        %1290 = vmatmul.mubr.f32.gmra.mxu0 %v231
        %v1291 = vpop.f32.mrf.mxu0
        %v1292 = vadd.f32 %v820, %v1291
        %v1293 = vpop.f32.mrf.mxu0
        %v1294 = vadd.f32 %v824, %v1293
        %1295 = vmatprep.mubr.f32.mxu0 %v236
        %1296 = vmatmul.mubr.f32.gmra.mxu0 %v235
        %v1297 = vpop.f32.mrf.mxu0
        %v1298 = vadd.f32 %v820, %v1297
        %v1299 = vpop.f32.mrf.mxu0
        %v1300 = vadd.f32 %v824, %v1299
        %1301 = vmatprep.mubr.f32.mxu0 %v240
        %1302 = vmatmul.mubr.f32.gmra.mxu0 %v239
        %v1303 = vpop.f32.mrf.mxu0
        %v1304 = vadd.f32 %v820, %v1303
        %v1305 = vpop.f32.mrf.mxu0
        %v1306 = vadd.f32 %v824, %v1305
        %1307 = vmatprep.mubr.f32.mxu0 %v244
        %1308 = vmatmul.mubr.f32.gmra.mxu0 %v243
        %v1309 = vpop.f32.mrf.mxu0
        %v1310 = vadd.f32 %v820, %v1309
        %v1311 = vpop.f32.mrf.mxu0
        %v1312 = vadd.f32 %v824, %v1311
        %1313 = vmatprep.mubr.f32.mxu0 %v248
        %1314 = vmatmul.mubr.f32.gmra.mxu0 %v247
        %v1315 = vpop.f32.mrf.mxu0
        %v1316 = vadd.f32 %v820, %v1315
        %v1317 = vpop.f32.mrf.mxu0
        %v1318 = vadd.f32 %v824, %v1317
        %1319 = vmatprep.mubr.f32.mxu0 %v252
        %1320 = vmatmul.mubr.f32.gmra.mxu0 %v251
        %v1321 = vpop.f32.mrf.mxu0
        %v1322 = vadd.f32 %v820, %v1321
        %v1323 = vpop.f32.mrf.mxu0
        %v1324 = vadd.f32 %v824, %v1323
        %1325 = vmatprep.mubr.f32.mxu0 %v256
        %1326 = vmatmul.mubr.f32.gmra.mxu0 %v255
        %v1327 = vpop.f32.mrf.mxu0
        %v1328 = vadd.f32 %v820, %v1327
        %v1329 = vpop.f32.mrf.mxu0
        %v1330 = vadd.f32 %v824, %v1329
        %1331 = vmatprep.mubr.f32.mxu0 %v260
        %1332 = vmatmul.mubr.f32.gmra.mxu0 %v259
        %v1333 = vpop.f32.mrf.mxu0
        %v1334 = vadd.f32 %v820, %v1333
        %v1335 = vpop.f32.mrf.mxu0
        %v1336 = vadd.f32 %v824, %v1335
        %1337 = vmatprep.mubr.f32.mxu0 %v264
        %1338 = vmatmul.mubr.f32.gmra.mxu0 %v263
        %v1339 = vpop.f32.mrf.mxu0
        %v1340 = vadd.f32 %v820, %v1339
        %v1341 = vpop.f32.mrf.mxu0
        %v1342 = vadd.f32 %v824, %v1341
        %1343 = vmatprep.mubr.f32.mxu0 %v268
        %1344 = vmatmul.mubr.f32.gmra.mxu0 %v267
        %v1345 = vpop.f32.mrf.mxu0
        %v1346 = vadd.f32 %v820, %v1345
        %v1347 = vpop.f32.mrf.mxu0
        %v1348 = vadd.f32 %v824, %v1347
        %1349 = vmatprep.mubr.f32.mxu0 %v272
        %1350 = vmatmul.mubr.f32.gmra.mxu0 %v271
        %v1351 = vpop.f32.mrf.mxu0
        %v1352 = vadd.f32 %v820, %v1351
        %v1353 = vpop.f32.mrf.mxu0
        %v1354 = vadd.f32 %v824, %v1353
        %1355 = vmatprep.mubr.f32.mxu0 %v276
        %1356 = vmatmul.mubr.f32.gmra.mxu0 %v275
        %v1357 = vpop.f32.mrf.mxu0
        %v1358 = vadd.f32 %v820, %v1357
        %v1359 = vpop.f32.mrf.mxu0
        %v1360 = vadd.f32 %v824, %v1359
        %1361 = vmatprep.mubr.f32.mxu0 %v280
        %1362 = vmatmul.mubr.f32.gmra.mxu0 %v279
        %v1363 = vpop.f32.mrf.mxu0
        %v1364 = vadd.f32 %v820, %v1363
        %v1365 = vpop.f32.mrf.mxu0
        %v1366 = vadd.f32 %v824, %v1365
        %1367 = vmatprep.mubr.f32.mxu0 %v284
        %1368 = vmatmul.mubr.f32.gmra.mxu0 %v283
        %v1369 = vpop.f32.mrf.mxu0
        %v1370 = vadd.f32 %v820, %v1369
        %v1371 = vpop.f32.mrf.mxu0
        %v1372 = vadd.f32 %v824, %v1371
        %1373 = vmatprep.mubr.f32.mxu0 %v288
        %1374 = vmatmul.mubr.f32.gmra.mxu0 %v287
        %v1375 = vpop.f32.mrf.mxu0
        %v1376 = vadd.f32 %v820, %v1375
        %v1377 = vpop.f32.mrf.mxu0
        %v1378 = vadd.f32 %v824, %v1377
        %1379 = vmatprep.mubr.f32.mxu0 %v292
        %1380 = vmatmul.mubr.f32.gmra.mxu0 %v291
        %v1381 = vpop.f32.mrf.mxu0
        %v1382 = vadd.f32 %v820, %v1381
        %v1383 = vpop.f32.mrf.mxu0
        %v1384 = vadd.f32 %v824, %v1383
        %1385 = vdwg.mxu0
        %1386 = vmatprep.subr.mxu0 %v674
        %1387 = vmatpush1.msra.mxu0 %v673
        %1388 = vmatprep.subr.mxu0 %v666
        %1389 = vmatpush1.msra.mxu0 %v665
        %1390 = vmatprep.subr.mxu0 %v658
        %1391 = vmatpush1.msra.mxu0 %v657
        %1392 = vmatprep.subr.mxu0 %v650
        %1393 = vmatpush1.msra.mxu0 %v649
        %1394 = vmatprep.subr.mxu0 %v642
        %1395 = vmatpush1.msra.mxu0 %v641
        %1396 = vmatprep.subr.mxu0 %v634
        %1397 = vmatpush1.msra.mxu0 %v633
        %1398 = vmatprep.subr.mxu0 %v626
        %1399 = vmatpush1.msra.mxu0 %v625
        %1400 = vmatprep.subr.mxu0 %v618
        %1401 = vmatpush1.msra.mxu0 %v617
        %1402 = vmatprep.subr.mxu0 %v610
        %1403 = vmatpush1.msra.mxu0 %v609
        %1404 = vmatprep.subr.mxu0 %v602
        %1405 = vmatpush1.msra.mxu0 %v601
        %1406 = vmatprep.subr.mxu0 %v594
        %1407 = vmatpush1.msra.mxu0 %v593
        %1408 = vmatprep.subr.mxu0 %v586
        %1409 = vmatpush1.msra.mxu0 %v585
        %1410 = vmatprep.subr.mxu0 %v578
        %1411 = vmatpush1.msra.mxu0 %v577
        %1412 = vmatprep.subr.mxu0 %v570
        %1413 = vmatpush1.msra.mxu0 %v569
        %1414 = vmatprep.subr.mxu0 %v562
        %1415 = vmatpush1.msra.mxu0 %v561
        %1416 = vmatprep.subr.mxu0 %v554
        %1417 = vmatpush1.msra.mxu0 %v553
        %1418 = vmatprep.subr.mxu0 %v802
        %1419 = vmatpush2.msra.mxu0 %v801
        %1420 = vmatprep.subr.mxu0 %v794
        %1421 = vmatpush2.msra.mxu0 %v793
        %1422 = vmatprep.subr.mxu0 %v786
        %1423 = vmatpush2.msra.mxu0 %v785
        %1424 = vmatprep.subr.mxu0 %v778
        %1425 = vmatpush2.msra.mxu0 %v777
        %1426 = vmatprep.subr.mxu0 %v770
        %1427 = vmatpush2.msra.mxu0 %v769
        %1428 = vmatprep.subr.mxu0 %v762
        %1429 = vmatpush2.msra.mxu0 %v761
        %1430 = vmatprep.subr.mxu0 %v754
        %1431 = vmatpush2.msra.mxu0 %v753
        %1432 = vmatprep.subr.mxu0 %v746
        %1433 = vmatpush2.msra.mxu0 %v745
        %1434 = vmatprep.subr.mxu0 %v738
        %1435 = vmatpush2.msra.mxu0 %v737
        %1436 = vmatprep.subr.mxu0 %v730
        %1437 = vmatpush2.msra.mxu0 %v729
        %1438 = vmatprep.subr.mxu0 %v722
        %1439 = vmatpush2.msra.mxu0 %v721
        %1440 = vmatprep.subr.mxu0 %v714
        %1441 = vmatpush2.msra.mxu0 %v713
        %1442 = vmatprep.subr.mxu0 %v706
        %1443 = vmatpush2.msra.mxu0 %v705
        %1444 = vmatprep.subr.mxu0 %v698
        %1445 = vmatpush2.msra.mxu0 %v697
        %1446 = vmatprep.subr.mxu0 %v690
        %1447 = vmatpush2.msra.mxu0 %v689
        %1448 = vmatprep.subr.mxu0 %v682
        %1449 = vmatpush2.msra.mxu0 %v681
        %1450 = vmatprep.mubr.f32.mxu0 %v222
        %1451 = vmatmul.mubr.f32.gmra.mxu0 %v221
        %v1452 = vpop.f32.mrf.mxu0
        %v1453 = vadd.f32 %v1274, %v1452
        %v1454 = vpop.f32.mrf.mxu0
        %v1455 = vadd.f32 %v1276, %v1454
        %1456 = vmatprep.mubr.f32.mxu0 %v226
        %1457 = vmatmul.mubr.f32.gmra.mxu0 %v225
        %v1458 = vpop.f32.mrf.mxu0
        %v1459 = vadd.f32 %v1280, %v1458
        %v1460 = vpop.f32.mrf.mxu0
        %v1461 = vadd.f32 %v1282, %v1460
        %1462 = vmatprep.mubr.f32.mxu0 %v230
        %1463 = vmatmul.mubr.f32.gmra.mxu0 %v229
        %v1464 = vpop.f32.mrf.mxu0
        %v1465 = vadd.f32 %v1286, %v1464
        %v1466 = vpop.f32.mrf.mxu0
        %v1467 = vadd.f32 %v1288, %v1466
        %1468 = vmatprep.mubr.f32.mxu0 %v234
        %1469 = vmatmul.mubr.f32.gmra.mxu0 %v233
        %v1470 = vpop.f32.mrf.mxu0
        %v1471 = vadd.f32 %v1292, %v1470
        %v1472 = vpop.f32.mrf.mxu0
        %v1473 = vadd.f32 %v1294, %v1472
        %1474 = vmatprep.mubr.f32.mxu0 %v238
        %1475 = vmatmul.mubr.f32.gmra.mxu0 %v237
        %v1476 = vpop.f32.mrf.mxu0
        %v1477 = vadd.f32 %v1298, %v1476
        %v1478 = vpop.f32.mrf.mxu0
        %v1479 = vadd.f32 %v1300, %v1478
        %1480 = vmatprep.mubr.f32.mxu0 %v242
        %1481 = vmatmul.mubr.f32.gmra.mxu0 %v241
        %v1482 = vpop.f32.mrf.mxu0
        %v1483 = vadd.f32 %v1304, %v1482
        %v1484 = vpop.f32.mrf.mxu0
        %v1485 = vadd.f32 %v1306, %v1484
        %1486 = vmatprep.mubr.f32.mxu0 %v246
        %1487 = vmatmul.mubr.f32.gmra.mxu0 %v245
        %v1488 = vpop.f32.mrf.mxu0
        %v1489 = vadd.f32 %v1310, %v1488
        %v1490 = vpop.f32.mrf.mxu0
        %v1491 = vadd.f32 %v1312, %v1490
        %1492 = vmatprep.mubr.f32.mxu0 %v250
        %1493 = vmatmul.mubr.f32.gmra.mxu0 %v249
        %v1494 = vpop.f32.mrf.mxu0
        %v1495 = vadd.f32 %v1316, %v1494
        %v1496 = vpop.f32.mrf.mxu0
        %v1497 = vadd.f32 %v1318, %v1496
        %1498 = vmatprep.mubr.f32.mxu0 %v254
        %1499 = vmatmul.mubr.f32.gmra.mxu0 %v253
        %v1500 = vpop.f32.mrf.mxu0
        %v1501 = vadd.f32 %v1322, %v1500
        %v1502 = vpop.f32.mrf.mxu0
        %v1503 = vadd.f32 %v1324, %v1502
        %1504 = vmatprep.mubr.f32.mxu0 %v258
        %1505 = vmatmul.mubr.f32.gmra.mxu0 %v257
        %v1506 = vpop.f32.mrf.mxu0
        %v1507 = vadd.f32 %v1328, %v1506
        %v1508 = vpop.f32.mrf.mxu0
        %v1509 = vadd.f32 %v1330, %v1508
        %1510 = vmatprep.mubr.f32.mxu0 %v262
        %1511 = vmatmul.mubr.f32.gmra.mxu0 %v261
        %v1512 = vpop.f32.mrf.mxu0
        %v1513 = vadd.f32 %v1334, %v1512
        %v1514 = vpop.f32.mrf.mxu0
        %v1515 = vadd.f32 %v1336, %v1514
        %1516 = vmatprep.mubr.f32.mxu0 %v266
        %1517 = vmatmul.mubr.f32.gmra.mxu0 %v265
        %v1518 = vpop.f32.mrf.mxu0
        %v1519 = vadd.f32 %v1340, %v1518
        %v1520 = vpop.f32.mrf.mxu0
        %v1521 = vadd.f32 %v1342, %v1520
        %1522 = vmatprep.mubr.f32.mxu0 %v270
        %1523 = vmatmul.mubr.f32.gmra.mxu0 %v269
        %v1524 = vpop.f32.mrf.mxu0
        %v1525 = vadd.f32 %v1346, %v1524
        %v1526 = vpop.f32.mrf.mxu0
        %v1527 = vadd.f32 %v1348, %v1526
        %1528 = vmatprep.mubr.f32.mxu0 %v274
        %1529 = vmatmul.mubr.f32.gmra.mxu0 %v273
        %v1530 = vpop.f32.mrf.mxu0
        %v1531 = vadd.f32 %v1352, %v1530
        %v1532 = vpop.f32.mrf.mxu0
        %v1533 = vadd.f32 %v1354, %v1532
        %1534 = vmatprep.mubr.f32.mxu0 %v278
        %1535 = vmatmul.mubr.f32.gmra.mxu0 %v277
        %v1536 = vpop.f32.mrf.mxu0
        %v1537 = vadd.f32 %v1358, %v1536
        %v1538 = vpop.f32.mrf.mxu0
        %v1539 = vadd.f32 %v1360, %v1538
        %1540 = vmatprep.mubr.f32.mxu0 %v282
        %1541 = vmatmul.mubr.f32.gmra.mxu0 %v281
        %v1542 = vpop.f32.mrf.mxu0
        %v1543 = vadd.f32 %v1364, %v1542
        %v1544 = vpop.f32.mrf.mxu0
        %v1545 = vadd.f32 %v1366, %v1544
        %1546 = vmatprep.mubr.f32.mxu0 %v286
        %1547 = vmatmul.mubr.f32.gmra.mxu0 %v285
        %v1548 = vpop.f32.mrf.mxu0
        %v1549 = vadd.f32 %v1370, %v1548
        %v1550 = vpop.f32.mrf.mxu0
        %v1551 = vadd.f32 %v1372, %v1550
        %1552 = vmatprep.mubr.f32.mxu0 %v290
        %1553 = vmatmul.mubr.f32.gmra.mxu0 %v289
        %v1554 = vpop.f32.mrf.mxu0
        %v1555 = vadd.f32 %v1376, %v1554
        %v1556 = vpop.f32.mrf.mxu0
        %v1557 = vadd.f32 %v1378, %v1556
        %1558 = vmatprep.mubr.f32.mxu0 %v294
        %1559 = vmatmul.mubr.f32.gmra.mxu0 %v293
        %v1560 = vpop.f32.mrf.mxu0
        %v1561 = vadd.f32 %v1382, %v1560
        %v1562 = vpop.f32.mrf.mxu0
        %v1563 = vadd.f32 %v1384, %v1562
        %1564 = vdwg.mxu0
        %1565 = vmatprep.subr.mxu0 %v420
        %1566 = vmatpush1.msra.mxu0 %v419
        %1567 = vmatprep.subr.mxu0 %v412
        %1568 = vmatpush1.msra.mxu0 %v411
        %1569 = vmatprep.subr.mxu0 %v404
        %1570 = vmatpush1.msra.mxu0 %v403
        %1571 = vmatprep.subr.mxu0 %v396
        %1572 = vmatpush1.msra.mxu0 %v395
        %1573 = vmatprep.subr.mxu0 %v388
        %1574 = vmatpush1.msra.mxu0 %v387
        %1575 = vmatprep.subr.mxu0 %v380
        %1576 = vmatpush1.msra.mxu0 %v379
        %1577 = vmatprep.subr.mxu0 %v372
        %1578 = vmatpush1.msra.mxu0 %v371
        %1579 = vmatprep.subr.mxu0 %v364
        %1580 = vmatpush1.msra.mxu0 %v363
        %1581 = vmatprep.subr.mxu0 %v356
        %1582 = vmatpush1.msra.mxu0 %v355
        %1583 = vmatprep.subr.mxu0 %v348
        %1584 = vmatpush1.msra.mxu0 %v347
        %1585 = vmatprep.subr.mxu0 %v340
        %1586 = vmatpush1.msra.mxu0 %v339
        %1587 = vmatprep.subr.mxu0 %v332
        %1588 = vmatpush1.msra.mxu0 %v331
        %1589 = vmatprep.subr.mxu0 %v324
        %1590 = vmatpush1.msra.mxu0 %v323
        %1591 = vmatprep.subr.mxu0 %v316
        %1592 = vmatpush1.msra.mxu0 %v315
        %1593 = vmatprep.subr.mxu0 %v308
        %1594 = vmatpush1.msra.mxu0 %v307
        %1595 = vmatprep.subr.mxu0 %v300
        %1596 = vmatpush1.msra.mxu0 %v299
        %1597 = vmatprep.subr.mxu0 %v548
        %1598 = vmatpush2.msra.mxu0 %v547
        %1599 = vmatprep.subr.mxu0 %v540
        %1600 = vmatpush2.msra.mxu0 %v539
        %1601 = vmatprep.subr.mxu0 %v532
        %1602 = vmatpush2.msra.mxu0 %v531
        %1603 = vmatprep.subr.mxu0 %v524
        %1604 = vmatpush2.msra.mxu0 %v523
        %1605 = vmatprep.subr.mxu0 %v516
        %1606 = vmatpush2.msra.mxu0 %v515
        %1607 = vmatprep.subr.mxu0 %v508
        %1608 = vmatpush2.msra.mxu0 %v507
        %1609 = vmatprep.subr.mxu0 %v500
        %1610 = vmatpush2.msra.mxu0 %v499
        %1611 = vmatprep.subr.mxu0 %v492
        %1612 = vmatpush2.msra.mxu0 %v491
        %1613 = vmatprep.subr.mxu0 %v484
        %1614 = vmatpush2.msra.mxu0 %v483
        %1615 = vmatprep.subr.mxu0 %v476
        %1616 = vmatpush2.msra.mxu0 %v475
        %1617 = vmatprep.subr.mxu0 %v468
        %1618 = vmatpush2.msra.mxu0 %v467
        %1619 = vmatprep.subr.mxu0 %v460
        %1620 = vmatpush2.msra.mxu0 %v459
        %1621 = vmatprep.subr.mxu0 %v452
        %1622 = vmatpush2.msra.mxu0 %v451
        %1623 = vmatprep.subr.mxu0 %v444
        %1624 = vmatpush2.msra.mxu0 %v443
        %1625 = vmatprep.subr.mxu0 %v436
        %1626 = vmatpush2.msra.mxu0 %v435
        %1627 = vmatprep.subr.mxu0 %v428
        %1628 = vmatpush2.msra.mxu0 %v427
        %1629 = vmatprep.mubr.f32.mxu0 %v220
        %1630 = vmatmul.mubr.f32.gmra.mxu0 %v219
        %v1631 = vpop.f32.mrf.mxu0
        %v1632 = vadd.f32 %v828, %v1631
        %v1633 = vpop.f32.mrf.mxu0
        %v1634 = vadd.f32 %v832, %v1633
        %1635 = vmatprep.mubr.f32.mxu0 %v224
        %1636 = vmatmul.mubr.f32.gmra.mxu0 %v223
        %v1637 = vpop.f32.mrf.mxu0
        %v1638 = vadd.f32 %v828, %v1637
        %v1639 = vpop.f32.mrf.mxu0
        %v1640 = vadd.f32 %v832, %v1639
        %1641 = vmatprep.mubr.f32.mxu0 %v228
        %1642 = vmatmul.mubr.f32.gmra.mxu0 %v227
        %v1643 = vpop.f32.mrf.mxu0
        %v1644 = vadd.f32 %v828, %v1643
        %v1645 = vpop.f32.mrf.mxu0
        %v1646 = vadd.f32 %v832, %v1645
        %1647 = vmatprep.mubr.f32.mxu0 %v232
        %1648 = vmatmul.mubr.f32.gmra.mxu0 %v231
        %v1649 = vpop.f32.mrf.mxu0
        %v1650 = vadd.f32 %v828, %v1649
        %v1651 = vpop.f32.mrf.mxu0
        %v1652 = vadd.f32 %v832, %v1651
        %1653 = vmatprep.mubr.f32.mxu0 %v236
        %1654 = vmatmul.mubr.f32.gmra.mxu0 %v235
        %v1655 = vpop.f32.mrf.mxu0
        %v1656 = vadd.f32 %v828, %v1655
        %v1657 = vpop.f32.mrf.mxu0
        %v1658 = vadd.f32 %v832, %v1657
        %1659 = vmatprep.mubr.f32.mxu0 %v240
        %1660 = vmatmul.mubr.f32.gmra.mxu0 %v239
        %v1661 = vpop.f32.mrf.mxu0
        %v1662 = vadd.f32 %v828, %v1661
        %v1663 = vpop.f32.mrf.mxu0
        %v1664 = vadd.f32 %v832, %v1663
        %1665 = vmatprep.mubr.f32.mxu0 %v244
        %1666 = vmatmul.mubr.f32.gmra.mxu0 %v243
        %v1667 = vpop.f32.mrf.mxu0
        %v1668 = vadd.f32 %v828, %v1667
        %v1669 = vpop.f32.mrf.mxu0
        %v1670 = vadd.f32 %v832, %v1669
        %1671 = vmatprep.mubr.f32.mxu0 %v248
        %1672 = vmatmul.mubr.f32.gmra.mxu0 %v247
        %v1673 = vpop.f32.mrf.mxu0
        %v1674 = vadd.f32 %v828, %v1673
        %v1675 = vpop.f32.mrf.mxu0
        %v1676 = vadd.f32 %v832, %v1675
        %1677 = vmatprep.mubr.f32.mxu0 %v252
        %1678 = vmatmul.mubr.f32.gmra.mxu0 %v251
        %v1679 = vpop.f32.mrf.mxu0
        %v1680 = vadd.f32 %v828, %v1679
        %v1681 = vpop.f32.mrf.mxu0
        %v1682 = vadd.f32 %v832, %v1681
        %1683 = vmatprep.mubr.f32.mxu0 %v256
        %1684 = vmatmul.mubr.f32.gmra.mxu0 %v255
        %v1685 = vpop.f32.mrf.mxu0
        %v1686 = vadd.f32 %v828, %v1685
        %v1687 = vpop.f32.mrf.mxu0
        %v1688 = vadd.f32 %v832, %v1687
        %1689 = vmatprep.mubr.f32.mxu0 %v260
        %1690 = vmatmul.mubr.f32.gmra.mxu0 %v259
        %v1691 = vpop.f32.mrf.mxu0
        %v1692 = vadd.f32 %v828, %v1691
        %v1693 = vpop.f32.mrf.mxu0
        %v1694 = vadd.f32 %v832, %v1693
        %1695 = vmatprep.mubr.f32.mxu0 %v264
        %1696 = vmatmul.mubr.f32.gmra.mxu0 %v263
        %v1697 = vpop.f32.mrf.mxu0
        %v1698 = vadd.f32 %v828, %v1697
        %v1699 = vpop.f32.mrf.mxu0
        %v1700 = vadd.f32 %v832, %v1699
        %1701 = vmatprep.mubr.f32.mxu0 %v268
        %1702 = vmatmul.mubr.f32.gmra.mxu0 %v267
        %v1703 = vpop.f32.mrf.mxu0
        %v1704 = vadd.f32 %v828, %v1703
        %v1705 = vpop.f32.mrf.mxu0
        %v1706 = vadd.f32 %v832, %v1705
        %1707 = vmatprep.mubr.f32.mxu0 %v272
        %1708 = vmatmul.mubr.f32.gmra.mxu0 %v271
        %v1709 = vpop.f32.mrf.mxu0
        %v1710 = vadd.f32 %v828, %v1709
        %v1711 = vpop.f32.mrf.mxu0
        %v1712 = vadd.f32 %v832, %v1711
        %1713 = vmatprep.mubr.f32.mxu0 %v276
        %1714 = vmatmul.mubr.f32.gmra.mxu0 %v275
        %v1715 = vpop.f32.mrf.mxu0
        %v1716 = vadd.f32 %v828, %v1715
        %v1717 = vpop.f32.mrf.mxu0
        %v1718 = vadd.f32 %v832, %v1717
        %1719 = vmatprep.mubr.f32.mxu0 %v280
        %1720 = vmatmul.mubr.f32.gmra.mxu0 %v279
        %v1721 = vpop.f32.mrf.mxu0
        %v1722 = vadd.f32 %v828, %v1721
        %v1723 = vpop.f32.mrf.mxu0
        %v1724 = vadd.f32 %v832, %v1723
        %1725 = vmatprep.mubr.f32.mxu0 %v284
        %1726 = vmatmul.mubr.f32.gmra.mxu0 %v283
        %v1727 = vpop.f32.mrf.mxu0
        %v1728 = vadd.f32 %v828, %v1727
        %v1729 = vpop.f32.mrf.mxu0
        %v1730 = vadd.f32 %v832, %v1729
        %1731 = vmatprep.mubr.f32.mxu0 %v288
        %1732 = vmatmul.mubr.f32.gmra.mxu0 %v287
        %v1733 = vpop.f32.mrf.mxu0
        %v1734 = vadd.f32 %v828, %v1733
        %v1735 = vpop.f32.mrf.mxu0
        %v1736 = vadd.f32 %v832, %v1735
        %1737 = vmatprep.mubr.f32.mxu0 %v292
        %1738 = vmatmul.mubr.f32.gmra.mxu0 %v291
        %v1739 = vpop.f32.mrf.mxu0
        %v1740 = vadd.f32 %v828, %v1739
        %v1741 = vpop.f32.mrf.mxu0
        %v1742 = vadd.f32 %v832, %v1741
        %1743 = vdwg.mxu0
        %1744 = vmatprep.subr.mxu0 %v676
        %1745 = vmatpush1.msra.mxu0 %v675
        %1746 = vmatprep.subr.mxu0 %v668
        %1747 = vmatpush1.msra.mxu0 %v667
        %1748 = vmatprep.subr.mxu0 %v660
        %1749 = vmatpush1.msra.mxu0 %v659
        %1750 = vmatprep.subr.mxu0 %v652
        %1751 = vmatpush1.msra.mxu0 %v651
        %1752 = vmatprep.subr.mxu0 %v644
        %1753 = vmatpush1.msra.mxu0 %v643
        %1754 = vmatprep.subr.mxu0 %v636
        %1755 = vmatpush1.msra.mxu0 %v635
        %1756 = vmatprep.subr.mxu0 %v628
        %1757 = vmatpush1.msra.mxu0 %v627
        %1758 = vmatprep.subr.mxu0 %v620
        %1759 = vmatpush1.msra.mxu0 %v619
        %1760 = vmatprep.subr.mxu0 %v612
        %1761 = vmatpush1.msra.mxu0 %v611
        %1762 = vmatprep.subr.mxu0 %v604
        %1763 = vmatpush1.msra.mxu0 %v603
        %1764 = vmatprep.subr.mxu0 %v596
        %1765 = vmatpush1.msra.mxu0 %v595
        %1766 = vmatprep.subr.mxu0 %v588
        %1767 = vmatpush1.msra.mxu0 %v587
        %1768 = vmatprep.subr.mxu0 %v580
        %1769 = vmatpush1.msra.mxu0 %v579
        %1770 = vmatprep.subr.mxu0 %v572
        %1771 = vmatpush1.msra.mxu0 %v571
        %1772 = vmatprep.subr.mxu0 %v564
        %1773 = vmatpush1.msra.mxu0 %v563
        %1774 = vmatprep.subr.mxu0 %v556
        %1775 = vmatpush1.msra.mxu0 %v555
        %1776 = vmatprep.subr.mxu0 %v804
        %1777 = vmatpush2.msra.mxu0 %v803
        %1778 = vmatprep.subr.mxu0 %v796
        %1779 = vmatpush2.msra.mxu0 %v795
        %1780 = vmatprep.subr.mxu0 %v788
        %1781 = vmatpush2.msra.mxu0 %v787
        %1782 = vmatprep.subr.mxu0 %v780
        %1783 = vmatpush2.msra.mxu0 %v779
        %1784 = vmatprep.subr.mxu0 %v772
        %1785 = vmatpush2.msra.mxu0 %v771
        %1786 = vmatprep.subr.mxu0 %v764
        %1787 = vmatpush2.msra.mxu0 %v763
        %1788 = vmatprep.subr.mxu0 %v756
        %1789 = vmatpush2.msra.mxu0 %v755
        %1790 = vmatprep.subr.mxu0 %v748
        %1791 = vmatpush2.msra.mxu0 %v747
        %1792 = vmatprep.subr.mxu0 %v740
        %1793 = vmatpush2.msra.mxu0 %v739
        %1794 = vmatprep.subr.mxu0 %v732
        %1795 = vmatpush2.msra.mxu0 %v731
        %1796 = vmatprep.subr.mxu0 %v724
        %1797 = vmatpush2.msra.mxu0 %v723
        %1798 = vmatprep.subr.mxu0 %v716
        %1799 = vmatpush2.msra.mxu0 %v715
        %1800 = vmatprep.subr.mxu0 %v708
        %1801 = vmatpush2.msra.mxu0 %v707
        %1802 = vmatprep.subr.mxu0 %v700
        %1803 = vmatpush2.msra.mxu0 %v699
        %1804 = vmatprep.subr.mxu0 %v692
        %1805 = vmatpush2.msra.mxu0 %v691
        %1806 = vmatprep.subr.mxu0 %v684
        %1807 = vmatpush2.msra.mxu0 %v683
        %1808 = vmatprep.mubr.f32.mxu0 %v222
        %1809 = vmatmul.mubr.f32.gmra.mxu0 %v221
        %v1810 = vpop.f32.mrf.mxu0
        %v1811 = vadd.f32 %v1632, %v1810
        %v1812 = vpop.f32.mrf.mxu0
        %v1813 = vadd.f32 %v1634, %v1812
        %1814 = vmatprep.mubr.f32.mxu0 %v226
        %1815 = vmatmul.mubr.f32.gmra.mxu0 %v225
        %v1816 = vpop.f32.mrf.mxu0
        %v1817 = vadd.f32 %v1638, %v1816
        %v1818 = vpop.f32.mrf.mxu0
        %v1819 = vadd.f32 %v1640, %v1818
        %1820 = vmatprep.mubr.f32.mxu0 %v230
        %1821 = vmatmul.mubr.f32.gmra.mxu0 %v229
        %v1822 = vpop.f32.mrf.mxu0
        %v1823 = vadd.f32 %v1644, %v1822
        %v1824 = vpop.f32.mrf.mxu0
        %v1825 = vadd.f32 %v1646, %v1824
        %1826 = vmatprep.mubr.f32.mxu0 %v234
        %1827 = vmatmul.mubr.f32.gmra.mxu0 %v233
        %v1828 = vpop.f32.mrf.mxu0
        %v1829 = vadd.f32 %v1650, %v1828
        %v1830 = vpop.f32.mrf.mxu0
        %v1831 = vadd.f32 %v1652, %v1830
        %1832 = vmatprep.mubr.f32.mxu0 %v238
        %1833 = vmatmul.mubr.f32.gmra.mxu0 %v237
        %v1834 = vpop.f32.mrf.mxu0
        %v1835 = vadd.f32 %v1656, %v1834
        %v1836 = vpop.f32.mrf.mxu0
        %v1837 = vadd.f32 %v1658, %v1836
        %1838 = vmatprep.mubr.f32.mxu0 %v242
        %1839 = vmatmul.mubr.f32.gmra.mxu0 %v241
        %v1840 = vpop.f32.mrf.mxu0
        %v1841 = vadd.f32 %v1662, %v1840
        %v1842 = vpop.f32.mrf.mxu0
        %v1843 = vadd.f32 %v1664, %v1842
        %1844 = vmatprep.mubr.f32.mxu0 %v246
        %1845 = vmatmul.mubr.f32.gmra.mxu0 %v245
        %v1846 = vpop.f32.mrf.mxu0
        %v1847 = vadd.f32 %v1668, %v1846
        %v1848 = vpop.f32.mrf.mxu0
        %v1849 = vadd.f32 %v1670, %v1848
        %1850 = vmatprep.mubr.f32.mxu0 %v250
        %1851 = vmatmul.mubr.f32.gmra.mxu0 %v249
        %v1852 = vpop.f32.mrf.mxu0
        %v1853 = vadd.f32 %v1674, %v1852
        %v1854 = vpop.f32.mrf.mxu0
        %v1855 = vadd.f32 %v1676, %v1854
        %1856 = vmatprep.mubr.f32.mxu0 %v254
        %1857 = vmatmul.mubr.f32.gmra.mxu0 %v253
        %v1858 = vpop.f32.mrf.mxu0
        %v1859 = vadd.f32 %v1680, %v1858
        %v1860 = vpop.f32.mrf.mxu0
        %v1861 = vadd.f32 %v1682, %v1860
        %1862 = vmatprep.mubr.f32.mxu0 %v258
        %1863 = vmatmul.mubr.f32.gmra.mxu0 %v257
        %v1864 = vpop.f32.mrf.mxu0
        %v1865 = vadd.f32 %v1686, %v1864
        %v1866 = vpop.f32.mrf.mxu0
        %v1867 = vadd.f32 %v1688, %v1866
        %1868 = vmatprep.mubr.f32.mxu0 %v262
        %1869 = vmatmul.mubr.f32.gmra.mxu0 %v261
        %v1870 = vpop.f32.mrf.mxu0
        %v1871 = vadd.f32 %v1692, %v1870
        %v1872 = vpop.f32.mrf.mxu0
        %v1873 = vadd.f32 %v1694, %v1872
        %1874 = vmatprep.mubr.f32.mxu0 %v266
        %1875 = vmatmul.mubr.f32.gmra.mxu0 %v265
        %v1876 = vpop.f32.mrf.mxu0
        %v1877 = vadd.f32 %v1698, %v1876
        %v1878 = vpop.f32.mrf.mxu0
        %v1879 = vadd.f32 %v1700, %v1878
        %1880 = vmatprep.mubr.f32.mxu0 %v270
        %1881 = vmatmul.mubr.f32.gmra.mxu0 %v269
        %v1882 = vpop.f32.mrf.mxu0
        %v1883 = vadd.f32 %v1704, %v1882
        %v1884 = vpop.f32.mrf.mxu0
        %v1885 = vadd.f32 %v1706, %v1884
        %1886 = vmatprep.mubr.f32.mxu0 %v274
        %1887 = vmatmul.mubr.f32.gmra.mxu0 %v273
        %v1888 = vpop.f32.mrf.mxu0
        %v1889 = vadd.f32 %v1710, %v1888
        %v1890 = vpop.f32.mrf.mxu0
        %v1891 = vadd.f32 %v1712, %v1890
        %1892 = vmatprep.mubr.f32.mxu0 %v278
        %1893 = vmatmul.mubr.f32.gmra.mxu0 %v277
        %v1894 = vpop.f32.mrf.mxu0
        %v1895 = vadd.f32 %v1716, %v1894
        %v1896 = vpop.f32.mrf.mxu0
        %v1897 = vadd.f32 %v1718, %v1896
        %1898 = vmatprep.mubr.f32.mxu0 %v282
        %1899 = vmatmul.mubr.f32.gmra.mxu0 %v281
        %v1900 = vpop.f32.mrf.mxu0
        %v1901 = vadd.f32 %v1722, %v1900
        %v1902 = vpop.f32.mrf.mxu0
        %v1903 = vadd.f32 %v1724, %v1902
        %1904 = vmatprep.mubr.f32.mxu0 %v286
        %1905 = vmatmul.mubr.f32.gmra.mxu0 %v285
        %v1906 = vpop.f32.mrf.mxu0
        %v1907 = vadd.f32 %v1728, %v1906
        %v1908 = vpop.f32.mrf.mxu0
        %v1909 = vadd.f32 %v1730, %v1908
        %1910 = vmatprep.mubr.f32.mxu0 %v290
        %1911 = vmatmul.mubr.f32.gmra.mxu0 %v289
        %v1912 = vpop.f32.mrf.mxu0
        %v1913 = vadd.f32 %v1734, %v1912
        %v1914 = vpop.f32.mrf.mxu0
        %v1915 = vadd.f32 %v1736, %v1914
        %1916 = vmatprep.mubr.f32.mxu0 %v294
        %1917 = vmatmul.mubr.f32.gmra.mxu0 %v293
        %v1918 = vpop.f32.mrf.mxu0
        %v1919 = vadd.f32 %v1740, %v1918
        %v1920 = vpop.f32.mrf.mxu0
        %v1921 = vadd.f32 %v1742, %v1920
        %1922 = vdwg.mxu0
        %1923 = vmatprep.subr.mxu0 %v422
        %1924 = vmatpush1.msra.mxu0 %v421
        %1925 = vmatprep.subr.mxu0 %v414
        %1926 = vmatpush1.msra.mxu0 %v413
        %1927 = vmatprep.subr.mxu0 %v406
        %1928 = vmatpush1.msra.mxu0 %v405
        %1929 = vmatprep.subr.mxu0 %v398
        %1930 = vmatpush1.msra.mxu0 %v397
        %1931 = vmatprep.subr.mxu0 %v390
        %1932 = vmatpush1.msra.mxu0 %v389
        %1933 = vmatprep.subr.mxu0 %v382
        %1934 = vmatpush1.msra.mxu0 %v381
        %1935 = vmatprep.subr.mxu0 %v374
        %1936 = vmatpush1.msra.mxu0 %v373
        %1937 = vmatprep.subr.mxu0 %v366
        %1938 = vmatpush1.msra.mxu0 %v365
        %1939 = vmatprep.subr.mxu0 %v358
        %1940 = vmatpush1.msra.mxu0 %v357
        %1941 = vmatprep.subr.mxu0 %v350
        %1942 = vmatpush1.msra.mxu0 %v349
        %1943 = vmatprep.subr.mxu0 %v342
        %1944 = vmatpush1.msra.mxu0 %v341
        %1945 = vmatprep.subr.mxu0 %v334
        %1946 = vmatpush1.msra.mxu0 %v333
        %1947 = vmatprep.subr.mxu0 %v326
        %1948 = vmatpush1.msra.mxu0 %v325
        %1949 = vmatprep.subr.mxu0 %v318
        %1950 = vmatpush1.msra.mxu0 %v317
        %1951 = vmatprep.subr.mxu0 %v310
        %1952 = vmatpush1.msra.mxu0 %v309
        %1953 = vmatprep.subr.mxu0 %v302
        %1954 = vmatpush1.msra.mxu0 %v301
        %1955 = vmatprep.subr.mxu0 %v550
        %1956 = vmatpush2.msra.mxu0 %v549
        %1957 = vmatprep.subr.mxu0 %v542
        %1958 = vmatpush2.msra.mxu0 %v541
        %1959 = vmatprep.subr.mxu0 %v534
        %1960 = vmatpush2.msra.mxu0 %v533
        %1961 = vmatprep.subr.mxu0 %v526
        %1962 = vmatpush2.msra.mxu0 %v525
        %1963 = vmatprep.subr.mxu0 %v518
        %1964 = vmatpush2.msra.mxu0 %v517
        %1965 = vmatprep.subr.mxu0 %v510
        %1966 = vmatpush2.msra.mxu0 %v509
        %1967 = vmatprep.subr.mxu0 %v502
        %1968 = vmatpush2.msra.mxu0 %v501
        %1969 = vmatprep.subr.mxu0 %v494
        %1970 = vmatpush2.msra.mxu0 %v493
        %1971 = vmatprep.subr.mxu0 %v486
        %1972 = vmatpush2.msra.mxu0 %v485
        %1973 = vmatprep.subr.mxu0 %v478
        %1974 = vmatpush2.msra.mxu0 %v477
        %1975 = vmatprep.subr.mxu0 %v470
        %1976 = vmatpush2.msra.mxu0 %v469
        %1977 = vmatprep.subr.mxu0 %v462
        %1978 = vmatpush2.msra.mxu0 %v461
        %1979 = vmatprep.subr.mxu0 %v454
        %1980 = vmatpush2.msra.mxu0 %v453
        %1981 = vmatprep.subr.mxu0 %v446
        %1982 = vmatpush2.msra.mxu0 %v445
        %1983 = vmatprep.subr.mxu0 %v438
        %1984 = vmatpush2.msra.mxu0 %v437
        %1985 = vmatprep.subr.mxu0 %v430
        %1986 = vmatpush2.msra.mxu0 %v429
        %1987 = vmatprep.mubr.f32.mxu0 %v220
        %1988 = vmatmul.mubr.f32.gmra.mxu0 %v219
        %v1989 = vpop.f32.mrf.mxu0
        %v1990 = vadd.f32 %v836, %v1989
        %v1991 = vpop.f32.mrf.mxu0
        %v1992 = vadd.f32 %v840, %v1991
        %1993 = vmatprep.mubr.f32.mxu0 %v224
        %1994 = vmatmul.mubr.f32.gmra.mxu0 %v223
        %v1995 = vpop.f32.mrf.mxu0
        %v1996 = vadd.f32 %v836, %v1995
        %v1997 = vpop.f32.mrf.mxu0
        %v1998 = vadd.f32 %v840, %v1997
        %1999 = vmatprep.mubr.f32.mxu0 %v228
        %2000 = vmatmul.mubr.f32.gmra.mxu0 %v227
        %v2001 = vpop.f32.mrf.mxu0
        %v2002 = vadd.f32 %v836, %v2001
        %v2003 = vpop.f32.mrf.mxu0
        %v2004 = vadd.f32 %v840, %v2003
        %2005 = vmatprep.mubr.f32.mxu0 %v232
        %2006 = vmatmul.mubr.f32.gmra.mxu0 %v231
        %v2007 = vpop.f32.mrf.mxu0
        %v2008 = vadd.f32 %v836, %v2007
        %v2009 = vpop.f32.mrf.mxu0
        %v2010 = vadd.f32 %v840, %v2009
        %2011 = vmatprep.mubr.f32.mxu0 %v236
        %2012 = vmatmul.mubr.f32.gmra.mxu0 %v235
        %v2013 = vpop.f32.mrf.mxu0
        %v2014 = vadd.f32 %v836, %v2013
        %v2015 = vpop.f32.mrf.mxu0
        %v2016 = vadd.f32 %v840, %v2015
        %2017 = vmatprep.mubr.f32.mxu0 %v240
        %2018 = vmatmul.mubr.f32.gmra.mxu0 %v239
        %v2019 = vpop.f32.mrf.mxu0
        %v2020 = vadd.f32 %v836, %v2019
        %v2021 = vpop.f32.mrf.mxu0
        %v2022 = vadd.f32 %v840, %v2021
        %2023 = vmatprep.mubr.f32.mxu0 %v244
        %2024 = vmatmul.mubr.f32.gmra.mxu0 %v243
        %v2025 = vpop.f32.mrf.mxu0
        %v2026 = vadd.f32 %v836, %v2025
        %v2027 = vpop.f32.mrf.mxu0
        %v2028 = vadd.f32 %v840, %v2027
        %2029 = vmatprep.mubr.f32.mxu0 %v248
        %2030 = vmatmul.mubr.f32.gmra.mxu0 %v247
        %v2031 = vpop.f32.mrf.mxu0
        %v2032 = vadd.f32 %v836, %v2031
        %v2033 = vpop.f32.mrf.mxu0
        %v2034 = vadd.f32 %v840, %v2033
        %2035 = vmatprep.mubr.f32.mxu0 %v252
        %2036 = vmatmul.mubr.f32.gmra.mxu0 %v251
        %v2037 = vpop.f32.mrf.mxu0
        %v2038 = vadd.f32 %v836, %v2037
        %v2039 = vpop.f32.mrf.mxu0
        %v2040 = vadd.f32 %v840, %v2039
        %2041 = vmatprep.mubr.f32.mxu0 %v256
        %2042 = vmatmul.mubr.f32.gmra.mxu0 %v255
        %v2043 = vpop.f32.mrf.mxu0
        %v2044 = vadd.f32 %v836, %v2043
        %v2045 = vpop.f32.mrf.mxu0
        %v2046 = vadd.f32 %v840, %v2045
        %2047 = vmatprep.mubr.f32.mxu0 %v260
        %2048 = vmatmul.mubr.f32.gmra.mxu0 %v259
        %v2049 = vpop.f32.mrf.mxu0
        %v2050 = vadd.f32 %v836, %v2049
        %v2051 = vpop.f32.mrf.mxu0
        %v2052 = vadd.f32 %v840, %v2051
        %2053 = vmatprep.mubr.f32.mxu0 %v264
        %2054 = vmatmul.mubr.f32.gmra.mxu0 %v263
        %v2055 = vpop.f32.mrf.mxu0
        %v2056 = vadd.f32 %v836, %v2055
        %v2057 = vpop.f32.mrf.mxu0
        %v2058 = vadd.f32 %v840, %v2057
        %2059 = vmatprep.mubr.f32.mxu0 %v268
        %2060 = vmatmul.mubr.f32.gmra.mxu0 %v267
        %v2061 = vpop.f32.mrf.mxu0
        %v2062 = vadd.f32 %v836, %v2061
        %v2063 = vpop.f32.mrf.mxu0
        %v2064 = vadd.f32 %v840, %v2063
        %2065 = vmatprep.mubr.f32.mxu0 %v272
        %2066 = vmatmul.mubr.f32.gmra.mxu0 %v271
        %v2067 = vpop.f32.mrf.mxu0
        %v2068 = vadd.f32 %v836, %v2067
        %v2069 = vpop.f32.mrf.mxu0
        %v2070 = vadd.f32 %v840, %v2069
        %2071 = vmatprep.mubr.f32.mxu0 %v276
        %2072 = vmatmul.mubr.f32.gmra.mxu0 %v275
        %v2073 = vpop.f32.mrf.mxu0
        %v2074 = vadd.f32 %v836, %v2073
        %v2075 = vpop.f32.mrf.mxu0
        %v2076 = vadd.f32 %v840, %v2075
        %2077 = vmatprep.mubr.f32.mxu0 %v280
        %2078 = vmatmul.mubr.f32.gmra.mxu0 %v279
        %v2079 = vpop.f32.mrf.mxu0
        %v2080 = vadd.f32 %v836, %v2079
        %v2081 = vpop.f32.mrf.mxu0
        %v2082 = vadd.f32 %v840, %v2081
        %2083 = vmatprep.mubr.f32.mxu0 %v284
        %2084 = vmatmul.mubr.f32.gmra.mxu0 %v283
        %v2085 = vpop.f32.mrf.mxu0
        %v2086 = vadd.f32 %v836, %v2085
        %v2087 = vpop.f32.mrf.mxu0
        %v2088 = vadd.f32 %v840, %v2087
        %2089 = vmatprep.mubr.f32.mxu0 %v288
        %2090 = vmatmul.mubr.f32.gmra.mxu0 %v287
        %v2091 = vpop.f32.mrf.mxu0
        %v2092 = vadd.f32 %v836, %v2091
        %v2093 = vpop.f32.mrf.mxu0
        %v2094 = vadd.f32 %v840, %v2093
        %2095 = vmatprep.mubr.f32.mxu0 %v292
        %2096 = vmatmul.mubr.f32.gmra.mxu0 %v291
        %v2097 = vpop.f32.mrf.mxu0
        %v2098 = vadd.f32 %v836, %v2097
        %v2099 = vpop.f32.mrf.mxu0
        %v2100 = vadd.f32 %v840, %v2099
        %2101 = vdwg.mxu0
        %2102 = vmatprep.subr.mxu0 %v678
        %2103 = vmatpush1.msra.mxu0 %v677
        %2104 = vmatprep.subr.mxu0 %v670
        %2105 = vmatpush1.msra.mxu0 %v669
        %2106 = vmatprep.subr.mxu0 %v662
        %2107 = vmatpush1.msra.mxu0 %v661
        %2108 = vmatprep.subr.mxu0 %v654
        %2109 = vmatpush1.msra.mxu0 %v653
        %2110 = vmatprep.subr.mxu0 %v646
        %2111 = vmatpush1.msra.mxu0 %v645
        %2112 = vmatprep.subr.mxu0 %v638
        %2113 = vmatpush1.msra.mxu0 %v637
        %2114 = vmatprep.subr.mxu0 %v630
        %2115 = vmatpush1.msra.mxu0 %v629
        %2116 = vmatprep.subr.mxu0 %v622
        %2117 = vmatpush1.msra.mxu0 %v621
        %2118 = vmatprep.subr.mxu0 %v614
        %2119 = vmatpush1.msra.mxu0 %v613
        %2120 = vmatprep.subr.mxu0 %v606
        %2121 = vmatpush1.msra.mxu0 %v605
        %2122 = vmatprep.subr.mxu0 %v598
        %2123 = vmatpush1.msra.mxu0 %v597
        %2124 = vmatprep.subr.mxu0 %v590
        %2125 = vmatpush1.msra.mxu0 %v589
        %2126 = vmatprep.subr.mxu0 %v582
        %2127 = vmatpush1.msra.mxu0 %v581
        %2128 = vmatprep.subr.mxu0 %v574
        %2129 = vmatpush1.msra.mxu0 %v573
        %2130 = vmatprep.subr.mxu0 %v566
        %2131 = vmatpush1.msra.mxu0 %v565
        %2132 = vmatprep.subr.mxu0 %v558
        %2133 = vmatpush1.msra.mxu0 %v557
        %2134 = vmatprep.subr.mxu0 %v806
        %2135 = vmatpush2.msra.mxu0 %v805
        %2136 = vmatprep.subr.mxu0 %v798
        %2137 = vmatpush2.msra.mxu0 %v797
        %2138 = vmatprep.subr.mxu0 %v790
        %2139 = vmatpush2.msra.mxu0 %v789
        %2140 = vmatprep.subr.mxu0 %v782
        %2141 = vmatpush2.msra.mxu0 %v781
        %2142 = vmatprep.subr.mxu0 %v774
        %2143 = vmatpush2.msra.mxu0 %v773
        %2144 = vmatprep.subr.mxu0 %v766
        %2145 = vmatpush2.msra.mxu0 %v765
        %2146 = vmatprep.subr.mxu0 %v758
        %2147 = vmatpush2.msra.mxu0 %v757
        %2148 = vmatprep.subr.mxu0 %v750
        %2149 = vmatpush2.msra.mxu0 %v749
        %2150 = vmatprep.subr.mxu0 %v742
        %2151 = vmatpush2.msra.mxu0 %v741
        %2152 = vmatprep.subr.mxu0 %v734
        %2153 = vmatpush2.msra.mxu0 %v733
        %2154 = vmatprep.subr.mxu0 %v726
        %2155 = vmatpush2.msra.mxu0 %v725
        %2156 = vmatprep.subr.mxu0 %v718
        %2157 = vmatpush2.msra.mxu0 %v717
        %2158 = vmatprep.subr.mxu0 %v710
        %2159 = vmatpush2.msra.mxu0 %v709
        %2160 = vmatprep.subr.mxu0 %v702
        %2161 = vmatpush2.msra.mxu0 %v701
        %2162 = vmatprep.subr.mxu0 %v694
        %2163 = vmatpush2.msra.mxu0 %v693
        %2164 = vmatprep.subr.mxu0 %v686
        %2165 = vmatpush2.msra.mxu0 %v685
        %2166 = vmatprep.mubr.f32.mxu0 %v222
        %2167 = vmatmul.mubr.f32.gmra.mxu0 %v221
        %v2168 = vpop.f32.mrf.mxu0
        %v2169 = vadd.f32 %v1990, %v2168
        %v2170 = vpop.f32.mrf.mxu0
        %v2171 = vadd.f32 %v1992, %v2170
        %2172 = vmatprep.mubr.f32.mxu0 %v226
        %2173 = vmatmul.mubr.f32.gmra.mxu0 %v225
        %v2174 = vpop.f32.mrf.mxu0
        %v2175 = vadd.f32 %v1996, %v2174
        %v2176 = vpop.f32.mrf.mxu0
        %v2177 = vadd.f32 %v1998, %v2176
        %2178 = vmatprep.mubr.f32.mxu0 %v230
        %2179 = vmatmul.mubr.f32.gmra.mxu0 %v229
        %v2180 = vpop.f32.mrf.mxu0
        %v2181 = vadd.f32 %v2002, %v2180
        %v2182 = vpop.f32.mrf.mxu0
        %v2183 = vadd.f32 %v2004, %v2182
        %2184 = vmatprep.mubr.f32.mxu0 %v234
        %2185 = vmatmul.mubr.f32.gmra.mxu0 %v233
        %v2186 = vpop.f32.mrf.mxu0
        %v2187 = vadd.f32 %v2008, %v2186
        %v2188 = vpop.f32.mrf.mxu0
        %v2189 = vadd.f32 %v2010, %v2188
        %2190 = vmatprep.mubr.f32.mxu0 %v238
        %2191 = vmatmul.mubr.f32.gmra.mxu0 %v237
        %v2192 = vpop.f32.mrf.mxu0
        %v2193 = vadd.f32 %v2014, %v2192
        %v2194 = vpop.f32.mrf.mxu0
        %v2195 = vadd.f32 %v2016, %v2194
        %2196 = vmatprep.mubr.f32.mxu0 %v242
        %2197 = vmatmul.mubr.f32.gmra.mxu0 %v241
        %v2198 = vpop.f32.mrf.mxu0
        %v2199 = vadd.f32 %v2020, %v2198
        %v2200 = vpop.f32.mrf.mxu0
        %v2201 = vadd.f32 %v2022, %v2200
        %2202 = vmatprep.mubr.f32.mxu0 %v246
        %2203 = vmatmul.mubr.f32.gmra.mxu0 %v245
        %v2204 = vpop.f32.mrf.mxu0
        %v2205 = vadd.f32 %v2026, %v2204
        %v2206 = vpop.f32.mrf.mxu0
        %v2207 = vadd.f32 %v2028, %v2206
        %2208 = vmatprep.mubr.f32.mxu0 %v250
        %2209 = vmatmul.mubr.f32.gmra.mxu0 %v249
        %v2210 = vpop.f32.mrf.mxu0
        %v2211 = vadd.f32 %v2032, %v2210
        %v2212 = vpop.f32.mrf.mxu0
        %v2213 = vadd.f32 %v2034, %v2212
        %2214 = vmatprep.mubr.f32.mxu0 %v254
        %2215 = vmatmul.mubr.f32.gmra.mxu0 %v253
        %v2216 = vpop.f32.mrf.mxu0
        %v2217 = vadd.f32 %v2038, %v2216
        %v2218 = vpop.f32.mrf.mxu0
        %v2219 = vadd.f32 %v2040, %v2218
        %2220 = vmatprep.mubr.f32.mxu0 %v258
        %2221 = vmatmul.mubr.f32.gmra.mxu0 %v257
        %v2222 = vpop.f32.mrf.mxu0
        %v2223 = vadd.f32 %v2044, %v2222
        %v2224 = vpop.f32.mrf.mxu0
        %v2225 = vadd.f32 %v2046, %v2224
        %2226 = vmatprep.mubr.f32.mxu0 %v262
        %2227 = vmatmul.mubr.f32.gmra.mxu0 %v261
        %v2228 = vpop.f32.mrf.mxu0
        %v2229 = vadd.f32 %v2050, %v2228
        %v2230 = vpop.f32.mrf.mxu0
        %v2231 = vadd.f32 %v2052, %v2230
        %2232 = vmatprep.mubr.f32.mxu0 %v266
        %2233 = vmatmul.mubr.f32.gmra.mxu0 %v265
        %v2234 = vpop.f32.mrf.mxu0
        %v2235 = vadd.f32 %v2056, %v2234
        %v2236 = vpop.f32.mrf.mxu0
        %v2237 = vadd.f32 %v2058, %v2236
        %2238 = vmatprep.mubr.f32.mxu0 %v270
        %2239 = vmatmul.mubr.f32.gmra.mxu0 %v269
        %v2240 = vpop.f32.mrf.mxu0
        %v2241 = vadd.f32 %v2062, %v2240
        %v2242 = vpop.f32.mrf.mxu0
        %v2243 = vadd.f32 %v2064, %v2242
        %2244 = vmatprep.mubr.f32.mxu0 %v274
        %2245 = vmatmul.mubr.f32.gmra.mxu0 %v273
        %v2246 = vpop.f32.mrf.mxu0
        %v2247 = vadd.f32 %v2068, %v2246
        %v2248 = vpop.f32.mrf.mxu0
        %v2249 = vadd.f32 %v2070, %v2248
        %2250 = vmatprep.mubr.f32.mxu0 %v278
        %2251 = vmatmul.mubr.f32.gmra.mxu0 %v277
        %v2252 = vpop.f32.mrf.mxu0
        %v2253 = vadd.f32 %v2074, %v2252
        %v2254 = vpop.f32.mrf.mxu0
        %v2255 = vadd.f32 %v2076, %v2254
        %2256 = vmatprep.mubr.f32.mxu0 %v282
        %2257 = vmatmul.mubr.f32.gmra.mxu0 %v281
        %v2258 = vpop.f32.mrf.mxu0
        %v2259 = vadd.f32 %v2080, %v2258
        %v2260 = vpop.f32.mrf.mxu0
        %v2261 = vadd.f32 %v2082, %v2260
        %2262 = vmatprep.mubr.f32.mxu0 %v286
        %2263 = vmatmul.mubr.f32.gmra.mxu0 %v285
        %v2264 = vpop.f32.mrf.mxu0
        %v2265 = vadd.f32 %v2086, %v2264
        %v2266 = vpop.f32.mrf.mxu0
        %v2267 = vadd.f32 %v2088, %v2266
        %2268 = vmatprep.mubr.f32.mxu0 %v290
        %2269 = vmatmul.mubr.f32.gmra.mxu0 %v289
        %v2270 = vpop.f32.mrf.mxu0
        %v2271 = vadd.f32 %v2092, %v2270
        %v2272 = vpop.f32.mrf.mxu0
        %v2273 = vadd.f32 %v2094, %v2272
        %2274 = vmatprep.mubr.f32.mxu0 %v294
        %2275 = vmatmul.mubr.f32.gmra.mxu0 %v293
        %v2276 = vpop.f32.mrf.mxu0
        %v2277 = vadd.f32 %v2098, %v2276
        %v2278 = vpop.f32.mrf.mxu0
        %v2279 = vadd.f32 %v2100, %v2278
        %2280 = vdwg.mxu0
        %v2281 = vxor.u32 %v1095, 2147483648
        %v2282 = vxor.u32 %v1097, 2147483648
        %v2283 = vxor.u32 %v1453, 2147483648
        %v2284 = vxor.u32 %v1455, 2147483648
        %v2285 = vxor.u32 %v1101, 2147483648
        %v2286 = vxor.u32 %v1103, 2147483648
        %v2287 = vxor.u32 %v1459, 2147483648
        %v2288 = vxor.u32 %v1461, 2147483648
        %v2289 = vxor.u32 %v1107, 2147483648
        %v2290 = vxor.u32 %v1109, 2147483648
        %v2291 = vxor.u32 %v1465, 2147483648
        %v2292 = vxor.u32 %v1467, 2147483648
        %v2293 = vxor.u32 %v1113, 2147483648
        %v2294 = vxor.u32 %v1115, 2147483648
        %v2295 = vxor.u32 %v1471, 2147483648
        %v2296 = vxor.u32 %v1473, 2147483648
        %v2297 = vxor.u32 %v1119, 2147483648
        %v2298 = vxor.u32 %v1121, 2147483648
        %v2299 = vxor.u32 %v1477, 2147483648
        %v2300 = vxor.u32 %v1479, 2147483648
        %v2301 = vxor.u32 %v1125, 2147483648
        %v2302 = vxor.u32 %v1127, 2147483648
        %v2303 = vxor.u32 %v1483, 2147483648
        %v2304 = vxor.u32 %v1485, 2147483648
        %v2305 = vxor.u32 %v1131, 2147483648
        %v2306 = vxor.u32 %v1133, 2147483648
        %v2307 = vxor.u32 %v1489, 2147483648
        %v2308 = vxor.u32 %v1491, 2147483648
        %v2309 = vxor.u32 %v1137, 2147483648
        %v2310 = vxor.u32 %v1139, 2147483648
        %v2311 = vxor.u32 %v1495, 2147483648
        %v2312 = vxor.u32 %v1497, 2147483648
        %v2313 = vxor.u32 %v1143, 2147483648
        %v2314 = vxor.u32 %v1145, 2147483648
        %v2315 = vxor.u32 %v1501, 2147483648
        %v2316 = vxor.u32 %v1503, 2147483648
        %v2317 = vxor.u32 %v1149, 2147483648
        %v2318 = vxor.u32 %v1151, 2147483648
        %v2319 = vxor.u32 %v1507, 2147483648
        %v2320 = vxor.u32 %v1509, 2147483648
        %v2321 = vxor.u32 %v1155, 2147483648
        %v2322 = vxor.u32 %v1157, 2147483648
        %v2323 = vxor.u32 %v1513, 2147483648
        %v2324 = vxor.u32 %v1515, 2147483648
        %v2325 = vxor.u32 %v1161, 2147483648
        %v2326 = vxor.u32 %v1163, 2147483648
        %v2327 = vxor.u32 %v1519, 2147483648
        %v2328 = vxor.u32 %v1521, 2147483648
        %v2329 = vxor.u32 %v1167, 2147483648
        %v2330 = vxor.u32 %v1169, 2147483648
        %v2331 = vxor.u32 %v1525, 2147483648
        %v2332 = vxor.u32 %v1527, 2147483648
        %v2333 = vxor.u32 %v1173, 2147483648
        %v2334 = vxor.u32 %v1175, 2147483648
        %v2335 = vxor.u32 %v1531, 2147483648
        %v2336 = vxor.u32 %v1533, 2147483648
        %v2337 = vxor.u32 %v1179, 2147483648
        %v2338 = vxor.u32 %v1181, 2147483648
        %v2339 = vxor.u32 %v1537, 2147483648
        %v2340 = vxor.u32 %v1539, 2147483648
        %v2341 = vxor.u32 %v1185, 2147483648
        %v2342 = vxor.u32 %v1187, 2147483648
        %v2343 = vxor.u32 %v1543, 2147483648
        %v2344 = vxor.u32 %v1545, 2147483648
        %v2345 = vxor.u32 %v1191, 2147483648
        %v2346 = vxor.u32 %v1193, 2147483648
        %v2347 = vxor.u32 %v1549, 2147483648
        %v2348 = vxor.u32 %v1551, 2147483648
        %v2349 = vxor.u32 %v1197, 2147483648
        %v2350 = vxor.u32 %v1199, 2147483648
        %v2351 = vxor.u32 %v1555, 2147483648
        %v2352 = vxor.u32 %v1557, 2147483648
        %v2353 = vxor.u32 %v1203, 2147483648
        %v2354 = vxor.u32 %v1205, 2147483648
        %v2355 = vxor.u32 %v1561, 2147483648
        %v2356 = vxor.u32 %v1563, 2147483648
        %v2357 = vmul.f32 %v2281, 1.442695
        %v2358 = vpow.pop %v2357
        %v2359 = vmul.f32 %v2282, 1.442695
        %v2360 = vpow.pop %v2359
        %v2361 = vmul.f32 %v2283, 1.442695
        %v2362 = vpow.pop %v2361
        %v2363 = vmul.f32 %v2284, 1.442695
        %v2364 = vpow.pop %v2363
        %v2365 = vmul.f32 %v2285, 1.442695
        %v2366 = vpow.pop %v2365
        %v2367 = vmul.f32 %v2286, 1.442695
        %v2368 = vpow.pop %v2367
        %v2369 = vmul.f32 %v2287, 1.442695
        %v2370 = vpow.pop %v2369
        %v2371 = vmul.f32 %v2288, 1.442695
        %v2372 = vpow.pop %v2371
        %v2373 = vmul.f32 %v2289, 1.442695
        %v2374 = vpow.pop %v2373
        %v2375 = vmul.f32 %v2290, 1.442695
        %v2376 = vpow.pop %v2375
        %v2377 = vmul.f32 %v2291, 1.442695
        %v2378 = vpow.pop %v2377
        %v2379 = vmul.f32 %v2292, 1.442695
        %v2380 = vpow.pop %v2379
        %v2381 = vmul.f32 %v2293, 1.442695
        %v2382 = vpow.pop %v2381
        %v2383 = vmul.f32 %v2294, 1.442695
        %v2384 = vpow.pop %v2383
        %v2385 = vmul.f32 %v2295, 1.442695
        %v2386 = vpow.pop %v2385
        %v2387 = vmul.f32 %v2296, 1.442695
        %v2388 = vpow.pop %v2387
        %v2389 = vmul.f32 %v2297, 1.442695
        %v2390 = vpow.pop %v2389
        %v2391 = vmul.f32 %v2298, 1.442695
        %v2392 = vpow.pop %v2391
        %v2393 = vmul.f32 %v2299, 1.442695
        %v2394 = vpow.pop %v2393
        %v2395 = vmul.f32 %v2300, 1.442695
        %v2396 = vpow.pop %v2395
        %v2397 = vmul.f32 %v2301, 1.442695
        %v2398 = vpow.pop %v2397
        %v2399 = vmul.f32 %v2302, 1.442695
        %v2400 = vpow.pop %v2399
        %v2401 = vmul.f32 %v2303, 1.442695
        %v2402 = vpow.pop %v2401
        %v2403 = vmul.f32 %v2304, 1.442695
        %v2404 = vpow.pop %v2403
        %v2405 = vmul.f32 %v2305, 1.442695
        %v2406 = vpow.pop %v2405
        %v2407 = vmul.f32 %v2306, 1.442695
        %v2408 = vpow.pop %v2407
        %v2409 = vmul.f32 %v2307, 1.442695
        %v2410 = vpow.pop %v2409
        %v2411 = vmul.f32 %v2308, 1.442695
        %v2412 = vpow.pop %v2411
        %v2413 = vmul.f32 %v2309, 1.442695
        %v2414 = vpow.pop %v2413
        %v2415 = vmul.f32 %v2310, 1.442695
        %v2416 = vpow.pop %v2415
        %v2417 = vmul.f32 %v2311, 1.442695
        %v2418 = vpow.pop %v2417
        %v2419 = vmul.f32 %v2312, 1.442695
        %v2420 = vpow.pop %v2419
        %v2421 = vmul.f32 %v2313, 1.442695
        %v2422 = vpow.pop %v2421
        %v2423 = vmul.f32 %v2314, 1.442695
        %v2424 = vpow.pop %v2423
        %v2425 = vmul.f32 %v2315, 1.442695
        %v2426 = vpow.pop %v2425
        %v2427 = vmul.f32 %v2316, 1.442695
        %v2428 = vpow.pop %v2427
        %v2429 = vmul.f32 %v2317, 1.442695
        %v2430 = vpow.pop %v2429
        %v2431 = vmul.f32 %v2318, 1.442695
        %v2432 = vpow.pop %v2431
        %v2433 = vmul.f32 %v2319, 1.442695
        %v2434 = vpow.pop %v2433
        %v2435 = vmul.f32 %v2320, 1.442695
        %v2436 = vpow.pop %v2435
        %v2437 = vmul.f32 %v2321, 1.442695
        %v2438 = vpow.pop %v2437
        %v2439 = vmul.f32 %v2322, 1.442695
        %v2440 = vpow.pop %v2439
        %v2441 = vmul.f32 %v2323, 1.442695
        %v2442 = vpow.pop %v2441
        %v2443 = vmul.f32 %v2324, 1.442695
        %v2444 = vpow.pop %v2443
        %v2445 = vmul.f32 %v2325, 1.442695
        %v2446 = vpow.pop %v2445
        %v2447 = vmul.f32 %v2326, 1.442695
        %v2448 = vpow.pop %v2447
        %v2449 = vmul.f32 %v2327, 1.442695
        %v2450 = vpow.pop %v2449
        %v2451 = vmul.f32 %v2328, 1.442695
        %v2452 = vpow.pop %v2451
        %v2453 = vmul.f32 %v2329, 1.442695
        %v2454 = vpow.pop %v2453
        %v2455 = vmul.f32 %v2330, 1.442695
        %v2456 = vpow.pop %v2455
        %v2457 = vmul.f32 %v2331, 1.442695
        %v2458 = vpow.pop %v2457
        %v2459 = vmul.f32 %v2332, 1.442695
        %v2460 = vpow.pop %v2459
        %v2461 = vmul.f32 %v2333, 1.442695
        %v2462 = vpow.pop %v2461
        %v2463 = vmul.f32 %v2334, 1.442695
        %v2464 = vpow.pop %v2463
        %v2465 = vmul.f32 %v2335, 1.442695
        %v2466 = vpow.pop %v2465
        %v2467 = vmul.f32 %v2336, 1.442695
        %v2468 = vpow.pop %v2467
        %v2469 = vmul.f32 %v2337, 1.442695
        %v2470 = vpow.pop %v2469
        %v2471 = vmul.f32 %v2338, 1.442695
        %v2472 = vpow.pop %v2471
        %v2473 = vmul.f32 %v2339, 1.442695
        %v2474 = vpow.pop %v2473
        %v2475 = vmul.f32 %v2340, 1.442695
        %v2476 = vpow.pop %v2475
        %v2477 = vmul.f32 %v2341, 1.442695
        %v2478 = vpow.pop %v2477
        %v2479 = vmul.f32 %v2342, 1.442695
        %v2480 = vpow.pop %v2479
        %v2481 = vmul.f32 %v2343, 1.442695
        %v2482 = vpow.pop %v2481
        %v2483 = vmul.f32 %v2344, 1.442695
        %v2484 = vpow.pop %v2483
        %v2485 = vmul.f32 %v2345, 1.442695
        %v2486 = vpow.pop %v2485
        %v2487 = vmul.f32 %v2346, 1.442695
        %v2488 = vpow.pop %v2487
        %v2489 = vmul.f32 %v2347, 1.442695
        %v2490 = vpow.pop %v2489
        %v2491 = vmul.f32 %v2348, 1.442695
        %v2492 = vpow.pop %v2491
        %v2493 = vmul.f32 %v2349, 1.442695
        %v2494 = vpow.pop %v2493
        %v2495 = vmul.f32 %v2350, 1.442695
        %v2496 = vpow.pop %v2495
        %v2497 = vmul.f32 %v2351, 1.442695
        %v2498 = vpow.pop %v2497
        %v2499 = vmul.f32 %v2352, 1.442695
        %v2500 = vpow.pop %v2499
        %v2501 = vmul.f32 %v2353, 1.442695
        %v2502 = vpow.pop %v2501
        %v2503 = vmul.f32 %v2354, 1.442695
        %v2504 = vpow.pop %v2503
        %v2505 = vmul.f32 %v2355, 1.442695
        %v2506 = vpow.pop %v2505
        %v2507 = vmul.f32 %v2356, 1.442695
        %v2508 = vpow.pop %v2507
        %v2509 = vadd.f32 %v2358, 1.0
        %v2510 = vadd.f32 %v2360, 1.0
        %v2511 = vadd.f32 %v2362, 1.0
        %v2512 = vadd.f32 %v2364, 1.0
        %v2513 = vadd.f32 %v2366, 1.0
        %v2514 = vadd.f32 %v2368, 1.0
        %v2515 = vadd.f32 %v2370, 1.0
        %v2516 = vadd.f32 %v2372, 1.0
        %v2517 = vadd.f32 %v2374, 1.0
        %v2518 = vadd.f32 %v2376, 1.0
        %v2519 = vadd.f32 %v2378, 1.0
        %v2520 = vadd.f32 %v2380, 1.0
        %v2521 = vadd.f32 %v2382, 1.0
        %v2522 = vadd.f32 %v2384, 1.0
        %v2523 = vadd.f32 %v2386, 1.0
        %v2524 = vadd.f32 %v2388, 1.0
        %v2525 = vadd.f32 %v2390, 1.0
        %v2526 = vadd.f32 %v2392, 1.0
        %v2527 = vadd.f32 %v2394, 1.0
        %v2528 = vadd.f32 %v2396, 1.0
        %v2529 = vadd.f32 %v2398, 1.0
        %v2530 = vadd.f32 %v2400, 1.0
        %v2531 = vadd.f32 %v2402, 1.0
        %v2532 = vadd.f32 %v2404, 1.0
        %v2533 = vadd.f32 %v2406, 1.0
        %v2534 = vadd.f32 %v2408, 1.0
        %v2535 = vadd.f32 %v2410, 1.0
        %v2536 = vadd.f32 %v2412, 1.0
        %v2537 = vadd.f32 %v2414, 1.0
        %v2538 = vadd.f32 %v2416, 1.0
        %v2539 = vadd.f32 %v2418, 1.0
        %v2540 = vadd.f32 %v2420, 1.0
        %v2541 = vadd.f32 %v2422, 1.0
        %v2542 = vadd.f32 %v2424, 1.0
        %v2543 = vadd.f32 %v2426, 1.0
        %v2544 = vadd.f32 %v2428, 1.0
        %v2545 = vadd.f32 %v2430, 1.0
        %v2546 = vadd.f32 %v2432, 1.0
        %v2547 = vadd.f32 %v2434, 1.0
        %v2548 = vadd.f32 %v2436, 1.0
        %v2549 = vadd.f32 %v2438, 1.0
        %v2550 = vadd.f32 %v2440, 1.0
        %v2551 = vadd.f32 %v2442, 1.0
        %v2552 = vadd.f32 %v2444, 1.0
        %v2553 = vadd.f32 %v2446, 1.0
        %v2554 = vadd.f32 %v2448, 1.0
        %v2555 = vadd.f32 %v2450, 1.0
        %v2556 = vadd.f32 %v2452, 1.0
        %v2557 = vadd.f32 %v2454, 1.0
        %v2558 = vadd.f32 %v2456, 1.0
        %v2559 = vadd.f32 %v2458, 1.0
        %v2560 = vadd.f32 %v2460, 1.0
        %v2561 = vadd.f32 %v2462, 1.0
        %v2562 = vadd.f32 %v2464, 1.0
        %v2563 = vadd.f32 %v2466, 1.0
        %v2564 = vadd.f32 %v2468, 1.0
        %v2565 = vadd.f32 %v2470, 1.0
        %v2566 = vadd.f32 %v2472, 1.0
        %v2567 = vadd.f32 %v2474, 1.0
        %v2568 = vadd.f32 %v2476, 1.0
        %v2569 = vadd.f32 %v2478, 1.0
        %v2570 = vadd.f32 %v2480, 1.0
        %v2571 = vadd.f32 %v2482, 1.0
        %v2572 = vadd.f32 %v2484, 1.0
        %v2573 = vadd.f32 %v2486, 1.0
        %v2574 = vadd.f32 %v2488, 1.0
        %v2575 = vadd.f32 %v2490, 1.0
        %v2576 = vadd.f32 %v2492, 1.0
        %v2577 = vadd.f32 %v2494, 1.0
        %v2578 = vadd.f32 %v2496, 1.0
        %v2579 = vadd.f32 %v2498, 1.0
        %v2580 = vadd.f32 %v2500, 1.0
        %v2581 = vadd.f32 %v2502, 1.0
        %v2582 = vadd.f32 %v2504, 1.0
        %v2583 = vadd.f32 %v2506, 1.0
        %v2584 = vadd.f32 %v2508, 1.0
        %v2585 = vrcp.pop %v2509
        %v2586 = vmul.f32 1.0, %v2585
        %v2587 = vrcp.pop %v2510
        %v2588 = vmul.f32 1.0, %v2587
        %v2589 = vrcp.pop %v2511
        %v2590 = vmul.f32 1.0, %v2589
        %v2591 = vrcp.pop %v2512
        %v2592 = vmul.f32 1.0, %v2591
        %v2593 = vrcp.pop %v2513
        %v2594 = vmul.f32 1.0, %v2593
        %v2595 = vrcp.pop %v2514
        %v2596 = vmul.f32 1.0, %v2595
        %v2597 = vrcp.pop %v2515
        %v2598 = vmul.f32 1.0, %v2597
        %v2599 = vrcp.pop %v2516
        %v2600 = vmul.f32 1.0, %v2599
        %v2601 = vrcp.pop %v2517
        %v2602 = vmul.f32 1.0, %v2601
        %v2603 = vrcp.pop %v2518
        %v2604 = vmul.f32 1.0, %v2603
        %v2605 = vrcp.pop %v2519
        %v2606 = vmul.f32 1.0, %v2605
        %v2607 = vrcp.pop %v2520
        %v2608 = vmul.f32 1.0, %v2607
        %v2609 = vrcp.pop %v2521
        %v2610 = vmul.f32 1.0, %v2609
        %v2611 = vrcp.pop %v2522
        %v2612 = vmul.f32 1.0, %v2611
        %v2613 = vrcp.pop %v2523
        %v2614 = vmul.f32 1.0, %v2613
        %v2615 = vrcp.pop %v2524
        %v2616 = vmul.f32 1.0, %v2615
        %v2617 = vrcp.pop %v2525
        %v2618 = vmul.f32 1.0, %v2617
        %v2619 = vrcp.pop %v2526
        %v2620 = vmul.f32 1.0, %v2619
        %v2621 = vrcp.pop %v2527
        %v2622 = vmul.f32 1.0, %v2621
        %v2623 = vrcp.pop %v2528
        %v2624 = vmul.f32 1.0, %v2623
        %v2625 = vrcp.pop %v2529
        %v2626 = vmul.f32 1.0, %v2625
        %v2627 = vrcp.pop %v2530
        %v2628 = vmul.f32 1.0, %v2627
        %v2629 = vrcp.pop %v2531
        %v2630 = vmul.f32 1.0, %v2629
        %v2631 = vrcp.pop %v2532
        %v2632 = vmul.f32 1.0, %v2631
        %v2633 = vrcp.pop %v2533
        %v2634 = vmul.f32 1.0, %v2633
        %v2635 = vrcp.pop %v2534
        %v2636 = vmul.f32 1.0, %v2635
        %v2637 = vrcp.pop %v2535
        %v2638 = vmul.f32 1.0, %v2637
        %v2639 = vrcp.pop %v2536
        %v2640 = vmul.f32 1.0, %v2639
        %v2641 = vrcp.pop %v2537
        %v2642 = vmul.f32 1.0, %v2641
        %v2643 = vrcp.pop %v2538
        %v2644 = vmul.f32 1.0, %v2643
        %v2645 = vrcp.pop %v2539
        %v2646 = vmul.f32 1.0, %v2645
        %v2647 = vrcp.pop %v2540
        %v2648 = vmul.f32 1.0, %v2647
        %v2649 = vrcp.pop %v2541
        %v2650 = vmul.f32 1.0, %v2649
        %v2651 = vrcp.pop %v2542
        %v2652 = vmul.f32 1.0, %v2651
        %v2653 = vrcp.pop %v2543
        %v2654 = vmul.f32 1.0, %v2653
        %v2655 = vrcp.pop %v2544
        %v2656 = vmul.f32 1.0, %v2655
        %v2657 = vrcp.pop %v2545
        %v2658 = vmul.f32 1.0, %v2657
        %v2659 = vrcp.pop %v2546
        %v2660 = vmul.f32 1.0, %v2659
        %v2661 = vrcp.pop %v2547
        %v2662 = vmul.f32 1.0, %v2661
        %v2663 = vrcp.pop %v2548
        %v2664 = vmul.f32 1.0, %v2663
        %v2665 = vrcp.pop %v2549
        %v2666 = vmul.f32 1.0, %v2665
        %v2667 = vrcp.pop %v2550
        %v2668 = vmul.f32 1.0, %v2667
        %v2669 = vrcp.pop %v2551
        %v2670 = vmul.f32 1.0, %v2669
        %v2671 = vrcp.pop %v2552
        %v2672 = vmul.f32 1.0, %v2671
        %v2673 = vrcp.pop %v2553
        %v2674 = vmul.f32 1.0, %v2673
        %v2675 = vrcp.pop %v2554
        %v2676 = vmul.f32 1.0, %v2675
        %v2677 = vrcp.pop %v2555
        %v2678 = vmul.f32 1.0, %v2677
        %v2679 = vrcp.pop %v2556
        %v2680 = vmul.f32 1.0, %v2679
        %v2681 = vrcp.pop %v2557
        %v2682 = vmul.f32 1.0, %v2681
        %v2683 = vrcp.pop %v2558
        %v2684 = vmul.f32 1.0, %v2683
        %v2685 = vrcp.pop %v2559
        %v2686 = vmul.f32 1.0, %v2685
        %v2687 = vrcp.pop %v2560
        %v2688 = vmul.f32 1.0, %v2687
        %v2689 = vrcp.pop %v2561
        %v2690 = vmul.f32 1.0, %v2689
        %v2691 = vrcp.pop %v2562
        %v2692 = vmul.f32 1.0, %v2691
        %v2693 = vrcp.pop %v2563
        %v2694 = vmul.f32 1.0, %v2693
        %v2695 = vrcp.pop %v2564
        %v2696 = vmul.f32 1.0, %v2695
        %v2697 = vrcp.pop %v2565
        %v2698 = vmul.f32 1.0, %v2697
        %v2699 = vrcp.pop %v2566
        %v2700 = vmul.f32 1.0, %v2699
        %v2701 = vrcp.pop %v2567
        %v2702 = vmul.f32 1.0, %v2701
        %v2703 = vrcp.pop %v2568
        %v2704 = vmul.f32 1.0, %v2703
        %v2705 = vrcp.pop %v2569
        %v2706 = vmul.f32 1.0, %v2705
        %v2707 = vrcp.pop %v2570
        %v2708 = vmul.f32 1.0, %v2707
        %v2709 = vrcp.pop %v2571
        %v2710 = vmul.f32 1.0, %v2709
        %v2711 = vrcp.pop %v2572
        %v2712 = vmul.f32 1.0, %v2711
        %v2713 = vrcp.pop %v2573
        %v2714 = vmul.f32 1.0, %v2713
        %v2715 = vrcp.pop %v2574
        %v2716 = vmul.f32 1.0, %v2715
        %v2717 = vrcp.pop %v2575
        %v2718 = vmul.f32 1.0, %v2717
        %v2719 = vrcp.pop %v2576
        %v2720 = vmul.f32 1.0, %v2719
        %v2721 = vrcp.pop %v2577
        %v2722 = vmul.f32 1.0, %v2721
        %v2723 = vrcp.pop %v2578
        %v2724 = vmul.f32 1.0, %v2723
        %v2725 = vrcp.pop %v2579
        %v2726 = vmul.f32 1.0, %v2725
        %v2727 = vrcp.pop %v2580
        %v2728 = vmul.f32 1.0, %v2727
        %v2729 = vrcp.pop %v2581
        %v2730 = vmul.f32 1.0, %v2729
        %v2731 = vrcp.pop %v2582
        %v2732 = vmul.f32 1.0, %v2731
        %v2733 = vrcp.pop %v2583
        %v2734 = vmul.f32 1.0, %v2733
        %v2735 = vrcp.pop %v2584
        %v2736 = vmul.f32 1.0, %v2735
        %v2737 = vmax.f32 %v1811, 0.0
        %v2738 = vmax.f32 %v1813, 0.0
        %v2739 = vmax.f32 %v2169, 0.0
        %v2740 = vmax.f32 %v2171, 0.0
        %v2741 = vmax.f32 %v1817, 0.0
        %v2742 = vmax.f32 %v1819, 0.0
        %v2743 = vmax.f32 %v2175, 0.0
        %v2744 = vmax.f32 %v2177, 0.0
        %v2745 = vmax.f32 %v1823, 0.0
        %v2746 = vmax.f32 %v1825, 0.0
        %v2747 = vmax.f32 %v2181, 0.0
        %v2748 = vmax.f32 %v2183, 0.0
        %v2749 = vmax.f32 %v1829, 0.0
        %v2750 = vmax.f32 %v1831, 0.0
        %v2751 = vmax.f32 %v2187, 0.0
        %v2752 = vmax.f32 %v2189, 0.0
        %v2753 = vmax.f32 %v1835, 0.0
        %v2754 = vmax.f32 %v1837, 0.0
        %v2755 = vmax.f32 %v2193, 0.0
        %v2756 = vmax.f32 %v2195, 0.0
        %v2757 = vmax.f32 %v1841, 0.0
        %v2758 = vmax.f32 %v1843, 0.0
        %v2759 = vmax.f32 %v2199, 0.0
        %v2760 = vmax.f32 %v2201, 0.0
        %v2761 = vmax.f32 %v1847, 0.0
        %v2762 = vmax.f32 %v1849, 0.0
        %v2763 = vmax.f32 %v2205, 0.0
        %v2764 = vmax.f32 %v2207, 0.0
        %v2765 = vmax.f32 %v1853, 0.0
        %v2766 = vmax.f32 %v1855, 0.0
        %v2767 = vmax.f32 %v2211, 0.0
        %v2768 = vmax.f32 %v2213, 0.0
        %v2769 = vmax.f32 %v1859, 0.0
        %v2770 = vmax.f32 %v1861, 0.0
        %v2771 = vmax.f32 %v2217, 0.0
        %v2772 = vmax.f32 %v2219, 0.0
        %v2773 = vmax.f32 %v1865, 0.0
        %v2774 = vmax.f32 %v1867, 0.0
        %v2775 = vmax.f32 %v2223, 0.0
        %v2776 = vmax.f32 %v2225, 0.0
        %v2777 = vmax.f32 %v1871, 0.0
        %v2778 = vmax.f32 %v1873, 0.0
        %v2779 = vmax.f32 %v2229, 0.0
        %v2780 = vmax.f32 %v2231, 0.0
        %v2781 = vmax.f32 %v1877, 0.0
        %v2782 = vmax.f32 %v1879, 0.0
        %v2783 = vmax.f32 %v2235, 0.0
        %v2784 = vmax.f32 %v2237, 0.0
        %v2785 = vmax.f32 %v1883, 0.0
        %v2786 = vmax.f32 %v1885, 0.0
        %v2787 = vmax.f32 %v2241, 0.0
        %v2788 = vmax.f32 %v2243, 0.0
        %v2789 = vmax.f32 %v1889, 0.0
        %v2790 = vmax.f32 %v1891, 0.0
        %v2791 = vmax.f32 %v2247, 0.0
        %v2792 = vmax.f32 %v2249, 0.0
        %v2793 = vmax.f32 %v1895, 0.0
        %v2794 = vmax.f32 %v1897, 0.0
        %v2795 = vmax.f32 %v2253, 0.0
        %v2796 = vmax.f32 %v2255, 0.0
        %v2797 = vmax.f32 %v1901, 0.0
        %v2798 = vmax.f32 %v1903, 0.0
        %v2799 = vmax.f32 %v2259, 0.0
        %v2800 = vmax.f32 %v2261, 0.0
        %v2801 = vmax.f32 %v1907, 0.0
        %v2802 = vmax.f32 %v1909, 0.0
        %v2803 = vmax.f32 %v2265, 0.0
        %v2804 = vmax.f32 %v2267, 0.0
        %v2805 = vmax.f32 %v1913, 0.0
        %v2806 = vmax.f32 %v1915, 0.0
        %v2807 = vmax.f32 %v2271, 0.0
        %v2808 = vmax.f32 %v2273, 0.0
        %v2809 = vmax.f32 %v1919, 0.0
        %v2810 = vmax.f32 %v1921, 0.0
        %v2811 = vmax.f32 %v2277, 0.0
        %v2812 = vmax.f32 %v2279, 0.0
        %v2813 = vsub.f32 %v2737, %v219
        %v2814 = vsub.f32 %v2738, %v220
        %v2815 = vsub.f32 %v2739, %v221
        %v2816 = vsub.f32 %v2740, %v222
        %v2817 = vsub.f32 %v2741, %v223
        %v2818 = vsub.f32 %v2742, %v224
        %v2819 = vsub.f32 %v2743, %v225
        %v2820 = vsub.f32 %v2744, %v226
        %v2821 = vsub.f32 %v2745, %v227
        %v2822 = vsub.f32 %v2746, %v228
        %v2823 = vsub.f32 %v2747, %v229
        %v2824 = vsub.f32 %v2748, %v230
        %v2825 = vsub.f32 %v2749, %v231
        %v2826 = vsub.f32 %v2750, %v232
        %v2827 = vsub.f32 %v2751, %v233
        %v2828 = vsub.f32 %v2752, %v234
        %v2829 = vsub.f32 %v2753, %v235
        %v2830 = vsub.f32 %v2754, %v236
        %v2831 = vsub.f32 %v2755, %v237
        %v2832 = vsub.f32 %v2756, %v238
        %v2833 = vsub.f32 %v2757, %v239
        %v2834 = vsub.f32 %v2758, %v240
        %v2835 = vsub.f32 %v2759, %v241
        %v2836 = vsub.f32 %v2760, %v242
        %v2837 = vsub.f32 %v2761, %v243
        %v2838 = vsub.f32 %v2762, %v244
        %v2839 = vsub.f32 %v2763, %v245
        %v2840 = vsub.f32 %v2764, %v246
        %v2841 = vsub.f32 %v2765, %v247
        %v2842 = vsub.f32 %v2766, %v248
        %v2843 = vsub.f32 %v2767, %v249
        %v2844 = vsub.f32 %v2768, %v250
        %v2845 = vsub.f32 %v2769, %v251
        %v2846 = vsub.f32 %v2770, %v252
        %v2847 = vsub.f32 %v2771, %v253
        %v2848 = vsub.f32 %v2772, %v254
        %v2849 = vsub.f32 %v2773, %v255
        %v2850 = vsub.f32 %v2774, %v256
        %v2851 = vsub.f32 %v2775, %v257
        %v2852 = vsub.f32 %v2776, %v258
        %v2853 = vsub.f32 %v2777, %v259
        %v2854 = vsub.f32 %v2778, %v260
        %v2855 = vsub.f32 %v2779, %v261
        %v2856 = vsub.f32 %v2780, %v262
        %v2857 = vsub.f32 %v2781, %v263
        %v2858 = vsub.f32 %v2782, %v264
        %v2859 = vsub.f32 %v2783, %v265
        %v2860 = vsub.f32 %v2784, %v266
        %v2861 = vsub.f32 %v2785, %v267
        %v2862 = vsub.f32 %v2786, %v268
        %v2863 = vsub.f32 %v2787, %v269
        %v2864 = vsub.f32 %v2788, %v270
        %v2865 = vsub.f32 %v2789, %v271
        %v2866 = vsub.f32 %v2790, %v272
        %v2867 = vsub.f32 %v2791, %v273
        %v2868 = vsub.f32 %v2792, %v274
        %v2869 = vsub.f32 %v2793, %v275
        %v2870 = vsub.f32 %v2794, %v276
        %v2871 = vsub.f32 %v2795, %v277
        %v2872 = vsub.f32 %v2796, %v278
        %v2873 = vsub.f32 %v2797, %v279
        %v2874 = vsub.f32 %v2798, %v280
        %v2875 = vsub.f32 %v2799, %v281
        %v2876 = vsub.f32 %v2800, %v282
        %v2877 = vsub.f32 %v2801, %v283
        %v2878 = vsub.f32 %v2802, %v284
        %v2879 = vsub.f32 %v2803, %v285
        %v2880 = vsub.f32 %v2804, %v286
        %v2881 = vsub.f32 %v2805, %v287
        %v2882 = vsub.f32 %v2806, %v288
        %v2883 = vsub.f32 %v2807, %v289
        %v2884 = vsub.f32 %v2808, %v290
        %v2885 = vsub.f32 %v2809, %v291
        %v2886 = vsub.f32 %v2810, %v292
        %v2887 = vsub.f32 %v2811, %v293
        %v2888 = vsub.f32 %v2812, %v294
        %v2889 = vmul.f32 %v2586, %v2813
        %v2890 = vmul.f32 %v2588, %v2814
        %v2891 = vmul.f32 %v2590, %v2815
        %v2892 = vmul.f32 %v2592, %v2816
        %v2893 = vmul.f32 %v2594, %v2817
        %v2894 = vmul.f32 %v2596, %v2818
        %v2895 = vmul.f32 %v2598, %v2819
        %v2896 = vmul.f32 %v2600, %v2820
        %v2897 = vmul.f32 %v2602, %v2821
        %v2898 = vmul.f32 %v2604, %v2822
        %v2899 = vmul.f32 %v2606, %v2823
        %v2900 = vmul.f32 %v2608, %v2824
        %v2901 = vmul.f32 %v2610, %v2825
        %v2902 = vmul.f32 %v2612, %v2826
        %v2903 = vmul.f32 %v2614, %v2827
        %v2904 = vmul.f32 %v2616, %v2828
        %v2905 = vmul.f32 %v2618, %v2829
        %v2906 = vmul.f32 %v2620, %v2830
        %v2907 = vmul.f32 %v2622, %v2831
        %v2908 = vmul.f32 %v2624, %v2832
        %v2909 = vmul.f32 %v2626, %v2833
        %v2910 = vmul.f32 %v2628, %v2834
        %v2911 = vmul.f32 %v2630, %v2835
        %v2912 = vmul.f32 %v2632, %v2836
        %v2913 = vmul.f32 %v2634, %v2837
        %v2914 = vmul.f32 %v2636, %v2838
        %v2915 = vmul.f32 %v2638, %v2839
        %v2916 = vmul.f32 %v2640, %v2840
        %v2917 = vmul.f32 %v2642, %v2841
        %v2918 = vmul.f32 %v2644, %v2842
        %v2919 = vmul.f32 %v2646, %v2843
        %v2920 = vmul.f32 %v2648, %v2844
        %v2921 = vmul.f32 %v2650, %v2845
        %v2922 = vmul.f32 %v2652, %v2846
        %v2923 = vmul.f32 %v2654, %v2847
        %v2924 = vmul.f32 %v2656, %v2848
        %v2925 = vmul.f32 %v2658, %v2849
        %v2926 = vmul.f32 %v2660, %v2850
        %v2927 = vmul.f32 %v2662, %v2851
        %v2928 = vmul.f32 %v2664, %v2852
        %v2929 = vmul.f32 %v2666, %v2853
        %v2930 = vmul.f32 %v2668, %v2854
        %v2931 = vmul.f32 %v2670, %v2855
        %v2932 = vmul.f32 %v2672, %v2856
        %v2933 = vmul.f32 %v2674, %v2857
        %v2934 = vmul.f32 %v2676, %v2858
        %v2935 = vmul.f32 %v2678, %v2859
        %v2936 = vmul.f32 %v2680, %v2860
        %v2937 = vmul.f32 %v2682, %v2861
        %v2938 = vmul.f32 %v2684, %v2862
        %v2939 = vmul.f32 %v2686, %v2863
        %v2940 = vmul.f32 %v2688, %v2864
        %v2941 = vmul.f32 %v2690, %v2865
        %v2942 = vmul.f32 %v2692, %v2866
        %v2943 = vmul.f32 %v2694, %v2867
        %v2944 = vmul.f32 %v2696, %v2868
        %v2945 = vmul.f32 %v2698, %v2869
        %v2946 = vmul.f32 %v2700, %v2870
        %v2947 = vmul.f32 %v2702, %v2871
        %v2948 = vmul.f32 %v2704, %v2872
        %v2949 = vmul.f32 %v2706, %v2873
        %v2950 = vmul.f32 %v2708, %v2874
        %v2951 = vmul.f32 %v2710, %v2875
        %v2952 = vmul.f32 %v2712, %v2876
        %v2953 = vmul.f32 %v2714, %v2877
        %v2954 = vmul.f32 %v2716, %v2878
        %v2955 = vmul.f32 %v2718, %v2879
        %v2956 = vmul.f32 %v2720, %v2880
        %v2957 = vmul.f32 %v2722, %v2881
        %v2958 = vmul.f32 %v2724, %v2882
        %v2959 = vmul.f32 %v2726, %v2883
        %v2960 = vmul.f32 %v2728, %v2884
        %v2961 = vmul.f32 %v2730, %v2885
        %v2962 = vmul.f32 %v2732, %v2886
        %v2963 = vmul.f32 %v2734, %v2887
        %v2964 = vmul.f32 %v2736, %v2888
        %v2965 = vadd.f32 %v2889, %v219
        %v2966 = vadd.f32 %v2890, %v220
        %v2967 = vadd.f32 %v2891, %v221
        %v2968 = vadd.f32 %v2892, %v222
        %v2969 = vadd.f32 %v2893, %v223
        %v2970 = vadd.f32 %v2894, %v224
        %v2971 = vadd.f32 %v2895, %v225
        %v2972 = vadd.f32 %v2896, %v226
        %v2973 = vadd.f32 %v2897, %v227
        %v2974 = vadd.f32 %v2898, %v228
        %v2975 = vadd.f32 %v2899, %v229
        %v2976 = vadd.f32 %v2900, %v230
        %v2977 = vadd.f32 %v2901, %v231
        %v2978 = vadd.f32 %v2902, %v232
        %v2979 = vadd.f32 %v2903, %v233
        %v2980 = vadd.f32 %v2904, %v234
        %v2981 = vadd.f32 %v2905, %v235
        %v2982 = vadd.f32 %v2906, %v236
        %v2983 = vadd.f32 %v2907, %v237
        %v2984 = vadd.f32 %v2908, %v238
        %v2985 = vadd.f32 %v2909, %v239
        %v2986 = vadd.f32 %v2910, %v240
        %v2987 = vadd.f32 %v2911, %v241
        %v2988 = vadd.f32 %v2912, %v242
        %v2989 = vadd.f32 %v2913, %v243
        %v2990 = vadd.f32 %v2914, %v244
        %v2991 = vadd.f32 %v2915, %v245
        %v2992 = vadd.f32 %v2916, %v246
        %v2993 = vadd.f32 %v2917, %v247
        %v2994 = vadd.f32 %v2918, %v248
        %v2995 = vadd.f32 %v2919, %v249
        %v2996 = vadd.f32 %v2920, %v250
        %v2997 = vadd.f32 %v2921, %v251
        %v2998 = vadd.f32 %v2922, %v252
        %v2999 = vadd.f32 %v2923, %v253
        %v3000 = vadd.f32 %v2924, %v254
        %v3001 = vadd.f32 %v2925, %v255
        %v3002 = vadd.f32 %v2926, %v256
        %v3003 = vadd.f32 %v2927, %v257
        %v3004 = vadd.f32 %v2928, %v258
        %v3005 = vadd.f32 %v2929, %v259
        %v3006 = vadd.f32 %v2930, %v260
        %v3007 = vadd.f32 %v2931, %v261
        %v3008 = vadd.f32 %v2932, %v262
        %v3009 = vadd.f32 %v2933, %v263
        %v3010 = vadd.f32 %v2934, %v264
        %v3011 = vadd.f32 %v2935, %v265
        %v3012 = vadd.f32 %v2936, %v266
        %v3013 = vadd.f32 %v2937, %v267
        %v3014 = vadd.f32 %v2938, %v268
        %v3015 = vadd.f32 %v2939, %v269
        %v3016 = vadd.f32 %v2940, %v270
        %v3017 = vadd.f32 %v2941, %v271
        %v3018 = vadd.f32 %v2942, %v272
        %v3019 = vadd.f32 %v2943, %v273
        %v3020 = vadd.f32 %v2944, %v274
        %v3021 = vadd.f32 %v2945, %v275
        %v3022 = vadd.f32 %v2946, %v276
        %v3023 = vadd.f32 %v2947, %v277
        %v3024 = vadd.f32 %v2948, %v278
        %v3025 = vadd.f32 %v2949, %v279
        %v3026 = vadd.f32 %v2950, %v280
        %v3027 = vadd.f32 %v2951, %v281
        %v3028 = vadd.f32 %v2952, %v282
        %v3029 = vadd.f32 %v2953, %v283
        %v3030 = vadd.f32 %v2954, %v284
        %v3031 = vadd.f32 %v2955, %v285
        %v3032 = vadd.f32 %v2956, %v286
        %v3033 = vadd.f32 %v2957, %v287
        %v3034 = vadd.f32 %v2958, %v288
        %v3035 = vadd.f32 %v2959, %v289
        %v3036 = vadd.f32 %v2960, %v290
        %v3037 = vadd.f32 %v2961, %v291
        %v3038 = vadd.f32 %v2962, %v292
        %v3039 = vadd.f32 %v2963, %v293
        %v3040 = vadd.f32 %v2964, %v294
        %3041 = vst [vmem:[%s216] sm:$0xff] %v2965
        %3042 = vst [vmem:[%s216 + $0x8] sm:$0xff] %v2966
        %3043 = vst [vmem:[%s216 + $0x10] sm:$0xff] %v2967
        %3044 = vst [vmem:[%s216 + $0x18] sm:$0xff] %v2968
        %3045 = vst [vmem:[%s216 + $0x20] sm:$0xff] %v2969
        %3046 = vst [vmem:[%s216 + $0x28] sm:$0xff] %v2970
        %3047 = vst [vmem:[%s216 + $0x30] sm:$0xff] %v2971
        %3048 = vst [vmem:[%s216 + $0x38] sm:$0xff] %v2972
        %3049 = vst [vmem:[%s216 + $0x40] sm:$0xff] %v2973
        %3050 = vst [vmem:[%s216 + $0x48] sm:$0xff] %v2974
        %3051 = vst [vmem:[%s216 + $0x50] sm:$0xff] %v2975
        %3052 = vst [vmem:[%s216 + $0x58] sm:$0xff] %v2976
        %3053 = vst [vmem:[%s216 + $0x60] sm:$0xff] %v2977
        %3054 = vst [vmem:[%s216 + $0x68] sm:$0xff] %v2978
        %3055 = vst [vmem:[%s216 + $0x70] sm:$0xff] %v2979
        %3056 = vst [vmem:[%s216 + $0x78] sm:$0xff] %v2980
        %3057 = vst [vmem:[%s216 + $0x80] sm:$0xff] %v2981
        %3058 = vst [vmem:[%s216 + $0x88] sm:$0xff] %v2982
        %3059 = vst [vmem:[%s216 + $0x90] sm:$0xff] %v2983
        %3060 = vst [vmem:[%s216 + $0x98] sm:$0xff] %v2984
        %3061 = vst [vmem:[%s216 + $0xa0] sm:$0xff] %v2985
        %3062 = vst [vmem:[%s216 + $0xa8] sm:$0xff] %v2986
        %3063 = vst [vmem:[%s216 + $0xb0] sm:$0xff] %v2987
        %3064 = vst [vmem:[%s216 + $0xb8] sm:$0xff] %v2988
        %3065 = vst [vmem:[%s216 + $0xc0] sm:$0xff] %v2989
        %3066 = vst [vmem:[%s216 + $0xc8] sm:$0xff] %v2990
        %3067 = vst [vmem:[%s216 + $0xd0] sm:$0xff] %v2991
        %3068 = vst [vmem:[%s216 + $0xd8] sm:$0xff] %v2992
        %3069 = vst [vmem:[%s216 + $0xe0] sm:$0xff] %v2993
        %3070 = vst [vmem:[%s216 + $0xe8] sm:$0xff] %v2994
        %3071 = vst [vmem:[%s216 + $0xf0] sm:$0xff] %v2995
        %3072 = vst [vmem:[%s216 + $0xf8] sm:$0xff] %v2996
        %3073 = vst [vmem:[%s216 + $0x100] sm:$0xff] %v2997
        %3074 = vst [vmem:[%s216 + $0x108] sm:$0xff] %v2998
        %3075 = vst [vmem:[%s216 + $0x110] sm:$0xff] %v2999
        %3076 = vst [vmem:[%s216 + $0x118] sm:$0xff] %v3000
        %3077 = vst [vmem:[%s216 + $0x120] sm:$0xff] %v3001
        %3078 = vst [vmem:[%s216 + $0x128] sm:$0xff] %v3002
        %3079 = vst [vmem:[%s216 + $0x130] sm:$0xff] %v3003
        %3080 = vst [vmem:[%s216 + $0x138] sm:$0xff] %v3004
        %3081 = vst [vmem:[%s216 + $0x140] sm:$0xff] %v3005
        %3082 = vst [vmem:[%s216 + $0x148] sm:$0xff] %v3006
        %3083 = vst [vmem:[%s216 + $0x150] sm:$0xff] %v3007
        %3084 = vst [vmem:[%s216 + $0x158] sm:$0xff] %v3008
        %3085 = vst [vmem:[%s216 + $0x160] sm:$0xff] %v3009
        %3086 = vst [vmem:[%s216 + $0x168] sm:$0xff] %v3010
        %3087 = vst [vmem:[%s216 + $0x170] sm:$0xff] %v3011
        %3088 = vst [vmem:[%s216 + $0x178] sm:$0xff] %v3012
        %3089 = vst [vmem:[%s216 + $0x180] sm:$0xff] %v3013
        %3090 = vst [vmem:[%s216 + $0x188] sm:$0xff] %v3014
        %3091 = vst [vmem:[%s216 + $0x190] sm:$0xff] %v3015
        %3092 = vst [vmem:[%s216 + $0x198] sm:$0xff] %v3016
        %3093 = vst [vmem:[%s216 + $0x1a0] sm:$0xff] %v3017
        %3094 = vst [vmem:[%s216 + $0x1a8] sm:$0xff] %v3018
        %3095 = vst [vmem:[%s216 + $0x1b0] sm:$0xff] %v3019
        %3096 = vst [vmem:[%s216 + $0x1b8] sm:$0xff] %v3020
        %3097 = vst [vmem:[%s216 + $0x1c0] sm:$0xff] %v3021
        %3098 = vst [vmem:[%s216 + $0x1c8] sm:$0xff] %v3022
        %3099 = vst [vmem:[%s216 + $0x1d0] sm:$0xff] %v3023
        %3100 = vst [vmem:[%s216 + $0x1d8] sm:$0xff] %v3024
        %3101 = vst [vmem:[%s216 + $0x1e0] sm:$0xff] %v3025
        %3102 = vst [vmem:[%s216 + $0x1e8] sm:$0xff] %v3026
        %3103 = vst [vmem:[%s216 + $0x1f0] sm:$0xff] %v3027
        %3104 = vst [vmem:[%s216 + $0x1f8] sm:$0xff] %v3028
        %3105 = vst [vmem:[%s216 + $0x200] sm:$0xff] %v3029
        %3106 = vst [vmem:[%s216 + $0x208] sm:$0xff] %v3030
        %3107 = vst [vmem:[%s216 + $0x210] sm:$0xff] %v3031
        %3108 = vst [vmem:[%s216 + $0x218] sm:$0xff] %v3032
        %3109 = vst [vmem:[%s216 + $0x220] sm:$0xff] %v3033
        %3110 = vst [vmem:[%s216 + $0x228] sm:$0xff] %v3034
        %3111 = vst [vmem:[%s216 + $0x230] sm:$0xff] %v3035
        %3112 = vst [vmem:[%s216 + $0x238] sm:$0xff] %v3036
        %3113 = vst [vmem:[%s216 + $0x240] sm:$0xff] %v3037
        %3114 = vst [vmem:[%s216 + $0x248] sm:$0xff] %v3038
        %3115 = vst [vmem:[%s216 + $0x250] sm:$0xff] %v3039
        %3116 = vst [vmem:[%s216 + $0x258] sm:$0xff] %v3040
        %s3117 = sand.u32 %s97, 1
        %s3118 = scalar_lea.sflag [#allocation4], %s3117
        %s3119 = sand.u32 %s97, 1
        %s3120 = smul.addr %s3119, 608
        %s3121 = scalar_lea.vmem [#allocation8], %s3120
        // Predicated region
        $region45: #{tpu_custom_call.1} parent=31 // pred_check
          %p3122 = pneg %p107
        $region46: #{tpu_custom_call.1} parent=31 // pred_check_branch
          %3124 = sbr.rel (%p3122) target = $region48
        $region47: #{tpu_custom_call.1} parent=31 // pred_region
          %s3125 = smul.u32 19, %s21
          %s3127 = ssub.s32 9728, 9728
          %3128 = vsyncadd %s3118, %s3127
          %s3129 = smul.addr %s3125, 4
          %s3130 = smul.addr %s3129, 128
          %s3131 = scalar_lea.hbm %s3, %s3130
          %s3132 = sshll.u32 %s3121, 4
          %s3133 = int_to_ptr.vmem [resolvable:$true] %s3132
          %3138 = dma.vmem_to_hbm [thread:$0]  %s3133, 9728, %s3131, %s3118, 512, 512, 32
        $region48: #{tpu_custom_call.1} parent=31 // pred_fallthru
          _
      $region32: #{tpu_custom_call.1} parent=5 // pred_fallthru
        _
      %p3139 = scmp.le.s32.totalorder 2, %s16
      // Predicated region
      $region49: #{tpu_custom_call.1} parent=5 // pred_check
        %p3140 = pneg %p3139
      $region50: #{tpu_custom_call.1} parent=5 // pred_check_branch
        %3142 = sbr.rel (%p3140) target = $region52
      $region51: #{tpu_custom_call.1} parent=5 // pred_region
        %s3143 = ssub.s32 %s16, 2
        // Predicated region
        $region53: #{tpu_custom_call.1} parent=51 // pred_check
          %p3144 = pneg %p113
        $region54: #{tpu_custom_call.1} parent=51 // pred_check_branch
          %3146 = sbr.rel (%p3144) target = $region56
        $region55: #{tpu_custom_call.1} parent=51 // pred_region
          %s3147 = sand.u32 %s98, 1
          %s3148 = scalar_lea.sflag [#allocation4], %s3147
          %s3149 = sand.u32 %s98, 1
          %s3150 = smul.addr %s3149, 608
          %s3151 = scalar_lea.vmem [#allocation8], %s3150
          %3152 = dma.done %s3148, 9728
        $region56: #{tpu_custom_call.1} parent=51 // pred_fallthru
          _
      $region52: #{tpu_custom_call.1} parent=5 // pred_fallthru
        _
    $region6: #{tpu_custom_call.1} parent=1 // loop_footer
      %s20 = sadd.s32 1, %s16
    $region7: #{tpu_custom_call.1} parent=1 // loop_footer_branch
      %15 = sbr.rel target = $region3
    $region8: #{tpu_custom_call.1} parent=1 // loop_exit
      _
    %3153 = vsyncpa [#allocation3], 1
    %s3154 = scalar_lea.sflag [#allocation3], 1
    %3155 = vsyncpa %s3154, 1
    %3156 = vsyncpa [#allocation6], 1
    %3157 = vsyncpa [#allocation4], 1
    %s3158 = scalar_lea.sflag [#allocation4], 1
    %3159 = vsyncpa %s3158, 1

// kernel: tpu_custom_call.1
$region0: #{tpu_custom_call.1}
  #allocation0 [shape = 'u32[]', space=smem, size = 0x4, offset = 0x4, fixed_abs, tag = 'smem constant byte address 0x4 - core index']
  #allocation1 [shape = 'u32[144,128]{1,0:T(1,128)}', space=vmem, size = 0x12000, scoped, tag = 'internal scratch']
  %s0 = inlined_call_operand.hbm [shape: f32[300,512], index: 0, kind: input, shape index: {}]
  %s1 = inlined_call_operand.hbm [shape: f32[512,1024], index: 1, kind: input, shape index: {}]
  %s2 = inlined_call_operand.hbm [shape: f32[1,1024], index: 2, kind: input, shape index: {}]
  %s3 = inlined_call_operand.hbm [shape: f32[300,512], index: 3, kind: output, shape index: {}]
  %s4 = sld [smem:[#allocation0]]
  $region57: #{tpu_custom_call.1} parent=0
    _
  %s6 = ssub.s32 1, %s4
  %s7 = scalar_select 0, %s6, %s4
  $region1: #{tpu_custom_call.1} parent=0
    #allocation2 [shape = 'u8[622592]{0}', space=vmem, size = 0x98000, scoped, tag = 'input window, operand 0']
    #allocation3 [shape = 's32[2]{0}', space=sflag, size = 0x8, scoped, tag = 'scoped memory for tpu_custom_call.1']
    #allocation4 [shape = 's32[2]{0}', space=sflag, size = 0x8, scoped, tag = 'scoped memory for tpu_custom_call.1']
    #allocation5 [shape = 'u8[2097152]{0}', space=vmem, size = 0x200000, scoped, tag = 'input window, operand 1, single buffered']
    #allocation6 [shape = 's32[1]{0}', space=sflag, size = 0x4, scoped, tag = 'scoped memory for tpu_custom_call.1']
    #allocation7 [shape = 'u8[4096]{0}', space=vmem, size = 0x1000, scoped, tag = 'input window, operand 2, single buffered']
    #allocation8 [shape = 'u8[622592]{0}', space=vmem, size = 0x98000, scoped, tag = 'output window, operand 0']
    %8 = vsyncpa [#allocation3], 0
    %s9 = scalar_lea.sflag [#allocation3], 1
    %10 = vsyncpa %s9, 0
    %11 = vsyncpa [#allocation6], 0
    %12 = vsyncpa [#allocation4], 0
    %s13 = scalar_lea.sflag [#allocation4], 1
    %14 = vsyncpa %s13, 0
    loop: start=0, step=1, limit=4
    $region2: #{tpu_custom_call.1} parent=1 // loop_pre_header
      _
    $region3: #{tpu_custom_call.1} parent=1 // loop_header
      %s16 = sphi 0, %s20
      %p17 = scmp.ge.s32.totalorder %s16, 4
      %s26 = sphi 0, %s28
      %s29 = sphi 0, %s26
      %s30 = sphi 0, %s29
      %s46 = sphi 0, %s30
      %s50 = sphi 0, %s50
      %s52 = sphi 0, %s50
      %s53 = sphi 0, %s52
      %s67 = sphi 0, %s53
      %s71 = sphi 0, %s71
      %s73 = sphi 0, %s71
      %s74 = sphi 0, %s73
      %s88 = sphi 0, %s74
      %s94 = sphi 0, %s96
      %s97 = sphi 0, %s94
      %s98 = sphi 0, %s97
      %s114 = sphi 0, %s98
    $region4: #{tpu_custom_call.1} parent=1 // loop_header_branch
      %19 = sbr.rel (%p17) target = $region8
    $region5: #{tpu_custom_call.1} parent=1 // loop_body
      %s21 = ssub.s32 %s16, 1
      %s22 = ssub.s32 %s16, 2
      %s23 = sadd.s32 %s16, 1
      %s24 = ssub.s32 %s16, %s23
      %p25 = scmp.eq.s32.totalorder %s24, 0
      %s27 = sadd.s32 %s26, 1
      %s28 = scalar_select %p25, %s26, %s27
      %p31 = pneg %p25
      %p32 = scmp.eq.s32.totalorder %s16, 1
      %p33 = por %p31, %p32
      %p34 = scmp.ne.s32.totalorder %s26, %s29
      %p35 = scmp.eq.s32.totalorder %s16, 0
      %p36 = por %p34, %p35
      %p37 = scmp.ne.s32.totalorder %s26, %s29
      %p38 = scmp.eq.s32.totalorder %s21, 1
      %p39 = por %p37, %p38
      %p40 = scmp.ne.s32.totalorder %s29, %s30
      %p41 = scmp.eq.s32.totalorder %s21, 0
      %p42 = por %p40, %p41
      %p43 = scmp.ne.s32.totalorder %s29, %s30
      %p44 = scmp.eq.s32.totalorder %s22, 1
      %p45 = por %p43, %p44
      %p47 = scmp.ne.s32.totalorder %s30, %s46
      %p48 = scmp.eq.s32.totalorder %s22, 0
      %p49 = por %p47, %p48
      %s51 = sadd.s32 %s50, 1
      %p54 = scmp.eq.s32.totalorder %s16, 1
      %p55 = scmp.ne.s32.totalorder %s50, %s52
      %p56 = scmp.eq.s32.totalorder %s16, 0
      %p57 = por %p55, %p56
      %p58 = scmp.ne.s32.totalorder %s50, %s52
      %p59 = scmp.eq.s32.totalorder %s21, 1
      %p60 = por %p58, %p59
      %p61 = scmp.ne.s32.totalorder %s52, %s53
      %p62 = scmp.eq.s32.totalorder %s21, 0
      %p63 = por %p61, %p62
      %p64 = scmp.ne.s32.totalorder %s52, %s53
      %p65 = scmp.eq.s32.totalorder %s22, 1
      %p66 = por %p64, %p65
      %p68 = scmp.ne.s32.totalorder %s53, %s67
      %p69 = scmp.eq.s32.totalorder %s22, 0
      %p70 = por %p68, %p69
      %s72 = sadd.s32 %s71, 1
      %p75 = scmp.eq.s32.totalorder %s16, 1
      %p76 = scmp.ne.s32.totalorder %s71, %s73
      %p77 = scmp.eq.s32.totalorder %s16, 0
      %p78 = por %p76, %p77
      %p79 = scmp.ne.s32.totalorder %s71, %s73
      %p80 = scmp.eq.s32.totalorder %s21, 1
      %p81 = por %p79, %p80
      %p82 = scmp.ne.s32.totalorder %s73, %s74
      %p83 = scmp.eq.s32.totalorder %s21, 0
      %p84 = por %p82, %p83
      %p85 = scmp.ne.s32.totalorder %s73, %s74
      %p86 = scmp.eq.s32.totalorder %s22, 1
      %p87 = por %p85, %p86
      %p89 = scmp.ne.s32.totalorder %s74, %s88
      %p90 = scmp.eq.s32.totalorder %s22, 0
      %p91 = por %p89, %p90
      %s92 = ssub.s32 %s16, %s23
      %p93 = scmp.eq.s32.totalorder %s92, 0
      %s95 = sadd.s32 %s94, 1
      %s96 = scalar_select %p93, %s94, %s95
      %p99 = pneg %p93
      %p100 = scmp.eq.s32.totalorder %s16, 1
      %p101 = por %p99, %p100
      %p102 = scmp.ne.s32.totalorder %s94, %s97
      %p103 = scmp.eq.s32.totalorder %s16, 0
      %p104 = por %p102, %p103
      %p105 = scmp.ne.s32.totalorder %s94, %s97
      %p106 = scmp.eq.s32.totalorder %s21, 1
      %p107 = por %p105, %p106
      %p108 = scmp.ne.s32.totalorder %s97, %s98
      %p109 = scmp.eq.s32.totalorder %s21, 0
      %p110 = por %p108, %p109
      %p111 = scmp.ne.s32.totalorder %s97, %s98
      %p112 = scmp.eq.s32.totalorder %s22, 1
      %p113 = por %p111, %p112
      %p115 = scmp.ne.s32.totalorder %s98, %s114
      %p116 = scmp.eq.s32.totalorder %s22, 0
      %p117 = por %p115, %p116
      %p118 = scmp.le.s32.totalorder 1, %s16
      %p119 = scmp.lt.s32.totalorder %s16, 3
      %p120 = pnand %p118, %p119
      %p121 = pneg %p120
      // Predicated region
      $region9: #{tpu_custom_call.1} parent=5 // pred_check
        _
      $region10: #{tpu_custom_call.1} parent=5 // pred_check_branch
        %123 = sbr.rel (%p120) target = $region12
      $region11: #{tpu_custom_call.1} parent=5 // pred_region
        %s124 = ssub.s32 %s16, 1
        // Predicated region
        $region13: #{tpu_custom_call.1} parent=11 // pred_check
          %p125 = pneg %p63
        $region14: #{tpu_custom_call.1} parent=11 // pred_check_branch
          %127 = sbr.rel (%p125) target = $region16
        $region15: #{tpu_custom_call.1} parent=11 // pred_region
          %s129 = ssub.s32 65536, 65536
          %130 = vsyncadd [#allocation6], %s129
          %s131 = sshll.u32 [#allocation5], 4
          %s132 = int_to_ptr.vmem [resolvable:$true] %s131
          %137 = dma.hbm_to_vmem [thread:$0]  %s1, 65536, %s132, [#allocation6], 1024, 1024, 64
        $region16: #{tpu_custom_call.1} parent=11 // pred_fallthru
          _
        // Predicated region
        $region17: #{tpu_custom_call.1} parent=11 // pred_check
          %p138 = pneg %p84
        $region18: #{tpu_custom_call.1} parent=11 // pred_check_branch
          %140 = sbr.rel (%p138) target = $region20
        $region19: #{tpu_custom_call.1} parent=11 // pred_region
          %s142 = ssub.s32 128, 128
          %143 = vsyncadd [#allocation6], %s142
          %s145 = sshll.u32 [#allocation7], 4
          %s146 = int_to_ptr.vmem [resolvable:$true] %s145
          %148 = dma.hbm_to_vmem [thread:$0]  %s2, 128, %s146, [#allocation6]
        $region20: #{tpu_custom_call.1} parent=11 // pred_fallthru
          _
      $region12: #{tpu_custom_call.1} parent=5 // pred_fallthru
        _
      %p149 = scmp.lt.s32.totalorder %s16, 2
      // Predicated region
      $region21: #{tpu_custom_call.1} parent=5 // pred_check
        %p150 = pneg %p149
      $region22: #{tpu_custom_call.1} parent=5 // pred_check_branch
        %152 = sbr.rel (%p150) target = $region24
      $region23: #{tpu_custom_call.1} parent=5 // pred_region
        // Predicated region
        $region25: #{tpu_custom_call.1} parent=23 // pred_check
          %p153 = pneg %p36
        $region26: #{tpu_custom_call.1} parent=23 // pred_check_branch
          %155 = sbr.rel (%p153) target = $region28
        $region27: #{tpu_custom_call.1} parent=23 // pred_region
          %s156 = sand.u32 %s26, 1
          %s157 = scalar_lea.sflag [#allocation3], %s156
          %s158 = sand.u32 %s26, 1
          %s159 = smul.addr %s158, 608
          %s160 = scalar_lea.vmem [#allocation2], %s159
          %s161 = smul.u32 19, %s16
          %s163 = ssub.s32 9728, 9728
          %164 = vsyncadd %s157, %s163
          %s165 = smul.addr %s161, 4
          %s166 = smul.addr %s165, 128
          %s167 = scalar_lea.hbm %s0, %s166
          %s168 = sshll.u32 %s160, 4
          %s169 = int_to_ptr.vmem [resolvable:$true] %s168
          %174 = dma.hbm_to_vmem [thread:$0]  %s167, 9728, %s169, %s157, 512, 512, 32
        $region28: #{tpu_custom_call.1} parent=23 // pred_fallthru
          _
      $region24: #{tpu_custom_call.1} parent=5 // pred_fallthru
        _
      %p175 = scmp.le.s32.totalorder 1, %s16
      %p176 = scmp.lt.s32.totalorder %s16, 3
      %p177 = pnand %p175, %p176
      %p178 = pneg %p177
      // Predicated region
      $region29: #{tpu_custom_call.1} parent=5 // pred_check
        _
      $region30: #{tpu_custom_call.1} parent=5 // pred_check_branch
        %180 = sbr.rel (%p177) target = $region32
      $region31: #{tpu_custom_call.1} parent=5 // pred_region
        %s181 = ssub.s32 %s16, 1
        %s182 = sand.u32 %s29, 1
        %s183 = scalar_lea.sflag [#allocation3], %s182
        %s184 = sand.u32 %s29, 1
        %s185 = smul.addr %s184, 608
        %s186 = scalar_lea.vmem [#allocation2], %s185
        // Predicated region
        $region33: #{tpu_custom_call.1} parent=31 // pred_check
          %p187 = pneg %p42
        $region34: #{tpu_custom_call.1} parent=31 // pred_check_branch
          %189 = sbr.rel (%p187) target = $region36
        $region35: #{tpu_custom_call.1} parent=31 // pred_region
          %190 = dma.done %s183, 9728
        $region36: #{tpu_custom_call.1} parent=31 // pred_fallthru
          _
        // Predicated region
        $region37: #{tpu_custom_call.1} parent=31 // pred_check
          %p191 = pneg %p63
        $region38: #{tpu_custom_call.1} parent=31 // pred_check_branch
          %193 = sbr.rel (%p191) target = $region40
        $region39: #{tpu_custom_call.1} parent=31 // pred_region
          %194 = dma.done [#allocation6], 65536
        $region40: #{tpu_custom_call.1} parent=31 // pred_fallthru
          _
        // Predicated region
        $region41: #{tpu_custom_call.1} parent=31 // pred_check
          %p195 = pneg %p84
        $region42: #{tpu_custom_call.1} parent=31 // pred_check_branch
          %197 = sbr.rel (%p195) target = $region44
        $region43: #{tpu_custom_call.1} parent=31 // pred_region
          %198 = dma.done [#allocation6], 128
        $region44: #{tpu_custom_call.1} parent=31 // pred_fallthru
          _
        %s199 = sand.u32 %s29, 1
        %s200 = scalar_lea.sflag [#allocation3], %s199
        %s201 = sand.u32 %s29, 1
        %s202 = smul.addr %s201, 608
        %s203 = scalar_lea.vmem [#allocation2], %s202
        %p204 = pneg %p42
        %p205 = pneg %p39
        %p206 = pneg %p63
        %p207 = pneg %p60
        %p208 = pneg %p84
        %p209 = pneg %p81
        %p210 = pneg %p110
        %p211 = pneg %p107
        %s212 = sand.u32 %s97, 1
        %s213 = scalar_lea.sflag [#allocation4], %s212
        %s214 = sand.u32 %s97, 1
        %s215 = smul.addr %s214, 608
        %s216 = scalar_lea.vmem [#allocation8], %s215
        %s217 = smul.u32 19, %s21
        %s218 = smul.u32 19, %s21
        %v219 = vld [vmem:[%s186] sm:$0xff]
        %v220 = vld [vmem:[%s186 + $0x8] sm:$0xff]
        %v221 = vld [vmem:[%s186 + $0x10] sm:$0xff]
        %v222 = vld [vmem:[%s186 + $0x18] sm:$0xff]
        %v223 = vld [vmem:[%s186 + $0x20] sm:$0xff]
        %v224 = vld [vmem:[%s186 + $0x28] sm:$0xff]
        %v225 = vld [vmem:[%s186 + $0x30] sm:$0xff]
        %v226 = vld [vmem:[%s186 + $0x38] sm:$0xff]
        %v227 = vld [vmem:[%s186 + $0x40] sm:$0xff]
        %v228 = vld [vmem:[%s186 + $0x48] sm:$0xff]
        %v229 = vld [vmem:[%s186 + $0x50] sm:$0xff]
        %v230 = vld [vmem:[%s186 + $0x58] sm:$0xff]
        %v231 = vld [vmem:[%s186 + $0x60] sm:$0xff]
        %v232 = vld [vmem:[%s186 + $0x68] sm:$0xff]
        %v233 = vld [vmem:[%s186 + $0x70] sm:$0xff]
        %v234 = vld [vmem:[%s186 + $0x78] sm:$0xff]
        %v235 = vld [vmem:[%s186 + $0x80] sm:$0xff]
        %v236 = vld [vmem:[%s186 + $0x88] sm:$0xff]
        %v237 = vld [vmem:[%s186 + $0x90] sm:$0xff]
        %v238 = vld [vmem:[%s186 + $0x98] sm:$0xff]
        %v239 = vld [vmem:[%s186 + $0xa0] sm:$0xff]
        %v240 = vld [vmem:[%s186 + $0xa8] sm:$0xff]
        %v241 = vld [vmem:[%s186 + $0xb0] sm:$0xff]
        %v242 = vld [vmem:[%s186 + $0xb8] sm:$0xff]
        %v243 = vld [vmem:[%s186 + $0xc0] sm:$0xff]
        %v244 = vld [vmem:[%s186 + $0xc8] sm:$0xff]
        %v245 = vld [vmem:[%s186 + $0xd0] sm:$0xff]
        %v246 = vld [vmem:[%s186 + $0xd8] sm:$0xff]
        %v247 = vld [vmem:[%s186 + $0xe0] sm:$0xff]
        %v248 = vld [vmem:[%s186 + $0xe8] sm:$0xff]
        %v249 = vld [vmem:[%s186 + $0xf0] sm:$0xff]
        %v250 = vld [vmem:[%s186 + $0xf8] sm:$0xff]
        %v251 = vld [vmem:[%s186 + $0x100] sm:$0xff]
        %v252 = vld [vmem:[%s186 + $0x108] sm:$0xff]
        %v253 = vld [vmem:[%s186 + $0x110] sm:$0xff]
        %v254 = vld [vmem:[%s186 + $0x118] sm:$0xff]
        %v255 = vld [vmem:[%s186 + $0x120] sm:$0xff]
        %v256 = vld [vmem:[%s186 + $0x128] sm:$0xff]
        %v257 = vld [vmem:[%s186 + $0x130] sm:$0xff]
        %v258 = vld [vmem:[%s186 + $0x138] sm:$0xff]
        %v259 = vld [vmem:[%s186 + $0x140] sm:$0xff]
        %v260 = vld [vmem:[%s186 + $0x148] sm:$0xff]
        %v261 = vld [vmem:[%s186 + $0x150] sm:$0xff]
        %v262 = vld [vmem:[%s186 + $0x158] sm:$0xff]
        %v263 = vld [vmem:[%s186 + $0x160] sm:$0xff]
        %v264 = vld [vmem:[%s186 + $0x168] sm:$0xff]
        %v265 = vld [vmem:[%s186 + $0x170] sm:$0xff]
        %v266 = vld [vmem:[%s186 + $0x178] sm:$0xff]
        %v267 = vld [vmem:[%s186 + $0x180] sm:$0xff]
        %v268 = vld [vmem:[%s186 + $0x188] sm:$0xff]
        %v269 = vld [vmem:[%s186 + $0x190] sm:$0xff]
        %v270 = vld [vmem:[%s186 + $0x198] sm:$0xff]
        %v271 = vld [vmem:[%s186 + $0x1a0] sm:$0xff]
        %v272 = vld [vmem:[%s186 + $0x1a8] sm:$0xff]
        %v273 = vld [vmem:[%s186 + $0x1b0] sm:$0xff]
        %v274 = vld [vmem:[%s186 + $0x1b8] sm:$0xff]
        %v275 = vld [vmem:[%s186 + $0x1c0] sm:$0xff]
        %v276 = vld [vmem:[%s186 + $0x1c8] sm:$0xff]
        %v277 = vld [vmem:[%s186 + $0x1d0] sm:$0xff]
        %v278 = vld [vmem:[%s186 + $0x1d8] sm:$0xff]
        %v279 = vld [vmem:[%s186 + $0x1e0] sm:$0xff]
        %v280 = vld [vmem:[%s186 + $0x1e8] sm:$0xff]
        %v281 = vld [vmem:[%s186 + $0x1f0] sm:$0xff]
        %v282 = vld [vmem:[%s186 + $0x1f8] sm:$0xff]
        %v283 = vld [vmem:[%s186 + $0x200] sm:$0xff]
        %v284 = vld [vmem:[%s186 + $0x208] sm:$0xff]
        %v285 = vld [vmem:[%s186 + $0x210] sm:$0xff]
        %v286 = vld [vmem:[%s186 + $0x218] sm:$0xff]
        %v287 = vld [vmem:[%s186 + $0x220] sm:$0xff]
        %v288 = vld [vmem:[%s186 + $0x228] sm:$0xff]
        %v289 = vld [vmem:[%s186 + $0x230] sm:$0xff]
        %v290 = vld [vmem:[%s186 + $0x238] sm:$0xff]
        %v291 = vld [vmem:[%s186 + $0x240] sm:$0xff]
        %v292 = vld [vmem:[%s186 + $0x248] sm:$0xff]
        %v293 = vld [vmem:[%s186 + $0x250] sm:$0xff]
        %v294 = vld [vmem:[%s186 + $0x258] sm:$0xff]
        %v295 = vld [vmem:[#allocation5] sm:$0xff]
        %v296 = vld [vmem:[#allocation5 + $0x8] sm:$0xff]
        %v297 = vld [vmem:[#allocation5 + $0x10] sm:$0xff]
        %v298 = vld [vmem:[#allocation5 + $0x18] sm:$0xff]
        %v299 = vld [vmem:[#allocation5 + $0x20] sm:$0xff]
        %v300 = vld [vmem:[#allocation5 + $0x28] sm:$0xff]
        %v301 = vld [vmem:[#allocation5 + $0x30] sm:$0xff]
        %v302 = vld [vmem:[#allocation5 + $0x38] sm:$0xff]
        %v303 = vld [vmem:[#allocation5 + $0x40] sm:$0xff]
        %v304 = vld [vmem:[#allocation5 + $0x48] sm:$0xff]
        %v305 = vld [vmem:[#allocation5 + $0x50] sm:$0xff]
        %v306 = vld [vmem:[#allocation5 + $0x58] sm:$0xff]
        %v307 = vld [vmem:[#allocation5 + $0x60] sm:$0xff]
        %v308 = vld [vmem:[#allocation5 + $0x68] sm:$0xff]
        %v309 = vld [vmem:[#allocation5 + $0x70] sm:$0xff]
        %v310 = vld [vmem:[#allocation5 + $0x78] sm:$0xff]
        %v311 = vld [vmem:[#allocation5 + $0x80] sm:$0xff]
        %v312 = vld [vmem:[#allocation5 + $0x88] sm:$0xff]
        %v313 = vld [vmem:[#allocation5 + $0x90] sm:$0xff]
        %v314 = vld [vmem:[#allocation5 + $0x98] sm:$0xff]
        %v315 = vld [vmem:[#allocation5 + $0xa0] sm:$0xff]
        %v316 = vld [vmem:[#allocation5 + $0xa8] sm:$0xff]
        %v317 = vld [vmem:[#allocation5 + $0xb0] sm:$0xff]
        %v318 = vld [vmem:[#allocation5 + $0xb8] sm:$0xff]
        %v319 = vld [vmem:[#allocation5 + $0xc0] sm:$0xff]
        %v320 = vld [vmem:[#allocation5 + $0xc8] sm:$0xff]
        %v321 = vld [vmem:[#allocation5 + $0xd0] sm:$0xff]
        %v322 = vld [vmem:[#allocation5 + $0xd8] sm:$0xff]
        %v323 = vld [vmem:[#allocation5 + $0xe0] sm:$0xff]
        %v324 = vld [vmem:[#allocation5 + $0xe8] sm:$0xff]
        %v325 = vld [vmem:[#allocation5 + $0xf0] sm:$0xff]
        %v326 = vld [vmem:[#allocation5 + $0xf8] sm:$0xff]
        %v327 = vld [vmem:[#allocation5 + $0x100] sm:$0xff]
        %v328 = vld [vmem:[#allocation5 + $0x108] sm:$0xff]
        %v329 = vld [vmem:[#allocation5 + $0x110] sm:$0xff]
        %v330 = vld [vmem:[#allocation5 + $0x118] sm:$0xff]
        %v331 = vld [vmem:[#allocation5 + $0x120] sm:$0xff]
        %v332 = vld [vmem:[#allocation5 + $0x128] sm:$0xff]
        %v333 = vld [vmem:[#allocation5 + $0x130] sm:$0xff]
        %v334 = vld [vmem:[#allocation5 + $0x138] sm:$0xff]
        %v335 = vld [vmem:[#allocation5 + $0x140] sm:$0xff]
        %v336 = vld [vmem:[#allocation5 + $0x148] sm:$0xff]
        %v337 = vld [vmem:[#allocation5 + $0x150] sm:$0xff]
        %v338 = vld [vmem:[#allocation5 + $0x158] sm:$0xff]
        %v339 = vld [vmem:[#allocation5 + $0x160] sm:$0xff]
        %v340 = vld [vmem:[#allocation5 + $0x168] sm:$0xff]
        %v341 = vld [vmem:[#allocation5 + $0x170] sm:$0xff]
        %v342 = vld [vmem:[#allocation5 + $0x178] sm:$0xff]
        %v343 = vld [vmem:[#allocation5 + $0x180] sm:$0xff]
        %v344 = vld [vmem:[#allocation5 + $0x188] sm:$0xff]
        %v345 = vld [vmem:[#allocation5 + $0x190] sm:$0xff]
        %v346 = vld [vmem:[#allocation5 + $0x198] sm:$0xff]
        %v347 = vld [vmem:[#allocation5 + $0x1a0] sm:$0xff]
        %v348 = vld [vmem:[#allocation5 + $0x1a8] sm:$0xff]
        %v349 = vld [vmem:[#allocation5 + $0x1b0] sm:$0xff]
        %v350 = vld [vmem:[#allocation5 + $0x1b8] sm:$0xff]
        %v351 = vld [vmem:[#allocation5 + $0x1c0] sm:$0xff]
        %v352 = vld [vmem:[#allocation5 + $0x1c8] sm:$0xff]
        %v353 = vld [vmem:[#allocation5 + $0x1d0] sm:$0xff]
        %v354 = vld [vmem:[#allocation5 + $0x1d8] sm:$0xff]
        %v355 = vld [vmem:[#allocation5 + $0x1e0] sm:$0xff]
        %v356 = vld [vmem:[#allocation5 + $0x1e8] sm:$0xff]
        %v357 = vld [vmem:[#allocation5 + $0x1f0] sm:$0xff]
        %v358 = vld [vmem:[#allocation5 + $0x1f8] sm:$0xff]
        %v359 = vld [vmem:[#allocation5 + $0x200] sm:$0xff]
        %v360 = vld [vmem:[#allocation5 + $0x208] sm:$0xff]
        %v361 = vld [vmem:[#allocation5 + $0x210] sm:$0xff]
        %v362 = vld [vmem:[#allocation5 + $0x218] sm:$0xff]
        %v363 = vld [vmem:[#allocation5 + $0x220] sm:$0xff]
        %v364 = vld [vmem:[#allocation5 + $0x228] sm:$0xff]
        %v365 = vld [vmem:[#allocation5 + $0x230] sm:$0xff]
        %v366 = vld [vmem:[#allocation5 + $0x238] sm:$0xff]
        %v367 = vld [vmem:[#allocation5 + $0x240] sm:$0xff]
        %v368 = vld [vmem:[#allocation5 + $0x248] sm:$0xff]
        %v369 = vld [vmem:[#allocation5 + $0x250] sm:$0xff]
        %v370 = vld [vmem:[#allocation5 + $0x258] sm:$0xff]
        %v371 = vld [vmem:[#allocation5 + $0x260] sm:$0xff]
        %v372 = vld [vmem:[#allocation5 + $0x268] sm:$0xff]
        %v373 = vld [vmem:[#allocation5 + $0x270] sm:$0xff]
        %v374 = vld [vmem:[#allocation5 + $0x278] sm:$0xff]
        %v375 = vld [vmem:[#allocation5 + $0x280] sm:$0xff]
        %v376 = vld [vmem:[#allocation5 + $0x288] sm:$0xff]
        %v377 = vld [vmem:[#allocation5 + $0x290] sm:$0xff]
        %v378 = vld [vmem:[#allocation5 + $0x298] sm:$0xff]
        %v379 = vld [vmem:[#allocation5 + $0x2a0] sm:$0xff]
        %v380 = vld [vmem:[#allocation5 + $0x2a8] sm:$0xff]
        %v381 = vld [vmem:[#allocation5 + $0x2b0] sm:$0xff]
        %v382 = vld [vmem:[#allocation5 + $0x2b8] sm:$0xff]
        %v383 = vld [vmem:[#allocation5 + $0x2c0] sm:$0xff]
        %v384 = vld [vmem:[#allocation5 + $0x2c8] sm:$0xff]
        %v385 = vld [vmem:[#allocation5 + $0x2d0] sm:$0xff]
        %v386 = vld [vmem:[#allocation5 + $0x2d8] sm:$0xff]
        %v387 = vld [vmem:[#allocation5 + $0x2e0] sm:$0xff]
        %v388 = vld [vmem:[#allocation5 + $0x2e8] sm:$0xff]
        %v389 = vld [vmem:[#allocation5 + $0x2f0] sm:$0xff]
        %v390 = vld [vmem:[#allocation5 + $0x2f8] sm:$0xff]
        %v391 = vld [vmem:[#allocation5 + $0x300] sm:$0xff]
        %v392 = vld [vmem:[#allocation5 + $0x308] sm:$0xff]
        %v393 = vld [vmem:[#allocation5 + $0x310] sm:$0xff]
        %v394 = vld [vmem:[#allocation5 + $0x318] sm:$0xff]
        %v395 = vld [vmem:[#allocation5 + $0x320] sm:$0xff]
        %v396 = vld [vmem:[#allocation5 + $0x328] sm:$0xff]
        %v397 = vld [vmem:[#allocation5 + $0x330] sm:$0xff]
        %v398 = vld [vmem:[#allocation5 + $0x338] sm:$0xff]
        %v399 = vld [vmem:[#allocation5 + $0x340] sm:$0xff]
        %v400 = vld [vmem:[#allocation5 + $0x348] sm:$0xff]
        %v401 = vld [vmem:[#allocation5 + $0x350] sm:$0xff]
        %v402 = vld [vmem:[#allocation5 + $0x358] sm:$0xff]
        %v403 = vld [vmem:[#allocation5 + $0x360] sm:$0xff]
        %v404 = vld [vmem:[#allocation5 + $0x368] sm:$0xff]
        %v405 = vld [vmem:[#allocation5 + $0x370] sm:$0xff]
        %v406 = vld [vmem:[#allocation5 + $0x378] sm:$0xff]
        %v407 = vld [vmem:[#allocation5 + $0x380] sm:$0xff]
        %v408 = vld [vmem:[#allocation5 + $0x388] sm:$0xff]
        %v409 = vld [vmem:[#allocation5 + $0x390] sm:$0xff]
        %v410 = vld [vmem:[#allocation5 + $0x398] sm:$0xff]
        %v411 = vld [vmem:[#allocation5 + $0x3a0] sm:$0xff]
        %v412 = vld [vmem:[#allocation5 + $0x3a8] sm:$0xff]
        %v413 = vld [vmem:[#allocation5 + $0x3b0] sm:$0xff]
        %v414 = vld [vmem:[#allocation5 + $0x3b8] sm:$0xff]
        %v415 = vld [vmem:[#allocation5 + $0x3c0] sm:$0xff]
        %v416 = vld [vmem:[#allocation5 + $0x3c8] sm:$0xff]
        %v417 = vld [vmem:[#allocation5 + $0x3d0] sm:$0xff]
        %v418 = vld [vmem:[#allocation5 + $0x3d8] sm:$0xff]
        %v419 = vld [vmem:[#allocation5 + $0x3e0] sm:$0xff]
        %v420 = vld [vmem:[#allocation5 + $0x3e8] sm:$0xff]
        %v421 = vld [vmem:[#allocation5 + $0x3f0] sm:$0xff]
        %v422 = vld [vmem:[#allocation5 + $0x3f8] sm:$0xff]
        %v423 = vld [vmem:[#allocation5 + $0x400] sm:$0xff]
        %v424 = vld [vmem:[#allocation5 + $0x408] sm:$0xff]
        %v425 = vld [vmem:[#allocation5 + $0x410] sm:$0xff]
        %v426 = vld [vmem:[#allocation5 + $0x418] sm:$0xff]
        %v427 = vld [vmem:[#allocation5 + $0x420] sm:$0xff]
        %v428 = vld [vmem:[#allocation5 + $0x428] sm:$0xff]
        %v429 = vld [vmem:[#allocation5 + $0x430] sm:$0xff]
        %v430 = vld [vmem:[#allocation5 + $0x438] sm:$0xff]
        %v431 = vld [vmem:[#allocation5 + $0x440] sm:$0xff]
        %v432 = vld [vmem:[#allocation5 + $0x448] sm:$0xff]
        %v433 = vld [vmem:[#allocation5 + $0x450] sm:$0xff]
        %v434 = vld [vmem:[#allocation5 + $0x458] sm:$0xff]
        %v435 = vld [vmem:[#allocation5 + $0x460] sm:$0xff]
        %v436 = vld [vmem:[#allocation5 + $0x468] sm:$0xff]
        %v437 = vld [vmem:[#allocation5 + $0x470] sm:$0xff]
        %v438 = vld [vmem:[#allocation5 + $0x478] sm:$0xff]
        %v439 = vld [vmem:[#allocation5 + $0x480] sm:$0xff]
        %v440 = vld [vmem:[#allocation5 + $0x488] sm:$0xff]
        %v441 = vld [vmem:[#allocation5 + $0x490] sm:$0xff]
        %v442 = vld [vmem:[#allocation5 + $0x498] sm:$0xff]
        %v443 = vld [vmem:[#allocation5 + $0x4a0] sm:$0xff]
        %v444 = vld [vmem:[#allocation5 + $0x4a8] sm:$0xff]
        %v445 = vld [vmem:[#allocation5 + $0x4b0] sm:$0xff]
        %v446 = vld [vmem:[#allocation5 + $0x4b8] sm:$0xff]
        %v447 = vld [vmem:[#allocation5 + $0x4c0] sm:$0xff]
        %v448 = vld [vmem:[#allocation5 + $0x4c8] sm:$0xff]
        %v449 = vld [vmem:[#allocation5 + $0x4d0] sm:$0xff]
        %v450 = vld [vmem:[#allocation5 + $0x4d8] sm:$0xff]
        %v451 = vld [vmem:[#allocation5 + $0x4e0] sm:$0xff]
        %v452 = vld [vmem:[#allocation5 + $0x4e8] sm:$0xff]
        %v453 = vld [vmem:[#allocation5 + $0x4f0] sm:$0xff]
        %v454 = vld [vmem:[#allocation5 + $0x4f8] sm:$0xff]
        %v455 = vld [vmem:[#allocation5 + $0x500] sm:$0xff]
        %v456 = vld [vmem:[#allocation5 + $0x508] sm:$0xff]
        %v457 = vld [vmem:[#allocation5 + $0x510] sm:$0xff]
        %v458 = vld [vmem:[#allocation5 + $0x518] sm:$0xff]
        %v459 = vld [vmem:[#allocation5 + $0x520] sm:$0xff]
        %v460 = vld [vmem:[#allocation5 + $0x528] sm:$0xff]
        %v461 = vld [vmem:[#allocation5 + $0x530] sm:$0xff]
        %v462 = vld [vmem:[#allocation5 + $0x538] sm:$0xff]
        %v463 = vld [vmem:[#allocation5 + $0x540] sm:$0xff]
        %v464 = vld [vmem:[#allocation5 + $0x548] sm:$0xff]
        %v465 = vld [vmem:[#allocation5 + $0x550] sm:$0xff]
        %v466 = vld [vmem:[#allocation5 + $0x558] sm:$0xff]
        %v467 = vld [vmem:[#allocation5 + $0x560] sm:$0xff]
        %v468 = vld [vmem:[#allocation5 + $0x568] sm:$0xff]
        %v469 = vld [vmem:[#allocation5 + $0x570] sm:$0xff]
        %v470 = vld [vmem:[#allocation5 + $0x578] sm:$0xff]
        %v471 = vld [vmem:[#allocation5 + $0x580] sm:$0xff]
        %v472 = vld [vmem:[#allocation5 + $0x588] sm:$0xff]
        %v473 = vld [vmem:[#allocation5 + $0x590] sm:$0xff]
        %v474 = vld [vmem:[#allocation5 + $0x598] sm:$0xff]
        %v475 = vld [vmem:[#allocation5 + $0x5a0] sm:$0xff]
        %v476 = vld [vmem:[#allocation5 + $0x5a8] sm:$0xff]
        %v477 = vld [vmem:[#allocation5 + $0x5b0] sm:$0xff]
        %v478 = vld [vmem:[#allocation5 + $0x5b8] sm:$0xff]
        %v479 = vld [vmem:[#allocation5 + $0x5c0] sm:$0xff]
        %v480 = vld [vmem:[#allocation5 + $0x5c8] sm:$0xff]
        %v481 = vld [vmem:[#allocation5 + $0x5d0] sm:$0xff]
        %v482 = vld [vmem:[#allocation5 + $0x5d8] sm:$0xff]
        %v483 = vld [vmem:[#allocation5 + $0x5e0] sm:$0xff]
        %v484 = vld [vmem:[#allocation5 + $0x5e8] sm:$0xff]
        %v485 = vld [vmem:[#allocation5 + $0x5f0] sm:$0xff]
        %v486 = vld [vmem:[#allocation5 + $0x5f8] sm:$0xff]
        %v487 = vld [vmem:[#allocation5 + $0x600] sm:$0xff]
        %v488 = vld [vmem:[#allocation5 + $0x608] sm:$0xff]
        %v489 = vld [vmem:[#allocation5 + $0x610] sm:$0xff]
        %v490 = vld [vmem:[#allocation5 + $0x618] sm:$0xff]
        %v491 = vld [vmem:[#allocation5 + $0x620] sm:$0xff]
        %v492 = vld [vmem:[#allocation5 + $0x628] sm:$0xff]
        %v493 = vld [vmem:[#allocation5 + $0x630] sm:$0xff]
        %v494 = vld [vmem:[#allocation5 + $0x638] sm:$0xff]
        %v495 = vld [vmem:[#allocation5 + $0x640] sm:$0xff]
        %v496 = vld [vmem:[#allocation5 + $0x648] sm:$0xff]
        %v497 = vld [vmem:[#allocation5 + $0x650] sm:$0xff]
        %v498 = vld [vmem:[#allocation5 + $0x658] sm:$0xff]
        %v499 = vld [vmem:[#allocation5 + $0x660] sm:$0xff]
        %v500 = vld [vmem:[#allocation5 + $0x668] sm:$0xff]
        %v501 = vld [vmem:[#allocation5 + $0x670] sm:$0xff]
        %v502 = vld [vmem:[#allocation5 + $0x678] sm:$0xff]
        %v503 = vld [vmem:[#allocation5 + $0x680] sm:$0xff]
        %v504 = vld [vmem:[#allocation5 + $0x688] sm:$0xff]
        %v505 = vld [vmem:[#allocation5 + $0x690] sm:$0xff]
        %v506 = vld [vmem:[#allocation5 + $0x698] sm:$0xff]
        %v507 = vld [vmem:[#allocation5 + $0x6a0] sm:$0xff]
        %v508 = vld [vmem:[#allocation5 + $0x6a8] sm:$0xff]
        %v509 = vld [vmem:[#allocation5 + $0x6b0] sm:$0xff]
        %v510 = vld [vmem:[#allocation5 + $0x6b8] sm:$0xff]
        %v511 = vld [vmem:[#allocation5 + $0x6c0] sm:$0xff]
        %v512 = vld [vmem:[#allocation5 + $0x6c8] sm:$0xff]
        %v513 = vld [vmem:[#allocation5 + $0x6d0] sm:$0xff]
        %v514 = vld [vmem:[#allocation5 + $0x6d8] sm:$0xff]
        %v515 = vld [vmem:[#allocation5 + $0x6e0] sm:$0xff]
        %v516 = vld [vmem:[#allocation5 + $0x6e8] sm:$0xff]
        %v517 = vld [vmem:[#allocation5 + $0x6f0] sm:$0xff]
        %v518 = vld [vmem:[#allocation5 + $0x6f8] sm:$0xff]
        %v519 = vld [vmem:[#allocation5 + $0x700] sm:$0xff]
        %v520 = vld [vmem:[#allocation5 + $0x708] sm:$0xff]
        %v521 = vld [vmem:[#allocation5 + $0x710] sm:$0xff]
        %v522 = vld [vmem:[#allocation5 + $0x718] sm:$0xff]
        %v523 = vld [vmem:[#allocation5 + $0x720] sm:$0xff]
        %v524 = vld [vmem:[#allocation5 + $0x728] sm:$0xff]
        %v525 = vld [vmem:[#allocation5 + $0x730] sm:$0xff]
        %v526 = vld [vmem:[#allocation5 + $0x738] sm:$0xff]
        %v527 = vld [vmem:[#allocation5 + $0x740] sm:$0xff]
        %v528 = vld [vmem:[#allocation5 + $0x748] sm:$0xff]
        %v529 = vld [vmem:[#allocation5 + $0x750] sm:$0xff]
        %v530 = vld [vmem:[#allocation5 + $0x758] sm:$0xff]
        %v531 = vld [vmem:[#allocation5 + $0x760] sm:$0xff]
        %v532 = vld [vmem:[#allocation5 + $0x768] sm:$0xff]
        %v533 = vld [vmem:[#allocation5 + $0x770] sm:$0xff]
        %v534 = vld [vmem:[#allocation5 + $0x778] sm:$0xff]
        %v535 = vld [vmem:[#allocation5 + $0x780] sm:$0xff]
        %v536 = vld [vmem:[#allocation5 + $0x788] sm:$0xff]
        %v537 = vld [vmem:[#allocation5 + $0x790] sm:$0xff]
        %v538 = vld [vmem:[#allocation5 + $0x798] sm:$0xff]
        %v539 = vld [vmem:[#allocation5 + $0x7a0] sm:$0xff]
        %v540 = vld [vmem:[#allocation5 + $0x7a8] sm:$0xff]
        %v541 = vld [vmem:[#allocation5 + $0x7b0] sm:$0xff]
        %v542 = vld [vmem:[#allocation5 + $0x7b8] sm:$0xff]
        %v543 = vld [vmem:[#allocation5 + $0x7c0] sm:$0xff]
        %v544 = vld [vmem:[#allocation5 + $0x7c8] sm:$0xff]
        %v545 = vld [vmem:[#allocation5 + $0x7d0] sm:$0xff]
        %v546 = vld [vmem:[#allocation5 + $0x7d8] sm:$0xff]
        %v547 = vld [vmem:[#allocation5 + $0x7e0] sm:$0xff]
        %v548 = vld [vmem:[#allocation5 + $0x7e8] sm:$0xff]
        %v549 = vld [vmem:[#allocation5 + $0x7f0] sm:$0xff]
        %v550 = vld [vmem:[#allocation5 + $0x7f8] sm:$0xff]
        %v551 = vld [vmem:[#allocation5 + $0x800] sm:$0xff]
        %v552 = vld [vmem:[#allocation5 + $0x808] sm:$0xff]
        %v553 = vld [vmem:[#allocation5 + $0x810] sm:$0xff]
        %v554 = vld [vmem:[#allocation5 + $0x818] sm:$0xff]
        %v555 = vld [vmem:[#allocation5 + $0x820] sm:$0xff]
        %v556 = vld [vmem:[#allocation5 + $0x828] sm:$0xff]
        %v557 = vld [vmem:[#allocation5 + $0x830] sm:$0xff]
        %v558 = vld [vmem:[#allocation5 + $0x838] sm:$0xff]
        %v559 = vld [vmem:[#allocation5 + $0x840] sm:$0xff]
        %v560 = vld [vmem:[#allocation5 + $0x848] sm:$0xff]
        %v561 = vld [vmem:[#allocation5 + $0x850] sm:$0xff]
        %v562 = vld [vmem:[#allocation5 + $0x858] sm:$0xff]
        %v563 = vld [vmem:[#allocation5 + $0x860] sm:$0xff]
        %v564 = vld [vmem:[#allocation5 + $0x868] sm:$0xff]
        %v565 = vld [vmem:[#allocation5 + $0x870] sm:$0xff]
        %v566 = vld [vmem:[#allocation5 + $0x878] sm:$0xff]
        %v567 = vld [vmem:[#allocation5 + $0x880] sm:$0xff]
        %v568 = vld [vmem:[#allocation5 + $0x888] sm:$0xff]
        %v569 = vld [vmem:[#allocation5 + $0x890] sm:$0xff]
        %v570 = vld [vmem:[#allocation5 + $0x898] sm:$0xff]
        %v571 = vld [vmem:[#allocation5 + $0x8a0] sm:$0xff]
        %v572 = vld [vmem:[#allocation5 + $0x8a8] sm:$0xff]
        %v573 = vld [vmem:[#allocation5 + $0x8b0] sm:$0xff]
        %v574 = vld [vmem:[#allocation5 + $0x8b8] sm:$0xff]
        %v575 = vld [vmem:[#allocation5 + $0x8c0] sm:$0xff]
        %v576 = vld [vmem:[#allocation5 + $0x8c8] sm:$0xff]
        %v577 = vld [vmem:[#allocation5 + $0x8d0] sm:$0xff]
        %v578 = vld [vmem:[#allocation5 + $0x8d8] sm:$0xff]
        %v579 = vld [vmem:[#allocation5 + $0x8e0] sm:$0xff]
        %v580 = vld [vmem:[#allocation5 + $0x8e8] sm:$0xff]
        %v581 = vld [vmem:[#allocation5 + $0x8f0] sm:$0xff]
        %v582 = vld [vmem:[#allocation5 + $0x8f8] sm:$0xff]
        %v583 = vld [vmem:[#allocation5 + $0x900] sm:$0xff]
        %v584 = vld [vmem:[#allocation5 + $0x908] sm:$0xff]
        %v585 = vld [vmem:[#allocation5 + $0x910] sm:$0xff]
        %v586 = vld [vmem:[#allocation5 + $0x918] sm:$0xff]
        %v587 = vld [vmem:[#allocation5 + $0x920] sm:$0xff]
        %v588 = vld [vmem:[#allocation5 + $0x928] sm:$0xff]
        %v589 = vld [vmem:[#allocation5 + $0x930] sm:$0xff]
        %v590 = vld [vmem:[#allocation5 + $0x938] sm:$0xff]
        %v591 = vld [vmem:[#allocation5 + $0x940] sm:$0xff]
        %v592 = vld [vmem:[#allocation5 + $0x948] sm:$0xff]
        %v593 = vld [vmem:[#allocation5 + $0x950] sm:$0xff]
        %v594 = vld [vmem:[#allocation5 + $0x958] sm:$0xff]
        %v595 = vld [vmem:[#allocation5 + $0x960] sm:$0xff]
        %v596 = vld [vmem:[#allocation5 + $0x968] sm:$0xff]
        %v597 = vld [vmem:[#allocation5 + $0x970] sm:$0xff]
        %v598 = vld [vmem:[#allocation5 + $0x978] sm:$0xff]
        %v599 = vld [vmem:[#allocation5 + $0x980] sm:$0xff]
        %v600 = vld [vmem:[#allocation5 + $0x988] sm:$0xff]
        %v601 = vld [vmem:[#allocation5 + $0x990] sm:$0xff]
        %v602 = vld [vmem:[#allocation5 + $0x998] sm:$0xff]
        %v603 = vld [vmem:[#allocation5 + $0x9a0] sm:$0xff]
        %v604 = vld [vmem:[#allocation5 + $0x9a8] sm:$0xff]
        %v605 = vld [vmem:[#allocation5 + $0x9b0] sm:$0xff]
        %v606 = vld [vmem:[#allocation5 + $0x9b8] sm:$0xff]
        %v607 = vld [vmem:[#allocation5 + $0x9c0] sm:$0xff]
        %v608 = vld [vmem:[#allocation5 + $0x9c8] sm:$0xff]
        %v609 = vld [vmem:[#allocation5 + $0x9d0] sm:$0xff]
        %v610 = vld [vmem:[#allocation5 + $0x9d8] sm:$0xff]
        %v611 = vld [vmem:[#allocation5 + $0x9e0] sm:$0xff]
        %v612 = vld [vmem:[#allocation5 + $0x9e8] sm:$0xff]
        %v613 = vld [vmem:[#allocation5 + $0x9f0] sm:$0xff]
        %v614 = vld [vmem:[#allocation5 + $0x9f8] sm:$0xff]
        %v615 = vld [vmem:[#allocation5 + $0xa00] sm:$0xff]
        %v616 = vld [vmem:[#allocation5 + $0xa08] sm:$0xff]
        %v617 = vld [vmem:[#allocation5 + $0xa10] sm:$0xff]
        %v618 = vld [vmem:[#allocation5 + $0xa18] sm:$0xff]
        %v619 = vld [vmem:[#allocation5 + $0xa20] sm:$0xff]
        %v620 = vld [vmem:[#allocation5 + $0xa28] sm:$0xff]
        %v621 = vld [vmem:[#allocation5 + $0xa30] sm:$0xff]
        %v622 = vld [vmem:[#allocation5 + $0xa38] sm:$0xff]
        %v623 = vld [vmem:[#allocation5 + $0xa40] sm:$0xff]
        %v624 = vld [vmem:[#allocation5 + $0xa48] sm:$0xff]
        %v625 = vld [vmem:[#allocation5 + $0xa50] sm:$0xff]
        %v626 = vld [vmem:[#allocation5 + $0xa58] sm:$0xff]
        %v627 = vld [vmem:[#allocation5 + $0xa60] sm:$0xff]
        %v628 = vld [vmem:[#allocation5 + $0xa68] sm:$0xff]
        %v629 = vld [vmem:[#allocation5 + $0xa70] sm:$0xff]
        %v630 = vld [vmem:[#allocation5 + $0xa78] sm:$0xff]
        %v631 = vld [vmem:[#allocation5 + $0xa80] sm:$0xff]
        %v632 = vld [vmem:[#allocation5 + $0xa88] sm:$0xff]
        %v633 = vld [vmem:[#allocation5 + $0xa90] sm:$0xff]
        %v634 = vld [vmem:[#allocation5 + $0xa98] sm:$0xff]
        %v635 = vld [vmem:[#allocation5 + $0xaa0] sm:$0xff]
        %v636 = vld [vmem:[#allocation5 + $0xaa8] sm:$0xff]
        %v637 = vld [vmem:[#allocation5 + $0xab0] sm:$0xff]
        %v638 = vld [vmem:[#allocation5 + $0xab8] sm:$0xff]
        %v639 = vld [vmem:[#allocation5 + $0xac0] sm:$0xff]
        %v640 = vld [vmem:[#allocation5 + $0xac8] sm:$0xff]
        %v641 = vld [vmem:[#allocation5 + $0xad0] sm:$0xff]
        %v642 = vld [vmem:[#allocation5 + $0xad8] sm:$0xff]
        %v643 = vld [vmem:[#allocation5 + $0xae0] sm:$0xff]
        %v644 = vld [vmem:[#allocation5 + $0xae8] sm:$0xff]
        %v645 = vld [vmem:[#allocation5 + $0xaf0] sm:$0xff]
        %v646 = vld [vmem:[#allocation5 + $0xaf8] sm:$0xff]
        %v647 = vld [vmem:[#allocation5 + $0xb00] sm:$0xff]
        %v648 = vld [vmem:[#allocation5 + $0xb08] sm:$0xff]
        %v649 = vld [vmem:[#allocation5 + $0xb10] sm:$0xff]
        %v650 = vld [vmem:[#allocation5 + $0xb18] sm:$0xff]
        %v651 = vld [vmem:[#allocation5 + $0xb20] sm:$0xff]
        %v652 = vld [vmem:[#allocation5 + $0xb28] sm:$0xff]
        %v653 = vld [vmem:[#allocation5 + $0xb30] sm:$0xff]
        %v654 = vld [vmem:[#allocation5 + $0xb38] sm:$0xff]
        %v655 = vld [vmem:[#allocation5 + $0xb40] sm:$0xff]
        %v656 = vld [vmem:[#allocation5 + $0xb48] sm:$0xff]
        %v657 = vld [vmem:[#allocation5 + $0xb50] sm:$0xff]
        %v658 = vld [vmem:[#allocation5 + $0xb58] sm:$0xff]
        %v659 = vld [vmem:[#allocation5 + $0xb60] sm:$0xff]
        %v660 = vld [vmem:[#allocation5 + $0xb68] sm:$0xff]
        %v661 = vld [vmem:[#allocation5 + $0xb70] sm:$0xff]
        %v662 = vld [vmem:[#allocation5 + $0xb78] sm:$0xff]
        %v663 = vld [vmem:[#allocation5 + $0xb80] sm:$0xff]
        %v664 = vld [vmem:[#allocation5 + $0xb88] sm:$0xff]
        %v665 = vld [vmem:[#allocation5 + $0xb90] sm:$0xff]
        %v666 = vld [vmem:[#allocation5 + $0xb98] sm:$0xff]
        %v667 = vld [vmem:[#allocation5 + $0xba0] sm:$0xff]
        %v668 = vld [vmem:[#allocation5 + $0xba8] sm:$0xff]
        %v669 = vld [vmem:[#allocation5 + $0xbb0] sm:$0xff]
        %v670 = vld [vmem:[#allocation5 + $0xbb8] sm:$0xff]
        %v671 = vld [vmem:[#allocation5 + $0xbc0] sm:$0xff]
        %v672 = vld [vmem:[#allocation5 + $0xbc8] sm:$0xff]
        %v673 = vld [vmem:[#allocation5 + $0xbd0] sm:$0xff]
        %v674 = vld [vmem:[#allocation5 + $0xbd8] sm:$0xff]
        %v675 = vld [vmem:[#allocation5 + $0xbe0] sm:$0xff]
        %v676 = vld [vmem:[#allocation5 + $0xbe8] sm:$0xff]
        %v677 = vld [vmem:[#allocation5 + $0xbf0] sm:$0xff]
        %v678 = vld [vmem:[#allocation5 + $0xbf8] sm:$0xff]
        %v679 = vld [vmem:[#allocation5 + $0xc00] sm:$0xff]
        %v680 = vld [vmem:[#allocation5 + $0xc08] sm:$0xff]
        %v681 = vld [vmem:[#allocation5 + $0xc10] sm:$0xff]
        %v682 = vld [vmem:[#allocation5 + $0xc18] sm:$0xff]
        %v683 = vld [vmem:[#allocation5 + $0xc20] sm:$0xff]
        %v684 = vld [vmem:[#allocation5 + $0xc28] sm:$0xff]
        %v685 = vld [vmem:[#allocation5 + $0xc30] sm:$0xff]
        %v686 = vld [vmem:[#allocation5 + $0xc38] sm:$0xff]
        %v687 = vld [vmem:[#allocation5 + $0xc40] sm:$0xff]
        %v688 = vld [vmem:[#allocation5 + $0xc48] sm:$0xff]
        %v689 = vld [vmem:[#allocation5 + $0xc50] sm:$0xff]
        %v690 = vld [vmem:[#allocation5 + $0xc58] sm:$0xff]
        %v691 = vld [vmem:[#allocation5 + $0xc60] sm:$0xff]
        %v692 = vld [vmem:[#allocation5 + $0xc68] sm:$0xff]
        %v693 = vld [vmem:[#allocation5 + $0xc70] sm:$0xff]
        %v694 = vld [vmem:[#allocation5 + $0xc78] sm:$0xff]
        %v695 = vld [vmem:[#allocation5 + $0xc80] sm:$0xff]
        %v696 = vld [vmem:[#allocation5 + $0xc88] sm:$0xff]
        %v697 = vld [vmem:[#allocation5 + $0xc90] sm:$0xff]
        %v698 = vld [vmem:[#allocation5 + $0xc98] sm:$0xff]
        %v699 = vld [vmem:[#allocation5 + $0xca0] sm:$0xff]
        %v700 = vld [vmem:[#allocation5 + $0xca8] sm:$0xff]
        %v701 = vld [vmem:[#allocation5 + $0xcb0] sm:$0xff]
        %v702 = vld [vmem:[#allocation5 + $0xcb8] sm:$0xff]
        %v703 = vld [vmem:[#allocation5 + $0xcc0] sm:$0xff]
        %v704 = vld [vmem:[#allocation5 + $0xcc8] sm:$0xff]
        %v705 = vld [vmem:[#allocation5 + $0xcd0] sm:$0xff]
        %v706 = vld [vmem:[#allocation5 + $0xcd8] sm:$0xff]
        %v707 = vld [vmem:[#allocation5 + $0xce0] sm:$0xff]
        %v708 = vld [vmem:[#allocation5 + $0xce8] sm:$0xff]
        %v709 = vld [vmem:[#allocation5 + $0xcf0] sm:$0xff]
        %v710 = vld [vmem:[#allocation5 + $0xcf8] sm:$0xff]
        %v711 = vld [vmem:[#allocation5 + $0xd00] sm:$0xff]
        %v712 = vld [vmem:[#allocation5 + $0xd08] sm:$0xff]
        %v713 = vld [vmem:[#allocation5 + $0xd10] sm:$0xff]
        %v714 = vld [vmem:[#allocation5 + $0xd18] sm:$0xff]
        %v715 = vld [vmem:[#allocation5 + $0xd20] sm:$0xff]
        %v716 = vld [vmem:[#allocation5 + $0xd28] sm:$0xff]
        %v717 = vld [vmem:[#allocation5 + $0xd30] sm:$0xff]
        %v718 = vld [vmem:[#allocation5 + $0xd38] sm:$0xff]
        %v719 = vld [vmem:[#allocation5 + $0xd40] sm:$0xff]
        %v720 = vld [vmem:[#allocation5 + $0xd48] sm:$0xff]
        %v721 = vld [vmem:[#allocation5 + $0xd50] sm:$0xff]
        %v722 = vld [vmem:[#allocation5 + $0xd58] sm:$0xff]
        %v723 = vld [vmem:[#allocation5 + $0xd60] sm:$0xff]
        %v724 = vld [vmem:[#allocation5 + $0xd68] sm:$0xff]
        %v725 = vld [vmem:[#allocation5 + $0xd70] sm:$0xff]
        %v726 = vld [vmem:[#allocation5 + $0xd78] sm:$0xff]
        %v727 = vld [vmem:[#allocation5 + $0xd80] sm:$0xff]
        %v728 = vld [vmem:[#allocation5 + $0xd88] sm:$0xff]
        %v729 = vld [vmem:[#allocation5 + $0xd90] sm:$0xff]
        %v730 = vld [vmem:[#allocation5 + $0xd98] sm:$0xff]
        %v731 = vld [vmem:[#allocation5 + $0xda0] sm:$0xff]
        %v732 = vld [vmem:[#allocation5 + $0xda8] sm:$0xff]
        %v733 = vld [vmem:[#allocation5 + $0xdb0] sm:$0xff]
        %v734 = vld [vmem:[#allocation5 + $0xdb8] sm:$0xff]
        %v735 = vld [vmem:[#allocation5 + $0xdc0] sm:$0xff]
        %v736 = vld [vmem:[#allocation5 + $0xdc8] sm:$0xff]
        %v737 = vld [vmem:[#allocation5 + $0xdd0] sm:$0xff]
        %v738 = vld [vmem:[#allocation5 + $0xdd8] sm:$0xff]
        %v739 = vld [vmem:[#allocation5 + $0xde0] sm:$0xff]
        %v740 = vld [vmem:[#allocation5 + $0xde8] sm:$0xff]
        %v741 = vld [vmem:[#allocation5 + $0xdf0] sm:$0xff]
        %v742 = vld [vmem:[#allocation5 + $0xdf8] sm:$0xff]
        %v743 = vld [vmem:[#allocation5 + $0xe00] sm:$0xff]
        %v744 = vld [vmem:[#allocation5 + $0xe08] sm:$0xff]
        %v745 = vld [vmem:[#allocation5 + $0xe10] sm:$0xff]
        %v746 = vld [vmem:[#allocation5 + $0xe18] sm:$0xff]
        %v747 = vld [vmem:[#allocation5 + $0xe20] sm:$0xff]
        %v748 = vld [vmem:[#allocation5 + $0xe28] sm:$0xff]
        %v749 = vld [vmem:[#allocation5 + $0xe30] sm:$0xff]
        %v750 = vld [vmem:[#allocation5 + $0xe38] sm:$0xff]
        %v751 = vld [vmem:[#allocation5 + $0xe40] sm:$0xff]
        %v752 = vld [vmem:[#allocation5 + $0xe48] sm:$0xff]
        %v753 = vld [vmem:[#allocation5 + $0xe50] sm:$0xff]
        %v754 = vld [vmem:[#allocation5 + $0xe58] sm:$0xff]
        %v755 = vld [vmem:[#allocation5 + $0xe60] sm:$0xff]
        %v756 = vld [vmem:[#allocation5 + $0xe68] sm:$0xff]
        %v757 = vld [vmem:[#allocation5 + $0xe70] sm:$0xff]
        %v758 = vld [vmem:[#allocation5 + $0xe78] sm:$0xff]
        %v759 = vld [vmem:[#allocation5 + $0xe80] sm:$0xff]
        %v760 = vld [vmem:[#allocation5 + $0xe88] sm:$0xff]
        %v761 = vld [vmem:[#allocation5 + $0xe90] sm:$0xff]
        %v762 = vld [vmem:[#allocation5 + $0xe98] sm:$0xff]
        %v763 = vld [vmem:[#allocation5 + $0xea0] sm:$0xff]
        %v764 = vld [vmem:[#allocation5 + $0xea8] sm:$0xff]
        %v765 = vld [vmem:[#allocation5 + $0xeb0] sm:$0xff]
        %v766 = vld [vmem:[#allocation5 + $0xeb8] sm:$0xff]
        %v767 = vld [vmem:[#allocation5 + $0xec0] sm:$0xff]
        %v768 = vld [vmem:[#allocation5 + $0xec8] sm:$0xff]
        %v769 = vld [vmem:[#allocation5 + $0xed0] sm:$0xff]
        %v770 = vld [vmem:[#allocation5 + $0xed8] sm:$0xff]
        %v771 = vld [vmem:[#allocation5 + $0xee0] sm:$0xff]
        %v772 = vld [vmem:[#allocation5 + $0xee8] sm:$0xff]
        %v773 = vld [vmem:[#allocation5 + $0xef0] sm:$0xff]
        %v774 = vld [vmem:[#allocation5 + $0xef8] sm:$0xff]
        %v775 = vld [vmem:[#allocation5 + $0xf00] sm:$0xff]
        %v776 = vld [vmem:[#allocation5 + $0xf08] sm:$0xff]
        %v777 = vld [vmem:[#allocation5 + $0xf10] sm:$0xff]
        %v778 = vld [vmem:[#allocation5 + $0xf18] sm:$0xff]
        %v779 = vld [vmem:[#allocation5 + $0xf20] sm:$0xff]
        %v780 = vld [vmem:[#allocation5 + $0xf28] sm:$0xff]
        %v781 = vld [vmem:[#allocation5 + $0xf30] sm:$0xff]
        %v782 = vld [vmem:[#allocation5 + $0xf38] sm:$0xff]
        %v783 = vld [vmem:[#allocation5 + $0xf40] sm:$0xff]
        %v784 = vld [vmem:[#allocation5 + $0xf48] sm:$0xff]
        %v785 = vld [vmem:[#allocation5 + $0xf50] sm:$0xff]
        %v786 = vld [vmem:[#allocation5 + $0xf58] sm:$0xff]
        %v787 = vld [vmem:[#allocation5 + $0xf60] sm:$0xff]
        %v788 = vld [vmem:[#allocation5 + $0xf68] sm:$0xff]
        %v789 = vld [vmem:[#allocation5 + $0xf70] sm:$0xff]
        %v790 = vld [vmem:[#allocation5 + $0xf78] sm:$0xff]
        %v791 = vld [vmem:[#allocation5 + $0xf80] sm:$0xff]
        %v792 = vld [vmem:[#allocation5 + $0xf88] sm:$0xff]
        %v793 = vld [vmem:[#allocation5 + $0xf90] sm:$0xff]
        %v794 = vld [vmem:[#allocation5 + $0xf98] sm:$0xff]
        %v795 = vld [vmem:[#allocation5 + $0xfa0] sm:$0xff]
        %v796 = vld [vmem:[#allocation5 + $0xfa8] sm:$0xff]
        %v797 = vld [vmem:[#allocation5 + $0xfb0] sm:$0xff]
        %v798 = vld [vmem:[#allocation5 + $0xfb8] sm:$0xff]
        %v799 = vld [vmem:[#allocation5 + $0xfc0] sm:$0xff]
        %v800 = vld [vmem:[#allocation5 + $0xfc8] sm:$0xff]
        %v801 = vld [vmem:[#allocation5 + $0xfd0] sm:$0xff]
        %v802 = vld [vmem:[#allocation5 + $0xfd8] sm:$0xff]
        %v803 = vld [vmem:[#allocation5 + $0xfe0] sm:$0xff]
        %v804 = vld [vmem:[#allocation5 + $0xfe8] sm:$0xff]
        %v805 = vld [vmem:[#allocation5 + $0xff0] sm:$0xff]
        %v806 = vld [vmem:[#allocation5 + $0xff8] sm:$0xff]
        %v807 = vld [vmem:[#allocation7] sm:$0xff]
        %v809 = vlaneseq
        %v810 = vshrl.u32 %v809, 7
        %v811 = vsub.s32 0, %v810
        %v812 = vrot.slane %v807, %v811
        %v813 = vlaneseq
        %v814 = vshrl.u32 %v813, 7
        %v815 = vsub.s32 1, %v814
        %v816 = vrot.slane %v807, %v815
        %v817 = vlaneseq
        %v818 = vshrl.u32 %v817, 7
        %v819 = vsub.s32 2, %v818
        %v820 = vrot.slane %v807, %v819
        %v821 = vlaneseq
        %v822 = vshrl.u32 %v821, 7
        %v823 = vsub.s32 3, %v822
        %v824 = vrot.slane %v807, %v823
        %v825 = vlaneseq
        %v826 = vshrl.u32 %v825, 7
        %v827 = vsub.s32 4, %v826
        %v828 = vrot.slane %v807, %v827
        %v829 = vlaneseq
        %v830 = vshrl.u32 %v829, 7
        %v831 = vsub.s32 5, %v830
        %v832 = vrot.slane %v807, %v831
        %v833 = vlaneseq
        %v834 = vshrl.u32 %v833, 7
        %v835 = vsub.s32 6, %v834
        %v836 = vrot.slane %v807, %v835
        %v837 = vlaneseq
        %v838 = vshrl.u32 %v837, 7
        %v839 = vsub.s32 7, %v838
        %v840 = vrot.slane %v807, %v839
        %849 = vmatprep.subr.mxu0 %v416
        %850 = vmatpush1.msra.mxu0 %v415
        %851 = vmatprep.subr.mxu0 %v408
        %852 = vmatpush1.msra.mxu0 %v407
        %853 = vmatprep.subr.mxu0 %v400
        %854 = vmatpush1.msra.mxu0 %v399
        %855 = vmatprep.subr.mxu0 %v392
        %856 = vmatpush1.msra.mxu0 %v391
        %857 = vmatprep.subr.mxu0 %v384
        %858 = vmatpush1.msra.mxu0 %v383
        %859 = vmatprep.subr.mxu0 %v376
        %860 = vmatpush1.msra.mxu0 %v375
        %861 = vmatprep.subr.mxu0 %v368
        %862 = vmatpush1.msra.mxu0 %v367
        %863 = vmatprep.subr.mxu0 %v360
        %864 = vmatpush1.msra.mxu0 %v359
        %865 = vmatprep.subr.mxu0 %v352
        %866 = vmatpush1.msra.mxu0 %v351
        %867 = vmatprep.subr.mxu0 %v344
        %868 = vmatpush1.msra.mxu0 %v343
        %869 = vmatprep.subr.mxu0 %v336
        %870 = vmatpush1.msra.mxu0 %v335
        %871 = vmatprep.subr.mxu0 %v328
        %872 = vmatpush1.msra.mxu0 %v327
        %873 = vmatprep.subr.mxu0 %v320
        %874 = vmatpush1.msra.mxu0 %v319
        %875 = vmatprep.subr.mxu0 %v312
        %876 = vmatpush1.msra.mxu0 %v311
        %877 = vmatprep.subr.mxu0 %v304
        %878 = vmatpush1.msra.mxu0 %v303
        %879 = vmatprep.subr.mxu0 %v296
        %880 = vmatpush1.msra.mxu0 %v295
        %881 = vmatprep.subr.mxu0 %v544
        %882 = vmatpush2.msra.mxu0 %v543
        %883 = vmatprep.subr.mxu0 %v536
        %884 = vmatpush2.msra.mxu0 %v535
        %885 = vmatprep.subr.mxu0 %v528
        %886 = vmatpush2.msra.mxu0 %v527
        %887 = vmatprep.subr.mxu0 %v520
        %888 = vmatpush2.msra.mxu0 %v519
        %889 = vmatprep.subr.mxu0 %v512
        %890 = vmatpush2.msra.mxu0 %v511
        %891 = vmatprep.subr.mxu0 %v504
        %892 = vmatpush2.msra.mxu0 %v503
        %893 = vmatprep.subr.mxu0 %v496
        %894 = vmatpush2.msra.mxu0 %v495
        %895 = vmatprep.subr.mxu0 %v488
        %896 = vmatpush2.msra.mxu0 %v487
        %897 = vmatprep.subr.mxu0 %v480
        %898 = vmatpush2.msra.mxu0 %v479
        %899 = vmatprep.subr.mxu0 %v472
        %900 = vmatpush2.msra.mxu0 %v471
        %901 = vmatprep.subr.mxu0 %v464
        %902 = vmatpush2.msra.mxu0 %v463
        %903 = vmatprep.subr.mxu0 %v456
        %904 = vmatpush2.msra.mxu0 %v455
        %905 = vmatprep.subr.mxu0 %v448
        %906 = vmatpush2.msra.mxu0 %v447
        %907 = vmatprep.subr.mxu0 %v440
        %908 = vmatpush2.msra.mxu0 %v439
        %909 = vmatprep.subr.mxu0 %v432
        %910 = vmatpush2.msra.mxu0 %v431
        %911 = vmatprep.subr.mxu0 %v424
        %912 = vmatpush2.msra.mxu0 %v423
        %913 = vmatprep.mubr.f32.mxu0 %v220
        %914 = vmatmul.mubr.f32.gmra.mxu0 %v219
        %v915 = vpop.f32.mrf.mxu0
        %v916 = vadd.f32 %v812, %v915
        %v917 = vpop.f32.mrf.mxu0
        %v918 = vadd.f32 %v816, %v917
        %919 = vmatprep.mubr.f32.mxu0 %v224
        %920 = vmatmul.mubr.f32.gmra.mxu0 %v223
        %v921 = vpop.f32.mrf.mxu0
        %v922 = vadd.f32 %v812, %v921
        %v923 = vpop.f32.mrf.mxu0
        %v924 = vadd.f32 %v816, %v923
        %925 = vmatprep.mubr.f32.mxu0 %v228
        %926 = vmatmul.mubr.f32.gmra.mxu0 %v227
        %v927 = vpop.f32.mrf.mxu0
        %v928 = vadd.f32 %v812, %v927
        %v929 = vpop.f32.mrf.mxu0
        %v930 = vadd.f32 %v816, %v929
        %931 = vmatprep.mubr.f32.mxu0 %v232
        %932 = vmatmul.mubr.f32.gmra.mxu0 %v231
        %v933 = vpop.f32.mrf.mxu0
        %v934 = vadd.f32 %v812, %v933
        %v935 = vpop.f32.mrf.mxu0
        %v936 = vadd.f32 %v816, %v935
        %937 = vmatprep.mubr.f32.mxu0 %v236
        %938 = vmatmul.mubr.f32.gmra.mxu0 %v235
        %v939 = vpop.f32.mrf.mxu0
        %v940 = vadd.f32 %v812, %v939
        %v941 = vpop.f32.mrf.mxu0
        %v942 = vadd.f32 %v816, %v941
        %943 = vmatprep.mubr.f32.mxu0 %v240
        %944 = vmatmul.mubr.f32.gmra.mxu0 %v239
        %v945 = vpop.f32.mrf.mxu0
        %v946 = vadd.f32 %v812, %v945
        %v947 = vpop.f32.mrf.mxu0
        %v948 = vadd.f32 %v816, %v947
        %949 = vmatprep.mubr.f32.mxu0 %v244
        %950 = vmatmul.mubr.f32.gmra.mxu0 %v243
        %v951 = vpop.f32.mrf.mxu0
        %v952 = vadd.f32 %v812, %v951
        %v953 = vpop.f32.mrf.mxu0
        %v954 = vadd.f32 %v816, %v953
        %955 = vmatprep.mubr.f32.mxu0 %v248
        %956 = vmatmul.mubr.f32.gmra.mxu0 %v247
        %v957 = vpop.f32.mrf.mxu0
        %v958 = vadd.f32 %v812, %v957
        %v959 = vpop.f32.mrf.mxu0
        %v960 = vadd.f32 %v816, %v959
        %961 = vmatprep.mubr.f32.mxu0 %v252
        %962 = vmatmul.mubr.f32.gmra.mxu0 %v251
        %v963 = vpop.f32.mrf.mxu0
        %v964 = vadd.f32 %v812, %v963
        %v965 = vpop.f32.mrf.mxu0
        %v966 = vadd.f32 %v816, %v965
        %967 = vmatprep.mubr.f32.mxu0 %v256
        %968 = vmatmul.mubr.f32.gmra.mxu0 %v255
        %v969 = vpop.f32.mrf.mxu0
        %v970 = vadd.f32 %v812, %v969
        %v971 = vpop.f32.mrf.mxu0
        %v972 = vadd.f32 %v816, %v971
        %973 = vmatprep.mubr.f32.mxu0 %v260
        %974 = vmatmul.mubr.f32.gmra.mxu0 %v259
        %v975 = vpop.f32.mrf.mxu0
        %v976 = vadd.f32 %v812, %v975
        %v977 = vpop.f32.mrf.mxu0
        %v978 = vadd.f32 %v816, %v977
        %979 = vmatprep.mubr.f32.mxu0 %v264
        %980 = vmatmul.mubr.f32.gmra.mxu0 %v263
        %v981 = vpop.f32.mrf.mxu0
        %v982 = vadd.f32 %v812, %v981
        %v983 = vpop.f32.mrf.mxu0
        %v984 = vadd.f32 %v816, %v983
        %985 = vmatprep.mubr.f32.mxu0 %v268
        %986 = vmatmul.mubr.f32.gmra.mxu0 %v267
        %v987 = vpop.f32.mrf.mxu0
        %v988 = vadd.f32 %v812, %v987
        %v989 = vpop.f32.mrf.mxu0
        %v990 = vadd.f32 %v816, %v989
        %991 = vmatprep.mubr.f32.mxu0 %v272
        %992 = vmatmul.mubr.f32.gmra.mxu0 %v271
        %v993 = vpop.f32.mrf.mxu0
        %v994 = vadd.f32 %v812, %v993
        %v995 = vpop.f32.mrf.mxu0
        %v996 = vadd.f32 %v816, %v995
        %997 = vmatprep.mubr.f32.mxu0 %v276
        %998 = vmatmul.mubr.f32.gmra.mxu0 %v275
        %v999 = vpop.f32.mrf.mxu0
        %v1000 = vadd.f32 %v812, %v999
        %v1001 = vpop.f32.mrf.mxu0
        %v1002 = vadd.f32 %v816, %v1001
        %1003 = vmatprep.mubr.f32.mxu0 %v280
        %1004 = vmatmul.mubr.f32.gmra.mxu0 %v279
        %v1005 = vpop.f32.mrf.mxu0
        %v1006 = vadd.f32 %v812, %v1005
        %v1007 = vpop.f32.mrf.mxu0
        %v1008 = vadd.f32 %v816, %v1007
        %1009 = vmatprep.mubr.f32.mxu0 %v284
        %1010 = vmatmul.mubr.f32.gmra.mxu0 %v283
        %v1011 = vpop.f32.mrf.mxu0
        %v1012 = vadd.f32 %v812, %v1011
        %v1013 = vpop.f32.mrf.mxu0
        %v1014 = vadd.f32 %v816, %v1013
        %1015 = vmatprep.mubr.f32.mxu0 %v288
        %1016 = vmatmul.mubr.f32.gmra.mxu0 %v287
        %v1017 = vpop.f32.mrf.mxu0
        %v1018 = vadd.f32 %v812, %v1017
        %v1019 = vpop.f32.mrf.mxu0
        %v1020 = vadd.f32 %v816, %v1019
        %1021 = vmatprep.mubr.f32.mxu0 %v292
        %1022 = vmatmul.mubr.f32.gmra.mxu0 %v291
        %v1023 = vpop.f32.mrf.mxu0
        %v1024 = vadd.f32 %v812, %v1023
        %v1025 = vpop.f32.mrf.mxu0
        %v1026 = vadd.f32 %v816, %v1025
        %1027 = vdwg.mxu0
        %1028 = vmatprep.subr.mxu0 %v672
        %1029 = vmatpush1.msra.mxu0 %v671
        %1030 = vmatprep.subr.mxu0 %v664
        %1031 = vmatpush1.msra.mxu0 %v663
        %1032 = vmatprep.subr.mxu0 %v656
        %1033 = vmatpush1.msra.mxu0 %v655
        %1034 = vmatprep.subr.mxu0 %v648
        %1035 = vmatpush1.msra.mxu0 %v647
        %1036 = vmatprep.subr.mxu0 %v640
        %1037 = vmatpush1.msra.mxu0 %v639
        %1038 = vmatprep.subr.mxu0 %v632
        %1039 = vmatpush1.msra.mxu0 %v631
        %1040 = vmatprep.subr.mxu0 %v624
        %1041 = vmatpush1.msra.mxu0 %v623
        %1042 = vmatprep.subr.mxu0 %v616
        %1043 = vmatpush1.msra.mxu0 %v615
        %1044 = vmatprep.subr.mxu0 %v608
        %1045 = vmatpush1.msra.mxu0 %v607
        %1046 = vmatprep.subr.mxu0 %v600
        %1047 = vmatpush1.msra.mxu0 %v599
        %1048 = vmatprep.subr.mxu0 %v592
        %1049 = vmatpush1.msra.mxu0 %v591
        %1050 = vmatprep.subr.mxu0 %v584
        %1051 = vmatpush1.msra.mxu0 %v583
        %1052 = vmatprep.subr.mxu0 %v576
        %1053 = vmatpush1.msra.mxu0 %v575
        %1054 = vmatprep.subr.mxu0 %v568
        %1055 = vmatpush1.msra.mxu0 %v567
        %1056 = vmatprep.subr.mxu0 %v560
        %1057 = vmatpush1.msra.mxu0 %v559
        %1058 = vmatprep.subr.mxu0 %v552
        %1059 = vmatpush1.msra.mxu0 %v551
        %1060 = vmatprep.subr.mxu0 %v800
        %1061 = vmatpush2.msra.mxu0 %v799
        %1062 = vmatprep.subr.mxu0 %v792
        %1063 = vmatpush2.msra.mxu0 %v791
        %1064 = vmatprep.subr.mxu0 %v784
        %1065 = vmatpush2.msra.mxu0 %v783
        %1066 = vmatprep.subr.mxu0 %v776
        %1067 = vmatpush2.msra.mxu0 %v775
        %1068 = vmatprep.subr.mxu0 %v768
        %1069 = vmatpush2.msra.mxu0 %v767
        %1070 = vmatprep.subr.mxu0 %v760
        %1071 = vmatpush2.msra.mxu0 %v759
        %1072 = vmatprep.subr.mxu0 %v752
        %1073 = vmatpush2.msra.mxu0 %v751
        %1074 = vmatprep.subr.mxu0 %v744
        %1075 = vmatpush2.msra.mxu0 %v743
        %1076 = vmatprep.subr.mxu0 %v736
        %1077 = vmatpush2.msra.mxu0 %v735
        %1078 = vmatprep.subr.mxu0 %v728
        %1079 = vmatpush2.msra.mxu0 %v727
        %1080 = vmatprep.subr.mxu0 %v720
        %1081 = vmatpush2.msra.mxu0 %v719
        %1082 = vmatprep.subr.mxu0 %v712
        %1083 = vmatpush2.msra.mxu0 %v711
        %1084 = vmatprep.subr.mxu0 %v704
        %1085 = vmatpush2.msra.mxu0 %v703
        %1086 = vmatprep.subr.mxu0 %v696
        %1087 = vmatpush2.msra.mxu0 %v695
        %1088 = vmatprep.subr.mxu0 %v688
        %1089 = vmatpush2.msra.mxu0 %v687
        %1090 = vmatprep.subr.mxu0 %v680
        %1091 = vmatpush2.msra.mxu0 %v679
        %1092 = vmatprep.mubr.f32.mxu0 %v222
        %1093 = vmatmul.mubr.f32.gmra.mxu0 %v221
        %v1094 = vpop.f32.mrf.mxu0
        %v1095 = vadd.f32 %v916, %v1094
        %v1096 = vpop.f32.mrf.mxu0
        %v1097 = vadd.f32 %v918, %v1096
        %1098 = vmatprep.mubr.f32.mxu0 %v226
        %1099 = vmatmul.mubr.f32.gmra.mxu0 %v225
        %v1100 = vpop.f32.mrf.mxu0
        %v1101 = vadd.f32 %v922, %v1100
        %v1102 = vpop.f32.mrf.mxu0
        %v1103 = vadd.f32 %v924, %v1102
        %1104 = vmatprep.mubr.f32.mxu0 %v230
        %1105 = vmatmul.mubr.f32.gmra.mxu0 %v229
        %v1106 = vpop.f32.mrf.mxu0
        %v1107 = vadd.f32 %v928, %v1106
        %v1108 = vpop.f32.mrf.mxu0
        %v1109 = vadd.f32 %v930, %v1108
        %1110 = vmatprep.mubr.f32.mxu0 %v234
        %1111 = vmatmul.mubr.f32.gmra.mxu0 %v233
        %v1112 = vpop.f32.mrf.mxu0
        %v1113 = vadd.f32 %v934, %v1112
        %v1114 = vpop.f32.mrf.mxu0
        %v1115 = vadd.f32 %v936, %v1114
        %1116 = vmatprep.mubr.f32.mxu0 %v238
        %1117 = vmatmul.mubr.f32.gmra.mxu0 %v237
        %v1118 = vpop.f32.mrf.mxu0
        %v1119 = vadd.f32 %v940, %v1118
        %v1120 = vpop.f32.mrf.mxu0
        %v1121 = vadd.f32 %v942, %v1120
        %1122 = vmatprep.mubr.f32.mxu0 %v242
        %1123 = vmatmul.mubr.f32.gmra.mxu0 %v241
        %v1124 = vpop.f32.mrf.mxu0
        %v1125 = vadd.f32 %v946, %v1124
        %v1126 = vpop.f32.mrf.mxu0
        %v1127 = vadd.f32 %v948, %v1126
        %1128 = vmatprep.mubr.f32.mxu0 %v246
        %1129 = vmatmul.mubr.f32.gmra.mxu0 %v245
        %v1130 = vpop.f32.mrf.mxu0
        %v1131 = vadd.f32 %v952, %v1130
        %v1132 = vpop.f32.mrf.mxu0
        %v1133 = vadd.f32 %v954, %v1132
        %1134 = vmatprep.mubr.f32.mxu0 %v250
        %1135 = vmatmul.mubr.f32.gmra.mxu0 %v249
        %v1136 = vpop.f32.mrf.mxu0
        %v1137 = vadd.f32 %v958, %v1136
        %v1138 = vpop.f32.mrf.mxu0
        %v1139 = vadd.f32 %v960, %v1138
        %1140 = vmatprep.mubr.f32.mxu0 %v254
        %1141 = vmatmul.mubr.f32.gmra.mxu0 %v253
        %v1142 = vpop.f32.mrf.mxu0
        %v1143 = vadd.f32 %v964, %v1142
        %v1144 = vpop.f32.mrf.mxu0
        %v1145 = vadd.f32 %v966, %v1144
        %1146 = vmatprep.mubr.f32.mxu0 %v258
        %1147 = vmatmul.mubr.f32.gmra.mxu0 %v257
        %v1148 = vpop.f32.mrf.mxu0
        %v1149 = vadd.f32 %v970, %v1148
        %v1150 = vpop.f32.mrf.mxu0
        %v1151 = vadd.f32 %v972, %v1150
        %1152 = vmatprep.mubr.f32.mxu0 %v262
        %1153 = vmatmul.mubr.f32.gmra.mxu0 %v261
        %v1154 = vpop.f32.mrf.mxu0
        %v1155 = vadd.f32 %v976, %v1154
        %v1156 = vpop.f32.mrf.mxu0
        %v1157 = vadd.f32 %v978, %v1156
        %1158 = vmatprep.mubr.f32.mxu0 %v266
        %1159 = vmatmul.mubr.f32.gmra.mxu0 %v265
        %v1160 = vpop.f32.mrf.mxu0
        %v1161 = vadd.f32 %v982, %v1160
        %v1162 = vpop.f32.mrf.mxu0
        %v1163 = vadd.f32 %v984, %v1162
        %1164 = vmatprep.mubr.f32.mxu0 %v270
        %1165 = vmatmul.mubr.f32.gmra.mxu0 %v269
        %v1166 = vpop.f32.mrf.mxu0
        %v1167 = vadd.f32 %v988, %v1166
        %v1168 = vpop.f32.mrf.mxu0
        %v1169 = vadd.f32 %v990, %v1168
        %1170 = vmatprep.mubr.f32.mxu0 %v274
        %1171 = vmatmul.mubr.f32.gmra.mxu0 %v273
        %v1172 = vpop.f32.mrf.mxu0
        %v1173 = vadd.f32 %v994, %v1172
        %v1174 = vpop.f32.mrf.mxu0
        %v1175 = vadd.f32 %v996, %v1174
        %1176 = vmatprep.mubr.f32.mxu0 %v278
        %1177 = vmatmul.mubr.f32.gmra.mxu0 %v277
        %v1178 = vpop.f32.mrf.mxu0
        %v1179 = vadd.f32 %v1000, %v1178
        %v1180 = vpop.f32.mrf.mxu0
        %v1181 = vadd.f32 %v1002, %v1180
        %1182 = vmatprep.mubr.f32.mxu0 %v282
        %1183 = vmatmul.mubr.f32.gmra.mxu0 %v281
        %v1184 = vpop.f32.mrf.mxu0
        %v1185 = vadd.f32 %v1006, %v1184
        %v1186 = vpop.f32.mrf.mxu0
        %v1187 = vadd.f32 %v1008, %v1186
        %1188 = vmatprep.mubr.f32.mxu0 %v286
        %1189 = vmatmul.mubr.f32.gmra.mxu0 %v285
        %v1190 = vpop.f32.mrf.mxu0
        %v1191 = vadd.f32 %v1012, %v1190
        %v1192 = vpop.f32.mrf.mxu0
        %v1193 = vadd.f32 %v1014, %v1192
        %1194 = vmatprep.mubr.f32.mxu0 %v290
        %1195 = vmatmul.mubr.f32.gmra.mxu0 %v289
        %v1196 = vpop.f32.mrf.mxu0
        %v1197 = vadd.f32 %v1018, %v1196
        %v1198 = vpop.f32.mrf.mxu0
        %v1199 = vadd.f32 %v1020, %v1198
        %1200 = vmatprep.mubr.f32.mxu0 %v294
        %1201 = vmatmul.mubr.f32.gmra.mxu0 %v293
        %v1202 = vpop.f32.mrf.mxu0
        %v1203 = vadd.f32 %v1024, %v1202
        %v1204 = vpop.f32.mrf.mxu0
        %v1205 = vadd.f32 %v1026, %v1204
        %1206 = vdwg.mxu0
        %1207 = vmatprep.subr.mxu0 %v418
        %1208 = vmatpush1.msra.mxu0 %v417
        %1209 = vmatprep.subr.mxu0 %v410
        %1210 = vmatpush1.msra.mxu0 %v409
        %1211 = vmatprep.subr.mxu0 %v402
        %1212 = vmatpush1.msra.mxu0 %v401
        %1213 = vmatprep.subr.mxu0 %v394
        %1214 = vmatpush1.msra.mxu0 %v393
        %1215 = vmatprep.subr.mxu0 %v386
        %1216 = vmatpush1.msra.mxu0 %v385
        %1217 = vmatprep.subr.mxu0 %v378
        %1218 = vmatpush1.msra.mxu0 %v377
        %1219 = vmatprep.subr.mxu0 %v370
        %1220 = vmatpush1.msra.mxu0 %v369
        %1221 = vmatprep.subr.mxu0 %v362
        %1222 = vmatpush1.msra.mxu0 %v361
        %1223 = vmatprep.subr.mxu0 %v354
        %1224 = vmatpush1.msra.mxu0 %v353
        %1225 = vmatprep.subr.mxu0 %v346
        %1226 = vmatpush1.msra.mxu0 %v345
        %1227 = vmatprep.subr.mxu0 %v338
        %1228 = vmatpush1.msra.mxu0 %v337
        %1229 = vmatprep.subr.mxu0 %v330
        %1230 = vmatpush1.msra.mxu0 %v329
        %1231 = vmatprep.subr.mxu0 %v322
        %1232 = vmatpush1.msra.mxu0 %v321
        %1233 = vmatprep.subr.mxu0 %v314
        %1234 = vmatpush1.msra.mxu0 %v313
        %1235 = vmatprep.subr.mxu0 %v306
        %1236 = vmatpush1.msra.mxu0 %v305
        %1237 = vmatprep.subr.mxu0 %v298
        %1238 = vmatpush1.msra.mxu0 %v297
        %1239 = vmatprep.subr.mxu0 %v546
        %1240 = vmatpush2.msra.mxu0 %v545
        %1241 = vmatprep.subr.mxu0 %v538
        %1242 = vmatpush2.msra.mxu0 %v537
        %1243 = vmatprep.subr.mxu0 %v530
        %1244 = vmatpush2.msra.mxu0 %v529
        %1245 = vmatprep.subr.mxu0 %v522
        %1246 = vmatpush2.msra.mxu0 %v521
        %1247 = vmatprep.subr.mxu0 %v514
        %1248 = vmatpush2.msra.mxu0 %v513
        %1249 = vmatprep.subr.mxu0 %v506
        %1250 = vmatpush2.msra.mxu0 %v505
        %1251 = vmatprep.subr.mxu0 %v498
        %1252 = vmatpush2.msra.mxu0 %v497
        %1253 = vmatprep.subr.mxu0 %v490
        %1254 = vmatpush2.msra.mxu0 %v489
        %1255 = vmatprep.subr.mxu0 %v482
        %1256 = vmatpush2.msra.mxu0 %v481
        %1257 = vmatprep.subr.mxu0 %v474
        %1258 = vmatpush2.msra.mxu0 %v473
        %1259 = vmatprep.subr.mxu0 %v466
        %1260 = vmatpush2.msra.mxu0 %v465
        %1261 = vmatprep.subr.mxu0 %v458
        %1262 = vmatpush2.msra.mxu0 %v457
        %1263 = vmatprep.subr.mxu0 %v450
        %1264 = vmatpush2.msra.mxu0 %v449
        %1265 = vmatprep.subr.mxu0 %v442
        %1266 = vmatpush2.msra.mxu0 %v441
        %1267 = vmatprep.subr.mxu0 %v434
        %1268 = vmatpush2.msra.mxu0 %v433
        %1269 = vmatprep.subr.mxu0 %v426
        %1270 = vmatpush2.msra.mxu0 %v425
        %1271 = vmatprep.mubr.f32.mxu0 %v220
        %1272 = vmatmul.mubr.f32.gmra.mxu0 %v219
        %v1273 = vpop.f32.mrf.mxu0
        %v1274 = vadd.f32 %v820, %v1273
        %v1275 = vpop.f32.mrf.mxu0
        %v1276 = vadd.f32 %v824, %v1275
        %1277 = vmatprep.mubr.f32.mxu0 %v224
        %1278 = vmatmul.mubr.f32.gmra.mxu0 %v223
        %v1279 = vpop.f32.mrf.mxu0
        %v1280 = vadd.f32 %v820, %v1279
        %v1281 = vpop.f32.mrf.mxu0
        %v1282 = vadd.f32 %v824, %v1281
        %1283 = vmatprep.mubr.f32.mxu0 %v228
        %1284 = vmatmul.mubr.f32.gmra.mxu0 %v227
        %v1285 = vpop.f32.mrf.mxu0
        %v1286 = vadd.f32 %v820, %v1285
        %v1287 = vpop.f32.mrf.mxu0
        %v1288 = vadd.f32 %v824, %v1287
        %1289 = vmatprep.mubr.f32.mxu0 %v232
        %1290 = vmatmul.mubr.f32.gmra.mxu0 %v231
        %v1291 = vpop.f32.mrf.mxu0
        %v1292 = vadd.f32 %v820, %v1291
        %v1293 = vpop.f32.mrf.mxu0
        %v1294 = vadd.f32 %v824, %v1293
        %1295 = vmatprep.mubr.f32.mxu0 %v236
        %1296 = vmatmul.mubr.f32.gmra.mxu0 %v235
        %v1297 = vpop.f32.mrf.mxu0
        %v1298 = vadd.f32 %v820, %v1297
        %v1299 = vpop.f32.mrf.mxu0
        %v1300 = vadd.f32 %v824, %v1299
        %1301 = vmatprep.mubr.f32.mxu0 %v240
        %1302 = vmatmul.mubr.f32.gmra.mxu0 %v239
        %v1303 = vpop.f32.mrf.mxu0
        %v1304 = vadd.f32 %v820, %v1303
        %v1305 = vpop.f32.mrf.mxu0
        %v1306 = vadd.f32 %v824, %v1305
        %1307 = vmatprep.mubr.f32.mxu0 %v244
        %1308 = vmatmul.mubr.f32.gmra.mxu0 %v243
        %v1309 = vpop.f32.mrf.mxu0
        %v1310 = vadd.f32 %v820, %v1309
        %v1311 = vpop.f32.mrf.mxu0
        %v1312 = vadd.f32 %v824, %v1311
        %1313 = vmatprep.mubr.f32.mxu0 %v248
        %1314 = vmatmul.mubr.f32.gmra.mxu0 %v247
        %v1315 = vpop.f32.mrf.mxu0
        %v1316 = vadd.f32 %v820, %v1315
        %v1317 = vpop.f32.mrf.mxu0
        %v1318 = vadd.f32 %v824, %v1317
        %1319 = vmatprep.mubr.f32.mxu0 %v252
        %1320 = vmatmul.mubr.f32.gmra.mxu0 %v251
        %v1321 = vpop.f32.mrf.mxu0
        %v1322 = vadd.f32 %v820, %v1321
        %v1323 = vpop.f32.mrf.mxu0
        %v1324 = vadd.f32 %v824, %v1323
        %1325 = vmatprep.mubr.f32.mxu0 %v256
        %1326 = vmatmul.mubr.f32.gmra.mxu0 %v255
        %v1327 = vpop.f32.mrf.mxu0
        %v1328 = vadd.f32 %v820, %v1327
        %v1329 = vpop.f32.mrf.mxu0
        %v1330 = vadd.f32 %v824, %v1329
        %1331 = vmatprep.mubr.f32.mxu0 %v260
        %1332 = vmatmul.mubr.f32.gmra.mxu0 %v259
        %v1333 = vpop.f32.mrf.mxu0
        %v1334 = vadd.f32 %v820, %v1333
        %v1335 = vpop.f32.mrf.mxu0
        %v1336 = vadd.f32 %v824, %v1335
        %1337 = vmatprep.mubr.f32.mxu0 %v264
        %1338 = vmatmul.mubr.f32.gmra.mxu0 %v263
        %v1339 = vpop.f32.mrf.mxu0
        %v1340 = vadd.f32 %v820, %v1339
        %v1341 = vpop.f32.mrf.mxu0
        %v1342 = vadd.f32 %v824, %v1341
        %1343 = vmatprep.mubr.f32.mxu0 %v268
        %1344 = vmatmul.mubr.f32.gmra.mxu0 %v267
        %v1345 = vpop.f32.mrf.mxu0
        %v1346 = vadd.f32 %v820, %v1345
        %v1347 = vpop.f32.mrf.mxu0
        %v1348 = vadd.f32 %v824, %v1347
        %1349 = vmatprep.mubr.f32.mxu0 %v272
        %1350 = vmatmul.mubr.f32.gmra.mxu0 %v271
        %v1351 = vpop.f32.mrf.mxu0
        %v1352 = vadd.f32 %v820, %v1351
        %v1353 = vpop.f32.mrf.mxu0
        %v1354 = vadd.f32 %v824, %v1353
        %1355 = vmatprep.mubr.f32.mxu0 %v276
        %1356 = vmatmul.mubr.f32.gmra.mxu0 %v275
        %v1357 = vpop.f32.mrf.mxu0
        %v1358 = vadd.f32 %v820, %v1357
        %v1359 = vpop.f32.mrf.mxu0
        %v1360 = vadd.f32 %v824, %v1359
        %1361 = vmatprep.mubr.f32.mxu0 %v280
        %1362 = vmatmul.mubr.f32.gmra.mxu0 %v279
        %v1363 = vpop.f32.mrf.mxu0
        %v1364 = vadd.f32 %v820, %v1363
        %v1365 = vpop.f32.mrf.mxu0
        %v1366 = vadd.f32 %v824, %v1365
        %1367 = vmatprep.mubr.f32.mxu0 %v284
        %1368 = vmatmul.mubr.f32.gmra.mxu0 %v283
        %v1369 = vpop.f32.mrf.mxu0
        %v1370 = vadd.f32 %v820, %v1369
        %v1371 = vpop.f32.mrf.mxu0
        %v1372 = vadd.f32 %v824, %v1371
        %1373 = vmatprep.mubr.f32.mxu0 %v288
        %1374 = vmatmul.mubr.f32.gmra.mxu0 %v287
        %v1375 = vpop.f32.mrf.mxu0
        %v1376 = vadd.f32 %v820, %v1375
        %v1377 = vpop.f32.mrf.mxu0
        %v1378 = vadd.f32 %v824, %v1377
        %1379 = vmatprep.mubr.f32.mxu0 %v292
        %1380 = vmatmul.mubr.f32.gmra.mxu0 %v291
        %v1381 = vpop.f32.mrf.mxu0
        %v1382 = vadd.f32 %v820, %v1381
        %v1383 = vpop.f32.mrf.mxu0
        %v1384 = vadd.f32 %v824, %v1383
        %1385 = vdwg.mxu0
        %1386 = vmatprep.subr.mxu0 %v674
        %1387 = vmatpush1.msra.mxu0 %v673
        %1388 = vmatprep.subr.mxu0 %v666
        %1389 = vmatpush1.msra.mxu0 %v665
        %1390 = vmatprep.subr.mxu0 %v658
        %1391 = vmatpush1.msra.mxu0 %v657
        %1392 = vmatprep.subr.mxu0 %v650
        %1393 = vmatpush1.msra.mxu0 %v649
        %1394 = vmatprep.subr.mxu0 %v642
        %1395 = vmatpush1.msra.mxu0 %v641
        %1396 = vmatprep.subr.mxu0 %v634
        %1397 = vmatpush1.msra.mxu0 %v633
        %1398 = vmatprep.subr.mxu0 %v626
        %1399 = vmatpush1.msra.mxu0 %v625
        %1400 = vmatprep.subr.mxu0 %v618
        %1401 = vmatpush1.msra.mxu0 %v617
        %1402 = vmatprep.subr.mxu0 %v610
        %1403 = vmatpush1.msra.mxu0 %v609
        %1404 = vmatprep.subr.mxu0 %v602
        %1405 = vmatpush1.msra.mxu0 %v601
        %1406 = vmatprep.subr.mxu0 %v594
        %1407 = vmatpush1.msra.mxu0 %v593
        %1408 = vmatprep.subr.mxu0 %v586
        %1409 = vmatpush1.msra.mxu0 %v585
        %1410 = vmatprep.subr.mxu0 %v578
        %1411 = vmatpush1.msra.mxu0 %v577
        %1412 = vmatprep.subr.mxu0 %v570
        %1413 = vmatpush1.msra.mxu0 %v569
        %1414 = vmatprep.subr.mxu0 %v562
        %1415 = vmatpush1.msra.mxu0 %v561
        %1416 = vmatprep.subr.mxu0 %v554
        %1417 = vmatpush1.msra.mxu0 %v553
        %1418 = vmatprep.subr.mxu0 %v802
        %1419 = vmatpush2.msra.mxu0 %v801
        %1420 = vmatprep.subr.mxu0 %v794
        %1421 = vmatpush2.msra.mxu0 %v793
        %1422 = vmatprep.subr.mxu0 %v786
        %1423 = vmatpush2.msra.mxu0 %v785
        %1424 = vmatprep.subr.mxu0 %v778
        %1425 = vmatpush2.msra.mxu0 %v777
        %1426 = vmatprep.subr.mxu0 %v770
        %1427 = vmatpush2.msra.mxu0 %v769
        %1428 = vmatprep.subr.mxu0 %v762
        %1429 = vmatpush2.msra.mxu0 %v761
        %1430 = vmatprep.subr.mxu0 %v754
        %1431 = vmatpush2.msra.mxu0 %v753
        %1432 = vmatprep.subr.mxu0 %v746
        %1433 = vmatpush2.msra.mxu0 %v745
        %1434 = vmatprep.subr.mxu0 %v738
        %1435 = vmatpush2.msra.mxu0 %v737
        %1436 = vmatprep.subr.mxu0 %v730
        %1437 = vmatpush2.msra.mxu0 %v729
        %1438 = vmatprep.subr.mxu0 %v722
        %1439 = vmatpush2.msra.mxu0 %v721
        %1440 = vmatprep.subr.mxu0 %v714
        %1441 = vmatpush2.msra.mxu0 %v713
        %1442 = vmatprep.subr.mxu0 %v706
        %1443 = vmatpush2.msra.mxu0 %v705
        %1444 = vmatprep.subr.mxu0 %v698
        %1445 = vmatpush2.msra.mxu0 %v697
        %1446 = vmatprep.subr.mxu0 %v690
        %1447 = vmatpush2.msra.mxu0 %v689
        %1448 = vmatprep.subr.mxu0 %v682
        %1449 = vmatpush2.msra.mxu0 %v681
        %1450 = vmatprep.mubr.f32.mxu0 %v222
        %1451 = vmatmul.mubr.f32.gmra.mxu0 %v221
        %v1452 = vpop.f32.mrf.mxu0
        %v1453 = vadd.f32 %v1274, %v1452
        %v1454 = vpop.f32.mrf.mxu0
        %v1455 = vadd.f32 %v1276, %v1454
        %1456 = vmatprep.mubr.f32.mxu0 %v226
        %1457 = vmatmul.mubr.f32.gmra.mxu0 %v225
        %v1458 = vpop.f32.mrf.mxu0
        %v1459 = vadd.f32 %v1280, %v1458
        %v1460 = vpop.f32.mrf.mxu0
        %v1461 = vadd.f32 %v1282, %v1460
        %1462 = vmatprep.mubr.f32.mxu0 %v230
        %1463 = vmatmul.mubr.f32.gmra.mxu0 %v229
        %v1464 = vpop.f32.mrf.mxu0
        %v1465 = vadd.f32 %v1286, %v1464
        %v1466 = vpop.f32.mrf.mxu0
        %v1467 = vadd.f32 %v1288, %v1466
        %1468 = vmatprep.mubr.f32.mxu0 %v234
        %1469 = vmatmul.mubr.f32.gmra.mxu0 %v233
        %v1470 = vpop.f32.mrf.mxu0
        %v1471 = vadd.f32 %v1292, %v1470
        %v1472 = vpop.f32.mrf.mxu0
        %v1473 = vadd.f32 %v1294, %v1472
        %1474 = vmatprep.mubr.f32.mxu0 %v238
        %1475 = vmatmul.mubr.f32.gmra.mxu0 %v237
        %v1476 = vpop.f32.mrf.mxu0
        %v1477 = vadd.f32 %v1298, %v1476
        %v1478 = vpop.f32.mrf.mxu0
        %v1479 = vadd.f32 %v1300, %v1478
        %1480 = vmatprep.mubr.f32.mxu0 %v242
        %1481 = vmatmul.mubr.f32.gmra.mxu0 %v241
        %v1482 = vpop.f32.mrf.mxu0
        %v1483 = vadd.f32 %v1304, %v1482
        %v1484 = vpop.f32.mrf.mxu0
        %v1485 = vadd.f32 %v1306, %v1484
        %1486 = vmatprep.mubr.f32.mxu0 %v246
        %1487 = vmatmul.mubr.f32.gmra.mxu0 %v245
        %v1488 = vpop.f32.mrf.mxu0
        %v1489 = vadd.f32 %v1310, %v1488
        %v1490 = vpop.f32.mrf.mxu0
        %v1491 = vadd.f32 %v1312, %v1490
        %1492 = vmatprep.mubr.f32.mxu0 %v250
        %1493 = vmatmul.mubr.f32.gmra.mxu0 %v249
        %v1494 = vpop.f32.mrf.mxu0
        %v1495 = vadd.f32 %v1316, %v1494
        %v1496 = vpop.f32.mrf.mxu0
        %v1497 = vadd.f32 %v1318, %v1496
        %1498 = vmatprep.mubr.f32.mxu0 %v254
        %1499 = vmatmul.mubr.f32.gmra.mxu0 %v253
        %v1500 = vpop.f32.mrf.mxu0
        %v1501 = vadd.f32 %v1322, %v1500
        %v1502 = vpop.f32.mrf.mxu0
        %v1503 = vadd.f32 %v1324, %v1502
        %1504 = vmatprep.mubr.f32.mxu0 %v258
        %1505 = vmatmul.mubr.f32.gmra.mxu0 %v257
        %v1506 = vpop.f32.mrf.mxu0
        %v1507 = vadd.f32 %v1328, %v1506
        %v1508 = vpop.f32.mrf.mxu0
        %v1509 = vadd.f32 %v1330, %v1508
        %1510 = vmatprep.mubr.f32.mxu0 %v262
        %1511 = vmatmul.mubr.f32.gmra.mxu0 %v261
        %v1512 = vpop.f32.mrf.mxu0
        %v1513 = vadd.f32 %v1334, %v1512
        %v1514 = vpop.f32.mrf.mxu0
        %v1515 = vadd.f32 %v1336, %v1514
        %1516 = vmatprep.mubr.f32.mxu0 %v266
        %1517 = vmatmul.mubr.f32.gmra.mxu0 %v265
        %v1518 = vpop.f32.mrf.mxu0
        %v1519 = vadd.f32 %v1340, %v1518
        %v1520 = vpop.f32.mrf.mxu0
        %v1521 = vadd.f32 %v1342, %v1520
        %1522 = vmatprep.mubr.f32.mxu0 %v270
        %1523 = vmatmul.mubr.f32.gmra.mxu0 %v269
        %v1524 = vpop.f32.mrf.mxu0
        %v1525 = vadd.f32 %v1346, %v1524
        %v1526 = vpop.f32.mrf.mxu0
        %v1527 = vadd.f32 %v1348, %v1526
        %1528 = vmatprep.mubr.f32.mxu0 %v274
        %1529 = vmatmul.mubr.f32.gmra.mxu0 %v273
        %v1530 = vpop.f32.mrf.mxu0
        %v1531 = vadd.f32 %v1352, %v1530
        %v1532 = vpop.f32.mrf.mxu0
        %v1533 = vadd.f32 %v1354, %v1532
        %1534 = vmatprep.mubr.f32.mxu0 %v278
        %1535 = vmatmul.mubr.f32.gmra.mxu0 %v277
        %v1536 = vpop.f32.mrf.mxu0
        %v1537 = vadd.f32 %v1358, %v1536
        %v1538 = vpop.f32.mrf.mxu0
        %v1539 = vadd.f32 %v1360, %v1538
        %1540 = vmatprep.mubr.f32.mxu0 %v282
        %1541 = vmatmul.mubr.f32.gmra.mxu0 %v281
        %v1542 = vpop.f32.mrf.mxu0
        %v1543 = vadd.f32 %v1364, %v1542
        %v1544 = vpop.f32.mrf.mxu0
        %v1545 = vadd.f32 %v1366, %v1544
        %1546 = vmatprep.mubr.f32.mxu0 %v286
        %1547 = vmatmul.mubr.f32.gmra.mxu0 %v285
        %v1548 = vpop.f32.mrf.mxu0
        %v1549 = vadd.f32 %v1370, %v1548
        %v1550 = vpop.f32.mrf.mxu0
        %v1551 = vadd.f32 %v1372, %v1550
        %1552 = vmatprep.mubr.f32.mxu0 %v290
        %1553 = vmatmul.mubr.f32.gmra.mxu0 %v289
        %v1554 = vpop.f32.mrf.mxu0
        %v1555 = vadd.f32 %v1376, %v1554
        %v1556 = vpop.f32.mrf.mxu0
        %v1557 = vadd.f32 %v1378, %v1556
        %1558 = vmatprep.mubr.f32.mxu0 %v294
        %1559 = vmatmul.mubr.f32.gmra.mxu0 %v293
        %v1560 = vpop.f32.mrf.mxu0
        %v1561 = vadd.f32 %v1382, %v1560
        %v1562 = vpop.f32.mrf.mxu0
        %v1563 = vadd.f32 %v1384, %v1562
        %1564 = vdwg.mxu0
        %1565 = vmatprep.subr.mxu0 %v420
        %1566 = vmatpush1.msra.mxu0 %v419
        %1567 = vmatprep.subr.mxu0 %v412
        %1568 = vmatpush1.msra.mxu0 %v411
        %1569 = vmatprep.subr.mxu0 %v404
        %1570 = vmatpush1.msra.mxu0 %v403
        %1571 = vmatprep.subr.mxu0 %v396
        %1572 = vmatpush1.msra.mxu0 %v395
        %1573 = vmatprep.subr.mxu0 %v388
        %1574 = vmatpush1.msra.mxu0 %v387
        %1575 = vmatprep.subr.mxu0 %v380
        %1576 = vmatpush1.msra.mxu0 %v379
        %1577 = vmatprep.subr.mxu0 %v372
        %1578 = vmatpush1.msra.mxu0 %v371
        %1579 = vmatprep.subr.mxu0 %v364
        %1580 = vmatpush1.msra.mxu0 %v363
        %1581 = vmatprep.subr.mxu0 %v356
        %1582 = vmatpush1.msra.mxu0 %v355
        %1583 = vmatprep.subr.mxu0 %v348
        %1584 = vmatpush1.msra.mxu0 %v347
        %1585 = vmatprep.subr.mxu0 %v340
        %1586 = vmatpush1.msra.mxu0 %v339
        %1587 = vmatprep.subr.mxu0 %v332
        %1588 = vmatpush1.msra.mxu0 %v331
        %1589 = vmatprep.subr.mxu0 %v324
        %1590 = vmatpush1.msra.mxu0 %v323
        %1591 = vmatprep.subr.mxu0 %v316
        %1592 = vmatpush1.msra.mxu0 %v315
        %1593 = vmatprep.subr.mxu0 %v308
        %1594 = vmatpush1.msra.mxu0 %v307
        %1595 = vmatprep.subr.mxu0 %v300
        %1596 = vmatpush1.msra.mxu0 %v299
        %1597 = vmatprep.subr.mxu0 %v548
        %1598 = vmatpush2.msra.mxu0 %v547
        %1599 = vmatprep.subr.mxu0 %v540
        %1600 = vmatpush2.msra.mxu0 %v539
        %1601 = vmatprep.subr.mxu0 %v532
        %1602 = vmatpush2.msra.mxu0 %v531
        %1603 = vmatprep.subr.mxu0 %v524
        %1604 = vmatpush2.msra.mxu0 %v523
        %1605 = vmatprep.subr.mxu0 %v516
        %1606 = vmatpush2.msra.mxu0 %v515
        %1607 = vmatprep.subr.mxu0 %v508
        %1608 = vmatpush2.msra.mxu0 %v507
        %1609 = vmatprep.subr.mxu0 %v500
        %1610 = vmatpush2.msra.mxu0 %v499
        %1611 = vmatprep.subr.mxu0 %v492
        %1612 = vmatpush2.msra.mxu0 %v491
        %1613 = vmatprep.subr.mxu0 %v484
        %1614 = vmatpush2.msra.mxu0 %v483
        %1615 = vmatprep.subr.mxu0 %v476
        %1616 = vmatpush2.msra.mxu0 %v475
        %1617 = vmatprep.subr.mxu0 %v468
        %1618 = vmatpush2.msra.mxu0 %v467
        %1619 = vmatprep.subr.mxu0 %v460
        %1620 = vmatpush2.msra.mxu0 %v459
        %1621 = vmatprep.subr.mxu0 %v452
        %1622 = vmatpush2.msra.mxu0 %v451
        %1623 = vmatprep.subr.mxu0 %v444
        %1624 = vmatpush2.msra.mxu0 %v443
        %1625 = vmatprep.subr.mxu0 %v436
        %1626 = vmatpush2.msra.mxu0 %v435
        %1627 = vmatprep.subr.mxu0 %v428
        %1628 = vmatpush2.msra.mxu0 %v427
        %1629 = vmatprep.mubr.f32.mxu0 %v220
        %1630 = vmatmul.mubr.f32.gmra.mxu0 %v219
        %v1631 = vpop.f32.mrf.mxu0
        %v1632 = vadd.f32 %v828, %v1631
        %v1633 = vpop.f32.mrf.mxu0
        %v1634 = vadd.f32 %v832, %v1633
        %1635 = vmatprep.mubr.f32.mxu0 %v224
        %1636 = vmatmul.mubr.f32.gmra.mxu0 %v223
        %v1637 = vpop.f32.mrf.mxu0
        %v1638 = vadd.f32 %v828, %v1637
        %v1639 = vpop.f32.mrf.mxu0
        %v1640 = vadd.f32 %v832, %v1639
        %1641 = vmatprep.mubr.f32.mxu0 %v228
        %1642 = vmatmul.mubr.f32.gmra.mxu0 %v227
        %v1643 = vpop.f32.mrf.mxu0
        %v1644 = vadd.f32 %v828, %v1643
        %v1645 = vpop.f32.mrf.mxu0
        %v1646 = vadd.f32 %v832, %v1645
        %1647 = vmatprep.mubr.f32.mxu0 %v232
        %1648 = vmatmul.mubr.f32.gmra.mxu0 %v231
        %v1649 = vpop.f32.mrf.mxu0
        %v1650 = vadd.f32 %v828, %v1649
        %v1651 = vpop.f32.mrf.mxu0
        %v1652 = vadd.f32 %v832, %v1651
        %1653 = vmatprep.mubr.f32.mxu0 %v236
        %1654 = vmatmul.mubr.f32.gmra.mxu0 %v235
        %v1655 = vpop.f32.mrf.mxu0
        %v1656 = vadd.f32 %v828, %v1655
        %v1657 = vpop.f32.mrf.mxu0
        %v1658 = vadd.f32 %v832, %v1657
        %1659 = vmatprep.mubr.f32.mxu0 %v240
        %1660 = vmatmul.mubr.f32.gmra.mxu0 %v239
        %v1661 = vpop.f32.mrf.mxu0
        %v1662 = vadd.f32 %v828, %v1661
        %v1663 = vpop.f32.mrf.mxu0
        %v1664 = vadd.f32 %v832, %v1663
        %1665 = vmatprep.mubr.f32.mxu0 %v244
        %1666 = vmatmul.mubr.f32.gmra.mxu0 %v243
        %v1667 = vpop.f32.mrf.mxu0
        %v1668 = vadd.f32 %v828, %v1667
        %v1669 = vpop.f32.mrf.mxu0
        %v1670 = vadd.f32 %v832, %v1669
        %1671 = vmatprep.mubr.f32.mxu0 %v248
        %1672 = vmatmul.mubr.f32.gmra.mxu0 %v247
        %v1673 = vpop.f32.mrf.mxu0
        %v1674 = vadd.f32 %v828, %v1673
        %v1675 = vpop.f32.mrf.mxu0
        %v1676 = vadd.f32 %v832, %v1675
        %1677 = vmatprep.mubr.f32.mxu0 %v252
        %1678 = vmatmul.mubr.f32.gmra.mxu0 %v251
        %v1679 = vpop.f32.mrf.mxu0
        %v1680 = vadd.f32 %v828, %v1679
        %v1681 = vpop.f32.mrf.mxu0
        %v1682 = vadd.f32 %v832, %v1681
        %1683 = vmatprep.mubr.f32.mxu0 %v256
        %1684 = vmatmul.mubr.f32.gmra.mxu0 %v255
        %v1685 = vpop.f32.mrf.mxu0
        %v1686 = vadd.f32 %v828, %v1685
        %v1687 = vpop.f32.mrf.mxu0
        %v1688 = vadd.f32 %v832, %v1687
        %1689 = vmatprep.mubr.f32.mxu0 %v260
        %1690 = vmatmul.mubr.f32.gmra.mxu0 %v259
        %v1691 = vpop.f32.mrf.mxu0
        %v1692 = vadd.f32 %v828, %v1691
        %v1693 = vpop.f32.mrf.mxu0
        %v1694 = vadd.f32 %v832, %v1693
        %1695 = vmatprep.mubr.f32.mxu0 %v264
        %1696 = vmatmul.mubr.f32.gmra.mxu0 %v263
        %v1697 = vpop.f32.mrf.mxu0
        %v1698 = vadd.f32 %v828, %v1697
        %v1699 = vpop.f32.mrf.mxu0
        %v1700 = vadd.f32 %v832, %v1699
        %1701 = vmatprep.mubr.f32.mxu0 %v268
        %1702 = vmatmul.mubr.f32.gmra.mxu0 %v267
        %v1703 = vpop.f32.mrf.mxu0
        %v1704 = vadd.f32 %v828, %v1703
        %v1705 = vpop.f32.mrf.mxu0
        %v1706 = vadd.f32 %v832, %v1705
        %1707 = vmatprep.mubr.f32.mxu0 %v272
        %1708 = vmatmul.mubr.f32.gmra.mxu0 %v271
        %v1709 = vpop.f32.mrf.mxu0
        %v1710 = vadd.f32 %v828, %v1709
        %v1711 = vpop.f32.mrf.mxu0
        %v1712 = vadd.f32 %v832, %v1711
        %1713 = vmatprep.mubr.f32.mxu0 %v276
        %1714 = vmatmul.mubr.f32.gmra.mxu0 %v275
        %v1715 = vpop.f32.mrf.mxu0
        %v1716 = vadd.f32 %v828, %v1715
        %v1717 = vpop.f32.mrf.mxu0
        %v1718 = vadd.f32 %v832, %v1717
        %1719 = vmatprep.mubr.f32.mxu0 %v280
        %1720 = vmatmul.mubr.f32.gmra.mxu0 %v279
        %v1721 = vpop.f32.mrf.mxu0
        %v1722 = vadd.f32 %v828, %v1721
        %v1723 = vpop.f32.mrf.mxu0
        %v1724 = vadd.f32 %v832, %v1723
        %1725 = vmatprep.mubr.f32.mxu0 %v284
        %1726 = vmatmul.mubr.f32.gmra.mxu0 %v283
        %v1727 = vpop.f32.mrf.mxu0
        %v1728 = vadd.f32 %v828, %v1727
        %v1729 = vpop.f32.mrf.mxu0
        %v1730 = vadd.f32 %v832, %v1729
        %1731 = vmatprep.mubr.f32.mxu0 %v288
        %1732 = vmatmul.mubr.f32.gmra.mxu0 %v287
        %v1733 = vpop.f32.mrf.mxu0
        %v1734 = vadd.f32 %v828, %v1733
        %v1735 = vpop.f32.mrf.mxu0
        %v1736 = vadd.f32 %v832, %v1735
        %1737 = vmatprep.mubr.f32.mxu0 %v292
        %1738 = vmatmul.mubr.f32.gmra.mxu0 %v291
        %v1739 = vpop.f32.mrf.mxu0
        %v1740 = vadd.f32 %v828, %v1739
        %v1741 = vpop.f32.mrf.mxu0
        %v1742 = vadd.f32 %v832, %v1741
        %1743 = vdwg.mxu0
        %1744 = vmatprep.subr.mxu0 %v676
        %1745 = vmatpush1.msra.mxu0 %v675
        %1746 = vmatprep.subr.mxu0 %v668
        %1747 = vmatpush1.msra.mxu0 %v667
        %1748 = vmatprep.subr.mxu0 %v660
        %1749 = vmatpush1.msra.mxu0 %v659
        %1750 = vmatprep.subr.mxu0 %v652
        %1751 = vmatpush1.msra.mxu0 %v651
        %1752 = vmatprep.subr.mxu0 %v644
        %1753 = vmatpush1.msra.mxu0 %v643
        %1754 = vmatprep.subr.mxu0 %v636
        %1755 = vmatpush1.msra.mxu0 %v635
        %1756 = vmatprep.subr.mxu0 %v628
        %1757 = vmatpush1.msra.mxu0 %v627
        %1758 = vmatprep.subr.mxu0 %v620
        %1759 = vmatpush1.msra.mxu0 %v619
        %1760 = vmatprep.subr.mxu0 %v612
        %1761 = vmatpush1.msra.mxu0 %v611
        %1762 = vmatprep.subr.mxu0 %v604
        %1763 = vmatpush1.msra.mxu0 %v603
        %1764 = vmatprep.subr.mxu0 %v596
        %1765 = vmatpush1.msra.mxu0 %v595
        %1766 = vmatprep.subr.mxu0 %v588
        %1767 = vmatpush1.msra.mxu0 %v587
        %1768 = vmatprep.subr.mxu0 %v580
        %1769 = vmatpush1.msra.mxu0 %v579
        %1770 = vmatprep.subr.mxu0 %v572
        %1771 = vmatpush1.msra.mxu0 %v571
        %1772 = vmatprep.subr.mxu0 %v564
        %1773 = vmatpush1.msra.mxu0 %v563
        %1774 = vmatprep.subr.mxu0 %v556
        %1775 = vmatpush1.msra.mxu0 %v555
        %1776 = vmatprep.subr.mxu0 %v804
        %1777 = vmatpush2.msra.mxu0 %v803
        %1778 = vmatprep.subr.mxu0 %v796
        %1779 = vmatpush2.msra.mxu0 %v795
        %1780 = vmatprep.subr.mxu0 %v788
        %1781 = vmatpush2.msra.mxu0 %v787
        %1782 = vmatprep.subr.mxu0 %v780
        %1783 = vmatpush2.msra.mxu0 %v779
        %1784 = vmatprep.subr.mxu0 %v772
        %1785 = vmatpush2.msra.mxu0 %v771
        %1786 = vmatprep.subr.mxu0 %v764
        %1787 = vmatpush2.msra.mxu0 %v763
        %1788 = vmatprep.subr.mxu0 %v756
        %1789 = vmatpush2.msra.mxu0 %v755
        %1790 = vmatprep.subr.mxu0 %v748
        %1791 = vmatpush2.msra.mxu0 %v747
        %1792 = vmatprep.subr.mxu0 %v740
        %1793 = vmatpush2.msra.mxu0 %v739
        %1794 = vmatprep.subr.mxu0 %v732
        %1795 = vmatpush2.msra.mxu0 %v731
        %1796 = vmatprep.subr.mxu0 %v724
        %1797 = vmatpush2.msra.mxu0 %v723
        %1798 = vmatprep.subr.mxu0 %v716
        %1799 = vmatpush2.msra.mxu0 %v715
        %1800 = vmatprep.subr.mxu0 %v708
        %1801 = vmatpush2.msra.mxu0 %v707
        %1802 = vmatprep.subr.mxu0 %v700
        %1803 = vmatpush2.msra.mxu0 %v699
        %1804 = vmatprep.subr.mxu0 %v692
        %1805 = vmatpush2.msra.mxu0 %v691
        %1806 = vmatprep.subr.mxu0 %v684
        %1807 = vmatpush2.msra.mxu0 %v683
        %1808 = vmatprep.mubr.f32.mxu0 %v222
        %1809 = vmatmul.mubr.f32.gmra.mxu0 %v221
        %v1810 = vpop.f32.mrf.mxu0
        %v1811 = vadd.f32 %v1632, %v1810
        %v1812 = vpop.f32.mrf.mxu0
        %v1813 = vadd.f32 %v1634, %v1812
        %1814 = vmatprep.mubr.f32.mxu0 %v226
        %1815 = vmatmul.mubr.f32.gmra.mxu0 %v225
        %v1816 = vpop.f32.mrf.mxu0
        %v1817 = vadd.f32 %v1638, %v1816
        %v1818 = vpop.f32.mrf.mxu0
        %v1819 = vadd.f32 %v1640, %v1818
        %1820 = vmatprep.mubr.f32.mxu0 %v230
        %1821 = vmatmul.mubr.f32.gmra.mxu0 %v229
        %v1822 = vpop.f32.mrf.mxu0
        %v1823 = vadd.f32 %v1644, %v1822
        %v1824 = vpop.f32.mrf.mxu0
        %v1825 = vadd.f32 %v1646, %v1824
        %1826 = vmatprep.mubr.f32.mxu0 %v234
        %1827 = vmatmul.mubr.f32.gmra.mxu0 %v233
        %v1828 = vpop.f32.mrf.mxu0
        %v1829 = vadd.f32 %v1650, %v1828
        %v1830 = vpop.f32.mrf.mxu0
        %v1831 = vadd.f32 %v1652, %v1830
        %1832 = vmatprep.mubr.f32.mxu0 %v238
        %1833 = vmatmul.mubr.f32.gmra.mxu0 %v237
        %v1834 = vpop.f32.mrf.mxu0
        %v1835 = vadd.f32 %v1656, %v1834
        %v1836 = vpop.f32.mrf.mxu0
        %v1837 = vadd.f32 %v1658, %v1836
        %1838 = vmatprep.mubr.f32.mxu0 %v242
        %1839 = vmatmul.mubr.f32.gmra.mxu0 %v241
        %v1840 = vpop.f32.mrf.mxu0
        %v1841 = vadd.f32 %v1662, %v1840
        %v1842 = vpop.f32.mrf.mxu0
        %v1843 = vadd.f32 %v1664, %v1842
        %1844 = vmatprep.mubr.f32.mxu0 %v246
        %1845 = vmatmul.mubr.f32.gmra.mxu0 %v245
        %v1846 = vpop.f32.mrf.mxu0
        %v1847 = vadd.f32 %v1668, %v1846
        %v1848 = vpop.f32.mrf.mxu0
        %v1849 = vadd.f32 %v1670, %v1848
        %1850 = vmatprep.mubr.f32.mxu0 %v250
        %1851 = vmatmul.mubr.f32.gmra.mxu0 %v249
        %v1852 = vpop.f32.mrf.mxu0
        %v1853 = vadd.f32 %v1674, %v1852
        %v1854 = vpop.f32.mrf.mxu0
        %v1855 = vadd.f32 %v1676, %v1854
        %1856 = vmatprep.mubr.f32.mxu0 %v254
        %1857 = vmatmul.mubr.f32.gmra.mxu0 %v253
        %v1858 = vpop.f32.mrf.mxu0
        %v1859 = vadd.f32 %v1680, %v1858
        %v1860 = vpop.f32.mrf.mxu0
        %v1861 = vadd.f32 %v1682, %v1860
        %1862 = vmatprep.mubr.f32.mxu0 %v258
        %1863 = vmatmul.mubr.f32.gmra.mxu0 %v257
        %v1864 = vpop.f32.mrf.mxu0
        %v1865 = vadd.f32 %v1686, %v1864
        %v1866 = vpop.f32.mrf.mxu0
        %v1867 = vadd.f32 %v1688, %v1866
        %1868 = vmatprep.mubr.f32.mxu0 %v262
        %1869 = vmatmul.mubr.f32.gmra.mxu0 %v261
        %v1870 = vpop.f32.mrf.mxu0
        %v1871 = vadd.f32 %v1692, %v1870
        %v1872 = vpop.f32.mrf.mxu0
        %v1873 = vadd.f32 %v1694, %v1872
        %1874 = vmatprep.mubr.f32.mxu0 %v266
        %1875 = vmatmul.mubr.f32.gmra.mxu0 %v265
        %v1876 = vpop.f32.mrf.mxu0
        %v1877 = vadd.f32 %v1698, %v1876
        %v1878 = vpop.f32.mrf.mxu0
        %v1879 = vadd.f32 %v1700, %v1878
        %1880 = vmatprep.mubr.f32.mxu0 %v270
        %1881 = vmatmul.mubr.f32.gmra.mxu0 %v269
        %v1882 = vpop.f32.mrf.mxu0
        %v1883 = vadd.f32 %v1704, %v1882
        %v1884 = vpop.f32.mrf.mxu0
        %v1885 = vadd.f32 %v1706, %v1884
        %1886 = vmatprep.mubr.f32.mxu0 %v274
        %1887 = vmatmul.mubr.f32.gmra.mxu0 %v273
        %v1888 = vpop.f32.mrf.mxu0
        %v1889 = vadd.f32 %v1710, %v1888
        %v1890 = vpop.f32.mrf.mxu0
        %v1891 = vadd.f32 %v1712, %v1890
        %1892 = vmatprep.mubr.f32.mxu0 %v278
        %1893 = vmatmul.mubr.f32.gmra.mxu0 %v277
        %v1894 = vpop.f32.mrf.mxu0
        %v1895 = vadd.f32 %v1716, %v1894
        %v1896 = vpop.f32.mrf.mxu0
        %v1897 = vadd.f32 %v1718, %v1896
        %1898 = vmatprep.mubr.f32.mxu0 %v282
        %1899 = vmatmul.mubr.f32.gmra.mxu0 %v281
        %v1900 = vpop.f32.mrf.mxu0
        %v1901 = vadd.f32 %v1722, %v1900
        %v1902 = vpop.f32.mrf.mxu0
        %v1903 = vadd.f32 %v1724, %v1902
        %1904 = vmatprep.mubr.f32.mxu0 %v286
        %1905 = vmatmul.mubr.f32.gmra.mxu0 %v285
        %v1906 = vpop.f32.mrf.mxu0
        %v1907 = vadd.f32 %v1728, %v1906
        %v1908 = vpop.f32.mrf.mxu0
        %v1909 = vadd.f32 %v1730, %v1908
        %1910 = vmatprep.mubr.f32.mxu0 %v290
        %1911 = vmatmul.mubr.f32.gmra.mxu0 %v289
        %v1912 = vpop.f32.mrf.mxu0
        %v1913 = vadd.f32 %v1734, %v1912
        %v1914 = vpop.f32.mrf.mxu0
        %v1915 = vadd.f32 %v1736, %v1914
        %1916 = vmatprep.mubr.f32.mxu0 %v294
        %1917 = vmatmul.mubr.f32.gmra.mxu0 %v293
        %v1918 = vpop.f32.mrf.mxu0
        %v1919 = vadd.f32 %v1740, %v1918
        %v1920 = vpop.f32.mrf.mxu0
        %v1921 = vadd.f32 %v1742, %v1920
        %1922 = vdwg.mxu0
        %1923 = vmatprep.subr.mxu0 %v422
        %1924 = vmatpush1.msra.mxu0 %v421
        %1925 = vmatprep.subr.mxu0 %v414
        %1926 = vmatpush1.msra.mxu0 %v413
        %1927 = vmatprep.subr.mxu0 %v406
        %1928 = vmatpush1.msra.mxu0 %v405
        %1929 = vmatprep.subr.mxu0 %v398
        %1930 = vmatpush1.msra.mxu0 %v397
        %1931 = vmatprep.subr.mxu0 %v390
        %1932 = vmatpush1.msra.mxu0 %v389
        %1933 = vmatprep.subr.mxu0 %v382
        %1934 = vmatpush1.msra.mxu0 %v381
        %1935 = vmatprep.subr.mxu0 %v374
        %1936 = vmatpush1.msra.mxu0 %v373
        %1937 = vmatprep.subr.mxu0 %v366
        %1938 = vmatpush1.msra.mxu0 %v365
        %1939 = vmatprep.subr.mxu0 %v358
        %1940 = vmatpush1.msra.mxu0 %v357
        %1941 = vmatprep.subr.mxu0 %v350
        %1942 = vmatpush1.msra.mxu0 %v349
        %1943 = vmatprep.subr.mxu0 %v342
        %1944 = vmatpush1.msra.mxu0 %v341
        %1945 = vmatprep.subr.mxu0 %v334
        %1946 = vmatpush1.msra.mxu0 %v333
        %1947 = vmatprep.subr.mxu0 %v326
        %1948 = vmatpush1.msra.mxu0 %v325
        %1949 = vmatprep.subr.mxu0 %v318
        %1950 = vmatpush1.msra.mxu0 %v317
        %1951 = vmatprep.subr.mxu0 %v310
        %1952 = vmatpush1.msra.mxu0 %v309
        %1953 = vmatprep.subr.mxu0 %v302
        %1954 = vmatpush1.msra.mxu0 %v301
        %1955 = vmatprep.subr.mxu0 %v550
        %1956 = vmatpush2.msra.mxu0 %v549
        %1957 = vmatprep.subr.mxu0 %v542
        %1958 = vmatpush2.msra.mxu0 %v541
        %1959 = vmatprep.subr.mxu0 %v534
        %1960 = vmatpush2.msra.mxu0 %v533
        %1961 = vmatprep.subr.mxu0 %v526
        %1962 = vmatpush2.msra.mxu0 %v525
        %1963 = vmatprep.subr.mxu0 %v518
        %1964 = vmatpush2.msra.mxu0 %v517
        %1965 = vmatprep.subr.mxu0 %v510
        %1966 = vmatpush2.msra.mxu0 %v509
        %1967 = vmatprep.subr.mxu0 %v502
        %1968 = vmatpush2.msra.mxu0 %v501
        %1969 = vmatprep.subr.mxu0 %v494
        %1970 = vmatpush2.msra.mxu0 %v493
        %1971 = vmatprep.subr.mxu0 %v486
        %1972 = vmatpush2.msra.mxu0 %v485
        %1973 = vmatprep.subr.mxu0 %v478
        %1974 = vmatpush2.msra.mxu0 %v477
        %1975 = vmatprep.subr.mxu0 %v470
        %1976 = vmatpush2.msra.mxu0 %v469
        %1977 = vmatprep.subr.mxu0 %v462
        %1978 = vmatpush2.msra.mxu0 %v461
        %1979 = vmatprep.subr.mxu0 %v454
        %1980 = vmatpush2.msra.mxu0 %v453
        %1981 = vmatprep.subr.mxu0 %v446
        %1982 = vmatpush2.msra.mxu0 %v445
        %1983 = vmatprep.subr.mxu0 %v438
        %1984 = vmatpush2.msra.mxu0 %v437
        %1985 = vmatprep.subr.mxu0 %v430
        %1986 = vmatpush2.msra.mxu0 %v429
        %1987 = vmatprep.mubr.f32.mxu0 %v220
        %1988 = vmatmul.mubr.f32.gmra.mxu0 %v219
        %v1989 = vpop.f32.mrf.mxu0
        %v1990 = vadd.f32 %v836, %v1989
        %v1991 = vpop.f32.mrf.mxu0
        %v1992 = vadd.f32 %v840, %v1991
        %1993 = vmatprep.mubr.f32.mxu0 %v224
        %1994 = vmatmul.mubr.f32.gmra.mxu0 %v223
        %v1995 = vpop.f32.mrf.mxu0
        %v1996 = vadd.f32 %v836, %v1995
        %v1997 = vpop.f32.mrf.mxu0
        %v1998 = vadd.f32 %v840, %v1997
        %1999 = vmatprep.mubr.f32.mxu0 %v228
        %2000 = vmatmul.mubr.f32.gmra.mxu0 %v227
        %v2001 = vpop.f32.mrf.mxu0
        %v2002 = vadd.f32 %v836, %v2001
        %v2003 = vpop.f32.mrf.mxu0
        %v2004 = vadd.f32 %v840, %v2003
        %2005 = vmatprep.mubr.f32.mxu0 %v232
        %2006 = vmatmul.mubr.f32.gmra.mxu0 %v231
        %v2007 = vpop.f32.mrf.mxu0
        %v2008 = vadd.f32 %v836, %v2007
        %v2009 = vpop.f32.mrf.mxu0
        %v2010 = vadd.f32 %v840, %v2009
        %2011 = vmatprep.mubr.f32.mxu0 %v236
        %2012 = vmatmul.mubr.f32.gmra.mxu0 %v235
        %v2013 = vpop.f32.mrf.mxu0
        %v2014 = vadd.f32 %v836, %v2013
        %v2015 = vpop.f32.mrf.mxu0
        %v2016 = vadd.f32 %v840, %v2015
        %2017 = vmatprep.mubr.f32.mxu0 %v240
        %2018 = vmatmul.mubr.f32.gmra.mxu0 %v239
        %v2019 = vpop.f32.mrf.mxu0
        %v2020 = vadd.f32 %v836, %v2019
        %v2021 = vpop.f32.mrf.mxu0
        %v2022 = vadd.f32 %v840, %v2021
        %2023 = vmatprep.mubr.f32.mxu0 %v244
        %2024 = vmatmul.mubr.f32.gmra.mxu0 %v243
        %v2025 = vpop.f32.mrf.mxu0
        %v2026 = vadd.f32 %v836, %v2025
        %v2027 = vpop.f32.mrf.mxu0
        %v2028 = vadd.f32 %v840, %v2027
        %2029 = vmatprep.mubr.f32.mxu0 %v248
        %2030 = vmatmul.mubr.f32.gmra.mxu0 %v247
        %v2031 = vpop.f32.mrf.mxu0
        %v2032 = vadd.f32 %v836, %v2031
        %v2033 = vpop.f32.mrf.mxu0
        %v2034 = vadd.f32 %v840, %v2033
        %2035 = vmatprep.mubr.f32.mxu0 %v252
        %2036 = vmatmul.mubr.f32.gmra.mxu0 %v251
        %v2037 = vpop.f32.mrf.mxu0
        %v2038 = vadd.f32 %v836, %v2037
        %v2039 = vpop.f32.mrf.mxu0
        %v2040 = vadd.f32 %v840, %v2039
        %2041 = vmatprep.mubr.f32.mxu0 %v256
        %2042 = vmatmul.mubr.f32.gmra.mxu0 %v255
        %v2043 = vpop.f32.mrf.mxu0
        %v2044 = vadd.f32 %v836, %v2043
        %v2045 = vpop.f32.mrf.mxu0
        %v2046 = vadd.f32 %v840, %v2045
        %2047 = vmatprep.mubr.f32.mxu0 %v260
        %2048 = vmatmul.mubr.f32.gmra.mxu0 %v259
        %v2049 = vpop.f32.mrf.mxu0
        %v2050 = vadd.f32 %v836, %v2049
        %v2051 = vpop.f32.mrf.mxu0
        %v2052 = vadd.f32 %v840, %v2051
        %2053 = vmatprep.mubr.f32.mxu0 %v264
        %2054 = vmatmul.mubr.f32.gmra.mxu0 %v263
        %v2055 = vpop.f32.mrf.mxu0
        %v2056 = vadd.f32 %v836, %v2055
        %v2057 = vpop.f32.mrf.mxu0
        %v2058 = vadd.f32 %v840, %v2057
        %2059 = vmatprep.mubr.f32.mxu0 %v268
        %2060 = vmatmul.mubr.f32.gmra.mxu0 %v267
        %v2061 = vpop.f32.mrf.mxu0
        %v2062 = vadd.f32 %v836, %v2061
        %v2063 = vpop.f32.mrf.mxu0
        %v2064 = vadd.f32 %v840, %v2063
        %2065 = vmatprep.mubr.f32.mxu0 %v272
        %2066 = vmatmul.mubr.f32.gmra.mxu0 %v271
        %v2067 = vpop.f32.mrf.mxu0
        %v2068 = vadd.f32 %v836, %v2067
        %v2069 = vpop.f32.mrf.mxu0
        %v2070 = vadd.f32 %v840, %v2069
        %2071 = vmatprep.mubr.f32.mxu0 %v276
        %2072 = vmatmul.mubr.f32.gmra.mxu0 %v275
        %v2073 = vpop.f32.mrf.mxu0
        %v2074 = vadd.f32 %v836, %v2073
        %v2075 = vpop.f32.mrf.mxu0
        %v2076 = vadd.f32 %v840, %v2075
        %2077 = vmatprep.mubr.f32.mxu0 %v280
        %2078 = vmatmul.mubr.f32.gmra.mxu0 %v279
        %v2079 = vpop.f32.mrf.mxu0
        %v2080 = vadd.f32 %v836, %v2079
        %v2081 = vpop.f32.mrf.mxu0
        %v2082 = vadd.f32 %v840, %v2081
        %2083 = vmatprep.mubr.f32.mxu0 %v284
        %2084 = vmatmul.mubr.f32.gmra.mxu0 %v283
        %v2085 = vpop.f32.mrf.mxu0
        %v2086 = vadd.f32 %v836, %v2085
        %v2087 = vpop.f32.mrf.mxu0
        %v2088 = vadd.f32 %v840, %v2087
        %2089 = vmatprep.mubr.f32.mxu0 %v288
        %2090 = vmatmul.mubr.f32.gmra.mxu0 %v287
        %v2091 = vpop.f32.mrf.mxu0
        %v2092 = vadd.f32 %v836, %v2091
        %v2093 = vpop.f32.mrf.mxu0
        %v2094 = vadd.f32 %v840, %v2093
        %2095 = vmatprep.mubr.f32.mxu0 %v292
        %2096 = vmatmul.mubr.f32.gmra.mxu0 %v291
        %v2097 = vpop.f32.mrf.mxu0
        %v2098 = vadd.f32 %v836, %v2097
        %v2099 = vpop.f32.mrf.mxu0
        %v2100 = vadd.f32 %v840, %v2099
        %2101 = vdwg.mxu0
        %2102 = vmatprep.subr.mxu0 %v678
        %2103 = vmatpush1.msra.mxu0 %v677
        %2104 = vmatprep.subr.mxu0 %v670
        %2105 = vmatpush1.msra.mxu0 %v669
        %2106 = vmatprep.subr.mxu0 %v662
        %2107 = vmatpush1.msra.mxu0 %v661
        %2108 = vmatprep.subr.mxu0 %v654
        %2109 = vmatpush1.msra.mxu0 %v653
        %2110 = vmatprep.subr.mxu0 %v646
        %2111 = vmatpush1.msra.mxu0 %v645
        %2112 = vmatprep.subr.mxu0 %v638
        %2113 = vmatpush1.msra.mxu0 %v637
        %2114 = vmatprep.subr.mxu0 %v630
        %2115 = vmatpush1.msra.mxu0 %v629
        %2116 = vmatprep.subr.mxu0 %v622
        %2117 = vmatpush1.msra.mxu0 %v621
        %2118 = vmatprep.subr.mxu0 %v614
        %2119 = vmatpush1.msra.mxu0 %v613
        %2120 = vmatprep.subr.mxu0 %v606
        %2121 = vmatpush1.msra.mxu0 %v605
        %2122 = vmatprep.subr.mxu0 %v598
        %2123 = vmatpush1.msra.mxu0 %v597
        %2124 = vmatprep.subr.mxu0 %v590
        %2125 = vmatpush1.msra.mxu0 %v589
        %2126 = vmatprep.subr.mxu0 %v582
        %2127 = vmatpush1.msra.mxu0 %v581
        %2128 = vmatprep.subr.mxu0 %v574
        %2129 = vmatpush1.msra.mxu0 %v573
        %2130 = vmatprep.subr.mxu0 %v566
        %2131 = vmatpush1.msra.mxu0 %v565
        %2132 = vmatprep.subr.mxu0 %v558
        %2133 = vmatpush1.msra.mxu0 %v557
        %2134 = vmatprep.subr.mxu0 %v806
        %2135 = vmatpush2.msra.mxu0 %v805
        %2136 = vmatprep.subr.mxu0 %v798
        %2137 = vmatpush2.msra.mxu0 %v797
        %2138 = vmatprep.subr.mxu0 %v790
        %2139 = vmatpush2.msra.mxu0 %v789
        %2140 = vmatprep.subr.mxu0 %v782
        %2141 = vmatpush2.msra.mxu0 %v781
        %2142 = vmatprep.subr.mxu0 %v774
        %2143 = vmatpush2.msra.mxu0 %v773
        %2144 = vmatprep.subr.mxu0 %v766
        %2145 = vmatpush2.msra.mxu0 %v765
        %2146 = vmatprep.subr.mxu0 %v758
        %2147 = vmatpush2.msra.mxu0 %v757
        %2148 = vmatprep.subr.mxu0 %v750
        %2149 = vmatpush2.msra.mxu0 %v749
        %2150 = vmatprep.subr.mxu0 %v742
        %2151 = vmatpush2.msra.mxu0 %v741
        %2152 = vmatprep.subr.mxu0 %v734
        %2153 = vmatpush2.msra.mxu0 %v733
        %2154 = vmatprep.subr.mxu0 %v726
        %2155 = vmatpush2.msra.mxu0 %v725
        %2156 = vmatprep.subr.mxu0 %v718
        %2157 = vmatpush2.msra.mxu0 %v717
        %2158 = vmatprep.subr.mxu0 %v710
        %2159 = vmatpush2.msra.mxu0 %v709
        %2160 = vmatprep.subr.mxu0 %v702
        %2161 = vmatpush2.msra.mxu0 %v701
        %2162 = vmatprep.subr.mxu0 %v694
        %2163 = vmatpush2.msra.mxu0 %v693
        %2164 = vmatprep.subr.mxu0 %v686
        %2165 = vmatpush2.msra.mxu0 %v685
        %2166 = vmatprep.mubr.f32.mxu0 %v222
        %2167 = vmatmul.mubr.f32.gmra.mxu0 %v221
        %v2168 = vpop.f32.mrf.mxu0
        %v2169 = vadd.f32 %v1990, %v2168
        %v2170 = vpop.f32.mrf.mxu0
        %v2171 = vadd.f32 %v1992, %v2170
        %2172 = vmatprep.mubr.f32.mxu0 %v226
        %2173 = vmatmul.mubr.f32.gmra.mxu0 %v225
        %v2174 = vpop.f32.mrf.mxu0
        %v2175 = vadd.f32 %v1996, %v2174
        %v2176 = vpop.f32.mrf.mxu0
        %v2177 = vadd.f32 %v1998, %v2176
        %2178 = vmatprep.mubr.f32.mxu0 %v230
        %2179 = vmatmul.mubr.f32.gmra.mxu0 %v229
        %v2180 = vpop.f32.mrf.mxu0
        %v2181 = vadd.f32 %v2002, %v2180
        %v2182 = vpop.f32.mrf.mxu0
        %v2183 = vadd.f32 %v2004, %v2182
        %2184 = vmatprep.mubr.f32.mxu0 %v234
        %2185 = vmatmul.mubr.f32.gmra.mxu0 %v233
        %v2186 = vpop.f32.mrf.mxu0
        %v2187 = vadd.f32 %v2008, %v2186
        %v2188 = vpop.f32.mrf.mxu0
        %v2189 = vadd.f32 %v2010, %v2188
        %2190 = vmatprep.mubr.f32.mxu0 %v238
        %2191 = vmatmul.mubr.f32.gmra.mxu0 %v237
        %v2192 = vpop.f32.mrf.mxu0
        %v2193 = vadd.f32 %v2014, %v2192
        %v2194 = vpop.f32.mrf.mxu0
        %v2195 = vadd.f32 %v2016, %v2194
        %2196 = vmatprep.mubr.f32.mxu0 %v242
        %2197 = vmatmul.mubr.f32.gmra.mxu0 %v241
        %v2198 = vpop.f32.mrf.mxu0
        %v2199 = vadd.f32 %v2020, %v2198
        %v2200 = vpop.f32.mrf.mxu0
        %v2201 = vadd.f32 %v2022, %v2200
        %2202 = vmatprep.mubr.f32.mxu0 %v246
        %2203 = vmatmul.mubr.f32.gmra.mxu0 %v245
        %v2204 = vpop.f32.mrf.mxu0
        %v2205 = vadd.f32 %v2026, %v2204
        %v2206 = vpop.f32.mrf.mxu0
        %v2207 = vadd.f32 %v2028, %v2206
        %2208 = vmatprep.mubr.f32.mxu0 %v250
        %2209 = vmatmul.mubr.f32.gmra.mxu0 %v249
        %v2210 = vpop.f32.mrf.mxu0
        %v2211 = vadd.f32 %v2032, %v2210
        %v2212 = vpop.f32.mrf.mxu0
        %v2213 = vadd.f32 %v2034, %v2212
        %2214 = vmatprep.mubr.f32.mxu0 %v254
        %2215 = vmatmul.mubr.f32.gmra.mxu0 %v253
        %v2216 = vpop.f32.mrf.mxu0
        %v2217 = vadd.f32 %v2038, %v2216
        %v2218 = vpop.f32.mrf.mxu0
        %v2219 = vadd.f32 %v2040, %v2218
        %2220 = vmatprep.mubr.f32.mxu0 %v258
        %2221 = vmatmul.mubr.f32.gmra.mxu0 %v257
        %v2222 = vpop.f32.mrf.mxu0
        %v2223 = vadd.f32 %v2044, %v2222
        %v2224 = vpop.f32.mrf.mxu0
        %v2225 = vadd.f32 %v2046, %v2224
        %2226 = vmatprep.mubr.f32.mxu0 %v262
        %2227 = vmatmul.mubr.f32.gmra.mxu0 %v261
        %v2228 = vpop.f32.mrf.mxu0
        %v2229 = vadd.f32 %v2050, %v2228
        %v2230 = vpop.f32.mrf.mxu0
        %v2231 = vadd.f32 %v2052, %v2230
        %2232 = vmatprep.mubr.f32.mxu0 %v266
        %2233 = vmatmul.mubr.f32.gmra.mxu0 %v265
        %v2234 = vpop.f32.mrf.mxu0
        %v2235 = vadd.f32 %v2056, %v2234
        %v2236 = vpop.f32.mrf.mxu0
        %v2237 = vadd.f32 %v2058, %v2236
        %2238 = vmatprep.mubr.f32.mxu0 %v270
        %2239 = vmatmul.mubr.f32.gmra.mxu0 %v269
        %v2240 = vpop.f32.mrf.mxu0
        %v2241 = vadd.f32 %v2062, %v2240
        %v2242 = vpop.f32.mrf.mxu0
        %v2243 = vadd.f32 %v2064, %v2242
        %2244 = vmatprep.mubr.f32.mxu0 %v274
        %2245 = vmatmul.mubr.f32.gmra.mxu0 %v273
        %v2246 = vpop.f32.mrf.mxu0
        %v2247 = vadd.f32 %v2068, %v2246
        %v2248 = vpop.f32.mrf.mxu0
        %v2249 = vadd.f32 %v2070, %v2248
        %2250 = vmatprep.mubr.f32.mxu0 %v278
        %2251 = vmatmul.mubr.f32.gmra.mxu0 %v277
        %v2252 = vpop.f32.mrf.mxu0
        %v2253 = vadd.f32 %v2074, %v2252
        %v2254 = vpop.f32.mrf.mxu0
        %v2255 = vadd.f32 %v2076, %v2254
        %2256 = vmatprep.mubr.f32.mxu0 %v282
        %2257 = vmatmul.mubr.f32.gmra.mxu0 %v281
        %v2258 = vpop.f32.mrf.mxu0
        %v2259 = vadd.f32 %v2080, %v2258
        %v2260 = vpop.f32.mrf.mxu0
        %v2261 = vadd.f32 %v2082, %v2260
        %2262 = vmatprep.mubr.f32.mxu0 %v286
        %2263 = vmatmul.mubr.f32.gmra.mxu0 %v285
        %v2264 = vpop.f32.mrf.mxu0
        %v2265 = vadd.f32 %v2086, %v2264
        %v2266 = vpop.f32.mrf.mxu0
        %v2267 = vadd.f32 %v2088, %v2266
        %2268 = vmatprep.mubr.f32.mxu0 %v290
        %2269 = vmatmul.mubr.f32.gmra.mxu0 %v289
        %v2270 = vpop.f32.mrf.mxu0
        %v2271 = vadd.f32 %v2092, %v2270
        %v2272 = vpop.f32.mrf.mxu0
        %v2273 = vadd.f32 %v2094, %v2272
        %2274 = vmatprep.mubr.f32.mxu0 %v294
        %2275 = vmatmul.mubr.f32.gmra.mxu0 %v293
        %v2276 = vpop.f32.mrf.mxu0
        %v2277 = vadd.f32 %v2098, %v2276
        %v2278 = vpop.f32.mrf.mxu0
        %v2279 = vadd.f32 %v2100, %v2278
        %2280 = vdwg.mxu0
        %v2281 = vxor.u32 %v1095, 2147483648
        %v2282 = vxor.u32 %v1097, 2147483648
        %v2283 = vxor.u32 %v1453, 2147483648
        %v2284 = vxor.u32 %v1455, 2147483648
        %v2285 = vxor.u32 %v1101, 2147483648
        %v2286 = vxor.u32 %v1103, 2147483648
        %v2287 = vxor.u32 %v1459, 2147483648
        %v2288 = vxor.u32 %v1461, 2147483648
        %v2289 = vxor.u32 %v1107, 2147483648
        %v2290 = vxor.u32 %v1109, 2147483648
        %v2291 = vxor.u32 %v1465, 2147483648
        %v2292 = vxor.u32 %v1467, 2147483648
        %v2293 = vxor.u32 %v1113, 2147483648
        %v2294 = vxor.u32 %v1115, 2147483648
        %v2295 = vxor.u32 %v1471, 2147483648
        %v2296 = vxor.u32 %v1473, 2147483648
        %v2297 = vxor.u32 %v1119, 2147483648
        %v2298 = vxor.u32 %v1121, 2147483648
        %v2299 = vxor.u32 %v1477, 2147483648
        %v2300 = vxor.u32 %v1479, 2147483648
        %v2301 = vxor.u32 %v1125, 2147483648
        %v2302 = vxor.u32 %v1127, 2147483648
        %v2303 = vxor.u32 %v1483, 2147483648
        %v2304 = vxor.u32 %v1485, 2147483648
        %v2305 = vxor.u32 %v1131, 2147483648
        %v2306 = vxor.u32 %v1133, 2147483648
        %v2307 = vxor.u32 %v1489, 2147483648
        %v2308 = vxor.u32 %v1491, 2147483648
        %v2309 = vxor.u32 %v1137, 2147483648
        %v2310 = vxor.u32 %v1139, 2147483648
        %v2311 = vxor.u32 %v1495, 2147483648
        %v2312 = vxor.u32 %v1497, 2147483648
        %v2313 = vxor.u32 %v1143, 2147483648
        %v2314 = vxor.u32 %v1145, 2147483648
        %v2315 = vxor.u32 %v1501, 2147483648
        %v2316 = vxor.u32 %v1503, 2147483648
        %v2317 = vxor.u32 %v1149, 2147483648
        %v2318 = vxor.u32 %v1151, 2147483648
        %v2319 = vxor.u32 %v1507, 2147483648
        %v2320 = vxor.u32 %v1509, 2147483648
        %v2321 = vxor.u32 %v1155, 2147483648
        %v2322 = vxor.u32 %v1157, 2147483648
        %v2323 = vxor.u32 %v1513, 2147483648
        %v2324 = vxor.u32 %v1515, 2147483648
        %v2325 = vxor.u32 %v1161, 2147483648
        %v2326 = vxor.u32 %v1163, 2147483648
        %v2327 = vxor.u32 %v1519, 2147483648
        %v2328 = vxor.u32 %v1521, 2147483648
        %v2329 = vxor.u32 %v1167, 2147483648
        %v2330 = vxor.u32 %v1169, 2147483648
        %v2331 = vxor.u32 %v1525, 2147483648
        %v2332 = vxor.u32 %v1527, 2147483648
        %v2333 = vxor.u32 %v1173, 2147483648
        %v2334 = vxor.u32 %v1175, 2147483648
        %v2335 = vxor.u32 %v1531, 2147483648
        %v2336 = vxor.u32 %v1533, 2147483648
        %v2337 = vxor.u32 %v1179, 2147483648
        %v2338 = vxor.u32 %v1181, 2147483648
        %v2339 = vxor.u32 %v1537, 2147483648
        %v2340 = vxor.u32 %v1539, 2147483648
        %v2341 = vxor.u32 %v1185, 2147483648
        %v2342 = vxor.u32 %v1187, 2147483648
        %v2343 = vxor.u32 %v1543, 2147483648
        %v2344 = vxor.u32 %v1545, 2147483648
        %v2345 = vxor.u32 %v1191, 2147483648
        %v2346 = vxor.u32 %v1193, 2147483648
        %v2347 = vxor.u32 %v1549, 2147483648
        %v2348 = vxor.u32 %v1551, 2147483648
        %v2349 = vxor.u32 %v1197, 2147483648
        %v2350 = vxor.u32 %v1199, 2147483648
        %v2351 = vxor.u32 %v1555, 2147483648
        %v2352 = vxor.u32 %v1557, 2147483648
        %v2353 = vxor.u32 %v1203, 2147483648
        %v2354 = vxor.u32 %v1205, 2147483648
        %v2355 = vxor.u32 %v1561, 2147483648
        %v2356 = vxor.u32 %v1563, 2147483648
        %v2357 = vmul.f32 %v2281, 1.442695
        %v2358 = vpow.pop %v2357
        %v2359 = vmul.f32 %v2282, 1.442695
        %v2360 = vpow.pop %v2359
        %v2361 = vmul.f32 %v2283, 1.442695
        %v2362 = vpow.pop %v2361
        %v2363 = vmul.f32 %v2284, 1.442695
        %v2364 = vpow.pop %v2363
        %v2365 = vmul.f32 %v2285, 1.442695
        %v2366 = vpow.pop %v2365
        %v2367 = vmul.f32 %v2286, 1.442695
        %v2368 = vpow.pop %v2367
        %v2369 = vmul.f32 %v2287, 1.442695
        %v2370 = vpow.pop %v2369
        %v2371 = vmul.f32 %v2288, 1.442695
        %v2372 = vpow.pop %v2371
        %v2373 = vmul.f32 %v2289, 1.442695
        %v2374 = vpow.pop %v2373
        %v2375 = vmul.f32 %v2290, 1.442695
        %v2376 = vpow.pop %v2375
        %v2377 = vmul.f32 %v2291, 1.442695
        %v2378 = vpow.pop %v2377
        %v2379 = vmul.f32 %v2292, 1.442695
        %v2380 = vpow.pop %v2379
        %v2381 = vmul.f32 %v2293, 1.442695
        %v2382 = vpow.pop %v2381
        %v2383 = vmul.f32 %v2294, 1.442695
        %v2384 = vpow.pop %v2383
        %v2385 = vmul.f32 %v2295, 1.442695
        %v2386 = vpow.pop %v2385
        %v2387 = vmul.f32 %v2296, 1.442695
        %v2388 = vpow.pop %v2387
        %v2389 = vmul.f32 %v2297, 1.442695
        %v2390 = vpow.pop %v2389
        %v2391 = vmul.f32 %v2298, 1.442695
        %v2392 = vpow.pop %v2391
        %v2393 = vmul.f32 %v2299, 1.442695
        %v2394 = vpow.pop %v2393
        %v2395 = vmul.f32 %v2300, 1.442695
        %v2396 = vpow.pop %v2395
        %v2397 = vmul.f32 %v2301, 1.442695
        %v2398 = vpow.pop %v2397
        %v2399 = vmul.f32 %v2302, 1.442695
        %v2400 = vpow.pop %v2399
        %v2401 = vmul.f32 %v2303, 1.442695
        %v2402 = vpow.pop %v2401
        %v2403 = vmul.f32 %v2304, 1.442695
        %v2404 = vpow.pop %v2403
        %v2405 = vmul.f32 %v2305, 1.442695
        %v2406 = vpow.pop %v2405
        %v2407 = vmul.f32 %v2306, 1.442695
        %v2408 = vpow.pop %v2407
        %v2409 = vmul.f32 %v2307, 1.442695
        %v2410 = vpow.pop %v2409
        %v2411 = vmul.f32 %v2308, 1.442695
        %v2412 = vpow.pop %v2411
        %v2413 = vmul.f32 %v2309, 1.442695
        %v2414 = vpow.pop %v2413
        %v2415 = vmul.f32 %v2310, 1.442695
        %v2416 = vpow.pop %v2415
        %v2417 = vmul.f32 %v2311, 1.442695
        %v2418 = vpow.pop %v2417
        %v2419 = vmul.f32 %v2312, 1.442695
        %v2420 = vpow.pop %v2419
        %v2421 = vmul.f32 %v2313, 1.442695
        %v2422 = vpow.pop %v2421
        %v2423 = vmul.f32 %v2314, 1.442695
        %v2424 = vpow.pop %v2423
        %v2425 = vmul.f32 %v2315, 1.442695
        %v2426 = vpow.pop %v2425
        %v2427 = vmul.f32 %v2316, 1.442695
        %v2428 = vpow.pop %v2427
        %v2429 = vmul.f32 %v2317, 1.442695
        %v2430 = vpow.pop %v2429
        %v2431 = vmul.f32 %v2318, 1.442695
        %v2432 = vpow.pop %v2431
        %v2433 = vmul.f32 %v2319, 1.442695
        %v2434 = vpow.pop %v2433
        %v2435 = vmul.f32 %v2320, 1.442695
        %v2436 = vpow.pop %v2435
        %v2437 = vmul.f32 %v2321, 1.442695
        %v2438 = vpow.pop %v2437
        %v2439 = vmul.f32 %v2322, 1.442695
        %v2440 = vpow.pop %v2439
        %v2441 = vmul.f32 %v2323, 1.442695
        %v2442 = vpow.pop %v2441
        %v2443 = vmul.f32 %v2324, 1.442695
        %v2444 = vpow.pop %v2443
        %v2445 = vmul.f32 %v2325, 1.442695
        %v2446 = vpow.pop %v2445
        %v2447 = vmul.f32 %v2326, 1.442695
        %v2448 = vpow.pop %v2447
        %v2449 = vmul.f32 %v2327, 1.442695
        %v2450 = vpow.pop %v2449
        %v2451 = vmul.f32 %v2328, 1.442695
        %v2452 = vpow.pop %v2451
        %v2453 = vmul.f32 %v2329, 1.442695
        %v2454 = vpow.pop %v2453
        %v2455 = vmul.f32 %v2330, 1.442695
        %v2456 = vpow.pop %v2455
        %v2457 = vmul.f32 %v2331, 1.442695
        %v2458 = vpow.pop %v2457
        %v2459 = vmul.f32 %v2332, 1.442695
        %v2460 = vpow.pop %v2459
        %v2461 = vmul.f32 %v2333, 1.442695
        %v2462 = vpow.pop %v2461
        %v2463 = vmul.f32 %v2334, 1.442695
        %v2464 = vpow.pop %v2463
        %v2465 = vmul.f32 %v2335, 1.442695
        %v2466 = vpow.pop %v2465
        %v2467 = vmul.f32 %v2336, 1.442695
        %v2468 = vpow.pop %v2467
        %v2469 = vmul.f32 %v2337, 1.442695
        %v2470 = vpow.pop %v2469
        %v2471 = vmul.f32 %v2338, 1.442695
        %v2472 = vpow.pop %v2471
        %v2473 = vmul.f32 %v2339, 1.442695
        %v2474 = vpow.pop %v2473
        %v2475 = vmul.f32 %v2340, 1.442695
        %v2476 = vpow.pop %v2475
        %v2477 = vmul.f32 %v2341, 1.442695
        %v2478 = vpow.pop %v2477
        %v2479 = vmul.f32 %v2342, 1.442695
        %v2480 = vpow.pop %v2479
        %v2481 = vmul.f32 %v2343, 1.442695
        %v2482 = vpow.pop %v2481
        %v2483 = vmul.f32 %v2344, 1.442695
        %v2484 = vpow.pop %v2483
        %v2485 = vmul.f32 %v2345, 1.442695
        %v2486 = vpow.pop %v2485
        %v2487 = vmul.f32 %v2346, 1.442695
        %v2488 = vpow.pop %v2487
        %v2489 = vmul.f32 %v2347, 1.442695
        %v2490 = vpow.pop %v2489
        %v2491 = vmul.f32 %v2348, 1.442695
        %v2492 = vpow.pop %v2491
        %v2493 = vmul.f32 %v2349, 1.442695
        %v2494 = vpow.pop %v2493
        %v2495 = vmul.f32 %v2350, 1.442695
        %v2496 = vpow.pop %v2495
        %v2497 = vmul.f32 %v2351, 1.442695
        %v2498 = vpow.pop %v2497
        %v2499 = vmul.f32 %v2352, 1.442695
        %v2500 = vpow.pop %v2499
        %v2501 = vmul.f32 %v2353, 1.442695
        %v2502 = vpow.pop %v2501
        %v2503 = vmul.f32 %v2354, 1.442695
        %v2504 = vpow.pop %v2503
        %v2505 = vmul.f32 %v2355, 1.442695
        %v2506 = vpow.pop %v2505
        %v2507 = vmul.f32 %v2356, 1.442695
        %v2508 = vpow.pop %v2507
        %v2509 = vadd.f32 %v2358, 1.0
        %v2510 = vadd.f32 %v2360, 1.0
        %v2511 = vadd.f32 %v2362, 1.0
        %v2512 = vadd.f32 %v2364, 1.0
        %v2513 = vadd.f32 %v2366, 1.0
        %v2514 = vadd.f32 %v2368, 1.0
        %v2515 = vadd.f32 %v2370, 1.0
        %v2516 = vadd.f32 %v2372, 1.0
        %v2517 = vadd.f32 %v2374, 1.0
        %v2518 = vadd.f32 %v2376, 1.0
        %v2519 = vadd.f32 %v2378, 1.0
        %v2520 = vadd.f32 %v2380, 1.0
        %v2521 = vadd.f32 %v2382, 1.0
        %v2522 = vadd.f32 %v2384, 1.0
        %v2523 = vadd.f32 %v2386, 1.0
        %v2524 = vadd.f32 %v2388, 1.0
        %v2525 = vadd.f32 %v2390, 1.0
        %v2526 = vadd.f32 %v2392, 1.0
        %v2527 = vadd.f32 %v2394, 1.0
        %v2528 = vadd.f32 %v2396, 1.0
        %v2529 = vadd.f32 %v2398, 1.0
        %v2530 = vadd.f32 %v2400, 1.0
        %v2531 = vadd.f32 %v2402, 1.0
        %v2532 = vadd.f32 %v2404, 1.0
        %v2533 = vadd.f32 %v2406, 1.0
        %v2534 = vadd.f32 %v2408, 1.0
        %v2535 = vadd.f32 %v2410, 1.0
        %v2536 = vadd.f32 %v2412, 1.0
        %v2537 = vadd.f32 %v2414, 1.0
        %v2538 = vadd.f32 %v2416, 1.0
        %v2539 = vadd.f32 %v2418, 1.0
        %v2540 = vadd.f32 %v2420, 1.0
        %v2541 = vadd.f32 %v2422, 1.0
        %v2542 = vadd.f32 %v2424, 1.0
        %v2543 = vadd.f32 %v2426, 1.0
        %v2544 = vadd.f32 %v2428, 1.0
        %v2545 = vadd.f32 %v2430, 1.0
        %v2546 = vadd.f32 %v2432, 1.0
        %v2547 = vadd.f32 %v2434, 1.0
        %v2548 = vadd.f32 %v2436, 1.0
        %v2549 = vadd.f32 %v2438, 1.0
        %v2550 = vadd.f32 %v2440, 1.0
        %v2551 = vadd.f32 %v2442, 1.0
        %v2552 = vadd.f32 %v2444, 1.0
        %v2553 = vadd.f32 %v2446, 1.0
        %v2554 = vadd.f32 %v2448, 1.0
        %v2555 = vadd.f32 %v2450, 1.0
        %v2556 = vadd.f32 %v2452, 1.0
        %v2557 = vadd.f32 %v2454, 1.0
        %v2558 = vadd.f32 %v2456, 1.0
        %v2559 = vadd.f32 %v2458, 1.0
        %v2560 = vadd.f32 %v2460, 1.0
        %v2561 = vadd.f32 %v2462, 1.0
        %v2562 = vadd.f32 %v2464, 1.0
        %v2563 = vadd.f32 %v2466, 1.0
        %v2564 = vadd.f32 %v2468, 1.0
        %v2565 = vadd.f32 %v2470, 1.0
        %v2566 = vadd.f32 %v2472, 1.0
        %v2567 = vadd.f32 %v2474, 1.0
        %v2568 = vadd.f32 %v2476, 1.0
        %v2569 = vadd.f32 %v2478, 1.0
        %v2570 = vadd.f32 %v2480, 1.0
        %v2571 = vadd.f32 %v2482, 1.0
        %v2572 = vadd.f32 %v2484, 1.0
        %v2573 = vadd.f32 %v2486, 1.0
        %v2574 = vadd.f32 %v2488, 1.0
        %v2575 = vadd.f32 %v2490, 1.0
        %v2576 = vadd.f32 %v2492, 1.0
        %v2577 = vadd.f32 %v2494, 1.0
        %v2578 = vadd.f32 %v2496, 1.0
        %v2579 = vadd.f32 %v2498, 1.0
        %v2580 = vadd.f32 %v2500, 1.0
        %v2581 = vadd.f32 %v2502, 1.0
        %v2582 = vadd.f32 %v2504, 1.0
        %v2583 = vadd.f32 %v2506, 1.0
        %v2584 = vadd.f32 %v2508, 1.0
        %v2585 = vrcp.pop %v2509
        %v2586 = vmul.f32 1.0, %v2585
        %v2587 = vrcp.pop %v2510
        %v2588 = vmul.f32 1.0, %v2587
        %v2589 = vrcp.pop %v2511
        %v2590 = vmul.f32 1.0, %v2589
        %v2591 = vrcp.pop %v2512
        %v2592 = vmul.f32 1.0, %v2591
        %v2593 = vrcp.pop %v2513
        %v2594 = vmul.f32 1.0, %v2593
        %v2595 = vrcp.pop %v2514
        %v2596 = vmul.f32 1.0, %v2595
        %v2597 = vrcp.pop %v2515
        %v2598 = vmul.f32 1.0, %v2597
        %v2599 = vrcp.pop %v2516
        %v2600 = vmul.f32 1.0, %v2599
        %v2601 = vrcp.pop %v2517
        %v2602 = vmul.f32 1.0, %v2601
        %v2603 = vrcp.pop %v2518
        %v2604 = vmul.f32 1.0, %v2603
        %v2605 = vrcp.pop %v2519
        %v2606 = vmul.f32 1.0, %v2605
        %v2607 = vrcp.pop %v2520
        %v2608 = vmul.f32 1.0, %v2607
        %v2609 = vrcp.pop %v2521
        %v2610 = vmul.f32 1.0, %v2609
        %v2611 = vrcp.pop %v2522
        %v2612 = vmul.f32 1.0, %v2611
        %v2613 = vrcp.pop %v2523
        %v2614 = vmul.f32 1.0, %v2613
        %v2615 = vrcp.pop %v2524
        %v2616 = vmul.f32 1.0, %v2615
        %v2617 = vrcp.pop %v2525
        %v2618 = vmul.f32 1.0, %v2617
        %v2619 = vrcp.pop %v2526
        %v2620 = vmul.f32 1.0, %v2619
        %v2621 = vrcp.pop %v2527
        %v2622 = vmul.f32 1.0, %v2621
        %v2623 = vrcp.pop %v2528
        %v2624 = vmul.f32 1.0, %v2623
        %v2625 = vrcp.pop %v2529
        %v2626 = vmul.f32 1.0, %v2625
        %v2627 = vrcp.pop %v2530
        %v2628 = vmul.f32 1.0, %v2627
        %v2629 = vrcp.pop %v2531
        %v2630 = vmul.f32 1.0, %v2629
        %v2631 = vrcp.pop %v2532
        %v2632 = vmul.f32 1.0, %v2631
        %v2633 = vrcp.pop %v2533
        %v2634 = vmul.f32 1.0, %v2633
        %v2635 = vrcp.pop %v2534
        %v2636 = vmul.f32 1.0, %v2635
        %v2637 = vrcp.pop %v2535
        %v2638 = vmul.f32 1.0, %v2637
        %v2639 = vrcp.pop %v2536
        %v2640 = vmul.f32 1.0, %v2639
        %v2641 = vrcp.pop %v2537
        %v2642 = vmul.f32 1.0, %v2641
        %v2643 = vrcp.pop %v2538
        %v2644 = vmul.f32 1.0, %v2643
        %v2645 = vrcp.pop %v2539
        %v2646 = vmul.f32 1.0, %v2645
        %v2647 = vrcp.pop %v2540
        %v2648 = vmul.f32 1.0, %v2647
        %v2649 = vrcp.pop %v2541
        %v2650 = vmul.f32 1.0, %v2649
        %v2651 = vrcp.pop %v2542
        %v2652 = vmul.f32 1.0, %v2651
        %v2653 = vrcp.pop %v2543
        %v2654 = vmul.f32 1.0, %v2653
        %v2655 = vrcp.pop %v2544
        %v2656 = vmul.f32 1.0, %v2655
        %v2657 = vrcp.pop %v2545
        %v2658 = vmul.f32 1.0, %v2657
        %v2659 = vrcp.pop %v2546
        %v2660 = vmul.f32 1.0, %v2659
        %v2661 = vrcp.pop %v2547
        %v2662 = vmul.f32 1.0, %v2661
        %v2663 = vrcp.pop %v2548
        %v2664 = vmul.f32 1.0, %v2663
        %v2665 = vrcp.pop %v2549
        %v2666 = vmul.f32 1.0, %v2665
        %v2667 = vrcp.pop %v2550
        %v2668 = vmul.f32 1.0, %v2667
        %v2669 = vrcp.pop %v2551
        %v2670 = vmul.f32 1.0, %v2669
        %v2671 = vrcp.pop %v2552
        %v2672 = vmul.f32 1.0, %v2671
        %v2673 = vrcp.pop %v2553
        %v2674 = vmul.f32 1.0, %v2673
        %v2675 = vrcp.pop %v2554
        %v2676 = vmul.f32 1.0, %v2675
        %v2677 = vrcp.pop %v2555
        %v2678 = vmul.f32 1.0, %v2677
        %v2679 = vrcp.pop %v2556
        %v2680 = vmul.f32 1.0, %v2679
        %v2681 = vrcp.pop %v2557
        %v2682 = vmul.f32 1.0, %v2681
        %v2683 = vrcp.pop %v2558
        %v2684 = vmul.f32 1.0, %v2683
        %v2685 = vrcp.pop %v2559
        %v2686 = vmul.f32 1.0, %v2685
        %v2687 = vrcp.pop %v2560
        %v2688 = vmul.f32 1.0, %v2687
        %v2689 = vrcp.pop %v2561
        %v2690 = vmul.f32 1.0, %v2689
        %v2691 = vrcp.pop %v2562
        %v2692 = vmul.f32 1.0, %v2691
        %v2693 = vrcp.pop %v2563
        %v2694 = vmul.f32 1.0, %v2693
        %v2695 = vrcp.pop %v2564
        %v2696 = vmul.f32 1.0, %v2695
        %v2697 = vrcp.pop %v2565
        %v2698 = vmul.f32 1.0, %v2697
        %v2699 = vrcp.pop %v2566
        %v2700 = vmul.f32 1.0, %v2699
        %v2701 = vrcp.pop %v2567
        %v2702 = vmul.f32 1.0, %v2701
        %v2703 = vrcp.pop %v2568
        %v2704 = vmul.f32 1.0, %v2703
        %v2705 = vrcp.pop %v2569
        %v2706 = vmul.f32 1.0, %v2705
        %v2707 = vrcp.pop %v2570
        %v2708 = vmul.f32 1.0, %v2707
        %v2709 = vrcp.pop %v2571
        %v2710 = vmul.f32 1.0, %v2709
        %v2711 = vrcp.pop %v2572
        %v2712 = vmul.f32 1.0, %v2711
        %v2713 = vrcp.pop %v2573
        %v2714 = vmul.f32 1.0, %v2713
        %v2715 = vrcp.pop %v2574
        %v2716 = vmul.f32 1.0, %v2715
        %v2717 = vrcp.pop %v2575
        %v2718 = vmul.f32 1.0, %v2717
        %v2719 = vrcp.pop %v2576
        %v2720 = vmul.f32 1.0, %v2719
        %v2721 = vrcp.pop %v2577
        %v2722 = vmul.f32 1.0, %v2721
        %v2723 = vrcp.pop %v2578
        %v2724 = vmul.f32 1.0, %v2723
        %v2725 = vrcp.pop %v2579
        %v2726 = vmul.f32 1.0, %v2725
        %v2727 = vrcp.pop %v2580
        %v2728 = vmul.f32 1.0, %v2727
        %v2729 = vrcp.pop %v2581
        %v2730 = vmul.f32 1.0, %v2729
        %v2731 = vrcp.pop %v2582
        %v2732 = vmul.f32 1.0, %v2731
        %v2733 = vrcp.pop %v2583
        %v2734 = vmul.f32 1.0, %v2733
        %v2735 = vrcp.pop %v2584
        %v2736 = vmul.f32 1.0, %v2735
        %v2737 = vmax.f32 %v1811, 0.0
        %v2738 = vmax.f32 %v1813, 0.0
        %v2739 = vmax.f32 %v2169, 0.0
        %v2740 = vmax.f32 %v2171, 0.0
        %v2741 = vmax.f32 %v1817, 0.0
        %v2742 = vmax.f32 %v1819, 0.0
        %v2743 = vmax.f32 %v2175, 0.0
        %v2744 = vmax.f32 %v2177, 0.0
        %v2745 = vmax.f32 %v1823, 0.0
        %v2746 = vmax.f32 %v1825, 0.0
        %v2747 = vmax.f32 %v2181, 0.0
        %v2748 = vmax.f32 %v2183, 0.0
        %v2749 = vmax.f32 %v1829, 0.0
        %v2750 = vmax.f32 %v1831, 0.0
        %v2751 = vmax.f32 %v2187, 0.0
        %v2752 = vmax.f32 %v2189, 0.0
        %v2753 = vmax.f32 %v1835, 0.0
        %v2754 = vmax.f32 %v1837, 0.0
        %v2755 = vmax.f32 %v2193, 0.0
        %v2756 = vmax.f32 %v2195, 0.0
        %v2757 = vmax.f32 %v1841, 0.0
        %v2758 = vmax.f32 %v1843, 0.0
        %v2759 = vmax.f32 %v2199, 0.0
        %v2760 = vmax.f32 %v2201, 0.0
        %v2761 = vmax.f32 %v1847, 0.0
        %v2762 = vmax.f32 %v1849, 0.0
        %v2763 = vmax.f32 %v2205, 0.0
        %v2764 = vmax.f32 %v2207, 0.0
        %v2765 = vmax.f32 %v1853, 0.0
        %v2766 = vmax.f32 %v1855, 0.0
        %v2767 = vmax.f32 %v2211, 0.0
        %v2768 = vmax.f32 %v2213, 0.0
        %v2769 = vmax.f32 %v1859, 0.0
        %v2770 = vmax.f32 %v1861, 0.0
        %v2771 = vmax.f32 %v2217, 0.0
        %v2772 = vmax.f32 %v2219, 0.0
        %v2773 = vmax.f32 %v1865, 0.0
        %v2774 = vmax.f32 %v1867, 0.0
        %v2775 = vmax.f32 %v2223, 0.0
        %v2776 = vmax.f32 %v2225, 0.0
        %v2777 = vmax.f32 %v1871, 0.0
        %v2778 = vmax.f32 %v1873, 0.0
        %v2779 = vmax.f32 %v2229, 0.0
        %v2780 = vmax.f32 %v2231, 0.0
        %v2781 = vmax.f32 %v1877, 0.0
        %v2782 = vmax.f32 %v1879, 0.0
        %v2783 = vmax.f32 %v2235, 0.0
        %v2784 = vmax.f32 %v2237, 0.0
        %v2785 = vmax.f32 %v1883, 0.0
        %v2786 = vmax.f32 %v1885, 0.0
        %v2787 = vmax.f32 %v2241, 0.0
        %v2788 = vmax.f32 %v2243, 0.0
        %v2789 = vmax.f32 %v1889, 0.0
        %v2790 = vmax.f32 %v1891, 0.0
        %v2791 = vmax.f32 %v2247, 0.0
        %v2792 = vmax.f32 %v2249, 0.0
        %v2793 = vmax.f32 %v1895, 0.0
        %v2794 = vmax.f32 %v1897, 0.0
        %v2795 = vmax.f32 %v2253, 0.0
        %v2796 = vmax.f32 %v2255, 0.0
        %v2797 = vmax.f32 %v1901, 0.0
        %v2798 = vmax.f32 %v1903, 0.0
        %v2799 = vmax.f32 %v2259, 0.0
        %v2800 = vmax.f32 %v2261, 0.0
        %v2801 = vmax.f32 %v1907, 0.0
        %v2802 = vmax.f32 %v1909, 0.0
        %v2803 = vmax.f32 %v2265, 0.0
        %v2804 = vmax.f32 %v2267, 0.0
        %v2805 = vmax.f32 %v1913, 0.0
        %v2806 = vmax.f32 %v1915, 0.0
        %v2807 = vmax.f32 %v2271, 0.0
        %v2808 = vmax.f32 %v2273, 0.0
        %v2809 = vmax.f32 %v1919, 0.0
        %v2810 = vmax.f32 %v1921, 0.0
        %v2811 = vmax.f32 %v2277, 0.0
        %v2812 = vmax.f32 %v2279, 0.0
        %v2813 = vsub.f32 %v2737, %v219
        %v2814 = vsub.f32 %v2738, %v220
        %v2815 = vsub.f32 %v2739, %v221
        %v2816 = vsub.f32 %v2740, %v222
        %v2817 = vsub.f32 %v2741, %v223
        %v2818 = vsub.f32 %v2742, %v224
        %v2819 = vsub.f32 %v2743, %v225
        %v2820 = vsub.f32 %v2744, %v226
        %v2821 = vsub.f32 %v2745, %v227
        %v2822 = vsub.f32 %v2746, %v228
        %v2823 = vsub.f32 %v2747, %v229
        %v2824 = vsub.f32 %v2748, %v230
        %v2825 = vsub.f32 %v2749, %v231
        %v2826 = vsub.f32 %v2750, %v232
        %v2827 = vsub.f32 %v2751, %v233
        %v2828 = vsub.f32 %v2752, %v234
        %v2829 = vsub.f32 %v2753, %v235
        %v2830 = vsub.f32 %v2754, %v236
        %v2831 = vsub.f32 %v2755, %v237
        %v2832 = vsub.f32 %v2756, %v238
        %v2833 = vsub.f32 %v2757, %v239
        %v2834 = vsub.f32 %v2758, %v240
        %v2835 = vsub.f32 %v2759, %v241
        %v2836 = vsub.f32 %v2760, %v242
        %v2837 = vsub.f32 %v2761, %v243
        %v2838 = vsub.f32 %v2762, %v244
        %v2839 = vsub.f32 %v2763, %v245
        %v2840 = vsub.f32 %v2764, %v246
        %v2841 = vsub.f32 %v2765, %v247
        %v2842 = vsub.f32 %v2766, %v248
        %v2843 = vsub.f32 %v2767, %v249
        %v2844 = vsub.f32 %v2768, %v250
        %v2845 = vsub.f32 %v2769, %v251
        %v2846 = vsub.f32 %v2770, %v252
        %v2847 = vsub.f32 %v2771, %v253
        %v2848 = vsub.f32 %v2772, %v254
        %v2849 = vsub.f32 %v2773, %v255
        %v2850 = vsub.f32 %v2774, %v256
        %v2851 = vsub.f32 %v2775, %v257
        %v2852 = vsub.f32 %v2776, %v258
        %v2853 = vsub.f32 %v2777, %v259
        %v2854 = vsub.f32 %v2778, %v260
        %v2855 = vsub.f32 %v2779, %v261
        %v2856 = vsub.f32 %v2780, %v262
        %v2857 = vsub.f32 %v2781, %v263
        %v2858 = vsub.f32 %v2782, %v264
        %v2859 = vsub.f32 %v2783, %v265
        %v2860 = vsub.f32 %v2784, %v266
        %v2861 = vsub.f32 %v2785, %v267
        %v2862 = vsub.f32 %v2786, %v268
        %v2863 = vsub.f32 %v2787, %v269
        %v2864 = vsub.f32 %v2788, %v270
        %v2865 = vsub.f32 %v2789, %v271
        %v2866 = vsub.f32 %v2790, %v272
        %v2867 = vsub.f32 %v2791, %v273
        %v2868 = vsub.f32 %v2792, %v274
        %v2869 = vsub.f32 %v2793, %v275
        %v2870 = vsub.f32 %v2794, %v276
        %v2871 = vsub.f32 %v2795, %v277
        %v2872 = vsub.f32 %v2796, %v278
        %v2873 = vsub.f32 %v2797, %v279
        %v2874 = vsub.f32 %v2798, %v280
        %v2875 = vsub.f32 %v2799, %v281
        %v2876 = vsub.f32 %v2800, %v282
        %v2877 = vsub.f32 %v2801, %v283
        %v2878 = vsub.f32 %v2802, %v284
        %v2879 = vsub.f32 %v2803, %v285
        %v2880 = vsub.f32 %v2804, %v286
        %v2881 = vsub.f32 %v2805, %v287
        %v2882 = vsub.f32 %v2806, %v288
        %v2883 = vsub.f32 %v2807, %v289
        %v2884 = vsub.f32 %v2808, %v290
        %v2885 = vsub.f32 %v2809, %v291
        %v2886 = vsub.f32 %v2810, %v292
        %v2887 = vsub.f32 %v2811, %v293
        %v2888 = vsub.f32 %v2812, %v294
        %v2889 = vmul.f32 %v2586, %v2813
        %v2890 = vmul.f32 %v2588, %v2814
        %v2891 = vmul.f32 %v2590, %v2815
        %v2892 = vmul.f32 %v2592, %v2816
        %v2893 = vmul.f32 %v2594, %v2817
        %v2894 = vmul.f32 %v2596, %v2818
        %v2895 = vmul.f32 %v2598, %v2819
        %v2896 = vmul.f32 %v2600, %v2820
        %v2897 = vmul.f32 %v2602, %v2821
        %v2898 = vmul.f32 %v2604, %v2822
        %v2899 = vmul.f32 %v2606, %v2823
        %v2900 = vmul.f32 %v2608, %v2824
        %v2901 = vmul.f32 %v2610, %v2825
        %v2902 = vmul.f32 %v2612, %v2826
        %v2903 = vmul.f32 %v2614, %v2827
        %v2904 = vmul.f32 %v2616, %v2828
        %v2905 = vmul.f32 %v2618, %v2829
        %v2906 = vmul.f32 %v2620, %v2830
        %v2907 = vmul.f32 %v2622, %v2831
        %v2908 = vmul.f32 %v2624, %v2832
        %v2909 = vmul.f32 %v2626, %v2833
        %v2910 = vmul.f32 %v2628, %v2834
        %v2911 = vmul.f32 %v2630, %v2835
        %v2912 = vmul.f32 %v2632, %v2836
        %v2913 = vmul.f32 %v2634, %v2837
        %v2914 = vmul.f32 %v2636, %v2838
        %v2915 = vmul.f32 %v2638, %v2839
        %v2916 = vmul.f32 %v2640, %v2840
        %v2917 = vmul.f32 %v2642, %v2841
        %v2918 = vmul.f32 %v2644, %v2842
        %v2919 = vmul.f32 %v2646, %v2843
        %v2920 = vmul.f32 %v2648, %v2844
        %v2921 = vmul.f32 %v2650, %v2845
        %v2922 = vmul.f32 %v2652, %v2846
        %v2923 = vmul.f32 %v2654, %v2847
        %v2924 = vmul.f32 %v2656, %v2848
        %v2925 = vmul.f32 %v2658, %v2849
        %v2926 = vmul.f32 %v2660, %v2850
        %v2927 = vmul.f32 %v2662, %v2851
        %v2928 = vmul.f32 %v2664, %v2852
        %v2929 = vmul.f32 %v2666, %v2853
        %v2930 = vmul.f32 %v2668, %v2854
        %v2931 = vmul.f32 %v2670, %v2855
        %v2932 = vmul.f32 %v2672, %v2856
        %v2933 = vmul.f32 %v2674, %v2857
        %v2934 = vmul.f32 %v2676, %v2858
        %v2935 = vmul.f32 %v2678, %v2859
        %v2936 = vmul.f32 %v2680, %v2860
        %v2937 = vmul.f32 %v2682, %v2861
        %v2938 = vmul.f32 %v2684, %v2862
        %v2939 = vmul.f32 %v2686, %v2863
        %v2940 = vmul.f32 %v2688, %v2864
        %v2941 = vmul.f32 %v2690, %v2865
        %v2942 = vmul.f32 %v2692, %v2866
        %v2943 = vmul.f32 %v2694, %v2867
        %v2944 = vmul.f32 %v2696, %v2868
        %v2945 = vmul.f32 %v2698, %v2869
        %v2946 = vmul.f32 %v2700, %v2870
        %v2947 = vmul.f32 %v2702, %v2871
        %v2948 = vmul.f32 %v2704, %v2872
        %v2949 = vmul.f32 %v2706, %v2873
        %v2950 = vmul.f32 %v2708, %v2874
        %v2951 = vmul.f32 %v2710, %v2875
        %v2952 = vmul.f32 %v2712, %v2876
        %v2953 = vmul.f32 %v2714, %v2877
        %v2954 = vmul.f32 %v2716, %v2878
        %v2955 = vmul.f32 %v2718, %v2879
        %v2956 = vmul.f32 %v2720, %v2880
        %v2957 = vmul.f32 %v2722, %v2881
        %v2958 = vmul.f32 %v2724, %v2882
        %v2959 = vmul.f32 %v2726, %v2883
        %v2960 = vmul.f32 %v2728, %v2884
        %v2961 = vmul.f32 %v2730, %v2885
        %v2962 = vmul.f32 %v2732, %v2886
        %v2963 = vmul.f32 %v2734, %v2887
        %v2964 = vmul.f32 %v2736, %v2888
        %v2965 = vadd.f32 %v2889, %v219
        %v2966 = vadd.f32 %v2890, %v220
        %v2967 = vadd.f32 %v2891, %v221
        %v2968 = vadd.f32 %v2892, %v222
        %v2969 = vadd.f32 %v2893, %v223
        %v2970 = vadd.f32 %v2894, %v224
        %v2971 = vadd.f32 %v2895, %v225
        %v2972 = vadd.f32 %v2896, %v226
        %v2973 = vadd.f32 %v2897, %v227
        %v2974 = vadd.f32 %v2898, %v228
        %v2975 = vadd.f32 %v2899, %v229
        %v2976 = vadd.f32 %v2900, %v230
        %v2977 = vadd.f32 %v2901, %v231
        %v2978 = vadd.f32 %v2902, %v232
        %v2979 = vadd.f32 %v2903, %v233
        %v2980 = vadd.f32 %v2904, %v234
        %v2981 = vadd.f32 %v2905, %v235
        %v2982 = vadd.f32 %v2906, %v236
        %v2983 = vadd.f32 %v2907, %v237
        %v2984 = vadd.f32 %v2908, %v238
        %v2985 = vadd.f32 %v2909, %v239
        %v2986 = vadd.f32 %v2910, %v240
        %v2987 = vadd.f32 %v2911, %v241
        %v2988 = vadd.f32 %v2912, %v242
        %v2989 = vadd.f32 %v2913, %v243
        %v2990 = vadd.f32 %v2914, %v244
        %v2991 = vadd.f32 %v2915, %v245
        %v2992 = vadd.f32 %v2916, %v246
        %v2993 = vadd.f32 %v2917, %v247
        %v2994 = vadd.f32 %v2918, %v248
        %v2995 = vadd.f32 %v2919, %v249
        %v2996 = vadd.f32 %v2920, %v250
        %v2997 = vadd.f32 %v2921, %v251
        %v2998 = vadd.f32 %v2922, %v252
        %v2999 = vadd.f32 %v2923, %v253
        %v3000 = vadd.f32 %v2924, %v254
        %v3001 = vadd.f32 %v2925, %v255
        %v3002 = vadd.f32 %v2926, %v256
        %v3003 = vadd.f32 %v2927, %v257
        %v3004 = vadd.f32 %v2928, %v258
        %v3005 = vadd.f32 %v2929, %v259
        %v3006 = vadd.f32 %v2930, %v260
        %v3007 = vadd.f32 %v2931, %v261
        %v3008 = vadd.f32 %v2932, %v262
        %v3009 = vadd.f32 %v2933, %v263
        %v3010 = vadd.f32 %v2934, %v264
        %v3011 = vadd.f32 %v2935, %v265
        %v3012 = vadd.f32 %v2936, %v266
        %v3013 = vadd.f32 %v2937, %v267
        %v3014 = vadd.f32 %v2938, %v268
        %v3015 = vadd.f32 %v2939, %v269
        %v3016 = vadd.f32 %v2940, %v270
        %v3017 = vadd.f32 %v2941, %v271
        %v3018 = vadd.f32 %v2942, %v272
        %v3019 = vadd.f32 %v2943, %v273
        %v3020 = vadd.f32 %v2944, %v274
        %v3021 = vadd.f32 %v2945, %v275
        %v3022 = vadd.f32 %v2946, %v276
        %v3023 = vadd.f32 %v2947, %v277
        %v3024 = vadd.f32 %v2948, %v278
        %v3025 = vadd.f32 %v2949, %v279
        %v3026 = vadd.f32 %v2950, %v280
        %v3027 = vadd.f32 %v2951, %v281
        %v3028 = vadd.f32 %v2952, %v282
        %v3029 = vadd.f32 %v2953, %v283
        %v3030 = vadd.f32 %v2954, %v284
        %v3031 = vadd.f32 %v2955, %v285
        %v3032 = vadd.f32 %v2956, %v286
        %v3033 = vadd.f32 %v2957, %v287
        %v3034 = vadd.f32 %v2958, %v288
        %v3035 = vadd.f32 %v2959, %v289
        %v3036 = vadd.f32 %v2960, %v290
        %v3037 = vadd.f32 %v2961, %v291
        %v3038 = vadd.f32 %v2962, %v292
        %v3039 = vadd.f32 %v2963, %v293
        %v3040 = vadd.f32 %v2964, %v294
        %3041 = vst [vmem:[%s216] sm:$0xff] %v2965
        %3042 = vst [vmem:[%s216 + $0x8] sm:$0xff] %v2966
        %3043 = vst [vmem:[%s216 + $0x10] sm:$0xff] %v2967
        %3044 = vst [vmem:[%s216 + $0x18] sm:$0xff] %v2968
        %3045 = vst [vmem:[%s216 + $0x20] sm:$0xff] %v2969
        %3046 = vst [vmem:[%s216 + $0x28] sm:$0xff] %v2970
        %3047 = vst [vmem:[%s216 + $0x30] sm:$0xff] %v2971
        %3048 = vst [vmem:[%s216 + $0x38] sm:$0xff] %v2972
        %3049 = vst [vmem:[%s216 + $0x40] sm:$0xff] %v2973
        %3050 = vst [vmem:[%s216 + $0x48] sm:$0xff] %v2974
        %3051 = vst [vmem:[%s216 + $0x50] sm:$0xff] %v2975
        %3052 = vst [vmem:[%s216 + $0x58] sm:$0xff] %v2976
        %3053 = vst [vmem:[%s216 + $0x60] sm:$0xff] %v2977
        %3054 = vst [vmem:[%s216 + $0x68] sm:$0xff] %v2978
        %3055 = vst [vmem:[%s216 + $0x70] sm:$0xff] %v2979
        %3056 = vst [vmem:[%s216 + $0x78] sm:$0xff] %v2980
        %3057 = vst [vmem:[%s216 + $0x80] sm:$0xff] %v2981
        %3058 = vst [vmem:[%s216 + $0x88] sm:$0xff] %v2982
        %3059 = vst [vmem:[%s216 + $0x90] sm:$0xff] %v2983
        %3060 = vst [vmem:[%s216 + $0x98] sm:$0xff] %v2984
        %3061 = vst [vmem:[%s216 + $0xa0] sm:$0xff] %v2985
        %3062 = vst [vmem:[%s216 + $0xa8] sm:$0xff] %v2986
        %3063 = vst [vmem:[%s216 + $0xb0] sm:$0xff] %v2987
        %3064 = vst [vmem:[%s216 + $0xb8] sm:$0xff] %v2988
        %3065 = vst [vmem:[%s216 + $0xc0] sm:$0xff] %v2989
        %3066 = vst [vmem:[%s216 + $0xc8] sm:$0xff] %v2990
        %3067 = vst [vmem:[%s216 + $0xd0] sm:$0xff] %v2991
        %3068 = vst [vmem:[%s216 + $0xd8] sm:$0xff] %v2992
        %3069 = vst [vmem:[%s216 + $0xe0] sm:$0xff] %v2993
        %3070 = vst [vmem:[%s216 + $0xe8] sm:$0xff] %v2994
        %3071 = vst [vmem:[%s216 + $0xf0] sm:$0xff] %v2995
        %3072 = vst [vmem:[%s216 + $0xf8] sm:$0xff] %v2996
        %3073 = vst [vmem:[%s216 + $0x100] sm:$0xff] %v2997
        %3074 = vst [vmem:[%s216 + $0x108] sm:$0xff] %v2998
        %3075 = vst [vmem:[%s216 + $0x110] sm:$0xff] %v2999
        %3076 = vst [vmem:[%s216 + $0x118] sm:$0xff] %v3000
        %3077 = vst [vmem:[%s216 + $0x120] sm:$0xff] %v3001
        %3078 = vst [vmem:[%s216 + $0x128] sm:$0xff] %v3002
        %3079 = vst [vmem:[%s216 + $0x130] sm:$0xff] %v3003
        %3080 = vst [vmem:[%s216 + $0x138] sm:$0xff] %v3004
        %3081 = vst [vmem:[%s216 + $0x140] sm:$0xff] %v3005
        %3082 = vst [vmem:[%s216 + $0x148] sm:$0xff] %v3006
        %3083 = vst [vmem:[%s216 + $0x150] sm:$0xff] %v3007
        %3084 = vst [vmem:[%s216 + $0x158] sm:$0xff] %v3008
        %3085 = vst [vmem:[%s216 + $0x160] sm:$0xff] %v3009
        %3086 = vst [vmem:[%s216 + $0x168] sm:$0xff] %v3010
        %3087 = vst [vmem:[%s216 + $0x170] sm:$0xff] %v3011
        %3088 = vst [vmem:[%s216 + $0x178] sm:$0xff] %v3012
        %3089 = vst [vmem:[%s216 + $0x180] sm:$0xff] %v3013
        %3090 = vst [vmem:[%s216 + $0x188] sm:$0xff] %v3014
        %3091 = vst [vmem:[%s216 + $0x190] sm:$0xff] %v3015
        %3092 = vst [vmem:[%s216 + $0x198] sm:$0xff] %v3016
        %3093 = vst [vmem:[%s216 + $0x1a0] sm:$0xff] %v3017
        %3094 = vst [vmem:[%s216 + $0x1a8] sm:$0xff] %v3018
        %3095 = vst [vmem:[%s216 + $0x1b0] sm:$0xff] %v3019
        %3096 = vst [vmem:[%s216 + $0x1b8] sm:$0xff] %v3020
        %3097 = vst [vmem:[%s216 + $0x1c0] sm:$0xff] %v3021
        %3098 = vst [vmem:[%s216 + $0x1c8] sm:$0xff] %v3022
        %3099 = vst [vmem:[%s216 + $0x1d0] sm:$0xff] %v3023
        %3100 = vst [vmem:[%s216 + $0x1d8] sm:$0xff] %v3024
        %3101 = vst [vmem:[%s216 + $0x1e0] sm:$0xff] %v3025
        %3102 = vst [vmem:[%s216 + $0x1e8] sm:$0xff] %v3026
        %3103 = vst [vmem:[%s216 + $0x1f0] sm:$0xff] %v3027
        %3104 = vst [vmem:[%s216 + $0x1f8] sm:$0xff] %v3028
        %3105 = vst [vmem:[%s216 + $0x200] sm:$0xff] %v3029
        %3106 = vst [vmem:[%s216 + $0x208] sm:$0xff] %v3030
        %3107 = vst [vmem:[%s216 + $0x210] sm:$0xff] %v3031
        %3108 = vst [vmem:[%s216 + $0x218] sm:$0xff] %v3032
        %3109 = vst [vmem:[%s216 + $0x220] sm:$0xff] %v3033
        %3110 = vst [vmem:[%s216 + $0x228] sm:$0xff] %v3034
        %3111 = vst [vmem:[%s216 + $0x230] sm:$0xff] %v3035
        %3112 = vst [vmem:[%s216 + $0x238] sm:$0xff] %v3036
        %3113 = vst [vmem:[%s216 + $0x240] sm:$0xff] %v3037
        %3114 = vst [vmem:[%s216 + $0x248] sm:$0xff] %v3038
        %3115 = vst [vmem:[%s216 + $0x250] sm:$0xff] %v3039
        %3116 = vst [vmem:[%s216 + $0x258] sm:$0xff] %v3040
        %s3117 = sand.u32 %s97, 1
        %s3118 = scalar_lea.sflag [#allocation4], %s3117
        %s3119 = sand.u32 %s97, 1
        %s3120 = smul.addr %s3119, 608
        %s3121 = scalar_lea.vmem [#allocation8], %s3120
        // Predicated region
        $region45: #{tpu_custom_call.1} parent=31 // pred_check
          %p3122 = pneg %p107
        $region46: #{tpu_custom_call.1} parent=31 // pred_check_branch
          %3124 = sbr.rel (%p3122) target = $region48
        $region47: #{tpu_custom_call.1} parent=31 // pred_region
          %s3125 = smul.u32 19, %s21
          %s3127 = ssub.s32 9728, 9728
          %3128 = vsyncadd %s3118, %s3127
          %s3129 = smul.addr %s3125, 4
          %s3130 = smul.addr %s3129, 128
          %s3131 = scalar_lea.hbm %s3, %s3130
          %s3132 = sshll.u32 %s3121, 4
          %s3133 = int_to_ptr.vmem [resolvable:$true] %s3132
          %3138 = dma.vmem_to_hbm [thread:$0]  %s3133, 9728, %s3131, %s3118, 512, 512, 32
        $region48: #{tpu_custom_call.1} parent=31 // pred_fallthru
          _
      $region32: #{tpu_custom_call.1} parent=5 // pred_fallthru
        _
      %p3139 = scmp.le.s32.totalorder 2, %s16
      // Predicated region
      $region49: #{tpu_custom_call.1} parent=5 // pred_check
        %p3140 = pneg %p3139
      $region50: #{tpu_custom_call.1} parent=5 // pred_check_branch
        %3142 = sbr.rel (%p3140) target = $region52
      $region51: #{tpu_custom_call.1} parent=5 // pred_region
        %s3143 = ssub.s32 %s16, 2
        // Predicated region
        $region53: #{tpu_custom_call.1} parent=51 // pred_check
          %p3144 = pneg %p113
        $region54: #{tpu_custom_call.1} parent=51 // pred_check_branch
          %3146 = sbr.rel (%p3144) target = $region56
        $region55: #{tpu_custom_call.1} parent=51 // pred_region
          %s3147 = sand.u32 %s98, 1
          %s3148 = scalar_lea.sflag [#allocation4], %s3147
          %s3149 = sand.u32 %s98, 1
          %s3150 = smul.addr %s3149, 608
          %s3151 = scalar_lea.vmem [#allocation8], %s3150
          %3152 = dma.done %s3148, 9728
        $region56: #{tpu_custom_call.1} parent=51 // pred_fallthru
          _
      $region52: #{tpu_custom_call.1} parent=5 // pred_fallthru
        _
    $region6: #{tpu_custom_call.1} parent=1 // loop_footer
      %s20 = sadd.s32 1, %s16
    $region7: #{tpu_custom_call.1} parent=1 // loop_footer_branch
      %15 = sbr.rel target = $region3
    $region8: #{tpu_custom_call.1} parent=1 // loop_exit
      _
    %3153 = vsyncpa [#allocation3], 1
    %s3154 = scalar_lea.sflag [#allocation3], 1
    %3155 = vsyncpa %s3154, 1
    %3156 = vsyncpa [#allocation6], 1
    %3157 = vsyncpa [#allocation4], 1
    %s3158 = scalar_lea.sflag [#allocation4], 1
    %3159 = vsyncpa %s3158, 1

</llo_original>
